<compile_context>
chip_gen: v7x
topology: tpu7x:2x2x1
jax: 0.10.0
libtpu: 0.0.40
codegen_flags: <defaults>
</compile_context>

<pallas_src>
import jax
import jax.numpy as jnp
from jax.experimental import pallas as pl
from jax.experimental.pallas import tpu as pltpu

LEAKY_SLOPE = 0.01  # nn.LeakyReLU() default negative_slope


def _leaky_relu(x):
    return jnp.where(x >= 0, x, LEAKY_SLOPE * x)


def _conv1d_leaky(x, w_ref, b_ref):
    """Valid 1-D conv (stride 1) + LeakyReLU as K accumulated MXU matmuls.

    x: (L_in, TB, Cin) f32 value; w_ref: (K, Cin, Cout) bf16 ref; b_ref: (1, Cout) f32 ref.
    Returns (L_in - K + 1, TB, Cout) f32.  Tap-accumulation avoids the lane-offset
    im2col concat (XLU rotates) — the extra MXU pushes are free in the CNN phase.
    """
    k_size, cin, cout = w_ref.shape
    l_in, tb, _ = x.shape
    l_out = l_in - k_size + 1
    xb = x.astype(jnp.bfloat16)                       # bf16 MXU operands, f32 accumulation
    acc = jnp.zeros((l_out * tb, cout), jnp.float32)
    for k in range(k_size):
        acc = acc + jnp.dot(xb[k:k + l_out].reshape(l_out * tb, cin), w_ref[k],
                            preferred_element_type=jnp.float32)
    return _leaky_relu(acc + b_ref[...]).reshape(l_out, tb, cout)


def _maxpool_k2_s2_p1(x):
    """nn.MaxPool1d(kernel=2, stride=2, padding=1) along axis 0 of (L, TB, C).

    Window j covers original positions [2j-1, 2j]; the -inf padding never wins,
    so the first (and, for even L, the last) window reduce to a single element.
    Implemented with unit-stride slices + a leading-axis regroup (no strided ops).
    """
    l_in, tb, c = x.shape
    l_out = l_in // 2 + 1
    n_mid = (l_in - 1) // 2
    pieces = [x[0:1]]                                  # window [-pad, x0] == x0
    if n_mid > 0:
        mid = x[1:1 + 2 * n_mid].reshape(n_mid, 2, tb, c)
        pieces.append(jnp.maximum(mid[:, 0], mid[:, 1]))
    if 1 + n_mid < l_out:                              # even L: last window only sees x[-1]
        pieces.append(x[l_in - 1:l_in])
    return jnp.concatenate(pieces, axis=0)


def lstm_cnn_kernel(x_ref, w1_ref, b1_ref, w2_ref, b2_ref, w3_ref, b3_ref,
                    wih_ref, whh_ref, blstm_ref, wout_ref, bout_ref,
                    out_ref, hseq_ref):
    num_layers = whh_ref.shape[0]
    hidden = whh_ref.shape[1]

    x = x_ref[...].astype(jnp.float32)                 # (L, TB, 12)
    tb = x.shape[1]

    y = _maxpool_k2_s2_p1(_conv1d_leaky(x, w1_ref, b1_ref))
    y = _maxpool_k2_s2_p1(_conv1d_leaky(y, w2_ref, b2_ref))
    y = _maxpool_k2_s2_p1(_conv1d_leaky(y, w3_ref, b3_ref))   # (T, TB, 32)
    t_len = y.shape[0]

    h = jnp.zeros((tb, hidden), jnp.float32)
    c = jnp.zeros((tb, hidden), jnp.float32)
    # TODO(synk): for long T convert the unrolled timestep loop + the live gx value into a
    # lax.fori_loop over a VMEM gx scratch to bound live ranges (fine at T=5).
    for layer in range(num_layers):
        if layer == 0:
            seq_flat = y.astype(jnp.bfloat16).reshape(t_len * tb, y.shape[-1])
        else:
            seq_flat = hseq_ref[...].astype(jnp.bfloat16).reshape(t_len * tb, hidden)
        # Input projection for ALL timesteps at once (off the serial critical path).
        gx = jnp.dot(seq_flat, wih_ref[layer],
                     preferred_element_type=jnp.float32) + blstm_ref[layer]
        gx = gx.reshape(t_len, tb, 4 * hidden)
        whh_l = whh_ref[layer]                          # (H, 4H) bf16
        h = jnp.zeros((tb, hidden), jnp.float32)
        c = jnp.zeros((tb, hidden), jnp.float32)
        for t in range(t_len):
            # One (TB, H) x (H, 4H) bf16 MXU push per step; N=4H fills the MXU width.
            gates = gx[t] + jnp.dot(h.astype(jnp.bfloat16), whh_l,
                                    preferred_element_type=jnp.float32)
            # Gate columns were reordered to (i, f, o, g) in the wrapper:
            # one contiguous sigmoid over 3H lanes + one tanh over H lanes
            # (~2x less EUP work per step than tanh+sigmoid+select everywhere).
            sig = jax.nn.sigmoid(gates[:, :3 * hidden])
            g_g = jnp.tanh(gates[:, 3 * hidden:])
            i_g = sig[:, :hidden]
            f_g = sig[:, hidden:2 * hidden]
            o_g = sig[:, 2 * hidden:]
            c = f_g * c + i_g * g_g
            h = o_g * jnp.tanh(c)
            if layer + 1 < num_layers:
                hseq_ref[t] = h                         # next layer's input, no concat relayout

    # torch.cat((h_n[-1], c_n[-1]), dim=1) @ Wout without the lane concat:
    # split Wout row-blocks (static, sublane-aligned slices) and sum two small matmuls.
    logits = (jnp.dot(h, wout_ref[:hidden, :], preferred_element_type=jnp.float32)
              + jnp.dot(c, wout_ref[hidden:, :], preferred_element_type=jnp.float32)
              + bout_ref[...])
    out_ref[...] = logits.astype(out_ref.dtype)         # lane-dense (TB, 128) store
    # TODO(synk): nn.Dropout is constructed but never applied in forward() (and LSTM
    # dropout only acts between layers in training); intentionally omitted.


def _seq_len_after_cnn(length):
    l = length - 8          # conv1, k=9
    l = l // 2 + 1          # maxpool(2, 2, padding=1)
    l = l - 4               # conv2, k=5
    l = l // 2 + 1
    l = l - 4               # conv3, k=5
    l = l // 2 + 1
    return l


def _choose_batch_tile(batch):
    rounded = ((batch + 7) // 8) * 8        # sublane-aligned: (L*TB, C) reshapes stay free
    if batch >= 16:
        # >=2 grid steps so both v7x TensorCores take a 'parallel' tile; cap at 128 so the
        # conv slabs / gx / scratch stay well inside v7x's 64 MiB VMEM.  On single-TC
        # v5e/v6e pass batch_tile=<rounded whole batch> explicitly for one big tile.
        return min(128, ((rounded // 2) + 7) // 8 * 8)
    return rounded


def _reorder_gate_cols(w, hidden):
    """Last-axis reorder from PyTorch LSTM gate order (i, f, g, o) to (i, f, o, g)
    so the sigmoid-activated gates occupy one contiguous lane range in-kernel."""
    i = w[..., 0 * hidden:1 * hidden]
    f = w[..., 1 * hidden:2 * hidden]
    g = w[..., 2 * hidden:3 * hidden]
    o = w[..., 3 * hidden:4 * hidden]
    return jnp.concatenate([i, f, o, g], axis=-1)


def lstm_cnn_forward(x, params, *, hidden, num_layers, num_classes, batch_tile=None):
    batch, length, cin = x.shape
    assert cin == 12
    t_len = _seq_len_after_cnn(length)
    assert t_len >= 1, "input length too short for the conv/pool stack"
    # Stacked (num_layers, 32, 4H) wih requires layer inputs (=hidden) == 32 for layers > 0.
    assert num_layers == 1 or hidden == params["wih"].shape[1]

    if batch_tile is None:
        batch_tile = _choose_batch_tile(batch)
    grid_n = pl.cdiv(batch, batch_tile)
    padded_batch = grid_n * batch_tile
    if grid_n > 1:
        assert batch_tile % 8 == 0

    # Contiguous per-grid-step input slab: (grid_n, L, TB, 12).  Each tile's fetch is one
    # large DMA instead of 48-byte strided runs through the middle batch axis.
    xp = x
    if padded_batch != batch:
        xp = jnp.pad(x, ((0, padded_batch - batch), (0, 0), (0, 0)))
    xg = jnp.transpose(xp.reshape(grid_n, batch_tile, length, cin), (0, 2, 1, 3))

    bf16 = jnp.bfloat16
    w1 = params["w1"].astype(bf16)
    w2 = params["w2"].astype(bf16)
    w3 = params["w3"].astype(bf16)
    # bf16 matmul operands change numerics slightly vs. the f32 PyTorch reference
    # (gate behind a tolerance check if bit-closeness matters).
    wih = _reorder_gate_cols(params["wih"], hidden).astype(bf16)
    whh = _reorder_gate_cols(params["whh"], hidden).astype(bf16)
    blstm = _reorder_gate_cols(params["blstm"], hidden)

    # Lane-dense classifier output: pad to a multiple of 128 output columns.
    c_pad = max(128, ((num_classes + 127) // 128) * 128)
    wout = jnp.pad(params["wout"], ((0, 0), (0, c_pad - num_classes)))
    bout = jnp.pad(params["bout"], ((0, 0), (0, c_pad - num_classes)))

    weight_args = [w1, params["b1"], w2, params["b2"], w3, params["b3"],
                   wih, whh, blstm, wout, bout]

    def _whole(a):
        return pl.BlockSpec(a.shape, lambda b, _n=a.ndim: (0,) * _n)

    in_specs = ([pl.BlockSpec((pl.Squeezed(), length, batch_tile, cin),
                              lambda b: (b, 0, 0, 0))]
                + [_whole(a) for a in weight_args])
    out_spec = pl.BlockSpec((batch_tile, c_pad), lambda b: (b, 0))

    # Advisory cost hint (transcendentals reflect the sliced gate activations: 5H/step).
    l1 = length - 8
    l2 = (l1 // 2 + 1) - 4
    l3 = (l2 // 2 + 1) - 4
    flops = padded_batch * (
        2 * l1 * (9 * cin) * 32 + 2 * l2 * (5 * 32) * 64 + 2 * l3 * (5 * 64) * 32
        + num_layers * 2 * t_len * (32 + hidden) * 4 * hidden
        + 2 * 2 * hidden * c_pad)
    transcendentals = padded_batch * num_layers * t_len * 5 * hidden
    bytes_accessed = (int(xg.size) * xg.dtype.itemsize
                      + padded_batch * c_pad * 4
                      + sum(int(a.size) * a.dtype.itemsize for a in weight_args))

    out = pl.pallas_call(
        lstm_cnn_kernel,
        grid=(grid_n,),
        in_specs=in_specs,
        out_specs=out_spec,
        out_shape=jax.ShapeDtypeStruct((padded_batch, c_pad), jnp.float32),
        scratch_shapes=[pltpu.VMEM((t_len, batch_tile, hidden), jnp.float32)],
        # Default scoped VMEM (32 MiB) is ample for these tile sizes; raise
        # vmem_limit_bytes here if length/batch_tile grow substantially.
        compiler_params=pltpu.CompilerParams(dimension_semantics=("parallel",)),
        cost_estimate=pl.CostEstimate(flops=int(flops),
                                      transcendentals=int(transcendentals),
                                      bytes_accessed=int(bytes_accessed)),
    )(xg, *weight_args)
    return out[:batch, :num_classes]                     # (B, num_classes)


def init_params(key, hidden, num_layers, num_classes):
    if num_layers > 1:
        # Stacked layers share one (num_layers, 32, 4H) wih array, so layer inputs
        # (= hidden) must equal 32 — a model-shape restriction of this packing.
        assert hidden == 32
    ks = jax.random.split(key, 11)
    scale = 0.1

    def rnd(k, shape):
        return scale * jax.random.normal(k, shape, jnp.float32)

    return {
        # Conv1d(12, 32, 9): torch weight (32, 12, 9) -> permute(2, 1, 0) = (9, 12, 32)
        "w1": rnd(ks[0], (9, 12, 32)),
        "b1": rnd(ks[1], (1, 32)),
        # Conv1d(32, 64, 5)
        "w2": rnd(ks[2], (5, 32, 64)),
        "b2": rnd(ks[3], (1, 64)),
        # Conv1d(64, 32, 5)
        "w3": rnd(ks[4], (5, 64, 32)),
        "b3": rnd(ks[5], (1, 32)),
        # LSTM (PyTorch gate order i,f,g,o): weight_ih_l{k} (4H, in) -> (in, 4H);
        # weight_hh_l{k} (4H, H) -> (H, 4H); bias = b_ih + b_hh folded as (1, 4H)
        "wih": rnd(ks[6], (num_layers, 32, 4 * hidden)),
        "whh": rnd(ks[7], (num_layers, hidden, 4 * hidden)),
        "blstm": rnd(ks[8], (num_layers, 1, 4 * hidden)),
        # Linear(2*hidden, num_classes): torch (C, 2H) -> (2H, C)
        "wout": rnd(ks[9], (2 * hidden, num_classes)),
        "bout": rnd(ks[10], (1, num_classes)),
    }


if __name__ == "__main__":
    hidden = 32
    num_layers = 2
    num_classes = 5
    batch, length = 2, 64   # seq lengths: 64 ->56 ->29 ->25 ->13 ->9 ->5 (LSTM T=5)

    key = jax.random.PRNGKey(0)
    kx, kp = jax.random.split(key)
    x = jax.random.normal(kx, (batch, length, 12), jnp.float32)
    params = init_params(kp, hidden, num_layers, num_classes)

    out = lstm_cnn_forward(x, params, hidden=hidden, num_layers=num_layers,
                           num_classes=num_classes)
    out = jax.block_until_ready(out)
    assert out.shape == (batch, num_classes)
    assert bool(jnp.all(jnp.isfinite(out)))
    print("KERNEL_OK")
</pallas_src>

<mosaic_0001>
module attributes {stable_mosaic.version = 11 : i64} {
  func.func @lstm_cnn_kernel(%arg0: i32, %arg1: memref<1x64x8x12xf32, #tpu.memory_space<vmem>>, %arg2: memref<9x12x32xbf16, #tpu.memory_space<vmem>>, %arg3: memref<1x32xf32, #tpu.memory_space<vmem>>, %arg4: memref<5x32x64xbf16, #tpu.memory_space<vmem>>, %arg5: memref<1x64xf32, #tpu.memory_space<vmem>>, %arg6: memref<5x64x32xbf16, #tpu.memory_space<vmem>>, %arg7: memref<1x32xf32, #tpu.memory_space<vmem>>, %arg8: memref<2x32x128xbf16, #tpu.memory_space<vmem>>, %arg9: memref<2x32x128xbf16, #tpu.memory_space<vmem>>, %arg10: memref<2x1x128xf32, #tpu.memory_space<vmem>>, %arg11: memref<64x128xf32, #tpu.memory_space<vmem>>, %arg12: memref<1x128xf32, #tpu.memory_space<vmem>>, %arg13: memref<8x128xf32, #tpu.memory_space<vmem>>, %arg14: memref<5x8x32xf32, #tpu.memory_space<vmem>>) attributes {dimension_semantics = [#tpu.dimension_semantics<parallel>], iteration_bounds = array<i64: 1>, scalar_prefetch = 0 : i64, scratch_operands = 1 : i64, tpu.core_type = #tpu.core_type<tc>, window_params = [{transform_indices = @transform_0, window_bounds = array<i64: 1, 64, 8, 12>}, {pipeline_mode = #tpu.pipeline_mode<synchronous>, transform_indices = @transform_1, window_bounds = array<i64: 9, 12, 32>}, {pipeline_mode = #tpu.pipeline_mode<synchronous>, transform_indices = @transform_2, window_bounds = array<i64: 1, 32>}, {pipeline_mode = #tpu.pipeline_mode<synchronous>, transform_indices = @transform_3, window_bounds = array<i64: 5, 32, 64>}, {pipeline_mode = #tpu.pipeline_mode<synchronous>, transform_indices = @transform_4, window_bounds = array<i64: 1, 64>}, {pipeline_mode = #tpu.pipeline_mode<synchronous>, transform_indices = @transform_5, window_bounds = array<i64: 5, 64, 32>}, {pipeline_mode = #tpu.pipeline_mode<synchronous>, transform_indices = @transform_6, window_bounds = array<i64: 1, 32>}, {pipeline_mode = #tpu.pipeline_mode<synchronous>, transform_indices = @transform_7, window_bounds = array<i64: 2, 32, 128>}, {pipeline_mode = #tpu.pipeline_mode<synchronous>, transform_indices = @transform_8, window_bounds = array<i64: 2, 32, 128>}, {pipeline_mode = #tpu.pipeline_mode<synchronous>, transform_indices = @transform_9, window_bounds = array<i64: 2, 1, 128>}, {pipeline_mode = #tpu.pipeline_mode<synchronous>, transform_indices = @transform_10, window_bounds = array<i64: 64, 128>}, {pipeline_mode = #tpu.pipeline_mode<synchronous>, transform_indices = @transform_11, window_bounds = array<i64: 1, 128>}, {transform_indices = @transform_12, window_bounds = array<i64: 8, 128>}]} {
    %c0 = arith.constant 0 : index
    %c0_0 = arith.constant 0 : index
    %c0_1 = arith.constant 0 : index
    %c0_2 = arith.constant 0 : index
    %0 = vector.load %arg1[%c0, %c0_0, %c0_1, %c0_2] : memref<1x64x8x12xf32, #tpu.memory_space<vmem>>, vector<1x64x8x12xf32>
    %1 = vector.shape_cast %0 : vector<1x64x8x12xf32> to vector<64x8x12xf32>
    %2 = arith.truncf %1 : vector<64x8x12xf32> to vector<64x8x12xbf16>
    %cst = arith.constant 0.000000e+00 : f32
    %3 = vector.broadcast %cst : f32 to vector<448x32xf32>
    %4 = vector.extract_strided_slice %2 {offsets = [0, 0, 0], sizes = [56, 8, 12], strides = [1, 1, 1]} : vector<64x8x12xbf16> to vector<56x8x12xbf16>
    %5 = vector.shape_cast %4 : vector<56x8x12xbf16> to vector<448x12xbf16>
    %c0_3 = arith.constant 0 : index
    %c0_4 = arith.constant 0 : index
    %c0_5 = arith.constant 0 : index
    %6 = vector.load %arg2[%c0_3, %c0_4, %c0_5] : memref<9x12x32xbf16, #tpu.memory_space<vmem>>, vector<1x12x32xbf16>
    %7 = vector.shape_cast %6 : vector<1x12x32xbf16> to vector<12x32xbf16>
    %cst_6 = arith.constant dense<0.000000e+00> : vector<448x32xf32>
    %8 = tpu.matmul %5, %7, %cst_6 {dimension_numbers = #tpu.dot_dimension_numbers<[1], [0], [0], [1], [0, 0, 1, 1], [], []>} : vector<448x12xbf16>, vector<12x32xbf16>, vector<448x32xf32> -> vector<448x32xf32>
    %9 = arith.addf %3, %8 : vector<448x32xf32>
    %10 = vector.extract_strided_slice %2 {offsets = [1, 0, 0], sizes = [56, 8, 12], strides = [1, 1, 1]} : vector<64x8x12xbf16> to vector<56x8x12xbf16>
    %11 = vector.shape_cast %10 : vector<56x8x12xbf16> to vector<448x12xbf16>
    %c1 = arith.constant 1 : index
    %c0_7 = arith.constant 0 : index
    %c0_8 = arith.constant 0 : index
    %12 = vector.load %arg2[%c1, %c0_7, %c0_8] : memref<9x12x32xbf16, #tpu.memory_space<vmem>>, vector<1x12x32xbf16>
    %13 = vector.shape_cast %12 : vector<1x12x32xbf16> to vector<12x32xbf16>
    %cst_9 = arith.constant dense<0.000000e+00> : vector<448x32xf32>
    %14 = tpu.matmul %11, %13, %cst_9 {dimension_numbers = #tpu.dot_dimension_numbers<[1], [0], [0], [1], [0, 0, 1, 1], [], []>} : vector<448x12xbf16>, vector<12x32xbf16>, vector<448x32xf32> -> vector<448x32xf32>
    %15 = arith.addf %9, %14 : vector<448x32xf32>
    %16 = vector.extract_strided_slice %2 {offsets = [2, 0, 0], sizes = [56, 8, 12], strides = [1, 1, 1]} : vector<64x8x12xbf16> to vector<56x8x12xbf16>
    %17 = vector.shape_cast %16 : vector<56x8x12xbf16> to vector<448x12xbf16>
    %c2 = arith.constant 2 : index
    %c0_10 = arith.constant 0 : index
    %c0_11 = arith.constant 0 : index
    %18 = vector.load %arg2[%c2, %c0_10, %c0_11] : memref<9x12x32xbf16, #tpu.memory_space<vmem>>, vector<1x12x32xbf16>
    %19 = vector.shape_cast %18 : vector<1x12x32xbf16> to vector<12x32xbf16>
    %cst_12 = arith.constant dense<0.000000e+00> : vector<448x32xf32>
    %20 = tpu.matmul %17, %19, %cst_12 {dimension_numbers = #tpu.dot_dimension_numbers<[1], [0], [0], [1], [0, 0, 1, 1], [], []>} : vector<448x12xbf16>, vector<12x32xbf16>, vector<448x32xf32> -> vector<448x32xf32>
    %21 = arith.addf %15, %20 : vector<448x32xf32>
    %22 = vector.extract_strided_slice %2 {offsets = [3, 0, 0], sizes = [56, 8, 12], strides = [1, 1, 1]} : vector<64x8x12xbf16> to vector<56x8x12xbf16>
    %23 = vector.shape_cast %22 : vector<56x8x12xbf16> to vector<448x12xbf16>
    %c3 = arith.constant 3 : index
    %c0_13 = arith.constant 0 : index
    %c0_14 = arith.constant 0 : index
    %24 = vector.load %arg2[%c3, %c0_13, %c0_14] : memref<9x12x32xbf16, #tpu.memory_space<vmem>>, vector<1x12x32xbf16>
    %25 = vector.shape_cast %24 : vector<1x12x32xbf16> to vector<12x32xbf16>
    %cst_15 = arith.constant dense<0.000000e+00> : vector<448x32xf32>
    %26 = tpu.matmul %23, %25, %cst_15 {dimension_numbers = #tpu.dot_dimension_numbers<[1], [0], [0], [1], [0, 0, 1, 1], [], []>} : vector<448x12xbf16>, vector<12x32xbf16>, vector<448x32xf32> -> vector<448x32xf32>
    %27 = arith.addf %21, %26 : vector<448x32xf32>
    %28 = vector.extract_strided_slice %2 {offsets = [4, 0, 0], sizes = [56, 8, 12], strides = [1, 1, 1]} : vector<64x8x12xbf16> to vector<56x8x12xbf16>
    %29 = vector.shape_cast %28 : vector<56x8x12xbf16> to vector<448x12xbf16>
    %c4 = arith.constant 4 : index
    %c0_16 = arith.constant 0 : index
    %c0_17 = arith.constant 0 : index
    %30 = vector.load %arg2[%c4, %c0_16, %c0_17] : memref<9x12x32xbf16, #tpu.memory_space<vmem>>, vector<1x12x32xbf16>
    %31 = vector.shape_cast %30 : vector<1x12x32xbf16> to vector<12x32xbf16>
    %cst_18 = arith.constant dense<0.000000e+00> : vector<448x32xf32>
    %32 = tpu.matmul %29, %31, %cst_18 {dimension_numbers = #tpu.dot_dimension_numbers<[1], [0], [0], [1], [0, 0, 1, 1], [], []>} : vector<448x12xbf16>, vector<12x32xbf16>, vector<448x32xf32> -> vector<448x32xf32>
    %33 = arith.addf %27, %32 : vector<448x32xf32>
    %34 = vector.extract_strided_slice %2 {offsets = [5, 0, 0], sizes = [56, 8, 12], strides = [1, 1, 1]} : vector<64x8x12xbf16> to vector<56x8x12xbf16>
    %35 = vector.shape_cast %34 : vector<56x8x12xbf16> to vector<448x12xbf16>
    %c5 = arith.constant 5 : index
    %c0_19 = arith.constant 0 : index
    %c0_20 = arith.constant 0 : index
    %36 = vector.load %arg2[%c5, %c0_19, %c0_20] : memref<9x12x32xbf16, #tpu.memory_space<vmem>>, vector<1x12x32xbf16>
    %37 = vector.shape_cast %36 : vector<1x12x32xbf16> to vector<12x32xbf16>
    %cst_21 = arith.constant dense<0.000000e+00> : vector<448x32xf32>
    %38 = tpu.matmul %35, %37, %cst_21 {dimension_numbers = #tpu.dot_dimension_numbers<[1], [0], [0], [1], [0, 0, 1, 1], [], []>} : vector<448x12xbf16>, vector<12x32xbf16>, vector<448x32xf32> -> vector<448x32xf32>
    %39 = arith.addf %33, %38 : vector<448x32xf32>
    %40 = vector.extract_strided_slice %2 {offsets = [6, 0, 0], sizes = [56, 8, 12], strides = [1, 1, 1]} : vector<64x8x12xbf16> to vector<56x8x12xbf16>
    %41 = vector.shape_cast %40 : vector<56x8x12xbf16> to vector<448x12xbf16>
    %c6 = arith.constant 6 : index
    %c0_22 = arith.constant 0 : index
    %c0_23 = arith.constant 0 : index
    %42 = vector.load %arg2[%c6, %c0_22, %c0_23] : memref<9x12x32xbf16, #tpu.memory_space<vmem>>, vector<1x12x32xbf16>
    %43 = vector.shape_cast %42 : vector<1x12x32xbf16> to vector<12x32xbf16>
    %cst_24 = arith.constant dense<0.000000e+00> : vector<448x32xf32>
    %44 = tpu.matmul %41, %43, %cst_24 {dimension_numbers = #tpu.dot_dimension_numbers<[1], [0], [0], [1], [0, 0, 1, 1], [], []>} : vector<448x12xbf16>, vector<12x32xbf16>, vector<448x32xf32> -> vector<448x32xf32>
    %45 = arith.addf %39, %44 : vector<448x32xf32>
    %46 = vector.extract_strided_slice %2 {offsets = [7, 0, 0], sizes = [56, 8, 12], strides = [1, 1, 1]} : vector<64x8x12xbf16> to vector<56x8x12xbf16>
    %47 = vector.shape_cast %46 : vector<56x8x12xbf16> to vector<448x12xbf16>
    %c7 = arith.constant 7 : index
    %c0_25 = arith.constant 0 : index
    %c0_26 = arith.constant 0 : index
    %48 = vector.load %arg2[%c7, %c0_25, %c0_26] : memref<9x12x32xbf16, #tpu.memory_space<vmem>>, vector<1x12x32xbf16>
    %49 = vector.shape_cast %48 : vector<1x12x32xbf16> to vector<12x32xbf16>
    %cst_27 = arith.constant dense<0.000000e+00> : vector<448x32xf32>
    %50 = tpu.matmul %47, %49, %cst_27 {dimension_numbers = #tpu.dot_dimension_numbers<[1], [0], [0], [1], [0, 0, 1, 1], [], []>} : vector<448x12xbf16>, vector<12x32xbf16>, vector<448x32xf32> -> vector<448x32xf32>
    %51 = arith.addf %45, %50 : vector<448x32xf32>
    %52 = vector.extract_strided_slice %2 {offsets = [8, 0, 0], sizes = [56, 8, 12], strides = [1, 1, 1]} : vector<64x8x12xbf16> to vector<56x8x12xbf16>
    %53 = vector.shape_cast %52 : vector<56x8x12xbf16> to vector<448x12xbf16>
    %c8 = arith.constant 8 : index
    %c0_28 = arith.constant 0 : index
    %c0_29 = arith.constant 0 : index
    %54 = vector.load %arg2[%c8, %c0_28, %c0_29] : memref<9x12x32xbf16, #tpu.memory_space<vmem>>, vector<1x12x32xbf16>
    %55 = vector.shape_cast %54 : vector<1x12x32xbf16> to vector<12x32xbf16>
    %cst_30 = arith.constant dense<0.000000e+00> : vector<448x32xf32>
    %56 = tpu.matmul %53, %55, %cst_30 {dimension_numbers = #tpu.dot_dimension_numbers<[1], [0], [0], [1], [0, 0, 1, 1], [], []>} : vector<448x12xbf16>, vector<12x32xbf16>, vector<448x32xf32> -> vector<448x32xf32>
    %57 = arith.addf %51, %56 : vector<448x32xf32>
    %c0_31 = arith.constant 0 : index
    %c0_32 = arith.constant 0 : index
    %58 = vector.load %arg3[%c0_31, %c0_32] : memref<1x32xf32, #tpu.memory_space<vmem>>, vector<1x32xf32>
    %59 = vector.broadcast %58 : vector<1x32xf32> to vector<448x32xf32>
    %60 = arith.addf %57, %59 : vector<448x32xf32>
    %cst_33 = arith.constant 0.000000e+00 : f32
    %61 = vector.broadcast %cst_33 : f32 to vector<448x32xf32>
    %62 = arith.cmpf oge, %60, %61 : vector<448x32xf32>
    %cst_34 = arith.constant 0.00999999977 : f32
    %63 = vector.broadcast %cst_34 : f32 to vector<448x32xf32>
    %64 = arith.mulf %63, %60 : vector<448x32xf32>
    %65 = arith.select %62, %60, %64 : vector<448x32xi1>, vector<448x32xf32>
    %66 = vector.shape_cast %65 : vector<448x32xf32> to vector<56x8x32xf32>
    %67 = vector.extract_strided_slice %66 {offsets = [0, 0, 0], sizes = [1, 8, 32], strides = [1, 1, 1]} : vector<56x8x32xf32> to vector<1x8x32xf32>
    %68 = vector.extract_strided_slice %66 {offsets = [1, 0, 0], sizes = [54, 8, 32], strides = [1, 1, 1]} : vector<56x8x32xf32> to vector<54x8x32xf32>
    %69 = vector.shape_cast %68 : vector<54x8x32xf32> to vector<27x2x8x32xf32>
    %70 = vector.extract_strided_slice %69 {offsets = [0, 0, 0, 0], sizes = [27, 1, 8, 32], strides = [1, 1, 1, 1]} : vector<27x2x8x32xf32> to vector<27x1x8x32xf32>
    %71 = vector.shape_cast %70 : vector<27x1x8x32xf32> to vector<27x8x32xf32>
    %72 = vector.extract_strided_slice %69 {offsets = [0, 1, 0, 0], sizes = [27, 1, 8, 32], strides = [1, 1, 1, 1]} : vector<27x2x8x32xf32> to vector<27x1x8x32xf32>
    %73 = vector.shape_cast %72 : vector<27x1x8x32xf32> to vector<27x8x32xf32>
    %74 = arith.maximumf %71, %73 : vector<27x8x32xf32>
    %75 = vector.extract_strided_slice %66 {offsets = [55, 0, 0], sizes = [1, 8, 32], strides = [1, 1, 1]} : vector<56x8x32xf32> to vector<1x8x32xf32>
    %76 = tpu.concatenate %67, %74, %75 in 0 : vector<1x8x32xf32>, vector<27x8x32xf32>, vector<1x8x32xf32> -> vector<29x8x32xf32>
    %77 = arith.truncf %76 : vector<29x8x32xf32> to vector<29x8x32xbf16>
    %cst_35 = arith.constant 0.000000e+00 : f32
    %78 = vector.broadcast %cst_35 : f32 to vector<200x64xf32>
    %79 = vector.extract_strided_slice %77 {offsets = [0, 0, 0], sizes = [25, 8, 32], strides = [1, 1, 1]} : vector<29x8x32xbf16> to vector<25x8x32xbf16>
    %80 = vector.shape_cast %79 : vector<25x8x32xbf16> to vector<200x32xbf16>
    %c0_36 = arith.constant 0 : index
    %c0_37 = arith.constant 0 : index
    %c0_38 = arith.constant 0 : index
    %81 = vector.load %arg4[%c0_36, %c0_37, %c0_38] : memref<5x32x64xbf16, #tpu.memory_space<vmem>>, vector<1x32x64xbf16>
    %82 = vector.shape_cast %81 : vector<1x32x64xbf16> to vector<32x64xbf16>
    %cst_39 = arith.constant dense<0.000000e+00> : vector<200x64xf32>
    %83 = tpu.matmul %80, %82, %cst_39 {dimension_numbers = #tpu.dot_dimension_numbers<[1], [0], [0], [1], [0, 0, 1, 1], [], []>} : vector<200x32xbf16>, vector<32x64xbf16>, vector<200x64xf32> -> vector<200x64xf32>
    %84 = arith.addf %78, %83 : vector<200x64xf32>
    %85 = vector.extract_strided_slice %77 {offsets = [1, 0, 0], sizes = [25, 8, 32], strides = [1, 1, 1]} : vector<29x8x32xbf16> to vector<25x8x32xbf16>
    %86 = vector.shape_cast %85 : vector<25x8x32xbf16> to vector<200x32xbf16>
    %c1_40 = arith.constant 1 : index
    %c0_41 = arith.constant 0 : index
    %c0_42 = arith.constant 0 : index
    %87 = vector.load %arg4[%c1_40, %c0_41, %c0_42] : memref<5x32x64xbf16, #tpu.memory_space<vmem>>, vector<1x32x64xbf16>
    %88 = vector.shape_cast %87 : vector<1x32x64xbf16> to vector<32x64xbf16>
    %cst_43 = arith.constant dense<0.000000e+00> : vector<200x64xf32>
    %89 = tpu.matmul %86, %88, %cst_43 {dimension_numbers = #tpu.dot_dimension_numbers<[1], [0], [0], [1], [0, 0, 1, 1], [], []>} : vector<200x32xbf16>, vector<32x64xbf16>, vector<200x64xf32> -> vector<200x64xf32>
    %90 = arith.addf %84, %89 : vector<200x64xf32>
    %91 = vector.extract_strided_slice %77 {offsets = [2, 0, 0], sizes = [25, 8, 32], strides = [1, 1, 1]} : vector<29x8x32xbf16> to vector<25x8x32xbf16>
    %92 = vector.shape_cast %91 : vector<25x8x32xbf16> to vector<200x32xbf16>
    %c2_44 = arith.constant 2 : index
    %c0_45 = arith.constant 0 : index
    %c0_46 = arith.constant 0 : index
    %93 = vector.load %arg4[%c2_44, %c0_45, %c0_46] : memref<5x32x64xbf16, #tpu.memory_space<vmem>>, vector<1x32x64xbf16>
    %94 = vector.shape_cast %93 : vector<1x32x64xbf16> to vector<32x64xbf16>
    %cst_47 = arith.constant dense<0.000000e+00> : vector<200x64xf32>
    %95 = tpu.matmul %92, %94, %cst_47 {dimension_numbers = #tpu.dot_dimension_numbers<[1], [0], [0], [1], [0, 0, 1, 1], [], []>} : vector<200x32xbf16>, vector<32x64xbf16>, vector<200x64xf32> -> vector<200x64xf32>
    %96 = arith.addf %90, %95 : vector<200x64xf32>
    %97 = vector.extract_strided_slice %77 {offsets = [3, 0, 0], sizes = [25, 8, 32], strides = [1, 1, 1]} : vector<29x8x32xbf16> to vector<25x8x32xbf16>
    %98 = vector.shape_cast %97 : vector<25x8x32xbf16> to vector<200x32xbf16>
    %c3_48 = arith.constant 3 : index
    %c0_49 = arith.constant 0 : index
    %c0_50 = arith.constant 0 : index
    %99 = vector.load %arg4[%c3_48, %c0_49, %c0_50] : memref<5x32x64xbf16, #tpu.memory_space<vmem>>, vector<1x32x64xbf16>
    %100 = vector.shape_cast %99 : vector<1x32x64xbf16> to vector<32x64xbf16>
    %cst_51 = arith.constant dense<0.000000e+00> : vector<200x64xf32>
    %101 = tpu.matmul %98, %100, %cst_51 {dimension_numbers = #tpu.dot_dimension_numbers<[1], [0], [0], [1], [0, 0, 1, 1], [], []>} : vector<200x32xbf16>, vector<32x64xbf16>, vector<200x64xf32> -> vector<200x64xf32>
    %102 = arith.addf %96, %101 : vector<200x64xf32>
    %103 = vector.extract_strided_slice %77 {offsets = [4, 0, 0], sizes = [25, 8, 32], strides = [1, 1, 1]} : vector<29x8x32xbf16> to vector<25x8x32xbf16>
    %104 = vector.shape_cast %103 : vector<25x8x32xbf16> to vector<200x32xbf16>
    %c4_52 = arith.constant 4 : index
    %c0_53 = arith.constant 0 : index
    %c0_54 = arith.constant 0 : index
    %105 = vector.load %arg4[%c4_52, %c0_53, %c0_54] : memref<5x32x64xbf16, #tpu.memory_space<vmem>>, vector<1x32x64xbf16>
    %106 = vector.shape_cast %105 : vector<1x32x64xbf16> to vector<32x64xbf16>
    %cst_55 = arith.constant dense<0.000000e+00> : vector<200x64xf32>
    %107 = tpu.matmul %104, %106, %cst_55 {dimension_numbers = #tpu.dot_dimension_numbers<[1], [0], [0], [1], [0, 0, 1, 1], [], []>} : vector<200x32xbf16>, vector<32x64xbf16>, vector<200x64xf32> -> vector<200x64xf32>
    %108 = arith.addf %102, %107 : vector<200x64xf32>
    %c0_56 = arith.constant 0 : index
    %c0_57 = arith.constant 0 : index
    %109 = vector.load %arg5[%c0_56, %c0_57] : memref<1x64xf32, #tpu.memory_space<vmem>>, vector<1x64xf32>
    %110 = vector.broadcast %109 : vector<1x64xf32> to vector<200x64xf32>
    %111 = arith.addf %108, %110 : vector<200x64xf32>
    %cst_58 = arith.constant 0.000000e+00 : f32
    %112 = vector.broadcast %cst_58 : f32 to vector<200x64xf32>
    %113 = arith.cmpf oge, %111, %112 : vector<200x64xf32>
    %cst_59 = arith.constant 0.00999999977 : f32
    %114 = vector.broadcast %cst_59 : f32 to vector<200x64xf32>
    %115 = arith.mulf %114, %111 : vector<200x64xf32>
    %116 = arith.select %113, %111, %115 : vector<200x64xi1>, vector<200x64xf32>
    %117 = vector.shape_cast %116 : vector<200x64xf32> to vector<25x8x64xf32>
    %118 = vector.extract_strided_slice %117 {offsets = [0, 0, 0], sizes = [1, 8, 64], strides = [1, 1, 1]} : vector<25x8x64xf32> to vector<1x8x64xf32>
    %119 = vector.extract_strided_slice %117 {offsets = [1, 0, 0], sizes = [24, 8, 64], strides = [1, 1, 1]} : vector<25x8x64xf32> to vector<24x8x64xf32>
    %120 = vector.shape_cast %119 : vector<24x8x64xf32> to vector<12x2x8x64xf32>
    %121 = vector.extract_strided_slice %120 {offsets = [0, 0, 0, 0], sizes = [12, 1, 8, 64], strides = [1, 1, 1, 1]} : vector<12x2x8x64xf32> to vector<12x1x8x64xf32>
    %122 = vector.shape_cast %121 : vector<12x1x8x64xf32> to vector<12x8x64xf32>
    %123 = vector.extract_strided_slice %120 {offsets = [0, 1, 0, 0], sizes = [12, 1, 8, 64], strides = [1, 1, 1, 1]} : vector<12x2x8x64xf32> to vector<12x1x8x64xf32>
    %124 = vector.shape_cast %123 : vector<12x1x8x64xf32> to vector<12x8x64xf32>
    %125 = arith.maximumf %122, %124 : vector<12x8x64xf32>
    %126 = tpu.concatenate %118, %125 in 0 : vector<1x8x64xf32>, vector<12x8x64xf32> -> vector<13x8x64xf32>
    %127 = arith.truncf %126 : vector<13x8x64xf32> to vector<13x8x64xbf16>
    %cst_60 = arith.constant 0.000000e+00 : f32
    %128 = vector.broadcast %cst_60 : f32 to vector<72x32xf32>
    %129 = vector.extract_strided_slice %127 {offsets = [0, 0, 0], sizes = [9, 8, 64], strides = [1, 1, 1]} : vector<13x8x64xbf16> to vector<9x8x64xbf16>
    %130 = vector.shape_cast %129 : vector<9x8x64xbf16> to vector<72x64xbf16>
    %c0_61 = arith.constant 0 : index
    %c0_62 = arith.constant 0 : index
    %c0_63 = arith.constant 0 : index
    %131 = vector.load %arg6[%c0_61, %c0_62, %c0_63] : memref<5x64x32xbf16, #tpu.memory_space<vmem>>, vector<1x64x32xbf16>
    %132 = vector.shape_cast %131 : vector<1x64x32xbf16> to vector<64x32xbf16>
    %cst_64 = arith.constant dense<0.000000e+00> : vector<72x32xf32>
    %133 = tpu.matmul %130, %132, %cst_64 {dimension_numbers = #tpu.dot_dimension_numbers<[1], [0], [0], [1], [0, 0, 1, 1], [], []>} : vector<72x64xbf16>, vector<64x32xbf16>, vector<72x32xf32> -> vector<72x32xf32>
    %134 = arith.addf %128, %133 : vector<72x32xf32>
    %135 = vector.extract_strided_slice %127 {offsets = [1, 0, 0], sizes = [9, 8, 64], strides = [1, 1, 1]} : vector<13x8x64xbf16> to vector<9x8x64xbf16>
    %136 = vector.shape_cast %135 : vector<9x8x64xbf16> to vector<72x64xbf16>
    %c1_65 = arith.constant 1 : index
    %c0_66 = arith.constant 0 : index
    %c0_67 = arith.constant 0 : index
    %137 = vector.load %arg6[%c1_65, %c0_66, %c0_67] : memref<5x64x32xbf16, #tpu.memory_space<vmem>>, vector<1x64x32xbf16>
    %138 = vector.shape_cast %137 : vector<1x64x32xbf16> to vector<64x32xbf16>
    %cst_68 = arith.constant dense<0.000000e+00> : vector<72x32xf32>
    %139 = tpu.matmul %136, %138, %cst_68 {dimension_numbers = #tpu.dot_dimension_numbers<[1], [0], [0], [1], [0, 0, 1, 1], [], []>} : vector<72x64xbf16>, vector<64x32xbf16>, vector<72x32xf32> -> vector<72x32xf32>
    %140 = arith.addf %134, %139 : vector<72x32xf32>
    %141 = vector.extract_strided_slice %127 {offsets = [2, 0, 0], sizes = [9, 8, 64], strides = [1, 1, 1]} : vector<13x8x64xbf16> to vector<9x8x64xbf16>
    %142 = vector.shape_cast %141 : vector<9x8x64xbf16> to vector<72x64xbf16>
    %c2_69 = arith.constant 2 : index
    %c0_70 = arith.constant 0 : index
    %c0_71 = arith.constant 0 : index
    %143 = vector.load %arg6[%c2_69, %c0_70, %c0_71] : memref<5x64x32xbf16, #tpu.memory_space<vmem>>, vector<1x64x32xbf16>
    %144 = vector.shape_cast %143 : vector<1x64x32xbf16> to vector<64x32xbf16>
    %cst_72 = arith.constant dense<0.000000e+00> : vector<72x32xf32>
    %145 = tpu.matmul %142, %144, %cst_72 {dimension_numbers = #tpu.dot_dimension_numbers<[1], [0], [0], [1], [0, 0, 1, 1], [], []>} : vector<72x64xbf16>, vector<64x32xbf16>, vector<72x32xf32> -> vector<72x32xf32>
    %146 = arith.addf %140, %145 : vector<72x32xf32>
    %147 = vector.extract_strided_slice %127 {offsets = [3, 0, 0], sizes = [9, 8, 64], strides = [1, 1, 1]} : vector<13x8x64xbf16> to vector<9x8x64xbf16>
    %148 = vector.shape_cast %147 : vector<9x8x64xbf16> to vector<72x64xbf16>
    %c3_73 = arith.constant 3 : index
    %c0_74 = arith.constant 0 : index
    %c0_75 = arith.constant 0 : index
    %149 = vector.load %arg6[%c3_73, %c0_74, %c0_75] : memref<5x64x32xbf16, #tpu.memory_space<vmem>>, vector<1x64x32xbf16>
    %150 = vector.shape_cast %149 : vector<1x64x32xbf16> to vector<64x32xbf16>
    %cst_76 = arith.constant dense<0.000000e+00> : vector<72x32xf32>
    %151 = tpu.matmul %148, %150, %cst_76 {dimension_numbers = #tpu.dot_dimension_numbers<[1], [0], [0], [1], [0, 0, 1, 1], [], []>} : vector<72x64xbf16>, vector<64x32xbf16>, vector<72x32xf32> -> vector<72x32xf32>
    %152 = arith.addf %146, %151 : vector<72x32xf32>
    %153 = vector.extract_strided_slice %127 {offsets = [4, 0, 0], sizes = [9, 8, 64], strides = [1, 1, 1]} : vector<13x8x64xbf16> to vector<9x8x64xbf16>
    %154 = vector.shape_cast %153 : vector<9x8x64xbf16> to vector<72x64xbf16>
    %c4_77 = arith.constant 4 : index
    %c0_78 = arith.constant 0 : index
    %c0_79 = arith.constant 0 : index
    %155 = vector.load %arg6[%c4_77, %c0_78, %c0_79] : memref<5x64x32xbf16, #tpu.memory_space<vmem>>, vector<1x64x32xbf16>
    %156 = vector.shape_cast %155 : vector<1x64x32xbf16> to vector<64x32xbf16>
    %cst_80 = arith.constant dense<0.000000e+00> : vector<72x32xf32>
    %157 = tpu.matmul %154, %156, %cst_80 {dimension_numbers = #tpu.dot_dimension_numbers<[1], [0], [0], [1], [0, 0, 1, 1], [], []>} : vector<72x64xbf16>, vector<64x32xbf16>, vector<72x32xf32> -> vector<72x32xf32>
    %158 = arith.addf %152, %157 : vector<72x32xf32>
    %c0_81 = arith.constant 0 : index
    %c0_82 = arith.constant 0 : index
    %159 = vector.load %arg7[%c0_81, %c0_82] : memref<1x32xf32, #tpu.memory_space<vmem>>, vector<1x32xf32>
    %160 = vector.broadcast %159 : vector<1x32xf32> to vector<72x32xf32>
    %161 = arith.addf %158, %160 : vector<72x32xf32>
    %cst_83 = arith.constant 0.000000e+00 : f32
    %162 = vector.broadcast %cst_83 : f32 to vector<72x32xf32>
    %163 = arith.cmpf oge, %161, %162 : vector<72x32xf32>
    %cst_84 = arith.constant 0.00999999977 : f32
    %164 = vector.broadcast %cst_84 : f32 to vector<72x32xf32>
    %165 = arith.mulf %164, %161 : vector<72x32xf32>
    %166 = arith.select %163, %161, %165 : vector<72x32xi1>, vector<72x32xf32>
    %167 = vector.shape_cast %166 : vector<72x32xf32> to vector<9x8x32xf32>
    %168 = vector.extract_strided_slice %167 {offsets = [0, 0, 0], sizes = [1, 8, 32], strides = [1, 1, 1]} : vector<9x8x32xf32> to vector<1x8x32xf32>
    %169 = vector.extract_strided_slice %167 {offsets = [1, 0, 0], sizes = [8, 8, 32], strides = [1, 1, 1]} : vector<9x8x32xf32> to vector<8x8x32xf32>
    %170 = vector.shape_cast %169 : vector<8x8x32xf32> to vector<4x2x8x32xf32>
    %171 = vector.extract_strided_slice %170 {offsets = [0, 0, 0, 0], sizes = [4, 1, 8, 32], strides = [1, 1, 1, 1]} : vector<4x2x8x32xf32> to vector<4x1x8x32xf32>
    %172 = vector.shape_cast %171 : vector<4x1x8x32xf32> to vector<4x8x32xf32>
    %173 = vector.extract_strided_slice %170 {offsets = [0, 1, 0, 0], sizes = [4, 1, 8, 32], strides = [1, 1, 1, 1]} : vector<4x2x8x32xf32> to vector<4x1x8x32xf32>
    %174 = vector.shape_cast %173 : vector<4x1x8x32xf32> to vector<4x8x32xf32>
    %175 = arith.maximumf %172, %174 : vector<4x8x32xf32>
    %176 = tpu.concatenate %168, %175 in 0 : vector<1x8x32xf32>, vector<4x8x32xf32> -> vector<5x8x32xf32>
    %177 = arith.truncf %176 : vector<5x8x32xf32> to vector<5x8x32xbf16>
    %178 = vector.shape_cast %177 : vector<5x8x32xbf16> to vector<40x32xbf16>
    %c0_85 = arith.constant 0 : index
    %c0_86 = arith.constant 0 : index
    %c0_87 = arith.constant 0 : index
    %179 = vector.load %arg8[%c0_85, %c0_86, %c0_87] : memref<2x32x128xbf16, #tpu.memory_space<vmem>>, vector<1x32x128xbf16>
    %180 = vector.shape_cast %179 : vector<1x32x128xbf16> to vector<32x128xbf16>
    %cst_88 = arith.constant dense<0.000000e+00> : vector<40x128xf32>
    %181 = tpu.matmul %178, %180, %cst_88 {dimension_numbers = #tpu.dot_dimension_numbers<[1], [0], [0], [1], [0, 0, 1, 1], [], []>} : vector<40x32xbf16>, vector<32x128xbf16>, vector<40x128xf32> -> vector<40x128xf32>
    %c0_89 = arith.constant 0 : index
    %c0_90 = arith.constant 0 : index
    %c0_91 = arith.constant 0 : index
    %182 = vector.load %arg10[%c0_89, %c0_90, %c0_91] : memref<2x1x128xf32, #tpu.memory_space<vmem>>, vector<1x1x128xf32>
    %183 = vector.shape_cast %182 : vector<1x1x128xf32> to vector<1x128xf32>
    %184 = vector.broadcast %183 : vector<1x128xf32> to vector<40x128xf32>
    %185 = arith.addf %181, %184 : vector<40x128xf32>
    %186 = vector.shape_cast %185 : vector<40x128xf32> to vector<5x8x128xf32>
    %c0_92 = arith.constant 0 : index
    %c0_93 = arith.constant 0 : index
    %c0_94 = arith.constant 0 : index
    %187 = vector.load %arg9[%c0_92, %c0_93, %c0_94] : memref<2x32x128xbf16, #tpu.memory_space<vmem>>, vector<1x32x128xbf16>
    %188 = vector.shape_cast %187 : vector<1x32x128xbf16> to vector<32x128xbf16>
    %cst_95 = arith.constant 0.000000e+00 : f32
    %189 = vector.broadcast %cst_95 : f32 to vector<8x32xf32>
    %cst_96 = arith.constant 0.000000e+00 : f32
    %190 = vector.broadcast %cst_96 : f32 to vector<8x32xf32>
    %191 = vector.extract_strided_slice %186 {offsets = [0, 0, 0], sizes = [1, 8, 128], strides = [1, 1, 1]} : vector<5x8x128xf32> to vector<1x8x128xf32>
    %192 = vector.shape_cast %191 : vector<1x8x128xf32> to vector<8x128xf32>
    %193 = arith.truncf %189 : vector<8x32xf32> to vector<8x32xbf16>
    %cst_97 = arith.constant dense<0.000000e+00> : vector<8x128xf32>
    %194 = tpu.matmul %193, %188, %cst_97 {dimension_numbers = #tpu.dot_dimension_numbers<[1], [0], [0], [1], [0, 0, 1, 1], [], []>} : vector<8x32xbf16>, vector<32x128xbf16>, vector<8x128xf32> -> vector<8x128xf32>
    %195 = arith.addf %192, %194 : vector<8x128xf32>
    %196 = vector.extract_strided_slice %195 {offsets = [0, 0], sizes = [8, 96], strides = [1, 1]} : vector<8x128xf32> to vector<8x96xf32>
    %197 = arith.negf %196 : vector<8x96xf32>
    %198 = math.exp %197 : vector<8x96xf32>
    %cst_98 = arith.constant 1.000000e+00 : f32
    %199 = vector.broadcast %cst_98 : f32 to vector<8x96xf32>
    %200 = arith.addf %199, %198 : vector<8x96xf32>
    %201 = arith.divf %199, %200 : vector<8x96xf32>
    %202 = vector.extract_strided_slice %195 {offsets = [0, 96], sizes = [8, 32], strides = [1, 1]} : vector<8x128xf32> to vector<8x32xf32>
    %203 = math.tanh %202 : vector<8x32xf32>
    %204 = vector.extract_strided_slice %201 {offsets = [0, 0], sizes = [8, 32], strides = [1, 1]} : vector<8x96xf32> to vector<8x32xf32>
    %205 = vector.extract_strided_slice %201 {offsets = [0, 32], sizes = [8, 32], strides = [1, 1]} : vector<8x96xf32> to vector<8x32xf32>
    %206 = vector.extract_strided_slice %201 {offsets = [0, 64], sizes = [8, 32], strides = [1, 1]} : vector<8x96xf32> to vector<8x32xf32>
    %207 = arith.mulf %205, %190 : vector<8x32xf32>
    %208 = arith.mulf %204, %203 : vector<8x32xf32>
    %209 = arith.addf %207, %208 : vector<8x32xf32>
    %210 = math.tanh %209 : vector<8x32xf32>
    %211 = arith.mulf %206, %210 : vector<8x32xf32>
    %c0_99 = arith.constant 0 : index
    %c0_100 = arith.constant 0 : index
    %c0_101 = arith.constant 0 : index
    %212 = vector.load %arg14[%c0_99, %c0_100, %c0_101] : memref<5x8x32xf32, #tpu.memory_space<vmem>>, vector<1x8x32xf32>
    %213 = vector.shape_cast %212 : vector<1x8x32xf32> to vector<8x32xf32>
    %214 = vector.shape_cast %211 : vector<8x32xf32> to vector<1x8x32xf32>
    tpu.vector_store %arg14[%c0_99, %c0_100, %c0_101], %214 {strides = array<i32>} : memref<5x8x32xf32, #tpu.memory_space<vmem>>, vector<1x8x32xf32>,
    %215 = vector.extract_strided_slice %186 {offsets = [1, 0, 0], sizes = [1, 8, 128], strides = [1, 1, 1]} : vector<5x8x128xf32> to vector<1x8x128xf32>
    %216 = vector.shape_cast %215 : vector<1x8x128xf32> to vector<8x128xf32>
    %217 = arith.truncf %211 : vector<8x32xf32> to vector<8x32xbf16>
    %cst_102 = arith.constant dense<0.000000e+00> : vector<8x128xf32>
    %218 = tpu.matmul %217, %188, %cst_102 {dimension_numbers = #tpu.dot_dimension_numbers<[1], [0], [0], [1], [0, 0, 1, 1], [], []>} : vector<8x32xbf16>, vector<32x128xbf16>, vector<8x128xf32> -> vector<8x128xf32>
    %219 = arith.addf %216, %218 : vector<8x128xf32>
    %220 = vector.extract_strided_slice %219 {offsets = [0, 0], sizes = [8, 96], strides = [1, 1]} : vector<8x128xf32> to vector<8x96xf32>
    %221 = arith.negf %220 : vector<8x96xf32>
    %222 = math.exp %221 : vector<8x96xf32>
    %cst_103 = arith.constant 1.000000e+00 : f32
    %223 = vector.broadcast %cst_103 : f32 to vector<8x96xf32>
    %224 = arith.addf %223, %222 : vector<8x96xf32>
    %225 = arith.divf %223, %224 : vector<8x96xf32>
    %226 = vector.extract_strided_slice %219 {offsets = [0, 96], sizes = [8, 32], strides = [1, 1]} : vector<8x128xf32> to vector<8x32xf32>
    %227 = math.tanh %226 : vector<8x32xf32>
    %228 = vector.extract_strided_slice %225 {offsets = [0, 0], sizes = [8, 32], strides = [1, 1]} : vector<8x96xf32> to vector<8x32xf32>
    %229 = vector.extract_strided_slice %225 {offsets = [0, 32], sizes = [8, 32], strides = [1, 1]} : vector<8x96xf32> to vector<8x32xf32>
    %230 = vector.extract_strided_slice %225 {offsets = [0, 64], sizes = [8, 32], strides = [1, 1]} : vector<8x96xf32> to vector<8x32xf32>
    %231 = arith.mulf %229, %209 : vector<8x32xf32>
    %232 = arith.mulf %228, %227 : vector<8x32xf32>
    %233 = arith.addf %231, %232 : vector<8x32xf32>
    %234 = math.tanh %233 : vector<8x32xf32>
    %235 = arith.mulf %230, %234 : vector<8x32xf32>
    %c1_104 = arith.constant 1 : index
    %c0_105 = arith.constant 0 : index
    %c0_106 = arith.constant 0 : index
    %236 = vector.load %arg14[%c1_104, %c0_105, %c0_106] : memref<5x8x32xf32, #tpu.memory_space<vmem>>, vector<1x8x32xf32>
    %237 = vector.shape_cast %236 : vector<1x8x32xf32> to vector<8x32xf32>
    %238 = vector.shape_cast %235 : vector<8x32xf32> to vector<1x8x32xf32>
    tpu.vector_store %arg14[%c1_104, %c0_105, %c0_106], %238 {strides = array<i32>} : memref<5x8x32xf32, #tpu.memory_space<vmem>>, vector<1x8x32xf32>,
    %239 = vector.extract_strided_slice %186 {offsets = [2, 0, 0], sizes = [1, 8, 128], strides = [1, 1, 1]} : vector<5x8x128xf32> to vector<1x8x128xf32>
    %240 = vector.shape_cast %239 : vector<1x8x128xf32> to vector<8x128xf32>
    %241 = arith.truncf %235 : vector<8x32xf32> to vector<8x32xbf16>
    %cst_107 = arith.constant dense<0.000000e+00> : vector<8x128xf32>
    %242 = tpu.matmul %241, %188, %cst_107 {dimension_numbers = #tpu.dot_dimension_numbers<[1], [0], [0], [1], [0, 0, 1, 1], [], []>} : vector<8x32xbf16>, vector<32x128xbf16>, vector<8x128xf32> -> vector<8x128xf32>
    %243 = arith.addf %240, %242 : vector<8x128xf32>
    %244 = vector.extract_strided_slice %243 {offsets = [0, 0], sizes = [8, 96], strides = [1, 1]} : vector<8x128xf32> to vector<8x96xf32>
    %245 = arith.negf %244 : vector<8x96xf32>
    %246 = math.exp %245 : vector<8x96xf32>
    %cst_108 = arith.constant 1.000000e+00 : f32
    %247 = vector.broadcast %cst_108 : f32 to vector<8x96xf32>
    %248 = arith.addf %247, %246 : vector<8x96xf32>
    %249 = arith.divf %247, %248 : vector<8x96xf32>
    %250 = vector.extract_strided_slice %243 {offsets = [0, 96], sizes = [8, 32], strides = [1, 1]} : vector<8x128xf32> to vector<8x32xf32>
    %251 = math.tanh %250 : vector<8x32xf32>
    %252 = vector.extract_strided_slice %249 {offsets = [0, 0], sizes = [8, 32], strides = [1, 1]} : vector<8x96xf32> to vector<8x32xf32>
    %253 = vector.extract_strided_slice %249 {offsets = [0, 32], sizes = [8, 32], strides = [1, 1]} : vector<8x96xf32> to vector<8x32xf32>
    %254 = vector.extract_strided_slice %249 {offsets = [0, 64], sizes = [8, 32], strides = [1, 1]} : vector<8x96xf32> to vector<8x32xf32>
    %255 = arith.mulf %253, %233 : vector<8x32xf32>
    %256 = arith.mulf %252, %251 : vector<8x32xf32>
    %257 = arith.addf %255, %256 : vector<8x32xf32>
    %258 = math.tanh %257 : vector<8x32xf32>
    %259 = arith.mulf %254, %258 : vector<8x32xf32>
    %c2_109 = arith.constant 2 : index
    %c0_110 = arith.constant 0 : index
    %c0_111 = arith.constant 0 : index
    %260 = vector.load %arg14[%c2_109, %c0_110, %c0_111] : memref<5x8x32xf32, #tpu.memory_space<vmem>>, vector<1x8x32xf32>
    %261 = vector.shape_cast %260 : vector<1x8x32xf32> to vector<8x32xf32>
    %262 = vector.shape_cast %259 : vector<8x32xf32> to vector<1x8x32xf32>
    tpu.vector_store %arg14[%c2_109, %c0_110, %c0_111], %262 {strides = array<i32>} : memref<5x8x32xf32, #tpu.memory_space<vmem>>, vector<1x8x32xf32>,
    %263 = vector.extract_strided_slice %186 {offsets = [3, 0, 0], sizes = [1, 8, 128], strides = [1, 1, 1]} : vector<5x8x128xf32> to vector<1x8x128xf32>
    %264 = vector.shape_cast %263 : vector<1x8x128xf32> to vector<8x128xf32>
    %265 = arith.truncf %259 : vector<8x32xf32> to vector<8x32xbf16>
    %cst_112 = arith.constant dense<0.000000e+00> : vector<8x128xf32>
    %266 = tpu.matmul %265, %188, %cst_112 {dimension_numbers = #tpu.dot_dimension_numbers<[1], [0], [0], [1], [0, 0, 1, 1], [], []>} : vector<8x32xbf16>, vector<32x128xbf16>, vector<8x128xf32> -> vector<8x128xf32>
    %267 = arith.addf %264, %266 : vector<8x128xf32>
    %268 = vector.extract_strided_slice %267 {offsets = [0, 0], sizes = [8, 96], strides = [1, 1]} : vector<8x128xf32> to vector<8x96xf32>
    %269 = arith.negf %268 : vector<8x96xf32>
    %270 = math.exp %269 : vector<8x96xf32>
    %cst_113 = arith.constant 1.000000e+00 : f32
    %271 = vector.broadcast %cst_113 : f32 to vector<8x96xf32>
    %272 = arith.addf %271, %270 : vector<8x96xf32>
    %273 = arith.divf %271, %272 : vector<8x96xf32>
    %274 = vector.extract_strided_slice %267 {offsets = [0, 96], sizes = [8, 32], strides = [1, 1]} : vector<8x128xf32> to vector<8x32xf32>
    %275 = math.tanh %274 : vector<8x32xf32>
    %276 = vector.extract_strided_slice %273 {offsets = [0, 0], sizes = [8, 32], strides = [1, 1]} : vector<8x96xf32> to vector<8x32xf32>
    %277 = vector.extract_strided_slice %273 {offsets = [0, 32], sizes = [8, 32], strides = [1, 1]} : vector<8x96xf32> to vector<8x32xf32>
    %278 = vector.extract_strided_slice %273 {offsets = [0, 64], sizes = [8, 32], strides = [1, 1]} : vector<8x96xf32> to vector<8x32xf32>
    %279 = arith.mulf %277, %257 : vector<8x32xf32>
    %280 = arith.mulf %276, %275 : vector<8x32xf32>
    %281 = arith.addf %279, %280 : vector<8x32xf32>
    %282 = math.tanh %281 : vector<8x32xf32>
    %283 = arith.mulf %278, %282 : vector<8x32xf32>
    %c3_114 = arith.constant 3 : index
    %c0_115 = arith.constant 0 : index
    %c0_116 = arith.constant 0 : index
    %284 = vector.load %arg14[%c3_114, %c0_115, %c0_116] : memref<5x8x32xf32, #tpu.memory_space<vmem>>, vector<1x8x32xf32>
    %285 = vector.shape_cast %284 : vector<1x8x32xf32> to vector<8x32xf32>
    %286 = vector.shape_cast %283 : vector<8x32xf32> to vector<1x8x32xf32>
    tpu.vector_store %arg14[%c3_114, %c0_115, %c0_116], %286 {strides = array<i32>} : memref<5x8x32xf32, #tpu.memory_space<vmem>>, vector<1x8x32xf32>,
    %287 = vector.extract_strided_slice %186 {offsets = [4, 0, 0], sizes = [1, 8, 128], strides = [1, 1, 1]} : vector<5x8x128xf32> to vector<1x8x128xf32>
    %288 = vector.shape_cast %287 : vector<1x8x128xf32> to vector<8x128xf32>
    %289 = arith.truncf %283 : vector<8x32xf32> to vector<8x32xbf16>
    %cst_117 = arith.constant dense<0.000000e+00> : vector<8x128xf32>
    %290 = tpu.matmul %289, %188, %cst_117 {dimension_numbers = #tpu.dot_dimension_numbers<[1], [0], [0], [1], [0, 0, 1, 1], [], []>} : vector<8x32xbf16>, vector<32x128xbf16>, vector<8x128xf32> -> vector<8x128xf32>
    %291 = arith.addf %288, %290 : vector<8x128xf32>
    %292 = vector.extract_strided_slice %291 {offsets = [0, 0], sizes = [8, 96], strides = [1, 1]} : vector<8x128xf32> to vector<8x96xf32>
    %293 = arith.negf %292 : vector<8x96xf32>
    %294 = math.exp %293 : vector<8x96xf32>
    %cst_118 = arith.constant 1.000000e+00 : f32
    %295 = vector.broadcast %cst_118 : f32 to vector<8x96xf32>
    %296 = arith.addf %295, %294 : vector<8x96xf32>
    %297 = arith.divf %295, %296 : vector<8x96xf32>
    %298 = vector.extract_strided_slice %291 {offsets = [0, 96], sizes = [8, 32], strides = [1, 1]} : vector<8x128xf32> to vector<8x32xf32>
    %299 = math.tanh %298 : vector<8x32xf32>
    %300 = vector.extract_strided_slice %297 {offsets = [0, 0], sizes = [8, 32], strides = [1, 1]} : vector<8x96xf32> to vector<8x32xf32>
    %301 = vector.extract_strided_slice %297 {offsets = [0, 32], sizes = [8, 32], strides = [1, 1]} : vector<8x96xf32> to vector<8x32xf32>
    %302 = vector.extract_strided_slice %297 {offsets = [0, 64], sizes = [8, 32], strides = [1, 1]} : vector<8x96xf32> to vector<8x32xf32>
    %303 = arith.mulf %301, %281 : vector<8x32xf32>
    %304 = arith.mulf %300, %299 : vector<8x32xf32>
    %305 = arith.addf %303, %304 : vector<8x32xf32>
    %306 = math.tanh %305 : vector<8x32xf32>
    %307 = arith.mulf %302, %306 : vector<8x32xf32>
    %c4_119 = arith.constant 4 : index
    %c0_120 = arith.constant 0 : index
    %c0_121 = arith.constant 0 : index
    %308 = vector.load %arg14[%c4_119, %c0_120, %c0_121] : memref<5x8x32xf32, #tpu.memory_space<vmem>>, vector<1x8x32xf32>
    %309 = vector.shape_cast %308 : vector<1x8x32xf32> to vector<8x32xf32>
    %310 = vector.shape_cast %307 : vector<8x32xf32> to vector<1x8x32xf32>
    tpu.vector_store %arg14[%c4_119, %c0_120, %c0_121], %310 {strides = array<i32>} : memref<5x8x32xf32, #tpu.memory_space<vmem>>, vector<1x8x32xf32>,
    %c0_122 = arith.constant 0 : index
    %c0_123 = arith.constant 0 : index
    %c0_124 = arith.constant 0 : index
    %311 = vector.load %arg14[%c0_122, %c0_123, %c0_124] : memref<5x8x32xf32, #tpu.memory_space<vmem>>, vector<5x8x32xf32>
    %312 = arith.truncf %311 : vector<5x8x32xf32> to vector<5x8x32xbf16>
    %313 = vector.shape_cast %312 : vector<5x8x32xbf16> to vector<40x32xbf16>
    %c1_125 = arith.constant 1 : index
    %c0_126 = arith.constant 0 : index
    %c0_127 = arith.constant 0 : index
    %314 = vector.load %arg8[%c1_125, %c0_126, %c0_127] : memref<2x32x128xbf16, #tpu.memory_space<vmem>>, vector<1x32x128xbf16>
    %315 = vector.shape_cast %314 : vector<1x32x128xbf16> to vector<32x128xbf16>
    %cst_128 = arith.constant dense<0.000000e+00> : vector<40x128xf32>
    %316 = tpu.matmul %313, %315, %cst_128 {dimension_numbers = #tpu.dot_dimension_numbers<[1], [0], [0], [1], [0, 0, 1, 1], [], []>} : vector<40x32xbf16>, vector<32x128xbf16>, vector<40x128xf32> -> vector<40x128xf32>
    %c1_129 = arith.constant 1 : index
    %c0_130 = arith.constant 0 : index
    %c0_131 = arith.constant 0 : index
    %317 = vector.load %arg10[%c1_129, %c0_130, %c0_131] : memref<2x1x128xf32, #tpu.memory_space<vmem>>, vector<1x1x128xf32>
    %318 = vector.shape_cast %317 : vector<1x1x128xf32> to vector<1x128xf32>
    %319 = vector.broadcast %318 : vector<1x128xf32> to vector<40x128xf32>
    %320 = arith.addf %316, %319 : vector<40x128xf32>
    %321 = vector.shape_cast %320 : vector<40x128xf32> to vector<5x8x128xf32>
    %c1_132 = arith.constant 1 : index
    %c0_133 = arith.constant 0 : index
    %c0_134 = arith.constant 0 : index
    %322 = vector.load %arg9[%c1_132, %c0_133, %c0_134] : memref<2x32x128xbf16, #tpu.memory_space<vmem>>, vector<1x32x128xbf16>
    %323 = vector.shape_cast %322 : vector<1x32x128xbf16> to vector<32x128xbf16>
    %cst_135 = arith.constant 0.000000e+00 : f32
    %324 = vector.broadcast %cst_135 : f32 to vector<8x32xf32>
    %cst_136 = arith.constant 0.000000e+00 : f32
    %325 = vector.broadcast %cst_136 : f32 to vector<8x32xf32>
    %326 = vector.extract_strided_slice %321 {offsets = [0, 0, 0], sizes = [1, 8, 128], strides = [1, 1, 1]} : vector<5x8x128xf32> to vector<1x8x128xf32>
    %327 = vector.shape_cast %326 : vector<1x8x128xf32> to vector<8x128xf32>
    %328 = arith.truncf %324 : vector<8x32xf32> to vector<8x32xbf16>
    %cst_137 = arith.constant dense<0.000000e+00> : vector<8x128xf32>
    %329 = tpu.matmul %328, %323, %cst_137 {dimension_numbers = #tpu.dot_dimension_numbers<[1], [0], [0], [1], [0, 0, 1, 1], [], []>} : vector<8x32xbf16>, vector<32x128xbf16>, vector<8x128xf32> -> vector<8x128xf32>
    %330 = arith.addf %327, %329 : vector<8x128xf32>
    %331 = vector.extract_strided_slice %330 {offsets = [0, 0], sizes = [8, 96], strides = [1, 1]} : vector<8x128xf32> to vector<8x96xf32>
    %332 = arith.negf %331 : vector<8x96xf32>
    %333 = math.exp %332 : vector<8x96xf32>
    %cst_138 = arith.constant 1.000000e+00 : f32
    %334 = vector.broadcast %cst_138 : f32 to vector<8x96xf32>
    %335 = arith.addf %334, %333 : vector<8x96xf32>
    %336 = arith.divf %334, %335 : vector<8x96xf32>
    %337 = vector.extract_strided_slice %330 {offsets = [0, 96], sizes = [8, 32], strides = [1, 1]} : vector<8x128xf32> to vector<8x32xf32>
    %338 = math.tanh %337 : vector<8x32xf32>
    %339 = vector.extract_strided_slice %336 {offsets = [0, 0], sizes = [8, 32], strides = [1, 1]} : vector<8x96xf32> to vector<8x32xf32>
    %340 = vector.extract_strided_slice %336 {offsets = [0, 32], sizes = [8, 32], strides = [1, 1]} : vector<8x96xf32> to vector<8x32xf32>
    %341 = vector.extract_strided_slice %336 {offsets = [0, 64], sizes = [8, 32], strides = [1, 1]} : vector<8x96xf32> to vector<8x32xf32>
    %342 = arith.mulf %340, %325 : vector<8x32xf32>
    %343 = arith.mulf %339, %338 : vector<8x32xf32>
    %344 = arith.addf %342, %343 : vector<8x32xf32>
    %345 = math.tanh %344 : vector<8x32xf32>
    %346 = arith.mulf %341, %345 : vector<8x32xf32>
    %347 = vector.extract_strided_slice %321 {offsets = [1, 0, 0], sizes = [1, 8, 128], strides = [1, 1, 1]} : vector<5x8x128xf32> to vector<1x8x128xf32>
    %348 = vector.shape_cast %347 : vector<1x8x128xf32> to vector<8x128xf32>
    %349 = arith.truncf %346 : vector<8x32xf32> to vector<8x32xbf16>
    %cst_139 = arith.constant dense<0.000000e+00> : vector<8x128xf32>
    %350 = tpu.matmul %349, %323, %cst_139 {dimension_numbers = #tpu.dot_dimension_numbers<[1], [0], [0], [1], [0, 0, 1, 1], [], []>} : vector<8x32xbf16>, vector<32x128xbf16>, vector<8x128xf32> -> vector<8x128xf32>
    %351 = arith.addf %348, %350 : vector<8x128xf32>
    %352 = vector.extract_strided_slice %351 {offsets = [0, 0], sizes = [8, 96], strides = [1, 1]} : vector<8x128xf32> to vector<8x96xf32>
    %353 = arith.negf %352 : vector<8x96xf32>
    %354 = math.exp %353 : vector<8x96xf32>
    %cst_140 = arith.constant 1.000000e+00 : f32
    %355 = vector.broadcast %cst_140 : f32 to vector<8x96xf32>
    %356 = arith.addf %355, %354 : vector<8x96xf32>
    %357 = arith.divf %355, %356 : vector<8x96xf32>
    %358 = vector.extract_strided_slice %351 {offsets = [0, 96], sizes = [8, 32], strides = [1, 1]} : vector<8x128xf32> to vector<8x32xf32>
    %359 = math.tanh %358 : vector<8x32xf32>
    %360 = vector.extract_strided_slice %357 {offsets = [0, 0], sizes = [8, 32], strides = [1, 1]} : vector<8x96xf32> to vector<8x32xf32>
    %361 = vector.extract_strided_slice %357 {offsets = [0, 32], sizes = [8, 32], strides = [1, 1]} : vector<8x96xf32> to vector<8x32xf32>
    %362 = vector.extract_strided_slice %357 {offsets = [0, 64], sizes = [8, 32], strides = [1, 1]} : vector<8x96xf32> to vector<8x32xf32>
    %363 = arith.mulf %361, %344 : vector<8x32xf32>
    %364 = arith.mulf %360, %359 : vector<8x32xf32>
    %365 = arith.addf %363, %364 : vector<8x32xf32>
    %366 = math.tanh %365 : vector<8x32xf32>
    %367 = arith.mulf %362, %366 : vector<8x32xf32>
    %368 = vector.extract_strided_slice %321 {offsets = [2, 0, 0], sizes = [1, 8, 128], strides = [1, 1, 1]} : vector<5x8x128xf32> to vector<1x8x128xf32>
    %369 = vector.shape_cast %368 : vector<1x8x128xf32> to vector<8x128xf32>
    %370 = arith.truncf %367 : vector<8x32xf32> to vector<8x32xbf16>
    %cst_141 = arith.constant dense<0.000000e+00> : vector<8x128xf32>
    %371 = tpu.matmul %370, %323, %cst_141 {dimension_numbers = #tpu.dot_dimension_numbers<[1], [0], [0], [1], [0, 0, 1, 1], [], []>} : vector<8x32xbf16>, vector<32x128xbf16>, vector<8x128xf32> -> vector<8x128xf32>
    %372 = arith.addf %369, %371 : vector<8x128xf32>
    %373 = vector.extract_strided_slice %372 {offsets = [0, 0], sizes = [8, 96], strides = [1, 1]} : vector<8x128xf32> to vector<8x96xf32>
    %374 = arith.negf %373 : vector<8x96xf32>
    %375 = math.exp %374 : vector<8x96xf32>
    %cst_142 = arith.constant 1.000000e+00 : f32
    %376 = vector.broadcast %cst_142 : f32 to vector<8x96xf32>
    %377 = arith.addf %376, %375 : vector<8x96xf32>
    %378 = arith.divf %376, %377 : vector<8x96xf32>
    %379 = vector.extract_strided_slice %372 {offsets = [0, 96], sizes = [8, 32], strides = [1, 1]} : vector<8x128xf32> to vector<8x32xf32>
    %380 = math.tanh %379 : vector<8x32xf32>
    %381 = vector.extract_strided_slice %378 {offsets = [0, 0], sizes = [8, 32], strides = [1, 1]} : vector<8x96xf32> to vector<8x32xf32>
    %382 = vector.extract_strided_slice %378 {offsets = [0, 32], sizes = [8, 32], strides = [1, 1]} : vector<8x96xf32> to vector<8x32xf32>
    %383 = vector.extract_strided_slice %378 {offsets = [0, 64], sizes = [8, 32], strides = [1, 1]} : vector<8x96xf32> to vector<8x32xf32>
    %384 = arith.mulf %382, %365 : vector<8x32xf32>
    %385 = arith.mulf %381, %380 : vector<8x32xf32>
    %386 = arith.addf %384, %385 : vector<8x32xf32>
    %387 = math.tanh %386 : vector<8x32xf32>
    %388 = arith.mulf %383, %387 : vector<8x32xf32>
    %389 = vector.extract_strided_slice %321 {offsets = [3, 0, 0], sizes = [1, 8, 128], strides = [1, 1, 1]} : vector<5x8x128xf32> to vector<1x8x128xf32>
    %390 = vector.shape_cast %389 : vector<1x8x128xf32> to vector<8x128xf32>
    %391 = arith.truncf %388 : vector<8x32xf32> to vector<8x32xbf16>
    %cst_143 = arith.constant dense<0.000000e+00> : vector<8x128xf32>
    %392 = tpu.matmul %391, %323, %cst_143 {dimension_numbers = #tpu.dot_dimension_numbers<[1], [0], [0], [1], [0, 0, 1, 1], [], []>} : vector<8x32xbf16>, vector<32x128xbf16>, vector<8x128xf32> -> vector<8x128xf32>
    %393 = arith.addf %390, %392 : vector<8x128xf32>
    %394 = vector.extract_strided_slice %393 {offsets = [0, 0], sizes = [8, 96], strides = [1, 1]} : vector<8x128xf32> to vector<8x96xf32>
    %395 = arith.negf %394 : vector<8x96xf32>
    %396 = math.exp %395 : vector<8x96xf32>
    %cst_144 = arith.constant 1.000000e+00 : f32
    %397 = vector.broadcast %cst_144 : f32 to vector<8x96xf32>
    %398 = arith.addf %397, %396 : vector<8x96xf32>
    %399 = arith.divf %397, %398 : vector<8x96xf32>
    %400 = vector.extract_strided_slice %393 {offsets = [0, 96], sizes = [8, 32], strides = [1, 1]} : vector<8x128xf32> to vector<8x32xf32>
    %401 = math.tanh %400 : vector<8x32xf32>
    %402 = vector.extract_strided_slice %399 {offsets = [0, 0], sizes = [8, 32], strides = [1, 1]} : vector<8x96xf32> to vector<8x32xf32>
    %403 = vector.extract_strided_slice %399 {offsets = [0, 32], sizes = [8, 32], strides = [1, 1]} : vector<8x96xf32> to vector<8x32xf32>
    %404 = vector.extract_strided_slice %399 {offsets = [0, 64], sizes = [8, 32], strides = [1, 1]} : vector<8x96xf32> to vector<8x32xf32>
    %405 = arith.mulf %403, %386 : vector<8x32xf32>
    %406 = arith.mulf %402, %401 : vector<8x32xf32>
    %407 = arith.addf %405, %406 : vector<8x32xf32>
    %408 = math.tanh %407 : vector<8x32xf32>
    %409 = arith.mulf %404, %408 : vector<8x32xf32>
    %410 = vector.extract_strided_slice %321 {offsets = [4, 0, 0], sizes = [1, 8, 128], strides = [1, 1, 1]} : vector<5x8x128xf32> to vector<1x8x128xf32>
    %411 = vector.shape_cast %410 : vector<1x8x128xf32> to vector<8x128xf32>
    %412 = arith.truncf %409 : vector<8x32xf32> to vector<8x32xbf16>
    %cst_145 = arith.constant dense<0.000000e+00> : vector<8x128xf32>
    %413 = tpu.matmul %412, %323, %cst_145 {dimension_numbers = #tpu.dot_dimension_numbers<[1], [0], [0], [1], [0, 0, 1, 1], [], []>} : vector<8x32xbf16>, vector<32x128xbf16>, vector<8x128xf32> -> vector<8x128xf32>
    %414 = arith.addf %411, %413 : vector<8x128xf32>
    %415 = vector.extract_strided_slice %414 {offsets = [0, 0], sizes = [8, 96], strides = [1, 1]} : vector<8x128xf32> to vector<8x96xf32>
    %416 = arith.negf %415 : vector<8x96xf32>
    %417 = math.exp %416 : vector<8x96xf32>
    %cst_146 = arith.constant 1.000000e+00 : f32
    %418 = vector.broadcast %cst_146 : f32 to vector<8x96xf32>
    %419 = arith.addf %418, %417 : vector<8x96xf32>
    %420 = arith.divf %418, %419 : vector<8x96xf32>
    %421 = vector.extract_strided_slice %414 {offsets = [0, 96], sizes = [8, 32], strides = [1, 1]} : vector<8x128xf32> to vector<8x32xf32>
    %422 = math.tanh %421 : vector<8x32xf32>
    %423 = vector.extract_strided_slice %420 {offsets = [0, 0], sizes = [8, 32], strides = [1, 1]} : vector<8x96xf32> to vector<8x32xf32>
    %424 = vector.extract_strided_slice %420 {offsets = [0, 32], sizes = [8, 32], strides = [1, 1]} : vector<8x96xf32> to vector<8x32xf32>
    %425 = vector.extract_strided_slice %420 {offsets = [0, 64], sizes = [8, 32], strides = [1, 1]} : vector<8x96xf32> to vector<8x32xf32>
    %426 = arith.mulf %424, %407 : vector<8x32xf32>
    %427 = arith.mulf %423, %422 : vector<8x32xf32>
    %428 = arith.addf %426, %427 : vector<8x32xf32>
    %429 = math.tanh %428 : vector<8x32xf32>
    %430 = arith.mulf %425, %429 : vector<8x32xf32>
    %c0_147 = arith.constant 0 : index
    %c0_148 = arith.constant 0 : index
    %431 = vector.load %arg11[%c0_147, %c0_148] : memref<64x128xf32, #tpu.memory_space<vmem>>, vector<32x128xf32>
    %cst_149 = arith.constant dense<0.000000e+00> : vector<8x128xf32>
    %432 = tpu.matmul %430, %431, %cst_149 {dimension_numbers = #tpu.dot_dimension_numbers<[1], [0], [0], [1], [0, 0, 1, 1], [], []>} : vector<8x32xf32>, vector<32x128xf32>, vector<8x128xf32> -> vector<8x128xf32>
    %c32 = arith.constant 32 : index
    %c0_150 = arith.constant 0 : index
    %433 = vector.load %arg11[%c32, %c0_150] : memref<64x128xf32, #tpu.memory_space<vmem>>, vector<32x128xf32>
    %cst_151 = arith.constant dense<0.000000e+00> : vector<8x128xf32>
    %434 = tpu.matmul %428, %433, %cst_151 {dimension_numbers = #tpu.dot_dimension_numbers<[1], [0], [0], [1], [0, 0, 1, 1], [], []>} : vector<8x32xf32>, vector<32x128xf32>, vector<8x128xf32> -> vector<8x128xf32>
    %435 = arith.addf %432, %434 : vector<8x128xf32>
    %c0_152 = arith.constant 0 : index
    %c0_153 = arith.constant 0 : index
    %436 = vector.load %arg12[%c0_152, %c0_153] : memref<1x128xf32, #tpu.memory_space<vmem>>, vector<1x128xf32>
    %437 = vector.broadcast %436 : vector<1x128xf32> to vector<8x128xf32>
    %438 = arith.addf %435, %437 : vector<8x128xf32>
    %c0_154 = arith.constant 0 : index
    %c0_155 = arith.constant 0 : index
    %439 = vector.load %arg13[%c0_154, %c0_155] : memref<8x128xf32, #tpu.memory_space<vmem>>, vector<8x128xf32>
    tpu.vector_store %arg13[%c0_154, %c0_155], %438 {strides = array<i32>} : memref<8x128xf32, #tpu.memory_space<vmem>>, vector<8x128xf32>,
    return
  }
  func.func @transform_0(%arg0: i32) -> (i32, i32, i32, i32) {
    %c0_i32 = arith.constant 0 : i32
    %c0_i32_0 = arith.constant 0 : i32
    %c0_i32_1 = arith.constant 0 : i32
    %c0_i32_2 = arith.constant 0 : i32
    return %arg0, %c0_i32, %c0_i32_0, %c0_i32_1 : i32, i32, i32, i32
  }
  func.func @transform_1(%arg0: i32) -> (i32, i32, i32) {
    %c0_i32 = arith.constant 0 : i32
    %c0_i32_0 = arith.constant 0 : i32
    %c0_i32_1 = arith.constant 0 : i32
    %c0_i32_2 = arith.constant 0 : i32
    return %c0_i32, %c0_i32_0, %c0_i32_1 : i32, i32, i32
  }
  func.func @transform_2(%arg0: i32) -> (i32, i32) {
    %c0_i32 = arith.constant 0 : i32
    %c0_i32_0 = arith.constant 0 : i32
    %c0_i32_1 = arith.constant 0 : i32
    return %c0_i32, %c0_i32_0 : i32, i32
  }
  func.func @transform_3(%arg0: i32) -> (i32, i32, i32) {
    %c0_i32 = arith.constant 0 : i32
    %c0_i32_0 = arith.constant 0 : i32
    %c0_i32_1 = arith.constant 0 : i32
    %c0_i32_2 = arith.constant 0 : i32
    return %c0_i32, %c0_i32_0, %c0_i32_1 : i32, i32, i32
  }
  func.func @transform_4(%arg0: i32) -> (i32, i32) {
    %c0_i32 = arith.constant 0 : i32
    %c0_i32_0 = arith.constant 0 : i32
    %c0_i32_1 = arith.constant 0 : i32
    return %c0_i32, %c0_i32_0 : i32, i32
  }
  func.func @transform_5(%arg0: i32) -> (i32, i32, i32) {
    %c0_i32 = arith.constant 0 : i32
    %c0_i32_0 = arith.constant 0 : i32
    %c0_i32_1 = arith.constant 0 : i32
    %c0_i32_2 = arith.constant 0 : i32
    return %c0_i32, %c0_i32_0, %c0_i32_1 : i32, i32, i32
  }
  func.func @transform_6(%arg0: i32) -> (i32, i32) {
    %c0_i32 = arith.constant 0 : i32
    %c0_i32_0 = arith.constant 0 : i32
    %c0_i32_1 = arith.constant 0 : i32
    return %c0_i32, %c0_i32_0 : i32, i32
  }
  func.func @transform_7(%arg0: i32) -> (i32, i32, i32) {
    %c0_i32 = arith.constant 0 : i32
    %c0_i32_0 = arith.constant 0 : i32
    %c0_i32_1 = arith.constant 0 : i32
    %c0_i32_2 = arith.constant 0 : i32
    return %c0_i32, %c0_i32_0, %c0_i32_1 : i32, i32, i32
  }
  func.func @transform_8(%arg0: i32) -> (i32, i32, i32) {
    %c0_i32 = arith.constant 0 : i32
    %c0_i32_0 = arith.constant 0 : i32
    %c0_i32_1 = arith.constant 0 : i32
    %c0_i32_2 = arith.constant 0 : i32
    return %c0_i32, %c0_i32_0, %c0_i32_1 : i32, i32, i32
  }
  func.func @transform_9(%arg0: i32) -> (i32, i32, i32) {
    %c0_i32 = arith.constant 0 : i32
    %c0_i32_0 = arith.constant 0 : i32
    %c0_i32_1 = arith.constant 0 : i32
    %c0_i32_2 = arith.constant 0 : i32
    return %c0_i32, %c0_i32_0, %c0_i32_1 : i32, i32, i32
  }
  func.func @transform_10(%arg0: i32) -> (i32, i32) {
    %c0_i32 = arith.constant 0 : i32
    %c0_i32_0 = arith.constant 0 : i32
    %c0_i32_1 = arith.constant 0 : i32
    return %c0_i32, %c0_i32_0 : i32, i32
  }
  func.func @transform_11(%arg0: i32) -> (i32, i32) {
    %c0_i32 = arith.constant 0 : i32
    %c0_i32_0 = arith.constant 0 : i32
    %c0_i32_1 = arith.constant 0 : i32
    return %c0_i32, %c0_i32_0 : i32, i32
  }
  func.func @transform_12(%arg0: i32) -> (i32, i32) {
    %c0_i32 = arith.constant 0 : i32
    %c0_i32_0 = arith.constant 0 : i32
    return %arg0, %c0_i32 : i32, i32
  }
}

</mosaic_0001>

<llo_original>
// kernel: tpu_custom_call.1
$region0: #{tpu_custom_call.1}
  #allocation0 [shape = 'u32[]', space=smem, size = 0x4, offset = 0x4, fixed_abs, tag = 'smem constant byte address 0x4 - core index']
  #allocation1 [shape = 'u32[144,128]{1,0:T(1,128)}', space=vmem, size = 0x12000, scoped, tag = 'internal scratch']
  #allocation2 [shape = 'f32[5,8,32]{2,1,0:T(8,128)}', space=vmem, size = 0x5000, scoped, tag = 'scratch operand']
  %s0 = inlined_call_operand.vmem [shape: f32[1,64,8,12], index: 0, kind: input, shape index: {}]
  %s1 = inlined_call_operand.vmem [shape: bf16[9,12,32], index: 1, kind: input, shape index: {}]
  %s2 = inlined_call_operand.vmem [shape: f32[1,32], index: 2, kind: input, shape index: {}]
  %s3 = inlined_call_operand.vmem [shape: bf16[5,32,64], index: 3, kind: input, shape index: {}]
  %s4 = inlined_call_operand.vmem [shape: f32[1,64], index: 4, kind: input, shape index: {}]
  %s5 = inlined_call_operand.vmem [shape: bf16[5,64,32], index: 5, kind: input, shape index: {}]
  %s6 = inlined_call_operand.vmem [shape: f32[1,32], index: 6, kind: input, shape index: {}]
  %s7 = inlined_call_operand.vmem [shape: bf16[2,32,128], index: 7, kind: input, shape index: {}]
  %s8 = inlined_call_operand.vmem [shape: bf16[2,32,128], index: 8, kind: input, shape index: {}]
  %s9 = inlined_call_operand.vmem [shape: f32[2,1,128], index: 9, kind: input, shape index: {}]
  %s10 = inlined_call_operand.vmem [shape: f32[64,128], index: 10, kind: input, shape index: {}]
  %s11 = inlined_call_operand.vmem [shape: f32[1,128], index: 11, kind: input, shape index: {}]
  %s12 = inlined_call_operand.hbm [shape: f32[8,128], index: 12, kind: output, shape index: {}]
  %s13 = sld [smem:[#allocation0]]
  $region58: #{tpu_custom_call.1} parent=0
    _
  %s15 = ssub.s32 1, %s13
  %s16 = scalar_select 0, %s15, %s13
  $region1: #{tpu_custom_call.1} parent=0
    #allocation3 [shape = 'u8[4096]{0}', space=vmem, size = 0x1000, scoped, tag = 'output window, operand 0, single buffered']
    #allocation4 [shape = 's32[1]{0}', space=sflag, size = 0x4, scoped, tag = 'scoped memory for tpu_custom_call.1']
    %17 = vsyncpa [#allocation4], 0
    // Predicated region
    $region2: #{tpu_custom_call.1} parent=1 // pred_check
      _
    $region3: #{tpu_custom_call.1} parent=1 // pred_check_branch
      %19 = sbr.rel (0) target = $region5
    $region4: #{tpu_custom_call.1} parent=1 // pred_region
      _
    $region5: #{tpu_custom_call.1} parent=1 // pred_fallthru
      _
    // Predicated region
    $region6: #{tpu_custom_call.1} parent=1 // pred_check
      _
    $region7: #{tpu_custom_call.1} parent=1 // pred_check_branch
      %21 = sbr.rel (0) target = $region9
    $region8: #{tpu_custom_call.1} parent=1 // pred_region
      _
    $region9: #{tpu_custom_call.1} parent=1 // pred_fallthru
      _
    // Predicated region
    $region10: #{tpu_custom_call.1} parent=1 // pred_check
      _
    $region11: #{tpu_custom_call.1} parent=1 // pred_check_branch
      %23 = sbr.rel (0) target = $region13
    $region12: #{tpu_custom_call.1} parent=1 // pred_region
      _
    $region13: #{tpu_custom_call.1} parent=1 // pred_fallthru
      _
    // Predicated region
    $region14: #{tpu_custom_call.1} parent=1 // pred_check
      _
    $region15: #{tpu_custom_call.1} parent=1 // pred_check_branch
      %25 = sbr.rel (0) target = $region17
    $region16: #{tpu_custom_call.1} parent=1 // pred_region
      _
    $region17: #{tpu_custom_call.1} parent=1 // pred_fallthru
      _
    // Predicated region
    $region18: #{tpu_custom_call.1} parent=1 // pred_check
      _
    $region19: #{tpu_custom_call.1} parent=1 // pred_check_branch
      %27 = sbr.rel (0) target = $region21
    $region20: #{tpu_custom_call.1} parent=1 // pred_region
      _
    $region21: #{tpu_custom_call.1} parent=1 // pred_fallthru
      _
    // Predicated region
    $region22: #{tpu_custom_call.1} parent=1 // pred_check
      _
    $region23: #{tpu_custom_call.1} parent=1 // pred_check_branch
      %29 = sbr.rel (0) target = $region25
    $region24: #{tpu_custom_call.1} parent=1 // pred_region
      _
    $region25: #{tpu_custom_call.1} parent=1 // pred_fallthru
      _
    // Predicated region
    $region26: #{tpu_custom_call.1} parent=1 // pred_check
      _
    $region27: #{tpu_custom_call.1} parent=1 // pred_check_branch
      %31 = sbr.rel (0) target = $region29
    $region28: #{tpu_custom_call.1} parent=1 // pred_region
      _
    $region29: #{tpu_custom_call.1} parent=1 // pred_fallthru
      _
    // Predicated region
    $region30: #{tpu_custom_call.1} parent=1 // pred_check
      _
    $region31: #{tpu_custom_call.1} parent=1 // pred_check_branch
      %33 = sbr.rel (0) target = $region33
    $region32: #{tpu_custom_call.1} parent=1 // pred_region
      _
    $region33: #{tpu_custom_call.1} parent=1 // pred_fallthru
      _
    // Predicated region
    $region34: #{tpu_custom_call.1} parent=1 // pred_check
      _
    $region35: #{tpu_custom_call.1} parent=1 // pred_check_branch
      %35 = sbr.rel (0) target = $region37
    $region36: #{tpu_custom_call.1} parent=1 // pred_region
      _
    $region37: #{tpu_custom_call.1} parent=1 // pred_fallthru
      _
    // Predicated region
    $region38: #{tpu_custom_call.1} parent=1 // pred_check
      _
    $region39: #{tpu_custom_call.1} parent=1 // pred_check_branch
      %37 = sbr.rel (0) target = $region41
    $region40: #{tpu_custom_call.1} parent=1 // pred_region
      _
    $region41: #{tpu_custom_call.1} parent=1 // pred_fallthru
      _
    // Predicated region
    $region42: #{tpu_custom_call.1} parent=1 // pred_check
      _
    $region43: #{tpu_custom_call.1} parent=1 // pred_check_branch
      %39 = sbr.rel (0) target = $region45
    $region44: #{tpu_custom_call.1} parent=1 // pred_region
      _
    $region45: #{tpu_custom_call.1} parent=1 // pred_fallthru
      _
    // Predicated region
    $region46: #{tpu_custom_call.1} parent=1 // pred_check
      _
    $region47: #{tpu_custom_call.1} parent=1 // pred_check_branch
      %41 = sbr.rel (0) target = $region49
    $region48: #{tpu_custom_call.1} parent=1 // pred_region
      _
    $region49: #{tpu_custom_call.1} parent=1 // pred_fallthru
      _
    %v43 = vld [vmem:[%s0] sm:$0xff]
    %v44 = vld [vmem:[%s0 + $0x8] sm:$0xff]
    %v45 = vld [vmem:[%s0 + $0x10] sm:$0xff]
    %v46 = vld [vmem:[%s0 + $0x18] sm:$0xff]
    %v47 = vld [vmem:[%s0 + $0x20] sm:$0xff]
    %v48 = vld [vmem:[%s0 + $0x28] sm:$0xff]
    %v49 = vld [vmem:[%s0 + $0x30] sm:$0xff]
    %v50 = vld [vmem:[%s0 + $0x38] sm:$0xff]
    %v51 = vld [vmem:[%s0 + $0x40] sm:$0xff]
    %v52 = vld [vmem:[%s0 + $0x48] sm:$0xff]
    %v53 = vld [vmem:[%s0 + $0x50] sm:$0xff]
    %v54 = vld [vmem:[%s0 + $0x58] sm:$0xff]
    %v55 = vld [vmem:[%s0 + $0x60] sm:$0xff]
    %v56 = vld [vmem:[%s0 + $0x68] sm:$0xff]
    %v57 = vld [vmem:[%s0 + $0x70] sm:$0xff]
    %v58 = vld [vmem:[%s0 + $0x78] sm:$0xff]
    %v59 = vld [vmem:[%s0 + $0x80] sm:$0xff]
    %v60 = vld [vmem:[%s0 + $0x88] sm:$0xff]
    %v61 = vld [vmem:[%s0 + $0x90] sm:$0xff]
    %v62 = vld [vmem:[%s0 + $0x98] sm:$0xff]
    %v63 = vld [vmem:[%s0 + $0xa0] sm:$0xff]
    %v64 = vld [vmem:[%s0 + $0xa8] sm:$0xff]
    %v65 = vld [vmem:[%s0 + $0xb0] sm:$0xff]
    %v66 = vld [vmem:[%s0 + $0xb8] sm:$0xff]
    %v67 = vld [vmem:[%s0 + $0xc0] sm:$0xff]
    %v68 = vld [vmem:[%s0 + $0xc8] sm:$0xff]
    %v69 = vld [vmem:[%s0 + $0xd0] sm:$0xff]
    %v70 = vld [vmem:[%s0 + $0xd8] sm:$0xff]
    %v71 = vld [vmem:[%s0 + $0xe0] sm:$0xff]
    %v72 = vld [vmem:[%s0 + $0xe8] sm:$0xff]
    %v73 = vld [vmem:[%s0 + $0xf0] sm:$0xff]
    %v74 = vld [vmem:[%s0 + $0xf8] sm:$0xff]
    %v75 = vld [vmem:[%s0 + $0x100] sm:$0xff]
    %v76 = vld [vmem:[%s0 + $0x108] sm:$0xff]
    %v77 = vld [vmem:[%s0 + $0x110] sm:$0xff]
    %v78 = vld [vmem:[%s0 + $0x118] sm:$0xff]
    %v79 = vld [vmem:[%s0 + $0x120] sm:$0xff]
    %v80 = vld [vmem:[%s0 + $0x128] sm:$0xff]
    %v81 = vld [vmem:[%s0 + $0x130] sm:$0xff]
    %v82 = vld [vmem:[%s0 + $0x138] sm:$0xff]
    %v83 = vld [vmem:[%s0 + $0x140] sm:$0xff]
    %v84 = vld [vmem:[%s0 + $0x148] sm:$0xff]
    %v85 = vld [vmem:[%s0 + $0x150] sm:$0xff]
    %v86 = vld [vmem:[%s0 + $0x158] sm:$0xff]
    %v87 = vld [vmem:[%s0 + $0x160] sm:$0xff]
    %v88 = vld [vmem:[%s0 + $0x168] sm:$0xff]
    %v89 = vld [vmem:[%s0 + $0x170] sm:$0xff]
    %v90 = vld [vmem:[%s0 + $0x178] sm:$0xff]
    %v91 = vld [vmem:[%s0 + $0x180] sm:$0xff]
    %v92 = vld [vmem:[%s0 + $0x188] sm:$0xff]
    %v93 = vld [vmem:[%s0 + $0x190] sm:$0xff]
    %v94 = vld [vmem:[%s0 + $0x198] sm:$0xff]
    %v95 = vld [vmem:[%s0 + $0x1a0] sm:$0xff]
    %v96 = vld [vmem:[%s0 + $0x1a8] sm:$0xff]
    %v97 = vld [vmem:[%s0 + $0x1b0] sm:$0xff]
    %v98 = vld [vmem:[%s0 + $0x1b8] sm:$0xff]
    %v99 = vld [vmem:[%s0 + $0x1c0] sm:$0xff]
    %v100 = vld [vmem:[%s0 + $0x1c8] sm:$0xff]
    %v101 = vld [vmem:[%s0 + $0x1d0] sm:$0xff]
    %v102 = vld [vmem:[%s0 + $0x1d8] sm:$0xff]
    %v103 = vld [vmem:[%s0 + $0x1e0] sm:$0xff]
    %v104 = vld [vmem:[%s0 + $0x1e8] sm:$0xff]
    %v105 = vld [vmem:[%s0 + $0x1f0] sm:$0xff]
    %v106 = vld [vmem:[%s0 + $0x1f8] sm:$0xff]
    %v107 = vpack.c.bf16 %v43, %v43
    %v108 = vpack.c.bf16 %v44, %v44
    %v109 = vpack.c.bf16 %v45, %v45
    %v110 = vpack.c.bf16 %v46, %v46
    %v111 = vpack.c.bf16 %v47, %v47
    %v112 = vpack.c.bf16 %v48, %v48
    %v113 = vpack.c.bf16 %v49, %v49
    %v114 = vpack.c.bf16 %v50, %v50
    %v115 = vpack.c.bf16 %v51, %v51
    %v116 = vpack.c.bf16 %v52, %v52
    %v117 = vpack.c.bf16 %v53, %v53
    %v118 = vpack.c.bf16 %v54, %v54
    %v119 = vpack.c.bf16 %v55, %v55
    %v120 = vpack.c.bf16 %v56, %v56
    %v121 = vpack.c.bf16 %v57, %v57
    %v122 = vpack.c.bf16 %v58, %v58
    %v123 = vpack.c.bf16 %v59, %v59
    %v124 = vpack.c.bf16 %v60, %v60
    %v125 = vpack.c.bf16 %v61, %v61
    %v126 = vpack.c.bf16 %v62, %v62
    %v127 = vpack.c.bf16 %v63, %v63
    %v128 = vpack.c.bf16 %v64, %v64
    %v129 = vpack.c.bf16 %v65, %v65
    %v130 = vpack.c.bf16 %v66, %v66
    %v131 = vpack.c.bf16 %v67, %v67
    %v132 = vpack.c.bf16 %v68, %v68
    %v133 = vpack.c.bf16 %v69, %v69
    %v134 = vpack.c.bf16 %v70, %v70
    %v135 = vpack.c.bf16 %v71, %v71
    %v136 = vpack.c.bf16 %v72, %v72
    %v137 = vpack.c.bf16 %v73, %v73
    %v138 = vpack.c.bf16 %v74, %v74
    %v139 = vpack.c.bf16 %v75, %v75
    %v140 = vpack.c.bf16 %v76, %v76
    %v141 = vpack.c.bf16 %v77, %v77
    %v142 = vpack.c.bf16 %v78, %v78
    %v143 = vpack.c.bf16 %v79, %v79
    %v144 = vpack.c.bf16 %v80, %v80
    %v145 = vpack.c.bf16 %v81, %v81
    %v146 = vpack.c.bf16 %v82, %v82
    %v147 = vpack.c.bf16 %v83, %v83
    %v148 = vpack.c.bf16 %v84, %v84
    %v149 = vpack.c.bf16 %v85, %v85
    %v150 = vpack.c.bf16 %v86, %v86
    %v151 = vpack.c.bf16 %v87, %v87
    %v152 = vpack.c.bf16 %v88, %v88
    %v153 = vpack.c.bf16 %v89, %v89
    %v154 = vpack.c.bf16 %v90, %v90
    %v155 = vpack.c.bf16 %v91, %v91
    %v156 = vpack.c.bf16 %v92, %v92
    %v157 = vpack.c.bf16 %v93, %v93
    %v158 = vpack.c.bf16 %v94, %v94
    %v159 = vpack.c.bf16 %v95, %v95
    %v160 = vpack.c.bf16 %v96, %v96
    %v161 = vpack.c.bf16 %v97, %v97
    %v162 = vpack.c.bf16 %v98, %v98
    %v163 = vpack.c.bf16 %v99, %v99
    %v164 = vpack.c.bf16 %v100, %v100
    %v165 = vpack.c.bf16 %v101, %v101
    %v166 = vpack.c.bf16 %v102, %v102
    %v167 = vpack.c.bf16 %v103, %v103
    %v168 = vpack.c.bf16 %v104, %v104
    %v169 = vpack.c.bf16 %v105, %v105
    %v170 = vpack.c.bf16 %v106, %v106
    %v171 = vld [vmem:[%s1] sm:$0xf]
    %v172 = vld [vmem:[%s1 + $0x4] sm:$0x3]
    %s173 = scalar_lea.vmem %s1, 8
    %v174 = vld [vmem:[%s173] sm:$0xf]
    %v175 = vld [vmem:[%s173 + $0x4] sm:$0x3]
    %v232 = vunpack.c.l.b16 %v108
    %v233 = vunpack.c.l.b16 %v109
    %v234 = vunpack.c.l.b16 %v110
    %v235 = vunpack.c.l.b16 %v111
    %v236 = vunpack.c.l.b16 %v112
    %v237 = vunpack.c.l.b16 %v113
    %v238 = vunpack.c.l.b16 %v114
    %v239 = vunpack.c.l.b16 %v115
    %v240 = vunpack.c.l.b16 %v116
    %v241 = vunpack.c.l.b16 %v117
    %v242 = vunpack.c.l.b16 %v118
    %v243 = vunpack.c.l.b16 %v119
    %v244 = vunpack.c.l.b16 %v120
    %v245 = vunpack.c.l.b16 %v121
    %v246 = vunpack.c.l.b16 %v122
    %v247 = vunpack.c.l.b16 %v123
    %v248 = vunpack.c.l.b16 %v124
    %v249 = vunpack.c.l.b16 %v125
    %v250 = vunpack.c.l.b16 %v126
    %v251 = vunpack.c.l.b16 %v127
    %v252 = vunpack.c.l.b16 %v128
    %v253 = vunpack.c.l.b16 %v129
    %v254 = vunpack.c.l.b16 %v130
    %v255 = vunpack.c.l.b16 %v131
    %v256 = vunpack.c.l.b16 %v132
    %v257 = vunpack.c.l.b16 %v133
    %v258 = vunpack.c.l.b16 %v134
    %v259 = vunpack.c.l.b16 %v135
    %v260 = vunpack.c.l.b16 %v136
    %v261 = vunpack.c.l.b16 %v137
    %v262 = vunpack.c.l.b16 %v138
    %v263 = vunpack.c.l.b16 %v139
    %v264 = vunpack.c.l.b16 %v140
    %v265 = vunpack.c.l.b16 %v141
    %v266 = vunpack.c.l.b16 %v142
    %v267 = vunpack.c.l.b16 %v143
    %v268 = vunpack.c.l.b16 %v144
    %v269 = vunpack.c.l.b16 %v145
    %v270 = vunpack.c.l.b16 %v146
    %v271 = vunpack.c.l.b16 %v147
    %v272 = vunpack.c.l.b16 %v148
    %v273 = vunpack.c.l.b16 %v149
    %v274 = vunpack.c.l.b16 %v150
    %v275 = vunpack.c.l.b16 %v151
    %v276 = vunpack.c.l.b16 %v152
    %v277 = vunpack.c.l.b16 %v153
    %v278 = vunpack.c.l.b16 %v154
    %v279 = vunpack.c.l.b16 %v155
    %v280 = vunpack.c.l.b16 %v156
    %v281 = vunpack.c.l.b16 %v157
    %v282 = vunpack.c.l.b16 %v158
    %v283 = vunpack.c.l.b16 %v159
    %v284 = vunpack.c.l.b16 %v160
    %v285 = vunpack.c.l.b16 %v161
    %v286 = vunpack.c.l.b16 %v162
    %v287 = vunpack.c.l.b16 %v163
    %v288 = vpack.c.b16 %v233, %v232
    %v289 = vpack.c.b16 %v235, %v234
    %v290 = vpack.c.b16 %v237, %v236
    %v291 = vpack.c.b16 %v239, %v238
    %v292 = vpack.c.b16 %v241, %v240
    %v293 = vpack.c.b16 %v243, %v242
    %v294 = vpack.c.b16 %v245, %v244
    %v295 = vpack.c.b16 %v247, %v246
    %v296 = vpack.c.b16 %v249, %v248
    %v297 = vpack.c.b16 %v251, %v250
    %v298 = vpack.c.b16 %v253, %v252
    %v299 = vpack.c.b16 %v255, %v254
    %v300 = vpack.c.b16 %v257, %v256
    %v301 = vpack.c.b16 %v259, %v258
    %v302 = vpack.c.b16 %v261, %v260
    %v303 = vpack.c.b16 %v263, %v262
    %v304 = vpack.c.b16 %v265, %v264
    %v305 = vpack.c.b16 %v267, %v266
    %v306 = vpack.c.b16 %v269, %v268
    %v307 = vpack.c.b16 %v271, %v270
    %v308 = vpack.c.b16 %v273, %v272
    %v309 = vpack.c.b16 %v275, %v274
    %v310 = vpack.c.b16 %v277, %v276
    %v311 = vpack.c.b16 %v279, %v278
    %v312 = vpack.c.b16 %v281, %v280
    %v313 = vpack.c.b16 %v283, %v282
    %v314 = vpack.c.b16 %v285, %v284
    %v315 = vpack.c.b16 %v287, %v286
    %v318 = vunpack.c.l.b16 %v174
    %v319 = vunpack.c.l.b16 %v175
    %v320 = vpack.c.b16 %v319, %v318
    %vm321 = vcmask 97280
    %v323 = vsel %vm321, %v288, 0
    %v326 = vsel %vm321, %v289, 0
    %v329 = vsel %vm321, %v290, 0
    %v332 = vsel %vm321, %v291, 0
    %v335 = vsel %vm321, %v292, 0
    %v338 = vsel %vm321, %v293, 0
    %v341 = vsel %vm321, %v294, 0
    %v344 = vsel %vm321, %v295, 0
    %v347 = vsel %vm321, %v296, 0
    %v350 = vsel %vm321, %v297, 0
    %v353 = vsel %vm321, %v298, 0
    %v356 = vsel %vm321, %v299, 0
    %v359 = vsel %vm321, %v300, 0
    %v362 = vsel %vm321, %v301, 0
    %v365 = vsel %vm321, %v302, 0
    %v368 = vsel %vm321, %v303, 0
    %v371 = vsel %vm321, %v304, 0
    %v374 = vsel %vm321, %v305, 0
    %v377 = vsel %vm321, %v306, 0
    %v380 = vsel %vm321, %v307, 0
    %v383 = vsel %vm321, %v308, 0
    %v386 = vsel %vm321, %v309, 0
    %v389 = vsel %vm321, %v310, 0
    %v392 = vsel %vm321, %v311, 0
    %v395 = vsel %vm321, %v312, 0
    %v398 = vsel %vm321, %v313, 0
    %v401 = vsel %vm321, %v314, 0
    %v404 = vsel %vm321, %v315, 0
    %vm406 = vcmask 1045504
    %v408 = vsel %vm406, %v320, 0
    %410 = vmatprep.subr.bf16.mxu0 0
    %411 = vmatpush1.bf16.msra.mxu0 %v408
    %412 = vmatprep.subr.bf16.mxu0 0
    %413 = vmatpush1.bf16.msra.mxu0 0
    %414 = vmatprep.subr.bf16.mxu0 0
    %415 = vmatpush1.bf16.msra.mxu0 0
    %416 = vmatprep.subr.bf16.mxu0 0
    %417 = vmatpush1.bf16.msra.mxu0 0
    %418 = vmatprep.subr.bf16.mxu0 0
    %419 = vmatpush1.bf16.msra.mxu0 0
    %420 = vmatprep.subr.bf16.mxu0 0
    %421 = vmatpush1.bf16.msra.mxu0 0
    %422 = vmatprep.subr.bf16.mxu0 0
    %423 = vmatpush1.bf16.msra.mxu0 0
    %424 = vmatprep.subr.bf16.mxu0 0
    %425 = vmatpush1.bf16.msra.mxu0 0
    %426 = vmatprep.subr.bf16.mxu0 0
    %427 = vmatpush1.bf16.msra.mxu0 0
    %428 = vmatprep.subr.bf16.mxu0 0
    %429 = vmatpush1.bf16.msra.mxu0 0
    %430 = vmatprep.subr.bf16.mxu0 0
    %431 = vmatpush1.bf16.msra.mxu0 0
    %432 = vmatprep.subr.bf16.mxu0 0
    %433 = vmatpush1.bf16.msra.mxu0 0
    %434 = vmatprep.subr.bf16.mxu0 0
    %435 = vmatpush1.bf16.msra.mxu0 0
    %436 = vmatprep.subr.bf16.mxu0 0
    %437 = vmatpush1.bf16.msra.mxu0 0
    %438 = vmatprep.subr.bf16.mxu0 0
    %439 = vmatpush1.bf16.msra.mxu0 0
    %440 = vmatprep.subr.bf16.mxu0 0
    %441 = vmatpush1.bf16.msra.mxu0 0
    %442 = vmatprep.mubr.bf16.mxu0 0
    %443 = vmatmul.mubr.bf16.gmra.mrb[0].mxu0 %v323
    %v444 = vpop.f32.mrb[0].mxu0
    %v445 = vadd.f32 0.0, %v444
    %v446 = vpop.f32.mrb[0].mxu0
    %v447 = vpop.f32.mrb[0].mxu0
    %v448 = vadd.f32 0.0, %v447
    %v449 = vpop.f32.mrb[0].mxu0
    %450 = vmatprep.mubr.bf16.mxu0 0
    %451 = vmatmul.mubr.bf16.gmra.mrb[0].mxu0 %v326
    %v452 = vpop.f32.mrb[0].mxu0
    %v453 = vadd.f32 0.0, %v452
    %v454 = vpop.f32.mrb[0].mxu0
    %v455 = vpop.f32.mrb[0].mxu0
    %v456 = vadd.f32 0.0, %v455
    %v457 = vpop.f32.mrb[0].mxu0
    %458 = vmatprep.mubr.bf16.mxu0 0
    %459 = vmatmul.mubr.bf16.gmra.mrb[0].mxu0 %v329
    %v460 = vpop.f32.mrb[0].mxu0
    %v461 = vadd.f32 0.0, %v460
    %v462 = vpop.f32.mrb[0].mxu0
    %v463 = vpop.f32.mrb[0].mxu0
    %v464 = vadd.f32 0.0, %v463
    %v465 = vpop.f32.mrb[0].mxu0
    %466 = vmatprep.mubr.bf16.mxu0 0
    %467 = vmatmul.mubr.bf16.gmra.mrb[0].mxu0 %v332
    %v468 = vpop.f32.mrb[0].mxu0
    %v469 = vadd.f32 0.0, %v468
    %v470 = vpop.f32.mrb[0].mxu0
    %v471 = vpop.f32.mrb[0].mxu0
    %v472 = vadd.f32 0.0, %v471
    %v473 = vpop.f32.mrb[0].mxu0
    %474 = vmatprep.mubr.bf16.mxu0 0
    %475 = vmatmul.mubr.bf16.gmra.mrb[0].mxu0 %v335
    %v476 = vpop.f32.mrb[0].mxu0
    %v477 = vadd.f32 0.0, %v476
    %v478 = vpop.f32.mrb[0].mxu0
    %v479 = vpop.f32.mrb[0].mxu0
    %v480 = vadd.f32 0.0, %v479
    %v481 = vpop.f32.mrb[0].mxu0
    %482 = vmatprep.mubr.bf16.mxu0 0
    %483 = vmatmul.mubr.bf16.gmra.mrb[0].mxu0 %v338
    %v484 = vpop.f32.mrb[0].mxu0
    %v485 = vadd.f32 0.0, %v484
    %v486 = vpop.f32.mrb[0].mxu0
    %v487 = vpop.f32.mrb[0].mxu0
    %v488 = vadd.f32 0.0, %v487
    %v489 = vpop.f32.mrb[0].mxu0
    %490 = vmatprep.mubr.bf16.mxu0 0
    %491 = vmatmul.mubr.bf16.gmra.mrb[0].mxu0 %v341
    %v492 = vpop.f32.mrb[0].mxu0
    %v493 = vadd.f32 0.0, %v492
    %v494 = vpop.f32.mrb[0].mxu0
    %v495 = vpop.f32.mrb[0].mxu0
    %v496 = vadd.f32 0.0, %v495
    %v497 = vpop.f32.mrb[0].mxu0
    %498 = vmatprep.mubr.bf16.mxu0 0
    %499 = vmatmul.mubr.bf16.gmra.mrb[0].mxu0 %v344
    %v500 = vpop.f32.mrb[0].mxu0
    %v501 = vadd.f32 0.0, %v500
    %v502 = vpop.f32.mrb[0].mxu0
    %v503 = vpop.f32.mrb[0].mxu0
    %v504 = vadd.f32 0.0, %v503
    %v505 = vpop.f32.mrb[0].mxu0
    %506 = vmatprep.mubr.bf16.mxu0 0
    %507 = vmatmul.mubr.bf16.gmra.mrb[0].mxu0 %v347
    %v508 = vpop.f32.mrb[0].mxu0
    %v509 = vadd.f32 0.0, %v508
    %v510 = vpop.f32.mrb[0].mxu0
    %v511 = vpop.f32.mrb[0].mxu0
    %v512 = vadd.f32 0.0, %v511
    %v513 = vpop.f32.mrb[0].mxu0
    %514 = vmatprep.mubr.bf16.mxu0 0
    %515 = vmatmul.mubr.bf16.gmra.mrb[0].mxu0 %v350
    %v516 = vpop.f32.mrb[0].mxu0
    %v517 = vadd.f32 0.0, %v516
    %v518 = vpop.f32.mrb[0].mxu0
    %v519 = vpop.f32.mrb[0].mxu0
    %v520 = vadd.f32 0.0, %v519
    %v521 = vpop.f32.mrb[0].mxu0
    %522 = vmatprep.mubr.bf16.mxu0 0
    %523 = vmatmul.mubr.bf16.gmra.mrb[0].mxu0 %v353
    %v524 = vpop.f32.mrb[0].mxu0
    %v525 = vadd.f32 0.0, %v524
    %v526 = vpop.f32.mrb[0].mxu0
    %v527 = vpop.f32.mrb[0].mxu0
    %v528 = vadd.f32 0.0, %v527
    %v529 = vpop.f32.mrb[0].mxu0
    %530 = vmatprep.mubr.bf16.mxu0 0
    %531 = vmatmul.mubr.bf16.gmra.mrb[0].mxu0 %v356
    %v532 = vpop.f32.mrb[0].mxu0
    %v533 = vadd.f32 0.0, %v532
    %v534 = vpop.f32.mrb[0].mxu0
    %v535 = vpop.f32.mrb[0].mxu0
    %v536 = vadd.f32 0.0, %v535
    %v537 = vpop.f32.mrb[0].mxu0
    %538 = vmatprep.mubr.bf16.mxu0 0
    %539 = vmatmul.mubr.bf16.gmra.mrb[0].mxu0 %v359
    %v540 = vpop.f32.mrb[0].mxu0
    %v541 = vadd.f32 0.0, %v540
    %v542 = vpop.f32.mrb[0].mxu0
    %v543 = vpop.f32.mrb[0].mxu0
    %v544 = vadd.f32 0.0, %v543
    %v545 = vpop.f32.mrb[0].mxu0
    %546 = vmatprep.mubr.bf16.mxu0 0
    %547 = vmatmul.mubr.bf16.gmra.mrb[0].mxu0 %v362
    %v548 = vpop.f32.mrb[0].mxu0
    %v549 = vadd.f32 0.0, %v548
    %v550 = vpop.f32.mrb[0].mxu0
    %v551 = vpop.f32.mrb[0].mxu0
    %v552 = vadd.f32 0.0, %v551
    %v553 = vpop.f32.mrb[0].mxu0
    %554 = vmatprep.mubr.bf16.mxu0 0
    %555 = vmatmul.mubr.bf16.gmra.mrb[0].mxu0 %v365
    %v556 = vpop.f32.mrb[0].mxu0
    %v557 = vadd.f32 0.0, %v556
    %v558 = vpop.f32.mrb[0].mxu0
    %v559 = vpop.f32.mrb[0].mxu0
    %v560 = vadd.f32 0.0, %v559
    %v561 = vpop.f32.mrb[0].mxu0
    %562 = vmatprep.mubr.bf16.mxu0 0
    %563 = vmatmul.mubr.bf16.gmra.mrb[0].mxu0 %v368
    %v564 = vpop.f32.mrb[0].mxu0
    %v565 = vadd.f32 0.0, %v564
    %v566 = vpop.f32.mrb[0].mxu0
    %v567 = vpop.f32.mrb[0].mxu0
    %v568 = vadd.f32 0.0, %v567
    %v569 = vpop.f32.mrb[0].mxu0
    %570 = vmatprep.mubr.bf16.mxu0 0
    %571 = vmatmul.mubr.bf16.gmra.mrb[0].mxu0 %v371
    %v572 = vpop.f32.mrb[0].mxu0
    %v573 = vadd.f32 0.0, %v572
    %v574 = vpop.f32.mrb[0].mxu0
    %v575 = vpop.f32.mrb[0].mxu0
    %v576 = vadd.f32 0.0, %v575
    %v577 = vpop.f32.mrb[0].mxu0
    %578 = vmatprep.mubr.bf16.mxu0 0
    %579 = vmatmul.mubr.bf16.gmra.mrb[0].mxu0 %v374
    %v580 = vpop.f32.mrb[0].mxu0
    %v581 = vadd.f32 0.0, %v580
    %v582 = vpop.f32.mrb[0].mxu0
    %v583 = vpop.f32.mrb[0].mxu0
    %v584 = vadd.f32 0.0, %v583
    %v585 = vpop.f32.mrb[0].mxu0
    %586 = vmatprep.mubr.bf16.mxu0 0
    %587 = vmatmul.mubr.bf16.gmra.mrb[0].mxu0 %v377
    %v588 = vpop.f32.mrb[0].mxu0
    %v589 = vadd.f32 0.0, %v588
    %v590 = vpop.f32.mrb[0].mxu0
    %v591 = vpop.f32.mrb[0].mxu0
    %v592 = vadd.f32 0.0, %v591
    %v593 = vpop.f32.mrb[0].mxu0
    %594 = vmatprep.mubr.bf16.mxu0 0
    %595 = vmatmul.mubr.bf16.gmra.mrb[0].mxu0 %v380
    %v596 = vpop.f32.mrb[0].mxu0
    %v597 = vadd.f32 0.0, %v596
    %v598 = vpop.f32.mrb[0].mxu0
    %v599 = vpop.f32.mrb[0].mxu0
    %v600 = vadd.f32 0.0, %v599
    %v601 = vpop.f32.mrb[0].mxu0
    %602 = vmatprep.mubr.bf16.mxu0 0
    %603 = vmatmul.mubr.bf16.gmra.mrb[0].mxu0 %v383
    %v604 = vpop.f32.mrb[0].mxu0
    %v605 = vadd.f32 0.0, %v604
    %v606 = vpop.f32.mrb[0].mxu0
    %v607 = vpop.f32.mrb[0].mxu0
    %v608 = vadd.f32 0.0, %v607
    %v609 = vpop.f32.mrb[0].mxu0
    %610 = vmatprep.mubr.bf16.mxu0 0
    %611 = vmatmul.mubr.bf16.gmra.mrb[0].mxu0 %v386
    %v612 = vpop.f32.mrb[0].mxu0
    %v613 = vadd.f32 0.0, %v612
    %v614 = vpop.f32.mrb[0].mxu0
    %v615 = vpop.f32.mrb[0].mxu0
    %v616 = vadd.f32 0.0, %v615
    %v617 = vpop.f32.mrb[0].mxu0
    %618 = vmatprep.mubr.bf16.mxu0 0
    %619 = vmatmul.mubr.bf16.gmra.mrb[0].mxu0 %v389
    %v620 = vpop.f32.mrb[0].mxu0
    %v621 = vadd.f32 0.0, %v620
    %v622 = vpop.f32.mrb[0].mxu0
    %v623 = vpop.f32.mrb[0].mxu0
    %v624 = vadd.f32 0.0, %v623
    %v625 = vpop.f32.mrb[0].mxu0
    %626 = vmatprep.mubr.bf16.mxu0 0
    %627 = vmatmul.mubr.bf16.gmra.mrb[0].mxu0 %v392
    %v628 = vpop.f32.mrb[0].mxu0
    %v629 = vadd.f32 0.0, %v628
    %v630 = vpop.f32.mrb[0].mxu0
    %v631 = vpop.f32.mrb[0].mxu0
    %v632 = vadd.f32 0.0, %v631
    %v633 = vpop.f32.mrb[0].mxu0
    %634 = vmatprep.mubr.bf16.mxu0 0
    %635 = vmatmul.mubr.bf16.gmra.mrb[0].mxu0 %v395
    %v636 = vpop.f32.mrb[0].mxu0
    %v637 = vadd.f32 0.0, %v636
    %v638 = vpop.f32.mrb[0].mxu0
    %v639 = vpop.f32.mrb[0].mxu0
    %v640 = vadd.f32 0.0, %v639
    %v641 = vpop.f32.mrb[0].mxu0
    %642 = vmatprep.mubr.bf16.mxu0 0
    %643 = vmatmul.mubr.bf16.gmra.mrb[0].mxu0 %v398
    %v644 = vpop.f32.mrb[0].mxu0
    %v645 = vadd.f32 0.0, %v644
    %v646 = vpop.f32.mrb[0].mxu0
    %v647 = vpop.f32.mrb[0].mxu0
    %v648 = vadd.f32 0.0, %v647
    %v649 = vpop.f32.mrb[0].mxu0
    %650 = vmatprep.mubr.bf16.mxu0 0
    %651 = vmatmul.mubr.bf16.gmra.mrb[0].mxu0 %v401
    %v652 = vpop.f32.mrb[0].mxu0
    %v653 = vadd.f32 0.0, %v652
    %v654 = vpop.f32.mrb[0].mxu0
    %v655 = vpop.f32.mrb[0].mxu0
    %v656 = vadd.f32 0.0, %v655
    %v657 = vpop.f32.mrb[0].mxu0
    %658 = vmatprep.mubr.bf16.mxu0 0
    %659 = vmatmul.mubr.bf16.gmra.mrb[0].mxu0 %v404
    %v660 = vpop.f32.mrb[0].mxu0
    %v661 = vadd.f32 0.0, %v660
    %v662 = vpop.f32.mrb[0].mxu0
    %v663 = vpop.f32.mrb[0].mxu0
    %v664 = vadd.f32 0.0, %v663
    %v665 = vpop.f32.mrb[0].mxu0
    %666 = vdwg.mxu0
    %v668 = vunpack.c.l.b16 %v107
    %v669 = vpack.c.b16 %v232, %v668
    %v670 = vpack.c.b16 %v234, %v233
    %v671 = vpack.c.b16 %v236, %v235
    %v672 = vpack.c.b16 %v238, %v237
    %v673 = vpack.c.b16 %v240, %v239
    %v674 = vpack.c.b16 %v242, %v241
    %v675 = vpack.c.b16 %v244, %v243
    %v676 = vpack.c.b16 %v246, %v245
    %v677 = vpack.c.b16 %v248, %v247
    %v678 = vpack.c.b16 %v250, %v249
    %v679 = vpack.c.b16 %v252, %v251
    %v680 = vpack.c.b16 %v254, %v253
    %v681 = vpack.c.b16 %v256, %v255
    %v682 = vpack.c.b16 %v258, %v257
    %v683 = vpack.c.b16 %v260, %v259
    %v684 = vpack.c.b16 %v262, %v261
    %v685 = vpack.c.b16 %v264, %v263
    %v686 = vpack.c.b16 %v266, %v265
    %v687 = vpack.c.b16 %v268, %v267
    %v688 = vpack.c.b16 %v270, %v269
    %v689 = vpack.c.b16 %v272, %v271
    %v690 = vpack.c.b16 %v274, %v273
    %v691 = vpack.c.b16 %v276, %v275
    %v692 = vpack.c.b16 %v278, %v277
    %v693 = vpack.c.b16 %v280, %v279
    %v694 = vpack.c.b16 %v282, %v281
    %v695 = vpack.c.b16 %v284, %v283
    %v696 = vpack.c.b16 %v286, %v285
    %v699 = vunpack.c.l.b16 %v171
    %v700 = vunpack.c.l.b16 %v172
    %v701 = vpack.c.b16 %v700, %v699
    %v703 = vsel %vm321, %v669, 0
    %v706 = vsel %vm321, %v670, 0
    %v709 = vsel %vm321, %v671, 0
    %v712 = vsel %vm321, %v672, 0
    %v715 = vsel %vm321, %v673, 0
    %v718 = vsel %vm321, %v674, 0
    %v721 = vsel %vm321, %v675, 0
    %v724 = vsel %vm321, %v676, 0
    %v727 = vsel %vm321, %v677, 0
    %v730 = vsel %vm321, %v678, 0
    %v733 = vsel %vm321, %v679, 0
    %v736 = vsel %vm321, %v680, 0
    %v739 = vsel %vm321, %v681, 0
    %v742 = vsel %vm321, %v682, 0
    %v745 = vsel %vm321, %v683, 0
    %v748 = vsel %vm321, %v684, 0
    %v751 = vsel %vm321, %v685, 0
    %v754 = vsel %vm321, %v686, 0
    %v757 = vsel %vm321, %v687, 0
    %v760 = vsel %vm321, %v688, 0
    %v763 = vsel %vm321, %v689, 0
    %v766 = vsel %vm321, %v690, 0
    %v769 = vsel %vm321, %v691, 0
    %v772 = vsel %vm321, %v692, 0
    %v775 = vsel %vm321, %v693, 0
    %v778 = vsel %vm321, %v694, 0
    %v781 = vsel %vm321, %v695, 0
    %v784 = vsel %vm321, %v696, 0
    %v787 = vsel %vm406, %v701, 0
    %789 = vmatprep.subr.bf16.mxu0 0
    %790 = vmatpush1.bf16.msra.mxu0 %v787
    %791 = vmatprep.subr.bf16.mxu0 0
    %792 = vmatpush1.bf16.msra.mxu0 0
    %793 = vmatprep.subr.bf16.mxu0 0
    %794 = vmatpush1.bf16.msra.mxu0 0
    %795 = vmatprep.subr.bf16.mxu0 0
    %796 = vmatpush1.bf16.msra.mxu0 0
    %797 = vmatprep.subr.bf16.mxu0 0
    %798 = vmatpush1.bf16.msra.mxu0 0
    %799 = vmatprep.subr.bf16.mxu0 0
    %800 = vmatpush1.bf16.msra.mxu0 0
    %801 = vmatprep.subr.bf16.mxu0 0
    %802 = vmatpush1.bf16.msra.mxu0 0
    %803 = vmatprep.subr.bf16.mxu0 0
    %804 = vmatpush1.bf16.msra.mxu0 0
    %805 = vmatprep.subr.bf16.mxu0 0
    %806 = vmatpush1.bf16.msra.mxu0 0
    %807 = vmatprep.subr.bf16.mxu0 0
    %808 = vmatpush1.bf16.msra.mxu0 0
    %809 = vmatprep.subr.bf16.mxu0 0
    %810 = vmatpush1.bf16.msra.mxu0 0
    %811 = vmatprep.subr.bf16.mxu0 0
    %812 = vmatpush1.bf16.msra.mxu0 0
    %813 = vmatprep.subr.bf16.mxu0 0
    %814 = vmatpush1.bf16.msra.mxu0 0
    %815 = vmatprep.subr.bf16.mxu0 0
    %816 = vmatpush1.bf16.msra.mxu0 0
    %817 = vmatprep.subr.bf16.mxu0 0
    %818 = vmatpush1.bf16.msra.mxu0 0
    %819 = vmatprep.subr.bf16.mxu0 0
    %820 = vmatpush1.bf16.msra.mxu0 0
    %821 = vmatprep.mubr.bf16.mxu0 0
    %822 = vmatmul.mubr.bf16.gmra.mrb[0].mxu0 %v703
    %v823 = vpop.f32.mrb[0].mxu0
    %v824 = vadd.f32 %v445, %v823
    %v825 = vpop.f32.mrb[0].mxu0
    %v826 = vpop.f32.mrb[0].mxu0
    %v827 = vadd.f32 %v448, %v826
    %v828 = vpop.f32.mrb[0].mxu0
    %829 = vmatprep.mubr.bf16.mxu0 0
    %830 = vmatmul.mubr.bf16.gmra.mrb[0].mxu0 %v706
    %v831 = vpop.f32.mrb[0].mxu0
    %v832 = vadd.f32 %v453, %v831
    %v833 = vpop.f32.mrb[0].mxu0
    %v834 = vpop.f32.mrb[0].mxu0
    %v835 = vadd.f32 %v456, %v834
    %v836 = vpop.f32.mrb[0].mxu0
    %837 = vmatprep.mubr.bf16.mxu0 0
    %838 = vmatmul.mubr.bf16.gmra.mrb[0].mxu0 %v709
    %v839 = vpop.f32.mrb[0].mxu0
    %v840 = vadd.f32 %v461, %v839
    %v841 = vpop.f32.mrb[0].mxu0
    %v842 = vpop.f32.mrb[0].mxu0
    %v843 = vadd.f32 %v464, %v842
    %v844 = vpop.f32.mrb[0].mxu0
    %845 = vmatprep.mubr.bf16.mxu0 0
    %846 = vmatmul.mubr.bf16.gmra.mrb[0].mxu0 %v712
    %v847 = vpop.f32.mrb[0].mxu0
    %v848 = vadd.f32 %v469, %v847
    %v849 = vpop.f32.mrb[0].mxu0
    %v850 = vpop.f32.mrb[0].mxu0
    %v851 = vadd.f32 %v472, %v850
    %v852 = vpop.f32.mrb[0].mxu0
    %853 = vmatprep.mubr.bf16.mxu0 0
    %854 = vmatmul.mubr.bf16.gmra.mrb[0].mxu0 %v715
    %v855 = vpop.f32.mrb[0].mxu0
    %v856 = vadd.f32 %v477, %v855
    %v857 = vpop.f32.mrb[0].mxu0
    %v858 = vpop.f32.mrb[0].mxu0
    %v859 = vadd.f32 %v480, %v858
    %v860 = vpop.f32.mrb[0].mxu0
    %861 = vmatprep.mubr.bf16.mxu0 0
    %862 = vmatmul.mubr.bf16.gmra.mrb[0].mxu0 %v718
    %v863 = vpop.f32.mrb[0].mxu0
    %v864 = vadd.f32 %v485, %v863
    %v865 = vpop.f32.mrb[0].mxu0
    %v866 = vpop.f32.mrb[0].mxu0
    %v867 = vadd.f32 %v488, %v866
    %v868 = vpop.f32.mrb[0].mxu0
    %869 = vmatprep.mubr.bf16.mxu0 0
    %870 = vmatmul.mubr.bf16.gmra.mrb[0].mxu0 %v721
    %v871 = vpop.f32.mrb[0].mxu0
    %v872 = vadd.f32 %v493, %v871
    %v873 = vpop.f32.mrb[0].mxu0
    %v874 = vpop.f32.mrb[0].mxu0
    %v875 = vadd.f32 %v496, %v874
    %v876 = vpop.f32.mrb[0].mxu0
    %877 = vmatprep.mubr.bf16.mxu0 0
    %878 = vmatmul.mubr.bf16.gmra.mrb[0].mxu0 %v724
    %v879 = vpop.f32.mrb[0].mxu0
    %v880 = vadd.f32 %v501, %v879
    %v881 = vpop.f32.mrb[0].mxu0
    %v882 = vpop.f32.mrb[0].mxu0
    %v883 = vadd.f32 %v504, %v882
    %v884 = vpop.f32.mrb[0].mxu0
    %885 = vmatprep.mubr.bf16.mxu0 0
    %886 = vmatmul.mubr.bf16.gmra.mrb[0].mxu0 %v727
    %v887 = vpop.f32.mrb[0].mxu0
    %v888 = vadd.f32 %v509, %v887
    %v889 = vpop.f32.mrb[0].mxu0
    %v890 = vpop.f32.mrb[0].mxu0
    %v891 = vadd.f32 %v512, %v890
    %v892 = vpop.f32.mrb[0].mxu0
    %893 = vmatprep.mubr.bf16.mxu0 0
    %894 = vmatmul.mubr.bf16.gmra.mrb[0].mxu0 %v730
    %v895 = vpop.f32.mrb[0].mxu0
    %v896 = vadd.f32 %v517, %v895
    %v897 = vpop.f32.mrb[0].mxu0
    %v898 = vpop.f32.mrb[0].mxu0
    %v899 = vadd.f32 %v520, %v898
    %v900 = vpop.f32.mrb[0].mxu0
    %901 = vmatprep.mubr.bf16.mxu0 0
    %902 = vmatmul.mubr.bf16.gmra.mrb[0].mxu0 %v733
    %v903 = vpop.f32.mrb[0].mxu0
    %v904 = vadd.f32 %v525, %v903
    %v905 = vpop.f32.mrb[0].mxu0
    %v906 = vpop.f32.mrb[0].mxu0
    %v907 = vadd.f32 %v528, %v906
    %v908 = vpop.f32.mrb[0].mxu0
    %909 = vmatprep.mubr.bf16.mxu0 0
    %910 = vmatmul.mubr.bf16.gmra.mrb[0].mxu0 %v736
    %v911 = vpop.f32.mrb[0].mxu0
    %v912 = vadd.f32 %v533, %v911
    %v913 = vpop.f32.mrb[0].mxu0
    %v914 = vpop.f32.mrb[0].mxu0
    %v915 = vadd.f32 %v536, %v914
    %v916 = vpop.f32.mrb[0].mxu0
    %917 = vmatprep.mubr.bf16.mxu0 0
    %918 = vmatmul.mubr.bf16.gmra.mrb[0].mxu0 %v739
    %v919 = vpop.f32.mrb[0].mxu0
    %v920 = vadd.f32 %v541, %v919
    %v921 = vpop.f32.mrb[0].mxu0
    %v922 = vpop.f32.mrb[0].mxu0
    %v923 = vadd.f32 %v544, %v922
    %v924 = vpop.f32.mrb[0].mxu0
    %925 = vmatprep.mubr.bf16.mxu0 0
    %926 = vmatmul.mubr.bf16.gmra.mrb[0].mxu0 %v742
    %v927 = vpop.f32.mrb[0].mxu0
    %v928 = vadd.f32 %v549, %v927
    %v929 = vpop.f32.mrb[0].mxu0
    %v930 = vpop.f32.mrb[0].mxu0
    %v931 = vadd.f32 %v552, %v930
    %v932 = vpop.f32.mrb[0].mxu0
    %933 = vmatprep.mubr.bf16.mxu0 0
    %934 = vmatmul.mubr.bf16.gmra.mrb[0].mxu0 %v745
    %v935 = vpop.f32.mrb[0].mxu0
    %v936 = vadd.f32 %v557, %v935
    %v937 = vpop.f32.mrb[0].mxu0
    %v938 = vpop.f32.mrb[0].mxu0
    %v939 = vadd.f32 %v560, %v938
    %v940 = vpop.f32.mrb[0].mxu0
    %941 = vmatprep.mubr.bf16.mxu0 0
    %942 = vmatmul.mubr.bf16.gmra.mrb[0].mxu0 %v748
    %v943 = vpop.f32.mrb[0].mxu0
    %v944 = vadd.f32 %v565, %v943
    %v945 = vpop.f32.mrb[0].mxu0
    %v946 = vpop.f32.mrb[0].mxu0
    %v947 = vadd.f32 %v568, %v946
    %v948 = vpop.f32.mrb[0].mxu0
    %949 = vmatprep.mubr.bf16.mxu0 0
    %950 = vmatmul.mubr.bf16.gmra.mrb[0].mxu0 %v751
    %v951 = vpop.f32.mrb[0].mxu0
    %v952 = vadd.f32 %v573, %v951
    %v953 = vpop.f32.mrb[0].mxu0
    %v954 = vpop.f32.mrb[0].mxu0
    %v955 = vadd.f32 %v576, %v954
    %v956 = vpop.f32.mrb[0].mxu0
    %957 = vmatprep.mubr.bf16.mxu0 0
    %958 = vmatmul.mubr.bf16.gmra.mrb[0].mxu0 %v754
    %v959 = vpop.f32.mrb[0].mxu0
    %v960 = vadd.f32 %v581, %v959
    %v961 = vpop.f32.mrb[0].mxu0
    %v962 = vpop.f32.mrb[0].mxu0
    %v963 = vadd.f32 %v584, %v962
    %v964 = vpop.f32.mrb[0].mxu0
    %965 = vmatprep.mubr.bf16.mxu0 0
    %966 = vmatmul.mubr.bf16.gmra.mrb[0].mxu0 %v757
    %v967 = vpop.f32.mrb[0].mxu0
    %v968 = vadd.f32 %v589, %v967
    %v969 = vpop.f32.mrb[0].mxu0
    %v970 = vpop.f32.mrb[0].mxu0
    %v971 = vadd.f32 %v592, %v970
    %v972 = vpop.f32.mrb[0].mxu0
    %973 = vmatprep.mubr.bf16.mxu0 0
    %974 = vmatmul.mubr.bf16.gmra.mrb[0].mxu0 %v760
    %v975 = vpop.f32.mrb[0].mxu0
    %v976 = vadd.f32 %v597, %v975
    %v977 = vpop.f32.mrb[0].mxu0
    %v978 = vpop.f32.mrb[0].mxu0
    %v979 = vadd.f32 %v600, %v978
    %v980 = vpop.f32.mrb[0].mxu0
    %981 = vmatprep.mubr.bf16.mxu0 0
    %982 = vmatmul.mubr.bf16.gmra.mrb[0].mxu0 %v763
    %v983 = vpop.f32.mrb[0].mxu0
    %v984 = vadd.f32 %v605, %v983
    %v985 = vpop.f32.mrb[0].mxu0
    %v986 = vpop.f32.mrb[0].mxu0
    %v987 = vadd.f32 %v608, %v986
    %v988 = vpop.f32.mrb[0].mxu0
    %989 = vmatprep.mubr.bf16.mxu0 0
    %990 = vmatmul.mubr.bf16.gmra.mrb[0].mxu0 %v766
    %v991 = vpop.f32.mrb[0].mxu0
    %v992 = vadd.f32 %v613, %v991
    %v993 = vpop.f32.mrb[0].mxu0
    %v994 = vpop.f32.mrb[0].mxu0
    %v995 = vadd.f32 %v616, %v994
    %v996 = vpop.f32.mrb[0].mxu0
    %997 = vmatprep.mubr.bf16.mxu0 0
    %998 = vmatmul.mubr.bf16.gmra.mrb[0].mxu0 %v769
    %v999 = vpop.f32.mrb[0].mxu0
    %v1000 = vadd.f32 %v621, %v999
    %v1001 = vpop.f32.mrb[0].mxu0
    %v1002 = vpop.f32.mrb[0].mxu0
    %v1003 = vadd.f32 %v624, %v1002
    %v1004 = vpop.f32.mrb[0].mxu0
    %1005 = vmatprep.mubr.bf16.mxu0 0
    %1006 = vmatmul.mubr.bf16.gmra.mrb[0].mxu0 %v772
    %v1007 = vpop.f32.mrb[0].mxu0
    %v1008 = vadd.f32 %v629, %v1007
    %v1009 = vpop.f32.mrb[0].mxu0
    %v1010 = vpop.f32.mrb[0].mxu0
    %v1011 = vadd.f32 %v632, %v1010
    %v1012 = vpop.f32.mrb[0].mxu0
    %1013 = vmatprep.mubr.bf16.mxu0 0
    %1014 = vmatmul.mubr.bf16.gmra.mrb[0].mxu0 %v775
    %v1015 = vpop.f32.mrb[0].mxu0
    %v1016 = vadd.f32 %v637, %v1015
    %v1017 = vpop.f32.mrb[0].mxu0
    %v1018 = vpop.f32.mrb[0].mxu0
    %v1019 = vadd.f32 %v640, %v1018
    %v1020 = vpop.f32.mrb[0].mxu0
    %1021 = vmatprep.mubr.bf16.mxu0 0
    %1022 = vmatmul.mubr.bf16.gmra.mrb[0].mxu0 %v778
    %v1023 = vpop.f32.mrb[0].mxu0
    %v1024 = vadd.f32 %v645, %v1023
    %v1025 = vpop.f32.mrb[0].mxu0
    %v1026 = vpop.f32.mrb[0].mxu0
    %v1027 = vadd.f32 %v648, %v1026
    %v1028 = vpop.f32.mrb[0].mxu0
    %1029 = vmatprep.mubr.bf16.mxu0 0
    %1030 = vmatmul.mubr.bf16.gmra.mrb[0].mxu0 %v781
    %v1031 = vpop.f32.mrb[0].mxu0
    %v1032 = vadd.f32 %v653, %v1031
    %v1033 = vpop.f32.mrb[0].mxu0
    %v1034 = vpop.f32.mrb[0].mxu0
    %v1035 = vadd.f32 %v656, %v1034
    %v1036 = vpop.f32.mrb[0].mxu0
    %1037 = vmatprep.mubr.bf16.mxu0 0
    %1038 = vmatmul.mubr.bf16.gmra.mrb[0].mxu0 %v784
    %v1039 = vpop.f32.mrb[0].mxu0
    %v1040 = vadd.f32 %v661, %v1039
    %v1041 = vpop.f32.mrb[0].mxu0
    %v1042 = vpop.f32.mrb[0].mxu0
    %v1043 = vadd.f32 %v664, %v1042
    %v1044 = vpop.f32.mrb[0].mxu0
    %1045 = vdwg.mxu0
    %s1046 = scalar_lea.vmem %s1, 16
    %v1047 = vld [vmem:[%s1046] sm:$0xf]
    %v1048 = vld [vmem:[%s1046 + $0x4] sm:$0x3]
    %v1050 = vunpack.c.l.b16 %v164
    %v1051 = vpack.c.b16 %v1050, %v287
    %v1054 = vunpack.c.l.b16 %v1047
    %v1055 = vunpack.c.l.b16 %v1048
    %v1056 = vpack.c.b16 %v1055, %v1054
    %v1058 = vsel %vm321, %v1051, 0
    %v1061 = vsel %vm406, %v1056, 0
    %1063 = vmatprep.subr.bf16.mxu0 0
    %1064 = vmatpush1.bf16.msra.mxu0 %v1061
    %1065 = vmatprep.subr.bf16.mxu0 0
    %1066 = vmatpush1.bf16.msra.mxu0 0
    %1067 = vmatprep.subr.bf16.mxu0 0
    %1068 = vmatpush1.bf16.msra.mxu0 0
    %1069 = vmatprep.subr.bf16.mxu0 0
    %1070 = vmatpush1.bf16.msra.mxu0 0
    %1071 = vmatprep.subr.bf16.mxu0 0
    %1072 = vmatpush1.bf16.msra.mxu0 0
    %1073 = vmatprep.subr.bf16.mxu0 0
    %1074 = vmatpush1.bf16.msra.mxu0 0
    %1075 = vmatprep.subr.bf16.mxu0 0
    %1076 = vmatpush1.bf16.msra.mxu0 0
    %1077 = vmatprep.subr.bf16.mxu0 0
    %1078 = vmatpush1.bf16.msra.mxu0 0
    %1079 = vmatprep.subr.bf16.mxu0 0
    %1080 = vmatpush1.bf16.msra.mxu0 0
    %1081 = vmatprep.subr.bf16.mxu0 0
    %1082 = vmatpush1.bf16.msra.mxu0 0
    %1083 = vmatprep.subr.bf16.mxu0 0
    %1084 = vmatpush1.bf16.msra.mxu0 0
    %1085 = vmatprep.subr.bf16.mxu0 0
    %1086 = vmatpush1.bf16.msra.mxu0 0
    %1087 = vmatprep.subr.bf16.mxu0 0
    %1088 = vmatpush1.bf16.msra.mxu0 0
    %1089 = vmatprep.subr.bf16.mxu0 0
    %1090 = vmatpush1.bf16.msra.mxu0 0
    %1091 = vmatprep.subr.bf16.mxu0 0
    %1092 = vmatpush1.bf16.msra.mxu0 0
    %1093 = vmatprep.subr.bf16.mxu0 0
    %1094 = vmatpush1.bf16.msra.mxu0 0
    %1095 = vmatprep.mubr.bf16.mxu0 0
    %1096 = vmatmul.mubr.bf16.gmra.mrb[0].mxu0 %v706
    %v1097 = vpop.f32.mrb[0].mxu0
    %v1098 = vadd.f32 0.0, %v1097
    %v1099 = vpop.f32.mrb[0].mxu0
    %v1100 = vpop.f32.mrb[0].mxu0
    %v1101 = vadd.f32 0.0, %v1100
    %v1102 = vpop.f32.mrb[0].mxu0
    %1103 = vmatprep.mubr.bf16.mxu0 0
    %1104 = vmatmul.mubr.bf16.gmra.mrb[0].mxu0 %v709
    %v1105 = vpop.f32.mrb[0].mxu0
    %v1106 = vadd.f32 0.0, %v1105
    %v1107 = vpop.f32.mrb[0].mxu0
    %v1108 = vpop.f32.mrb[0].mxu0
    %v1109 = vadd.f32 0.0, %v1108
    %v1110 = vpop.f32.mrb[0].mxu0
    %1111 = vmatprep.mubr.bf16.mxu0 0
    %1112 = vmatmul.mubr.bf16.gmra.mrb[0].mxu0 %v712
    %v1113 = vpop.f32.mrb[0].mxu0
    %v1114 = vadd.f32 0.0, %v1113
    %v1115 = vpop.f32.mrb[0].mxu0
    %v1116 = vpop.f32.mrb[0].mxu0
    %v1117 = vadd.f32 0.0, %v1116
    %v1118 = vpop.f32.mrb[0].mxu0
    %1119 = vmatprep.mubr.bf16.mxu0 0
    %1120 = vmatmul.mubr.bf16.gmra.mrb[0].mxu0 %v715
    %v1121 = vpop.f32.mrb[0].mxu0
    %v1122 = vadd.f32 0.0, %v1121
    %v1123 = vpop.f32.mrb[0].mxu0
    %v1124 = vpop.f32.mrb[0].mxu0
    %v1125 = vadd.f32 0.0, %v1124
    %v1126 = vpop.f32.mrb[0].mxu0
    %1127 = vmatprep.mubr.bf16.mxu0 0
    %1128 = vmatmul.mubr.bf16.gmra.mrb[0].mxu0 %v718
    %v1129 = vpop.f32.mrb[0].mxu0
    %v1130 = vadd.f32 0.0, %v1129
    %v1131 = vpop.f32.mrb[0].mxu0
    %v1132 = vpop.f32.mrb[0].mxu0
    %v1133 = vadd.f32 0.0, %v1132
    %v1134 = vpop.f32.mrb[0].mxu0
    %1135 = vmatprep.mubr.bf16.mxu0 0
    %1136 = vmatmul.mubr.bf16.gmra.mrb[0].mxu0 %v721
    %v1137 = vpop.f32.mrb[0].mxu0
    %v1138 = vadd.f32 0.0, %v1137
    %v1139 = vpop.f32.mrb[0].mxu0
    %v1140 = vpop.f32.mrb[0].mxu0
    %v1141 = vadd.f32 0.0, %v1140
    %v1142 = vpop.f32.mrb[0].mxu0
    %1143 = vmatprep.mubr.bf16.mxu0 0
    %1144 = vmatmul.mubr.bf16.gmra.mrb[0].mxu0 %v724
    %v1145 = vpop.f32.mrb[0].mxu0
    %v1146 = vadd.f32 0.0, %v1145
    %v1147 = vpop.f32.mrb[0].mxu0
    %v1148 = vpop.f32.mrb[0].mxu0
    %v1149 = vadd.f32 0.0, %v1148
    %v1150 = vpop.f32.mrb[0].mxu0
    %1151 = vmatprep.mubr.bf16.mxu0 0
    %1152 = vmatmul.mubr.bf16.gmra.mrb[0].mxu0 %v727
    %v1153 = vpop.f32.mrb[0].mxu0
    %v1154 = vadd.f32 0.0, %v1153
    %v1155 = vpop.f32.mrb[0].mxu0
    %v1156 = vpop.f32.mrb[0].mxu0
    %v1157 = vadd.f32 0.0, %v1156
    %v1158 = vpop.f32.mrb[0].mxu0
    %1159 = vmatprep.mubr.bf16.mxu0 0
    %1160 = vmatmul.mubr.bf16.gmra.mrb[0].mxu0 %v730
    %v1161 = vpop.f32.mrb[0].mxu0
    %v1162 = vadd.f32 0.0, %v1161
    %v1163 = vpop.f32.mrb[0].mxu0
    %v1164 = vpop.f32.mrb[0].mxu0
    %v1165 = vadd.f32 0.0, %v1164
    %v1166 = vpop.f32.mrb[0].mxu0
    %1167 = vmatprep.mubr.bf16.mxu0 0
    %1168 = vmatmul.mubr.bf16.gmra.mrb[0].mxu0 %v733
    %v1169 = vpop.f32.mrb[0].mxu0
    %v1170 = vadd.f32 0.0, %v1169
    %v1171 = vpop.f32.mrb[0].mxu0
    %v1172 = vpop.f32.mrb[0].mxu0
    %v1173 = vadd.f32 0.0, %v1172
    %v1174 = vpop.f32.mrb[0].mxu0
    %1175 = vmatprep.mubr.bf16.mxu0 0
    %1176 = vmatmul.mubr.bf16.gmra.mrb[0].mxu0 %v736
    %v1177 = vpop.f32.mrb[0].mxu0
    %v1178 = vadd.f32 0.0, %v1177
    %v1179 = vpop.f32.mrb[0].mxu0
    %v1180 = vpop.f32.mrb[0].mxu0
    %v1181 = vadd.f32 0.0, %v1180
    %v1182 = vpop.f32.mrb[0].mxu0
    %1183 = vmatprep.mubr.bf16.mxu0 0
    %1184 = vmatmul.mubr.bf16.gmra.mrb[0].mxu0 %v739
    %v1185 = vpop.f32.mrb[0].mxu0
    %v1186 = vadd.f32 0.0, %v1185
    %v1187 = vpop.f32.mrb[0].mxu0
    %v1188 = vpop.f32.mrb[0].mxu0
    %v1189 = vadd.f32 0.0, %v1188
    %v1190 = vpop.f32.mrb[0].mxu0
    %1191 = vmatprep.mubr.bf16.mxu0 0
    %1192 = vmatmul.mubr.bf16.gmra.mrb[0].mxu0 %v742
    %v1193 = vpop.f32.mrb[0].mxu0
    %v1194 = vadd.f32 0.0, %v1193
    %v1195 = vpop.f32.mrb[0].mxu0
    %v1196 = vpop.f32.mrb[0].mxu0
    %v1197 = vadd.f32 0.0, %v1196
    %v1198 = vpop.f32.mrb[0].mxu0
    %1199 = vmatprep.mubr.bf16.mxu0 0
    %1200 = vmatmul.mubr.bf16.gmra.mrb[0].mxu0 %v745
    %v1201 = vpop.f32.mrb[0].mxu0
    %v1202 = vadd.f32 0.0, %v1201
    %v1203 = vpop.f32.mrb[0].mxu0
    %v1204 = vpop.f32.mrb[0].mxu0
    %v1205 = vadd.f32 0.0, %v1204
    %v1206 = vpop.f32.mrb[0].mxu0
    %1207 = vmatprep.mubr.bf16.mxu0 0
    %1208 = vmatmul.mubr.bf16.gmra.mrb[0].mxu0 %v748
    %v1209 = vpop.f32.mrb[0].mxu0
    %v1210 = vadd.f32 0.0, %v1209
    %v1211 = vpop.f32.mrb[0].mxu0
    %v1212 = vpop.f32.mrb[0].mxu0
    %v1213 = vadd.f32 0.0, %v1212
    %v1214 = vpop.f32.mrb[0].mxu0
    %1215 = vmatprep.mubr.bf16.mxu0 0
    %1216 = vmatmul.mubr.bf16.gmra.mrb[0].mxu0 %v751
    %v1217 = vpop.f32.mrb[0].mxu0
    %v1218 = vadd.f32 0.0, %v1217
    %v1219 = vpop.f32.mrb[0].mxu0
    %v1220 = vpop.f32.mrb[0].mxu0
    %v1221 = vadd.f32 0.0, %v1220
    %v1222 = vpop.f32.mrb[0].mxu0
    %1223 = vmatprep.mubr.bf16.mxu0 0
    %1224 = vmatmul.mubr.bf16.gmra.mrb[0].mxu0 %v754
    %v1225 = vpop.f32.mrb[0].mxu0
    %v1226 = vadd.f32 0.0, %v1225
    %v1227 = vpop.f32.mrb[0].mxu0
    %v1228 = vpop.f32.mrb[0].mxu0
    %v1229 = vadd.f32 0.0, %v1228
    %v1230 = vpop.f32.mrb[0].mxu0
    %1231 = vmatprep.mubr.bf16.mxu0 0
    %1232 = vmatmul.mubr.bf16.gmra.mrb[0].mxu0 %v757
    %v1233 = vpop.f32.mrb[0].mxu0
    %v1234 = vadd.f32 0.0, %v1233
    %v1235 = vpop.f32.mrb[0].mxu0
    %v1236 = vpop.f32.mrb[0].mxu0
    %v1237 = vadd.f32 0.0, %v1236
    %v1238 = vpop.f32.mrb[0].mxu0
    %1239 = vmatprep.mubr.bf16.mxu0 0
    %1240 = vmatmul.mubr.bf16.gmra.mrb[0].mxu0 %v760
    %v1241 = vpop.f32.mrb[0].mxu0
    %v1242 = vadd.f32 0.0, %v1241
    %v1243 = vpop.f32.mrb[0].mxu0
    %v1244 = vpop.f32.mrb[0].mxu0
    %v1245 = vadd.f32 0.0, %v1244
    %v1246 = vpop.f32.mrb[0].mxu0
    %1247 = vmatprep.mubr.bf16.mxu0 0
    %1248 = vmatmul.mubr.bf16.gmra.mrb[0].mxu0 %v763
    %v1249 = vpop.f32.mrb[0].mxu0
    %v1250 = vadd.f32 0.0, %v1249
    %v1251 = vpop.f32.mrb[0].mxu0
    %v1252 = vpop.f32.mrb[0].mxu0
    %v1253 = vadd.f32 0.0, %v1252
    %v1254 = vpop.f32.mrb[0].mxu0
    %1255 = vmatprep.mubr.bf16.mxu0 0
    %1256 = vmatmul.mubr.bf16.gmra.mrb[0].mxu0 %v766
    %v1257 = vpop.f32.mrb[0].mxu0
    %v1258 = vadd.f32 0.0, %v1257
    %v1259 = vpop.f32.mrb[0].mxu0
    %v1260 = vpop.f32.mrb[0].mxu0
    %v1261 = vadd.f32 0.0, %v1260
    %v1262 = vpop.f32.mrb[0].mxu0
    %1263 = vmatprep.mubr.bf16.mxu0 0
    %1264 = vmatmul.mubr.bf16.gmra.mrb[0].mxu0 %v769
    %v1265 = vpop.f32.mrb[0].mxu0
    %v1266 = vadd.f32 0.0, %v1265
    %v1267 = vpop.f32.mrb[0].mxu0
    %v1268 = vpop.f32.mrb[0].mxu0
    %v1269 = vadd.f32 0.0, %v1268
    %v1270 = vpop.f32.mrb[0].mxu0
    %1271 = vmatprep.mubr.bf16.mxu0 0
    %1272 = vmatmul.mubr.bf16.gmra.mrb[0].mxu0 %v772
    %v1273 = vpop.f32.mrb[0].mxu0
    %v1274 = vadd.f32 0.0, %v1273
    %v1275 = vpop.f32.mrb[0].mxu0
    %v1276 = vpop.f32.mrb[0].mxu0
    %v1277 = vadd.f32 0.0, %v1276
    %v1278 = vpop.f32.mrb[0].mxu0
    %1279 = vmatprep.mubr.bf16.mxu0 0
    %1280 = vmatmul.mubr.bf16.gmra.mrb[0].mxu0 %v775
    %v1281 = vpop.f32.mrb[0].mxu0
    %v1282 = vadd.f32 0.0, %v1281
    %v1283 = vpop.f32.mrb[0].mxu0
    %v1284 = vpop.f32.mrb[0].mxu0
    %v1285 = vadd.f32 0.0, %v1284
    %v1286 = vpop.f32.mrb[0].mxu0
    %1287 = vmatprep.mubr.bf16.mxu0 0
    %1288 = vmatmul.mubr.bf16.gmra.mrb[0].mxu0 %v778
    %v1289 = vpop.f32.mrb[0].mxu0
    %v1290 = vadd.f32 0.0, %v1289
    %v1291 = vpop.f32.mrb[0].mxu0
    %v1292 = vpop.f32.mrb[0].mxu0
    %v1293 = vadd.f32 0.0, %v1292
    %v1294 = vpop.f32.mrb[0].mxu0
    %1295 = vmatprep.mubr.bf16.mxu0 0
    %1296 = vmatmul.mubr.bf16.gmra.mrb[0].mxu0 %v781
    %v1297 = vpop.f32.mrb[0].mxu0
    %v1298 = vadd.f32 0.0, %v1297
    %v1299 = vpop.f32.mrb[0].mxu0
    %v1300 = vpop.f32.mrb[0].mxu0
    %v1301 = vadd.f32 0.0, %v1300
    %v1302 = vpop.f32.mrb[0].mxu0
    %1303 = vmatprep.mubr.bf16.mxu0 0
    %1304 = vmatmul.mubr.bf16.gmra.mrb[0].mxu0 %v784
    %v1305 = vpop.f32.mrb[0].mxu0
    %v1306 = vadd.f32 0.0, %v1305
    %v1307 = vpop.f32.mrb[0].mxu0
    %v1308 = vpop.f32.mrb[0].mxu0
    %v1309 = vadd.f32 0.0, %v1308
    %v1310 = vpop.f32.mrb[0].mxu0
    %1311 = vmatprep.mubr.bf16.mxu0 0
    %1312 = vmatmul.mubr.bf16.gmra.mrb[0].mxu0 %v1058
    %v1313 = vpop.f32.mrb[0].mxu0
    %v1314 = vadd.f32 0.0, %v1313
    %v1315 = vpop.f32.mrb[0].mxu0
    %v1316 = vpop.f32.mrb[0].mxu0
    %v1317 = vadd.f32 0.0, %v1316
    %v1318 = vpop.f32.mrb[0].mxu0
    %1319 = vdwg.mxu0
    %v1320 = vadd.f32 %v824, %v1098
    %v1321 = vadd.f32 %v827, %v1101
    %v1322 = vadd.f32 %v832, %v1106
    %v1323 = vadd.f32 %v835, %v1109
    %v1324 = vadd.f32 %v840, %v1114
    %v1325 = vadd.f32 %v843, %v1117
    %v1326 = vadd.f32 %v848, %v1122
    %v1327 = vadd.f32 %v851, %v1125
    %v1328 = vadd.f32 %v856, %v1130
    %v1329 = vadd.f32 %v859, %v1133
    %v1330 = vadd.f32 %v864, %v1138
    %v1331 = vadd.f32 %v867, %v1141
    %v1332 = vadd.f32 %v872, %v1146
    %v1333 = vadd.f32 %v875, %v1149
    %v1334 = vadd.f32 %v880, %v1154
    %v1335 = vadd.f32 %v883, %v1157
    %v1336 = vadd.f32 %v888, %v1162
    %v1337 = vadd.f32 %v891, %v1165
    %v1338 = vadd.f32 %v896, %v1170
    %v1339 = vadd.f32 %v899, %v1173
    %v1340 = vadd.f32 %v904, %v1178
    %v1341 = vadd.f32 %v907, %v1181
    %v1342 = vadd.f32 %v912, %v1186
    %v1343 = vadd.f32 %v915, %v1189
    %v1344 = vadd.f32 %v920, %v1194
    %v1345 = vadd.f32 %v923, %v1197
    %v1346 = vadd.f32 %v928, %v1202
    %v1347 = vadd.f32 %v931, %v1205
    %v1348 = vadd.f32 %v936, %v1210
    %v1349 = vadd.f32 %v939, %v1213
    %v1350 = vadd.f32 %v944, %v1218
    %v1351 = vadd.f32 %v947, %v1221
    %v1352 = vadd.f32 %v952, %v1226
    %v1353 = vadd.f32 %v955, %v1229
    %v1354 = vadd.f32 %v960, %v1234
    %v1355 = vadd.f32 %v963, %v1237
    %v1356 = vadd.f32 %v968, %v1242
    %v1357 = vadd.f32 %v971, %v1245
    %v1358 = vadd.f32 %v976, %v1250
    %v1359 = vadd.f32 %v979, %v1253
    %v1360 = vadd.f32 %v984, %v1258
    %v1361 = vadd.f32 %v987, %v1261
    %v1362 = vadd.f32 %v992, %v1266
    %v1363 = vadd.f32 %v995, %v1269
    %v1364 = vadd.f32 %v1000, %v1274
    %v1365 = vadd.f32 %v1003, %v1277
    %v1366 = vadd.f32 %v1008, %v1282
    %v1367 = vadd.f32 %v1011, %v1285
    %v1368 = vadd.f32 %v1016, %v1290
    %v1369 = vadd.f32 %v1019, %v1293
    %v1370 = vadd.f32 %v1024, %v1298
    %v1371 = vadd.f32 %v1027, %v1301
    %v1372 = vadd.f32 %v1032, %v1306
    %v1373 = vadd.f32 %v1035, %v1309
    %v1374 = vadd.f32 %v1040, %v1314
    %v1375 = vadd.f32 %v1043, %v1317
    %s1376 = scalar_lea.vmem %s1, 24
    %v1377 = vld [vmem:[%s1376] sm:$0xf]
    %v1378 = vld [vmem:[%s1376 + $0x4] sm:$0x3]
    %v1380 = vunpack.c.l.b16 %v165
    %v1381 = vpack.c.b16 %v1380, %v1050
    %v1384 = vunpack.c.l.b16 %v1377
    %v1385 = vunpack.c.l.b16 %v1378
    %v1386 = vpack.c.b16 %v1385, %v1384
    %v1388 = vsel %vm321, %v1381, 0
    %v1391 = vsel %vm406, %v1386, 0
    %1393 = vmatprep.subr.bf16.mxu0 0
    %1394 = vmatpush1.bf16.msra.mxu0 %v1391
    %1395 = vmatprep.subr.bf16.mxu0 0
    %1396 = vmatpush1.bf16.msra.mxu0 0
    %1397 = vmatprep.subr.bf16.mxu0 0
    %1398 = vmatpush1.bf16.msra.mxu0 0
    %1399 = vmatprep.subr.bf16.mxu0 0
    %1400 = vmatpush1.bf16.msra.mxu0 0
    %1401 = vmatprep.subr.bf16.mxu0 0
    %1402 = vmatpush1.bf16.msra.mxu0 0
    %1403 = vmatprep.subr.bf16.mxu0 0
    %1404 = vmatpush1.bf16.msra.mxu0 0
    %1405 = vmatprep.subr.bf16.mxu0 0
    %1406 = vmatpush1.bf16.msra.mxu0 0
    %1407 = vmatprep.subr.bf16.mxu0 0
    %1408 = vmatpush1.bf16.msra.mxu0 0
    %1409 = vmatprep.subr.bf16.mxu0 0
    %1410 = vmatpush1.bf16.msra.mxu0 0
    %1411 = vmatprep.subr.bf16.mxu0 0
    %1412 = vmatpush1.bf16.msra.mxu0 0
    %1413 = vmatprep.subr.bf16.mxu0 0
    %1414 = vmatpush1.bf16.msra.mxu0 0
    %1415 = vmatprep.subr.bf16.mxu0 0
    %1416 = vmatpush1.bf16.msra.mxu0 0
    %1417 = vmatprep.subr.bf16.mxu0 0
    %1418 = vmatpush1.bf16.msra.mxu0 0
    %1419 = vmatprep.subr.bf16.mxu0 0
    %1420 = vmatpush1.bf16.msra.mxu0 0
    %1421 = vmatprep.subr.bf16.mxu0 0
    %1422 = vmatpush1.bf16.msra.mxu0 0
    %1423 = vmatprep.subr.bf16.mxu0 0
    %1424 = vmatpush1.bf16.msra.mxu0 0
    %1425 = vmatprep.mubr.bf16.mxu0 0
    %1426 = vmatmul.mubr.bf16.gmra.mrb[0].mxu0 %v326
    %v1427 = vpop.f32.mrb[0].mxu0
    %v1428 = vadd.f32 0.0, %v1427
    %v1429 = vpop.f32.mrb[0].mxu0
    %v1430 = vpop.f32.mrb[0].mxu0
    %v1431 = vadd.f32 0.0, %v1430
    %v1432 = vpop.f32.mrb[0].mxu0
    %1433 = vmatprep.mubr.bf16.mxu0 0
    %1434 = vmatmul.mubr.bf16.gmra.mrb[0].mxu0 %v329
    %v1435 = vpop.f32.mrb[0].mxu0
    %v1436 = vadd.f32 0.0, %v1435
    %v1437 = vpop.f32.mrb[0].mxu0
    %v1438 = vpop.f32.mrb[0].mxu0
    %v1439 = vadd.f32 0.0, %v1438
    %v1440 = vpop.f32.mrb[0].mxu0
    %1441 = vmatprep.mubr.bf16.mxu0 0
    %1442 = vmatmul.mubr.bf16.gmra.mrb[0].mxu0 %v332
    %v1443 = vpop.f32.mrb[0].mxu0
    %v1444 = vadd.f32 0.0, %v1443
    %v1445 = vpop.f32.mrb[0].mxu0
    %v1446 = vpop.f32.mrb[0].mxu0
    %v1447 = vadd.f32 0.0, %v1446
    %v1448 = vpop.f32.mrb[0].mxu0
    %1449 = vmatprep.mubr.bf16.mxu0 0
    %1450 = vmatmul.mubr.bf16.gmra.mrb[0].mxu0 %v335
    %v1451 = vpop.f32.mrb[0].mxu0
    %v1452 = vadd.f32 0.0, %v1451
    %v1453 = vpop.f32.mrb[0].mxu0
    %v1454 = vpop.f32.mrb[0].mxu0
    %v1455 = vadd.f32 0.0, %v1454
    %v1456 = vpop.f32.mrb[0].mxu0
    %1457 = vmatprep.mubr.bf16.mxu0 0
    %1458 = vmatmul.mubr.bf16.gmra.mrb[0].mxu0 %v338
    %v1459 = vpop.f32.mrb[0].mxu0
    %v1460 = vadd.f32 0.0, %v1459
    %v1461 = vpop.f32.mrb[0].mxu0
    %v1462 = vpop.f32.mrb[0].mxu0
    %v1463 = vadd.f32 0.0, %v1462
    %v1464 = vpop.f32.mrb[0].mxu0
    %1465 = vmatprep.mubr.bf16.mxu0 0
    %1466 = vmatmul.mubr.bf16.gmra.mrb[0].mxu0 %v341
    %v1467 = vpop.f32.mrb[0].mxu0
    %v1468 = vadd.f32 0.0, %v1467
    %v1469 = vpop.f32.mrb[0].mxu0
    %v1470 = vpop.f32.mrb[0].mxu0
    %v1471 = vadd.f32 0.0, %v1470
    %v1472 = vpop.f32.mrb[0].mxu0
    %1473 = vmatprep.mubr.bf16.mxu0 0
    %1474 = vmatmul.mubr.bf16.gmra.mrb[0].mxu0 %v344
    %v1475 = vpop.f32.mrb[0].mxu0
    %v1476 = vadd.f32 0.0, %v1475
    %v1477 = vpop.f32.mrb[0].mxu0
    %v1478 = vpop.f32.mrb[0].mxu0
    %v1479 = vadd.f32 0.0, %v1478
    %v1480 = vpop.f32.mrb[0].mxu0
    %1481 = vmatprep.mubr.bf16.mxu0 0
    %1482 = vmatmul.mubr.bf16.gmra.mrb[0].mxu0 %v347
    %v1483 = vpop.f32.mrb[0].mxu0
    %v1484 = vadd.f32 0.0, %v1483
    %v1485 = vpop.f32.mrb[0].mxu0
    %v1486 = vpop.f32.mrb[0].mxu0
    %v1487 = vadd.f32 0.0, %v1486
    %v1488 = vpop.f32.mrb[0].mxu0
    %1489 = vmatprep.mubr.bf16.mxu0 0
    %1490 = vmatmul.mubr.bf16.gmra.mrb[0].mxu0 %v350
    %v1491 = vpop.f32.mrb[0].mxu0
    %v1492 = vadd.f32 0.0, %v1491
    %v1493 = vpop.f32.mrb[0].mxu0
    %v1494 = vpop.f32.mrb[0].mxu0
    %v1495 = vadd.f32 0.0, %v1494
    %v1496 = vpop.f32.mrb[0].mxu0
    %1497 = vmatprep.mubr.bf16.mxu0 0
    %1498 = vmatmul.mubr.bf16.gmra.mrb[0].mxu0 %v353
    %v1499 = vpop.f32.mrb[0].mxu0
    %v1500 = vadd.f32 0.0, %v1499
    %v1501 = vpop.f32.mrb[0].mxu0
    %v1502 = vpop.f32.mrb[0].mxu0
    %v1503 = vadd.f32 0.0, %v1502
    %v1504 = vpop.f32.mrb[0].mxu0
    %1505 = vmatprep.mubr.bf16.mxu0 0
    %1506 = vmatmul.mubr.bf16.gmra.mrb[0].mxu0 %v356
    %v1507 = vpop.f32.mrb[0].mxu0
    %v1508 = vadd.f32 0.0, %v1507
    %v1509 = vpop.f32.mrb[0].mxu0
    %v1510 = vpop.f32.mrb[0].mxu0
    %v1511 = vadd.f32 0.0, %v1510
    %v1512 = vpop.f32.mrb[0].mxu0
    %1513 = vmatprep.mubr.bf16.mxu0 0
    %1514 = vmatmul.mubr.bf16.gmra.mrb[0].mxu0 %v359
    %v1515 = vpop.f32.mrb[0].mxu0
    %v1516 = vadd.f32 0.0, %v1515
    %v1517 = vpop.f32.mrb[0].mxu0
    %v1518 = vpop.f32.mrb[0].mxu0
    %v1519 = vadd.f32 0.0, %v1518
    %v1520 = vpop.f32.mrb[0].mxu0
    %1521 = vmatprep.mubr.bf16.mxu0 0
    %1522 = vmatmul.mubr.bf16.gmra.mrb[0].mxu0 %v362
    %v1523 = vpop.f32.mrb[0].mxu0
    %v1524 = vadd.f32 0.0, %v1523
    %v1525 = vpop.f32.mrb[0].mxu0
    %v1526 = vpop.f32.mrb[0].mxu0
    %v1527 = vadd.f32 0.0, %v1526
    %v1528 = vpop.f32.mrb[0].mxu0
    %1529 = vmatprep.mubr.bf16.mxu0 0
    %1530 = vmatmul.mubr.bf16.gmra.mrb[0].mxu0 %v365
    %v1531 = vpop.f32.mrb[0].mxu0
    %v1532 = vadd.f32 0.0, %v1531
    %v1533 = vpop.f32.mrb[0].mxu0
    %v1534 = vpop.f32.mrb[0].mxu0
    %v1535 = vadd.f32 0.0, %v1534
    %v1536 = vpop.f32.mrb[0].mxu0
    %1537 = vmatprep.mubr.bf16.mxu0 0
    %1538 = vmatmul.mubr.bf16.gmra.mrb[0].mxu0 %v368
    %v1539 = vpop.f32.mrb[0].mxu0
    %v1540 = vadd.f32 0.0, %v1539
    %v1541 = vpop.f32.mrb[0].mxu0
    %v1542 = vpop.f32.mrb[0].mxu0
    %v1543 = vadd.f32 0.0, %v1542
    %v1544 = vpop.f32.mrb[0].mxu0
    %1545 = vmatprep.mubr.bf16.mxu0 0
    %1546 = vmatmul.mubr.bf16.gmra.mrb[0].mxu0 %v371
    %v1547 = vpop.f32.mrb[0].mxu0
    %v1548 = vadd.f32 0.0, %v1547
    %v1549 = vpop.f32.mrb[0].mxu0
    %v1550 = vpop.f32.mrb[0].mxu0
    %v1551 = vadd.f32 0.0, %v1550
    %v1552 = vpop.f32.mrb[0].mxu0
    %1553 = vmatprep.mubr.bf16.mxu0 0
    %1554 = vmatmul.mubr.bf16.gmra.mrb[0].mxu0 %v374
    %v1555 = vpop.f32.mrb[0].mxu0
    %v1556 = vadd.f32 0.0, %v1555
    %v1557 = vpop.f32.mrb[0].mxu0
    %v1558 = vpop.f32.mrb[0].mxu0
    %v1559 = vadd.f32 0.0, %v1558
    %v1560 = vpop.f32.mrb[0].mxu0
    %1561 = vmatprep.mubr.bf16.mxu0 0
    %1562 = vmatmul.mubr.bf16.gmra.mrb[0].mxu0 %v377
    %v1563 = vpop.f32.mrb[0].mxu0
    %v1564 = vadd.f32 0.0, %v1563
    %v1565 = vpop.f32.mrb[0].mxu0
    %v1566 = vpop.f32.mrb[0].mxu0
    %v1567 = vadd.f32 0.0, %v1566
    %v1568 = vpop.f32.mrb[0].mxu0
    %1569 = vmatprep.mubr.bf16.mxu0 0
    %1570 = vmatmul.mubr.bf16.gmra.mrb[0].mxu0 %v380
    %v1571 = vpop.f32.mrb[0].mxu0
    %v1572 = vadd.f32 0.0, %v1571
    %v1573 = vpop.f32.mrb[0].mxu0
    %v1574 = vpop.f32.mrb[0].mxu0
    %v1575 = vadd.f32 0.0, %v1574
    %v1576 = vpop.f32.mrb[0].mxu0
    %1577 = vmatprep.mubr.bf16.mxu0 0
    %1578 = vmatmul.mubr.bf16.gmra.mrb[0].mxu0 %v383
    %v1579 = vpop.f32.mrb[0].mxu0
    %v1580 = vadd.f32 0.0, %v1579
    %v1581 = vpop.f32.mrb[0].mxu0
    %v1582 = vpop.f32.mrb[0].mxu0
    %v1583 = vadd.f32 0.0, %v1582
    %v1584 = vpop.f32.mrb[0].mxu0
    %1585 = vmatprep.mubr.bf16.mxu0 0
    %1586 = vmatmul.mubr.bf16.gmra.mrb[0].mxu0 %v386
    %v1587 = vpop.f32.mrb[0].mxu0
    %v1588 = vadd.f32 0.0, %v1587
    %v1589 = vpop.f32.mrb[0].mxu0
    %v1590 = vpop.f32.mrb[0].mxu0
    %v1591 = vadd.f32 0.0, %v1590
    %v1592 = vpop.f32.mrb[0].mxu0
    %1593 = vmatprep.mubr.bf16.mxu0 0
    %1594 = vmatmul.mubr.bf16.gmra.mrb[0].mxu0 %v389
    %v1595 = vpop.f32.mrb[0].mxu0
    %v1596 = vadd.f32 0.0, %v1595
    %v1597 = vpop.f32.mrb[0].mxu0
    %v1598 = vpop.f32.mrb[0].mxu0
    %v1599 = vadd.f32 0.0, %v1598
    %v1600 = vpop.f32.mrb[0].mxu0
    %1601 = vmatprep.mubr.bf16.mxu0 0
    %1602 = vmatmul.mubr.bf16.gmra.mrb[0].mxu0 %v392
    %v1603 = vpop.f32.mrb[0].mxu0
    %v1604 = vadd.f32 0.0, %v1603
    %v1605 = vpop.f32.mrb[0].mxu0
    %v1606 = vpop.f32.mrb[0].mxu0
    %v1607 = vadd.f32 0.0, %v1606
    %v1608 = vpop.f32.mrb[0].mxu0
    %1609 = vmatprep.mubr.bf16.mxu0 0
    %1610 = vmatmul.mubr.bf16.gmra.mrb[0].mxu0 %v395
    %v1611 = vpop.f32.mrb[0].mxu0
    %v1612 = vadd.f32 0.0, %v1611
    %v1613 = vpop.f32.mrb[0].mxu0
    %v1614 = vpop.f32.mrb[0].mxu0
    %v1615 = vadd.f32 0.0, %v1614
    %v1616 = vpop.f32.mrb[0].mxu0
    %1617 = vmatprep.mubr.bf16.mxu0 0
    %1618 = vmatmul.mubr.bf16.gmra.mrb[0].mxu0 %v398
    %v1619 = vpop.f32.mrb[0].mxu0
    %v1620 = vadd.f32 0.0, %v1619
    %v1621 = vpop.f32.mrb[0].mxu0
    %v1622 = vpop.f32.mrb[0].mxu0
    %v1623 = vadd.f32 0.0, %v1622
    %v1624 = vpop.f32.mrb[0].mxu0
    %1625 = vmatprep.mubr.bf16.mxu0 0
    %1626 = vmatmul.mubr.bf16.gmra.mrb[0].mxu0 %v401
    %v1627 = vpop.f32.mrb[0].mxu0
    %v1628 = vadd.f32 0.0, %v1627
    %v1629 = vpop.f32.mrb[0].mxu0
    %v1630 = vpop.f32.mrb[0].mxu0
    %v1631 = vadd.f32 0.0, %v1630
    %v1632 = vpop.f32.mrb[0].mxu0
    %1633 = vmatprep.mubr.bf16.mxu0 0
    %1634 = vmatmul.mubr.bf16.gmra.mrb[0].mxu0 %v404
    %v1635 = vpop.f32.mrb[0].mxu0
    %v1636 = vadd.f32 0.0, %v1635
    %v1637 = vpop.f32.mrb[0].mxu0
    %v1638 = vpop.f32.mrb[0].mxu0
    %v1639 = vadd.f32 0.0, %v1638
    %v1640 = vpop.f32.mrb[0].mxu0
    %1641 = vmatprep.mubr.bf16.mxu0 0
    %1642 = vmatmul.mubr.bf16.gmra.mrb[0].mxu0 %v1388
    %v1643 = vpop.f32.mrb[0].mxu0
    %v1644 = vadd.f32 0.0, %v1643
    %v1645 = vpop.f32.mrb[0].mxu0
    %v1646 = vpop.f32.mrb[0].mxu0
    %v1647 = vadd.f32 0.0, %v1646
    %v1648 = vpop.f32.mrb[0].mxu0
    %1649 = vdwg.mxu0
    %v1650 = vadd.f32 %v1320, %v1428
    %v1651 = vadd.f32 %v1321, %v1431
    %v1652 = vadd.f32 %v1322, %v1436
    %v1653 = vadd.f32 %v1323, %v1439
    %v1654 = vadd.f32 %v1324, %v1444
    %v1655 = vadd.f32 %v1325, %v1447
    %v1656 = vadd.f32 %v1326, %v1452
    %v1657 = vadd.f32 %v1327, %v1455
    %v1658 = vadd.f32 %v1328, %v1460
    %v1659 = vadd.f32 %v1329, %v1463
    %v1660 = vadd.f32 %v1330, %v1468
    %v1661 = vadd.f32 %v1331, %v1471
    %v1662 = vadd.f32 %v1332, %v1476
    %v1663 = vadd.f32 %v1333, %v1479
    %v1664 = vadd.f32 %v1334, %v1484
    %v1665 = vadd.f32 %v1335, %v1487
    %v1666 = vadd.f32 %v1336, %v1492
    %v1667 = vadd.f32 %v1337, %v1495
    %v1668 = vadd.f32 %v1338, %v1500
    %v1669 = vadd.f32 %v1339, %v1503
    %v1670 = vadd.f32 %v1340, %v1508
    %v1671 = vadd.f32 %v1341, %v1511
    %v1672 = vadd.f32 %v1342, %v1516
    %v1673 = vadd.f32 %v1343, %v1519
    %v1674 = vadd.f32 %v1344, %v1524
    %v1675 = vadd.f32 %v1345, %v1527
    %v1676 = vadd.f32 %v1346, %v1532
    %v1677 = vadd.f32 %v1347, %v1535
    %v1678 = vadd.f32 %v1348, %v1540
    %v1679 = vadd.f32 %v1349, %v1543
    %v1680 = vadd.f32 %v1350, %v1548
    %v1681 = vadd.f32 %v1351, %v1551
    %v1682 = vadd.f32 %v1352, %v1556
    %v1683 = vadd.f32 %v1353, %v1559
    %v1684 = vadd.f32 %v1354, %v1564
    %v1685 = vadd.f32 %v1355, %v1567
    %v1686 = vadd.f32 %v1356, %v1572
    %v1687 = vadd.f32 %v1357, %v1575
    %v1688 = vadd.f32 %v1358, %v1580
    %v1689 = vadd.f32 %v1359, %v1583
    %v1690 = vadd.f32 %v1360, %v1588
    %v1691 = vadd.f32 %v1361, %v1591
    %v1692 = vadd.f32 %v1362, %v1596
    %v1693 = vadd.f32 %v1363, %v1599
    %v1694 = vadd.f32 %v1364, %v1604
    %v1695 = vadd.f32 %v1365, %v1607
    %v1696 = vadd.f32 %v1366, %v1612
    %v1697 = vadd.f32 %v1367, %v1615
    %v1698 = vadd.f32 %v1368, %v1620
    %v1699 = vadd.f32 %v1369, %v1623
    %v1700 = vadd.f32 %v1370, %v1628
    %v1701 = vadd.f32 %v1371, %v1631
    %v1702 = vadd.f32 %v1372, %v1636
    %v1703 = vadd.f32 %v1373, %v1639
    %v1704 = vadd.f32 %v1374, %v1644
    %v1705 = vadd.f32 %v1375, %v1647
    %s1706 = scalar_lea.vmem %s1, 32
    %v1707 = vld [vmem:[%s1706] sm:$0xf]
    %v1708 = vld [vmem:[%s1706 + $0x4] sm:$0x3]
    %v1710 = vunpack.c.l.b16 %v166
    %v1711 = vpack.c.b16 %v1710, %v1380
    %v1714 = vunpack.c.l.b16 %v1707
    %v1715 = vunpack.c.l.b16 %v1708
    %v1716 = vpack.c.b16 %v1715, %v1714
    %v1718 = vsel %vm321, %v1711, 0
    %v1721 = vsel %vm406, %v1716, 0
    %1723 = vmatprep.subr.bf16.mxu0 0
    %1724 = vmatpush1.bf16.msra.mxu0 %v1721
    %1725 = vmatprep.subr.bf16.mxu0 0
    %1726 = vmatpush1.bf16.msra.mxu0 0
    %1727 = vmatprep.subr.bf16.mxu0 0
    %1728 = vmatpush1.bf16.msra.mxu0 0
    %1729 = vmatprep.subr.bf16.mxu0 0
    %1730 = vmatpush1.bf16.msra.mxu0 0
    %1731 = vmatprep.subr.bf16.mxu0 0
    %1732 = vmatpush1.bf16.msra.mxu0 0
    %1733 = vmatprep.subr.bf16.mxu0 0
    %1734 = vmatpush1.bf16.msra.mxu0 0
    %1735 = vmatprep.subr.bf16.mxu0 0
    %1736 = vmatpush1.bf16.msra.mxu0 0
    %1737 = vmatprep.subr.bf16.mxu0 0
    %1738 = vmatpush1.bf16.msra.mxu0 0
    %1739 = vmatprep.subr.bf16.mxu0 0
    %1740 = vmatpush1.bf16.msra.mxu0 0
    %1741 = vmatprep.subr.bf16.mxu0 0
    %1742 = vmatpush1.bf16.msra.mxu0 0
    %1743 = vmatprep.subr.bf16.mxu0 0
    %1744 = vmatpush1.bf16.msra.mxu0 0
    %1745 = vmatprep.subr.bf16.mxu0 0
    %1746 = vmatpush1.bf16.msra.mxu0 0
    %1747 = vmatprep.subr.bf16.mxu0 0
    %1748 = vmatpush1.bf16.msra.mxu0 0
    %1749 = vmatprep.subr.bf16.mxu0 0
    %1750 = vmatpush1.bf16.msra.mxu0 0
    %1751 = vmatprep.subr.bf16.mxu0 0
    %1752 = vmatpush1.bf16.msra.mxu0 0
    %1753 = vmatprep.subr.bf16.mxu0 0
    %1754 = vmatpush1.bf16.msra.mxu0 0
    %1755 = vmatprep.mubr.bf16.mxu0 0
    %1756 = vmatmul.mubr.bf16.gmra.mrb[0].mxu0 %v709
    %v1757 = vpop.f32.mrb[0].mxu0
    %v1758 = vadd.f32 0.0, %v1757
    %v1759 = vpop.f32.mrb[0].mxu0
    %v1760 = vpop.f32.mrb[0].mxu0
    %v1761 = vadd.f32 0.0, %v1760
    %v1762 = vpop.f32.mrb[0].mxu0
    %1763 = vmatprep.mubr.bf16.mxu0 0
    %1764 = vmatmul.mubr.bf16.gmra.mrb[0].mxu0 %v712
    %v1765 = vpop.f32.mrb[0].mxu0
    %v1766 = vadd.f32 0.0, %v1765
    %v1767 = vpop.f32.mrb[0].mxu0
    %v1768 = vpop.f32.mrb[0].mxu0
    %v1769 = vadd.f32 0.0, %v1768
    %v1770 = vpop.f32.mrb[0].mxu0
    %1771 = vmatprep.mubr.bf16.mxu0 0
    %1772 = vmatmul.mubr.bf16.gmra.mrb[0].mxu0 %v715
    %v1773 = vpop.f32.mrb[0].mxu0
    %v1774 = vadd.f32 0.0, %v1773
    %v1775 = vpop.f32.mrb[0].mxu0
    %v1776 = vpop.f32.mrb[0].mxu0
    %v1777 = vadd.f32 0.0, %v1776
    %v1778 = vpop.f32.mrb[0].mxu0
    %1779 = vmatprep.mubr.bf16.mxu0 0
    %1780 = vmatmul.mubr.bf16.gmra.mrb[0].mxu0 %v718
    %v1781 = vpop.f32.mrb[0].mxu0
    %v1782 = vadd.f32 0.0, %v1781
    %v1783 = vpop.f32.mrb[0].mxu0
    %v1784 = vpop.f32.mrb[0].mxu0
    %v1785 = vadd.f32 0.0, %v1784
    %v1786 = vpop.f32.mrb[0].mxu0
    %1787 = vmatprep.mubr.bf16.mxu0 0
    %1788 = vmatmul.mubr.bf16.gmra.mrb[0].mxu0 %v721
    %v1789 = vpop.f32.mrb[0].mxu0
    %v1790 = vadd.f32 0.0, %v1789
    %v1791 = vpop.f32.mrb[0].mxu0
    %v1792 = vpop.f32.mrb[0].mxu0
    %v1793 = vadd.f32 0.0, %v1792
    %v1794 = vpop.f32.mrb[0].mxu0
    %1795 = vmatprep.mubr.bf16.mxu0 0
    %1796 = vmatmul.mubr.bf16.gmra.mrb[0].mxu0 %v724
    %v1797 = vpop.f32.mrb[0].mxu0
    %v1798 = vadd.f32 0.0, %v1797
    %v1799 = vpop.f32.mrb[0].mxu0
    %v1800 = vpop.f32.mrb[0].mxu0
    %v1801 = vadd.f32 0.0, %v1800
    %v1802 = vpop.f32.mrb[0].mxu0
    %1803 = vmatprep.mubr.bf16.mxu0 0
    %1804 = vmatmul.mubr.bf16.gmra.mrb[0].mxu0 %v727
    %v1805 = vpop.f32.mrb[0].mxu0
    %v1806 = vadd.f32 0.0, %v1805
    %v1807 = vpop.f32.mrb[0].mxu0
    %v1808 = vpop.f32.mrb[0].mxu0
    %v1809 = vadd.f32 0.0, %v1808
    %v1810 = vpop.f32.mrb[0].mxu0
    %1811 = vmatprep.mubr.bf16.mxu0 0
    %1812 = vmatmul.mubr.bf16.gmra.mrb[0].mxu0 %v730
    %v1813 = vpop.f32.mrb[0].mxu0
    %v1814 = vadd.f32 0.0, %v1813
    %v1815 = vpop.f32.mrb[0].mxu0
    %v1816 = vpop.f32.mrb[0].mxu0
    %v1817 = vadd.f32 0.0, %v1816
    %v1818 = vpop.f32.mrb[0].mxu0
    %1819 = vmatprep.mubr.bf16.mxu0 0
    %1820 = vmatmul.mubr.bf16.gmra.mrb[0].mxu0 %v733
    %v1821 = vpop.f32.mrb[0].mxu0
    %v1822 = vadd.f32 0.0, %v1821
    %v1823 = vpop.f32.mrb[0].mxu0
    %v1824 = vpop.f32.mrb[0].mxu0
    %v1825 = vadd.f32 0.0, %v1824
    %v1826 = vpop.f32.mrb[0].mxu0
    %1827 = vmatprep.mubr.bf16.mxu0 0
    %1828 = vmatmul.mubr.bf16.gmra.mrb[0].mxu0 %v736
    %v1829 = vpop.f32.mrb[0].mxu0
    %v1830 = vadd.f32 0.0, %v1829
    %v1831 = vpop.f32.mrb[0].mxu0
    %v1832 = vpop.f32.mrb[0].mxu0
    %v1833 = vadd.f32 0.0, %v1832
    %v1834 = vpop.f32.mrb[0].mxu0
    %1835 = vmatprep.mubr.bf16.mxu0 0
    %1836 = vmatmul.mubr.bf16.gmra.mrb[0].mxu0 %v739
    %v1837 = vpop.f32.mrb[0].mxu0
    %v1838 = vadd.f32 0.0, %v1837
    %v1839 = vpop.f32.mrb[0].mxu0
    %v1840 = vpop.f32.mrb[0].mxu0
    %v1841 = vadd.f32 0.0, %v1840
    %v1842 = vpop.f32.mrb[0].mxu0
    %1843 = vmatprep.mubr.bf16.mxu0 0
    %1844 = vmatmul.mubr.bf16.gmra.mrb[0].mxu0 %v742
    %v1845 = vpop.f32.mrb[0].mxu0
    %v1846 = vadd.f32 0.0, %v1845
    %v1847 = vpop.f32.mrb[0].mxu0
    %v1848 = vpop.f32.mrb[0].mxu0
    %v1849 = vadd.f32 0.0, %v1848
    %v1850 = vpop.f32.mrb[0].mxu0
    %1851 = vmatprep.mubr.bf16.mxu0 0
    %1852 = vmatmul.mubr.bf16.gmra.mrb[0].mxu0 %v745
    %v1853 = vpop.f32.mrb[0].mxu0
    %v1854 = vadd.f32 0.0, %v1853
    %v1855 = vpop.f32.mrb[0].mxu0
    %v1856 = vpop.f32.mrb[0].mxu0
    %v1857 = vadd.f32 0.0, %v1856
    %v1858 = vpop.f32.mrb[0].mxu0
    %1859 = vmatprep.mubr.bf16.mxu0 0
    %1860 = vmatmul.mubr.bf16.gmra.mrb[0].mxu0 %v748
    %v1861 = vpop.f32.mrb[0].mxu0
    %v1862 = vadd.f32 0.0, %v1861
    %v1863 = vpop.f32.mrb[0].mxu0
    %v1864 = vpop.f32.mrb[0].mxu0
    %v1865 = vadd.f32 0.0, %v1864
    %v1866 = vpop.f32.mrb[0].mxu0
    %1867 = vmatprep.mubr.bf16.mxu0 0
    %1868 = vmatmul.mubr.bf16.gmra.mrb[0].mxu0 %v751
    %v1869 = vpop.f32.mrb[0].mxu0
    %v1870 = vadd.f32 0.0, %v1869
    %v1871 = vpop.f32.mrb[0].mxu0
    %v1872 = vpop.f32.mrb[0].mxu0
    %v1873 = vadd.f32 0.0, %v1872
    %v1874 = vpop.f32.mrb[0].mxu0
    %1875 = vmatprep.mubr.bf16.mxu0 0
    %1876 = vmatmul.mubr.bf16.gmra.mrb[0].mxu0 %v754
    %v1877 = vpop.f32.mrb[0].mxu0
    %v1878 = vadd.f32 0.0, %v1877
    %v1879 = vpop.f32.mrb[0].mxu0
    %v1880 = vpop.f32.mrb[0].mxu0
    %v1881 = vadd.f32 0.0, %v1880
    %v1882 = vpop.f32.mrb[0].mxu0
    %1883 = vmatprep.mubr.bf16.mxu0 0
    %1884 = vmatmul.mubr.bf16.gmra.mrb[0].mxu0 %v757
    %v1885 = vpop.f32.mrb[0].mxu0
    %v1886 = vadd.f32 0.0, %v1885
    %v1887 = vpop.f32.mrb[0].mxu0
    %v1888 = vpop.f32.mrb[0].mxu0
    %v1889 = vadd.f32 0.0, %v1888
    %v1890 = vpop.f32.mrb[0].mxu0
    %1891 = vmatprep.mubr.bf16.mxu0 0
    %1892 = vmatmul.mubr.bf16.gmra.mrb[0].mxu0 %v760
    %v1893 = vpop.f32.mrb[0].mxu0
    %v1894 = vadd.f32 0.0, %v1893
    %v1895 = vpop.f32.mrb[0].mxu0
    %v1896 = vpop.f32.mrb[0].mxu0
    %v1897 = vadd.f32 0.0, %v1896
    %v1898 = vpop.f32.mrb[0].mxu0
    %1899 = vmatprep.mubr.bf16.mxu0 0
    %1900 = vmatmul.mubr.bf16.gmra.mrb[0].mxu0 %v763
    %v1901 = vpop.f32.mrb[0].mxu0
    %v1902 = vadd.f32 0.0, %v1901
    %v1903 = vpop.f32.mrb[0].mxu0
    %v1904 = vpop.f32.mrb[0].mxu0
    %v1905 = vadd.f32 0.0, %v1904
    %v1906 = vpop.f32.mrb[0].mxu0
    %1907 = vmatprep.mubr.bf16.mxu0 0
    %1908 = vmatmul.mubr.bf16.gmra.mrb[0].mxu0 %v766
    %v1909 = vpop.f32.mrb[0].mxu0
    %v1910 = vadd.f32 0.0, %v1909
    %v1911 = vpop.f32.mrb[0].mxu0
    %v1912 = vpop.f32.mrb[0].mxu0
    %v1913 = vadd.f32 0.0, %v1912
    %v1914 = vpop.f32.mrb[0].mxu0
    %1915 = vmatprep.mubr.bf16.mxu0 0
    %1916 = vmatmul.mubr.bf16.gmra.mrb[0].mxu0 %v769
    %v1917 = vpop.f32.mrb[0].mxu0
    %v1918 = vadd.f32 0.0, %v1917
    %v1919 = vpop.f32.mrb[0].mxu0
    %v1920 = vpop.f32.mrb[0].mxu0
    %v1921 = vadd.f32 0.0, %v1920
    %v1922 = vpop.f32.mrb[0].mxu0
    %1923 = vmatprep.mubr.bf16.mxu0 0
    %1924 = vmatmul.mubr.bf16.gmra.mrb[0].mxu0 %v772
    %v1925 = vpop.f32.mrb[0].mxu0
    %v1926 = vadd.f32 0.0, %v1925
    %v1927 = vpop.f32.mrb[0].mxu0
    %v1928 = vpop.f32.mrb[0].mxu0
    %v1929 = vadd.f32 0.0, %v1928
    %v1930 = vpop.f32.mrb[0].mxu0
    %1931 = vmatprep.mubr.bf16.mxu0 0
    %1932 = vmatmul.mubr.bf16.gmra.mrb[0].mxu0 %v775
    %v1933 = vpop.f32.mrb[0].mxu0
    %v1934 = vadd.f32 0.0, %v1933
    %v1935 = vpop.f32.mrb[0].mxu0
    %v1936 = vpop.f32.mrb[0].mxu0
    %v1937 = vadd.f32 0.0, %v1936
    %v1938 = vpop.f32.mrb[0].mxu0
    %1939 = vmatprep.mubr.bf16.mxu0 0
    %1940 = vmatmul.mubr.bf16.gmra.mrb[0].mxu0 %v778
    %v1941 = vpop.f32.mrb[0].mxu0
    %v1942 = vadd.f32 0.0, %v1941
    %v1943 = vpop.f32.mrb[0].mxu0
    %v1944 = vpop.f32.mrb[0].mxu0
    %v1945 = vadd.f32 0.0, %v1944
    %v1946 = vpop.f32.mrb[0].mxu0
    %1947 = vmatprep.mubr.bf16.mxu0 0
    %1948 = vmatmul.mubr.bf16.gmra.mrb[0].mxu0 %v781
    %v1949 = vpop.f32.mrb[0].mxu0
    %v1950 = vadd.f32 0.0, %v1949
    %v1951 = vpop.f32.mrb[0].mxu0
    %v1952 = vpop.f32.mrb[0].mxu0
    %v1953 = vadd.f32 0.0, %v1952
    %v1954 = vpop.f32.mrb[0].mxu0
    %1955 = vmatprep.mubr.bf16.mxu0 0
    %1956 = vmatmul.mubr.bf16.gmra.mrb[0].mxu0 %v784
    %v1957 = vpop.f32.mrb[0].mxu0
    %v1958 = vadd.f32 0.0, %v1957
    %v1959 = vpop.f32.mrb[0].mxu0
    %v1960 = vpop.f32.mrb[0].mxu0
    %v1961 = vadd.f32 0.0, %v1960
    %v1962 = vpop.f32.mrb[0].mxu0
    %1963 = vmatprep.mubr.bf16.mxu0 0
    %1964 = vmatmul.mubr.bf16.gmra.mrb[0].mxu0 %v1058
    %v1965 = vpop.f32.mrb[0].mxu0
    %v1966 = vadd.f32 0.0, %v1965
    %v1967 = vpop.f32.mrb[0].mxu0
    %v1968 = vpop.f32.mrb[0].mxu0
    %v1969 = vadd.f32 0.0, %v1968
    %v1970 = vpop.f32.mrb[0].mxu0
    %1971 = vmatprep.mubr.bf16.mxu0 0
    %1972 = vmatmul.mubr.bf16.gmra.mrb[0].mxu0 %v1718
    %v1973 = vpop.f32.mrb[0].mxu0
    %v1974 = vadd.f32 0.0, %v1973
    %v1975 = vpop.f32.mrb[0].mxu0
    %v1976 = vpop.f32.mrb[0].mxu0
    %v1977 = vadd.f32 0.0, %v1976
    %v1978 = vpop.f32.mrb[0].mxu0
    %1979 = vdwg.mxu0
    %v1980 = vadd.f32 %v1650, %v1758
    %v1981 = vadd.f32 %v1651, %v1761
    %v1982 = vadd.f32 %v1652, %v1766
    %v1983 = vadd.f32 %v1653, %v1769
    %v1984 = vadd.f32 %v1654, %v1774
    %v1985 = vadd.f32 %v1655, %v1777
    %v1986 = vadd.f32 %v1656, %v1782
    %v1987 = vadd.f32 %v1657, %v1785
    %v1988 = vadd.f32 %v1658, %v1790
    %v1989 = vadd.f32 %v1659, %v1793
    %v1990 = vadd.f32 %v1660, %v1798
    %v1991 = vadd.f32 %v1661, %v1801
    %v1992 = vadd.f32 %v1662, %v1806
    %v1993 = vadd.f32 %v1663, %v1809
    %v1994 = vadd.f32 %v1664, %v1814
    %v1995 = vadd.f32 %v1665, %v1817
    %v1996 = vadd.f32 %v1666, %v1822
    %v1997 = vadd.f32 %v1667, %v1825
    %v1998 = vadd.f32 %v1668, %v1830
    %v1999 = vadd.f32 %v1669, %v1833
    %v2000 = vadd.f32 %v1670, %v1838
    %v2001 = vadd.f32 %v1671, %v1841
    %v2002 = vadd.f32 %v1672, %v1846
    %v2003 = vadd.f32 %v1673, %v1849
    %v2004 = vadd.f32 %v1674, %v1854
    %v2005 = vadd.f32 %v1675, %v1857
    %v2006 = vadd.f32 %v1676, %v1862
    %v2007 = vadd.f32 %v1677, %v1865
    %v2008 = vadd.f32 %v1678, %v1870
    %v2009 = vadd.f32 %v1679, %v1873
    %v2010 = vadd.f32 %v1680, %v1878
    %v2011 = vadd.f32 %v1681, %v1881
    %v2012 = vadd.f32 %v1682, %v1886
    %v2013 = vadd.f32 %v1683, %v1889
    %v2014 = vadd.f32 %v1684, %v1894
    %v2015 = vadd.f32 %v1685, %v1897
    %v2016 = vadd.f32 %v1686, %v1902
    %v2017 = vadd.f32 %v1687, %v1905
    %v2018 = vadd.f32 %v1688, %v1910
    %v2019 = vadd.f32 %v1689, %v1913
    %v2020 = vadd.f32 %v1690, %v1918
    %v2021 = vadd.f32 %v1691, %v1921
    %v2022 = vadd.f32 %v1692, %v1926
    %v2023 = vadd.f32 %v1693, %v1929
    %v2024 = vadd.f32 %v1694, %v1934
    %v2025 = vadd.f32 %v1695, %v1937
    %v2026 = vadd.f32 %v1696, %v1942
    %v2027 = vadd.f32 %v1697, %v1945
    %v2028 = vadd.f32 %v1698, %v1950
    %v2029 = vadd.f32 %v1699, %v1953
    %v2030 = vadd.f32 %v1700, %v1958
    %v2031 = vadd.f32 %v1701, %v1961
    %v2032 = vadd.f32 %v1702, %v1966
    %v2033 = vadd.f32 %v1703, %v1969
    %v2034 = vadd.f32 %v1704, %v1974
    %v2035 = vadd.f32 %v1705, %v1977
    %s2036 = scalar_lea.vmem %s1, 40
    %v2037 = vld [vmem:[%s2036] sm:$0xf]
    %v2038 = vld [vmem:[%s2036 + $0x4] sm:$0x3]
    %v2040 = vunpack.c.l.b16 %v167
    %v2041 = vpack.c.b16 %v2040, %v1710
    %v2044 = vunpack.c.l.b16 %v2037
    %v2045 = vunpack.c.l.b16 %v2038
    %v2046 = vpack.c.b16 %v2045, %v2044
    %v2048 = vsel %vm321, %v2041, 0
    %v2051 = vsel %vm406, %v2046, 0
    %2053 = vmatprep.subr.bf16.mxu0 0
    %2054 = vmatpush1.bf16.msra.mxu0 %v2051
    %2055 = vmatprep.subr.bf16.mxu0 0
    %2056 = vmatpush1.bf16.msra.mxu0 0
    %2057 = vmatprep.subr.bf16.mxu0 0
    %2058 = vmatpush1.bf16.msra.mxu0 0
    %2059 = vmatprep.subr.bf16.mxu0 0
    %2060 = vmatpush1.bf16.msra.mxu0 0
    %2061 = vmatprep.subr.bf16.mxu0 0
    %2062 = vmatpush1.bf16.msra.mxu0 0
    %2063 = vmatprep.subr.bf16.mxu0 0
    %2064 = vmatpush1.bf16.msra.mxu0 0
    %2065 = vmatprep.subr.bf16.mxu0 0
    %2066 = vmatpush1.bf16.msra.mxu0 0
    %2067 = vmatprep.subr.bf16.mxu0 0
    %2068 = vmatpush1.bf16.msra.mxu0 0
    %2069 = vmatprep.subr.bf16.mxu0 0
    %2070 = vmatpush1.bf16.msra.mxu0 0
    %2071 = vmatprep.subr.bf16.mxu0 0
    %2072 = vmatpush1.bf16.msra.mxu0 0
    %2073 = vmatprep.subr.bf16.mxu0 0
    %2074 = vmatpush1.bf16.msra.mxu0 0
    %2075 = vmatprep.subr.bf16.mxu0 0
    %2076 = vmatpush1.bf16.msra.mxu0 0
    %2077 = vmatprep.subr.bf16.mxu0 0
    %2078 = vmatpush1.bf16.msra.mxu0 0
    %2079 = vmatprep.subr.bf16.mxu0 0
    %2080 = vmatpush1.bf16.msra.mxu0 0
    %2081 = vmatprep.subr.bf16.mxu0 0
    %2082 = vmatpush1.bf16.msra.mxu0 0
    %2083 = vmatprep.subr.bf16.mxu0 0
    %2084 = vmatpush1.bf16.msra.mxu0 0
    %2085 = vmatprep.mubr.bf16.mxu0 0
    %2086 = vmatmul.mubr.bf16.gmra.mrb[0].mxu0 %v329
    %v2087 = vpop.f32.mrb[0].mxu0
    %v2088 = vadd.f32 0.0, %v2087
    %v2089 = vpop.f32.mrb[0].mxu0
    %v2090 = vpop.f32.mrb[0].mxu0
    %v2091 = vadd.f32 0.0, %v2090
    %v2092 = vpop.f32.mrb[0].mxu0
    %2093 = vmatprep.mubr.bf16.mxu0 0
    %2094 = vmatmul.mubr.bf16.gmra.mrb[0].mxu0 %v332
    %v2095 = vpop.f32.mrb[0].mxu0
    %v2096 = vadd.f32 0.0, %v2095
    %v2097 = vpop.f32.mrb[0].mxu0
    %v2098 = vpop.f32.mrb[0].mxu0
    %v2099 = vadd.f32 0.0, %v2098
    %v2100 = vpop.f32.mrb[0].mxu0
    %2101 = vmatprep.mubr.bf16.mxu0 0
    %2102 = vmatmul.mubr.bf16.gmra.mrb[0].mxu0 %v335
    %v2103 = vpop.f32.mrb[0].mxu0
    %v2104 = vadd.f32 0.0, %v2103
    %v2105 = vpop.f32.mrb[0].mxu0
    %v2106 = vpop.f32.mrb[0].mxu0
    %v2107 = vadd.f32 0.0, %v2106
    %v2108 = vpop.f32.mrb[0].mxu0
    %2109 = vmatprep.mubr.bf16.mxu0 0
    %2110 = vmatmul.mubr.bf16.gmra.mrb[0].mxu0 %v338
    %v2111 = vpop.f32.mrb[0].mxu0
    %v2112 = vadd.f32 0.0, %v2111
    %v2113 = vpop.f32.mrb[0].mxu0
    %v2114 = vpop.f32.mrb[0].mxu0
    %v2115 = vadd.f32 0.0, %v2114
    %v2116 = vpop.f32.mrb[0].mxu0
    %2117 = vmatprep.mubr.bf16.mxu0 0
    %2118 = vmatmul.mubr.bf16.gmra.mrb[0].mxu0 %v341
    %v2119 = vpop.f32.mrb[0].mxu0
    %v2120 = vadd.f32 0.0, %v2119
    %v2121 = vpop.f32.mrb[0].mxu0
    %v2122 = vpop.f32.mrb[0].mxu0
    %v2123 = vadd.f32 0.0, %v2122
    %v2124 = vpop.f32.mrb[0].mxu0
    %2125 = vmatprep.mubr.bf16.mxu0 0
    %2126 = vmatmul.mubr.bf16.gmra.mrb[0].mxu0 %v344
    %v2127 = vpop.f32.mrb[0].mxu0
    %v2128 = vadd.f32 0.0, %v2127
    %v2129 = vpop.f32.mrb[0].mxu0
    %v2130 = vpop.f32.mrb[0].mxu0
    %v2131 = vadd.f32 0.0, %v2130
    %v2132 = vpop.f32.mrb[0].mxu0
    %2133 = vmatprep.mubr.bf16.mxu0 0
    %2134 = vmatmul.mubr.bf16.gmra.mrb[0].mxu0 %v347
    %v2135 = vpop.f32.mrb[0].mxu0
    %v2136 = vadd.f32 0.0, %v2135
    %v2137 = vpop.f32.mrb[0].mxu0
    %v2138 = vpop.f32.mrb[0].mxu0
    %v2139 = vadd.f32 0.0, %v2138
    %v2140 = vpop.f32.mrb[0].mxu0
    %2141 = vmatprep.mubr.bf16.mxu0 0
    %2142 = vmatmul.mubr.bf16.gmra.mrb[0].mxu0 %v350
    %v2143 = vpop.f32.mrb[0].mxu0
    %v2144 = vadd.f32 0.0, %v2143
    %v2145 = vpop.f32.mrb[0].mxu0
    %v2146 = vpop.f32.mrb[0].mxu0
    %v2147 = vadd.f32 0.0, %v2146
    %v2148 = vpop.f32.mrb[0].mxu0
    %2149 = vmatprep.mubr.bf16.mxu0 0
    %2150 = vmatmul.mubr.bf16.gmra.mrb[0].mxu0 %v353
    %v2151 = vpop.f32.mrb[0].mxu0
    %v2152 = vadd.f32 0.0, %v2151
    %v2153 = vpop.f32.mrb[0].mxu0
    %v2154 = vpop.f32.mrb[0].mxu0
    %v2155 = vadd.f32 0.0, %v2154
    %v2156 = vpop.f32.mrb[0].mxu0
    %2157 = vmatprep.mubr.bf16.mxu0 0
    %2158 = vmatmul.mubr.bf16.gmra.mrb[0].mxu0 %v356
    %v2159 = vpop.f32.mrb[0].mxu0
    %v2160 = vadd.f32 0.0, %v2159
    %v2161 = vpop.f32.mrb[0].mxu0
    %v2162 = vpop.f32.mrb[0].mxu0
    %v2163 = vadd.f32 0.0, %v2162
    %v2164 = vpop.f32.mrb[0].mxu0
    %2165 = vmatprep.mubr.bf16.mxu0 0
    %2166 = vmatmul.mubr.bf16.gmra.mrb[0].mxu0 %v359
    %v2167 = vpop.f32.mrb[0].mxu0
    %v2168 = vadd.f32 0.0, %v2167
    %v2169 = vpop.f32.mrb[0].mxu0
    %v2170 = vpop.f32.mrb[0].mxu0
    %v2171 = vadd.f32 0.0, %v2170
    %v2172 = vpop.f32.mrb[0].mxu0
    %2173 = vmatprep.mubr.bf16.mxu0 0
    %2174 = vmatmul.mubr.bf16.gmra.mrb[0].mxu0 %v362
    %v2175 = vpop.f32.mrb[0].mxu0
    %v2176 = vadd.f32 0.0, %v2175
    %v2177 = vpop.f32.mrb[0].mxu0
    %v2178 = vpop.f32.mrb[0].mxu0
    %v2179 = vadd.f32 0.0, %v2178
    %v2180 = vpop.f32.mrb[0].mxu0
    %2181 = vmatprep.mubr.bf16.mxu0 0
    %2182 = vmatmul.mubr.bf16.gmra.mrb[0].mxu0 %v365
    %v2183 = vpop.f32.mrb[0].mxu0
    %v2184 = vadd.f32 0.0, %v2183
    %v2185 = vpop.f32.mrb[0].mxu0
    %v2186 = vpop.f32.mrb[0].mxu0
    %v2187 = vadd.f32 0.0, %v2186
    %v2188 = vpop.f32.mrb[0].mxu0
    %2189 = vmatprep.mubr.bf16.mxu0 0
    %2190 = vmatmul.mubr.bf16.gmra.mrb[0].mxu0 %v368
    %v2191 = vpop.f32.mrb[0].mxu0
    %v2192 = vadd.f32 0.0, %v2191
    %v2193 = vpop.f32.mrb[0].mxu0
    %v2194 = vpop.f32.mrb[0].mxu0
    %v2195 = vadd.f32 0.0, %v2194
    %v2196 = vpop.f32.mrb[0].mxu0
    %2197 = vmatprep.mubr.bf16.mxu0 0
    %2198 = vmatmul.mubr.bf16.gmra.mrb[0].mxu0 %v371
    %v2199 = vpop.f32.mrb[0].mxu0
    %v2200 = vadd.f32 0.0, %v2199
    %v2201 = vpop.f32.mrb[0].mxu0
    %v2202 = vpop.f32.mrb[0].mxu0
    %v2203 = vadd.f32 0.0, %v2202
    %v2204 = vpop.f32.mrb[0].mxu0
    %2205 = vmatprep.mubr.bf16.mxu0 0
    %2206 = vmatmul.mubr.bf16.gmra.mrb[0].mxu0 %v374
    %v2207 = vpop.f32.mrb[0].mxu0
    %v2208 = vadd.f32 0.0, %v2207
    %v2209 = vpop.f32.mrb[0].mxu0
    %v2210 = vpop.f32.mrb[0].mxu0
    %v2211 = vadd.f32 0.0, %v2210
    %v2212 = vpop.f32.mrb[0].mxu0
    %2213 = vmatprep.mubr.bf16.mxu0 0
    %2214 = vmatmul.mubr.bf16.gmra.mrb[0].mxu0 %v377
    %v2215 = vpop.f32.mrb[0].mxu0
    %v2216 = vadd.f32 0.0, %v2215
    %v2217 = vpop.f32.mrb[0].mxu0
    %v2218 = vpop.f32.mrb[0].mxu0
    %v2219 = vadd.f32 0.0, %v2218
    %v2220 = vpop.f32.mrb[0].mxu0
    %2221 = vmatprep.mubr.bf16.mxu0 0
    %2222 = vmatmul.mubr.bf16.gmra.mrb[0].mxu0 %v380
    %v2223 = vpop.f32.mrb[0].mxu0
    %v2224 = vadd.f32 0.0, %v2223
    %v2225 = vpop.f32.mrb[0].mxu0
    %v2226 = vpop.f32.mrb[0].mxu0
    %v2227 = vadd.f32 0.0, %v2226
    %v2228 = vpop.f32.mrb[0].mxu0
    %2229 = vmatprep.mubr.bf16.mxu0 0
    %2230 = vmatmul.mubr.bf16.gmra.mrb[0].mxu0 %v383
    %v2231 = vpop.f32.mrb[0].mxu0
    %v2232 = vadd.f32 0.0, %v2231
    %v2233 = vpop.f32.mrb[0].mxu0
    %v2234 = vpop.f32.mrb[0].mxu0
    %v2235 = vadd.f32 0.0, %v2234
    %v2236 = vpop.f32.mrb[0].mxu0
    %2237 = vmatprep.mubr.bf16.mxu0 0
    %2238 = vmatmul.mubr.bf16.gmra.mrb[0].mxu0 %v386
    %v2239 = vpop.f32.mrb[0].mxu0
    %v2240 = vadd.f32 0.0, %v2239
    %v2241 = vpop.f32.mrb[0].mxu0
    %v2242 = vpop.f32.mrb[0].mxu0
    %v2243 = vadd.f32 0.0, %v2242
    %v2244 = vpop.f32.mrb[0].mxu0
    %2245 = vmatprep.mubr.bf16.mxu0 0
    %2246 = vmatmul.mubr.bf16.gmra.mrb[0].mxu0 %v389
    %v2247 = vpop.f32.mrb[0].mxu0
    %v2248 = vadd.f32 0.0, %v2247
    %v2249 = vpop.f32.mrb[0].mxu0
    %v2250 = vpop.f32.mrb[0].mxu0
    %v2251 = vadd.f32 0.0, %v2250
    %v2252 = vpop.f32.mrb[0].mxu0
    %2253 = vmatprep.mubr.bf16.mxu0 0
    %2254 = vmatmul.mubr.bf16.gmra.mrb[0].mxu0 %v392
    %v2255 = vpop.f32.mrb[0].mxu0
    %v2256 = vadd.f32 0.0, %v2255
    %v2257 = vpop.f32.mrb[0].mxu0
    %v2258 = vpop.f32.mrb[0].mxu0
    %v2259 = vadd.f32 0.0, %v2258
    %v2260 = vpop.f32.mrb[0].mxu0
    %2261 = vmatprep.mubr.bf16.mxu0 0
    %2262 = vmatmul.mubr.bf16.gmra.mrb[0].mxu0 %v395
    %v2263 = vpop.f32.mrb[0].mxu0
    %v2264 = vadd.f32 0.0, %v2263
    %v2265 = vpop.f32.mrb[0].mxu0
    %v2266 = vpop.f32.mrb[0].mxu0
    %v2267 = vadd.f32 0.0, %v2266
    %v2268 = vpop.f32.mrb[0].mxu0
    %2269 = vmatprep.mubr.bf16.mxu0 0
    %2270 = vmatmul.mubr.bf16.gmra.mrb[0].mxu0 %v398
    %v2271 = vpop.f32.mrb[0].mxu0
    %v2272 = vadd.f32 0.0, %v2271
    %v2273 = vpop.f32.mrb[0].mxu0
    %v2274 = vpop.f32.mrb[0].mxu0
    %v2275 = vadd.f32 0.0, %v2274
    %v2276 = vpop.f32.mrb[0].mxu0
    %2277 = vmatprep.mubr.bf16.mxu0 0
    %2278 = vmatmul.mubr.bf16.gmra.mrb[0].mxu0 %v401
    %v2279 = vpop.f32.mrb[0].mxu0
    %v2280 = vadd.f32 0.0, %v2279
    %v2281 = vpop.f32.mrb[0].mxu0
    %v2282 = vpop.f32.mrb[0].mxu0
    %v2283 = vadd.f32 0.0, %v2282
    %v2284 = vpop.f32.mrb[0].mxu0
    %2285 = vmatprep.mubr.bf16.mxu0 0
    %2286 = vmatmul.mubr.bf16.gmra.mrb[0].mxu0 %v404
    %v2287 = vpop.f32.mrb[0].mxu0
    %v2288 = vadd.f32 0.0, %v2287
    %v2289 = vpop.f32.mrb[0].mxu0
    %v2290 = vpop.f32.mrb[0].mxu0
    %v2291 = vadd.f32 0.0, %v2290
    %v2292 = vpop.f32.mrb[0].mxu0
    %2293 = vmatprep.mubr.bf16.mxu0 0
    %2294 = vmatmul.mubr.bf16.gmra.mrb[0].mxu0 %v1388
    %v2295 = vpop.f32.mrb[0].mxu0
    %v2296 = vadd.f32 0.0, %v2295
    %v2297 = vpop.f32.mrb[0].mxu0
    %v2298 = vpop.f32.mrb[0].mxu0
    %v2299 = vadd.f32 0.0, %v2298
    %v2300 = vpop.f32.mrb[0].mxu0
    %2301 = vmatprep.mubr.bf16.mxu0 0
    %2302 = vmatmul.mubr.bf16.gmra.mrb[0].mxu0 %v2048
    %v2303 = vpop.f32.mrb[0].mxu0
    %v2304 = vadd.f32 0.0, %v2303
    %v2305 = vpop.f32.mrb[0].mxu0
    %v2306 = vpop.f32.mrb[0].mxu0
    %v2307 = vadd.f32 0.0, %v2306
    %v2308 = vpop.f32.mrb[0].mxu0
    %2309 = vdwg.mxu0
    %v2310 = vadd.f32 %v1980, %v2088
    %v2311 = vadd.f32 %v1981, %v2091
    %v2312 = vadd.f32 %v1982, %v2096
    %v2313 = vadd.f32 %v1983, %v2099
    %v2314 = vadd.f32 %v1984, %v2104
    %v2315 = vadd.f32 %v1985, %v2107
    %v2316 = vadd.f32 %v1986, %v2112
    %v2317 = vadd.f32 %v1987, %v2115
    %v2318 = vadd.f32 %v1988, %v2120
    %v2319 = vadd.f32 %v1989, %v2123
    %v2320 = vadd.f32 %v1990, %v2128
    %v2321 = vadd.f32 %v1991, %v2131
    %v2322 = vadd.f32 %v1992, %v2136
    %v2323 = vadd.f32 %v1993, %v2139
    %v2324 = vadd.f32 %v1994, %v2144
    %v2325 = vadd.f32 %v1995, %v2147
    %v2326 = vadd.f32 %v1996, %v2152
    %v2327 = vadd.f32 %v1997, %v2155
    %v2328 = vadd.f32 %v1998, %v2160
    %v2329 = vadd.f32 %v1999, %v2163
    %v2330 = vadd.f32 %v2000, %v2168
    %v2331 = vadd.f32 %v2001, %v2171
    %v2332 = vadd.f32 %v2002, %v2176
    %v2333 = vadd.f32 %v2003, %v2179
    %v2334 = vadd.f32 %v2004, %v2184
    %v2335 = vadd.f32 %v2005, %v2187
    %v2336 = vadd.f32 %v2006, %v2192
    %v2337 = vadd.f32 %v2007, %v2195
    %v2338 = vadd.f32 %v2008, %v2200
    %v2339 = vadd.f32 %v2009, %v2203
    %v2340 = vadd.f32 %v2010, %v2208
    %v2341 = vadd.f32 %v2011, %v2211
    %v2342 = vadd.f32 %v2012, %v2216
    %v2343 = vadd.f32 %v2013, %v2219
    %v2344 = vadd.f32 %v2014, %v2224
    %v2345 = vadd.f32 %v2015, %v2227
    %v2346 = vadd.f32 %v2016, %v2232
    %v2347 = vadd.f32 %v2017, %v2235
    %v2348 = vadd.f32 %v2018, %v2240
    %v2349 = vadd.f32 %v2019, %v2243
    %v2350 = vadd.f32 %v2020, %v2248
    %v2351 = vadd.f32 %v2021, %v2251
    %v2352 = vadd.f32 %v2022, %v2256
    %v2353 = vadd.f32 %v2023, %v2259
    %v2354 = vadd.f32 %v2024, %v2264
    %v2355 = vadd.f32 %v2025, %v2267
    %v2356 = vadd.f32 %v2026, %v2272
    %v2357 = vadd.f32 %v2027, %v2275
    %v2358 = vadd.f32 %v2028, %v2280
    %v2359 = vadd.f32 %v2029, %v2283
    %v2360 = vadd.f32 %v2030, %v2288
    %v2361 = vadd.f32 %v2031, %v2291
    %v2362 = vadd.f32 %v2032, %v2296
    %v2363 = vadd.f32 %v2033, %v2299
    %v2364 = vadd.f32 %v2034, %v2304
    %v2365 = vadd.f32 %v2035, %v2307
    %s2366 = scalar_lea.vmem %s1, 48
    %v2367 = vld [vmem:[%s2366] sm:$0xf]
    %v2368 = vld [vmem:[%s2366 + $0x4] sm:$0x3]
    %v2370 = vunpack.c.l.b16 %v168
    %v2371 = vpack.c.b16 %v2370, %v2040
    %v2374 = vunpack.c.l.b16 %v2367
    %v2375 = vunpack.c.l.b16 %v2368
    %v2376 = vpack.c.b16 %v2375, %v2374
    %v2378 = vsel %vm321, %v2371, 0
    %v2381 = vsel %vm406, %v2376, 0
    %2383 = vmatprep.subr.bf16.mxu0 0
    %2384 = vmatpush1.bf16.msra.mxu0 %v2381
    %2385 = vmatprep.subr.bf16.mxu0 0
    %2386 = vmatpush1.bf16.msra.mxu0 0
    %2387 = vmatprep.subr.bf16.mxu0 0
    %2388 = vmatpush1.bf16.msra.mxu0 0
    %2389 = vmatprep.subr.bf16.mxu0 0
    %2390 = vmatpush1.bf16.msra.mxu0 0
    %2391 = vmatprep.subr.bf16.mxu0 0
    %2392 = vmatpush1.bf16.msra.mxu0 0
    %2393 = vmatprep.subr.bf16.mxu0 0
    %2394 = vmatpush1.bf16.msra.mxu0 0
    %2395 = vmatprep.subr.bf16.mxu0 0
    %2396 = vmatpush1.bf16.msra.mxu0 0
    %2397 = vmatprep.subr.bf16.mxu0 0
    %2398 = vmatpush1.bf16.msra.mxu0 0
    %2399 = vmatprep.subr.bf16.mxu0 0
    %2400 = vmatpush1.bf16.msra.mxu0 0
    %2401 = vmatprep.subr.bf16.mxu0 0
    %2402 = vmatpush1.bf16.msra.mxu0 0
    %2403 = vmatprep.subr.bf16.mxu0 0
    %2404 = vmatpush1.bf16.msra.mxu0 0
    %2405 = vmatprep.subr.bf16.mxu0 0
    %2406 = vmatpush1.bf16.msra.mxu0 0
    %2407 = vmatprep.subr.bf16.mxu0 0
    %2408 = vmatpush1.bf16.msra.mxu0 0
    %2409 = vmatprep.subr.bf16.mxu0 0
    %2410 = vmatpush1.bf16.msra.mxu0 0
    %2411 = vmatprep.subr.bf16.mxu0 0
    %2412 = vmatpush1.bf16.msra.mxu0 0
    %2413 = vmatprep.subr.bf16.mxu0 0
    %2414 = vmatpush1.bf16.msra.mxu0 0
    %2415 = vmatprep.mubr.bf16.mxu0 0
    %2416 = vmatmul.mubr.bf16.gmra.mrb[0].mxu0 %v712
    %v2417 = vpop.f32.mrb[0].mxu0
    %v2418 = vadd.f32 0.0, %v2417
    %v2419 = vpop.f32.mrb[0].mxu0
    %v2420 = vpop.f32.mrb[0].mxu0
    %v2421 = vadd.f32 0.0, %v2420
    %v2422 = vpop.f32.mrb[0].mxu0
    %2423 = vmatprep.mubr.bf16.mxu0 0
    %2424 = vmatmul.mubr.bf16.gmra.mrb[0].mxu0 %v715
    %v2425 = vpop.f32.mrb[0].mxu0
    %v2426 = vadd.f32 0.0, %v2425
    %v2427 = vpop.f32.mrb[0].mxu0
    %v2428 = vpop.f32.mrb[0].mxu0
    %v2429 = vadd.f32 0.0, %v2428
    %v2430 = vpop.f32.mrb[0].mxu0
    %2431 = vmatprep.mubr.bf16.mxu0 0
    %2432 = vmatmul.mubr.bf16.gmra.mrb[0].mxu0 %v718
    %v2433 = vpop.f32.mrb[0].mxu0
    %v2434 = vadd.f32 0.0, %v2433
    %v2435 = vpop.f32.mrb[0].mxu0
    %v2436 = vpop.f32.mrb[0].mxu0
    %v2437 = vadd.f32 0.0, %v2436
    %v2438 = vpop.f32.mrb[0].mxu0
    %2439 = vmatprep.mubr.bf16.mxu0 0
    %2440 = vmatmul.mubr.bf16.gmra.mrb[0].mxu0 %v721
    %v2441 = vpop.f32.mrb[0].mxu0
    %v2442 = vadd.f32 0.0, %v2441
    %v2443 = vpop.f32.mrb[0].mxu0
    %v2444 = vpop.f32.mrb[0].mxu0
    %v2445 = vadd.f32 0.0, %v2444
    %v2446 = vpop.f32.mrb[0].mxu0
    %2447 = vmatprep.mubr.bf16.mxu0 0
    %2448 = vmatmul.mubr.bf16.gmra.mrb[0].mxu0 %v724
    %v2449 = vpop.f32.mrb[0].mxu0
    %v2450 = vadd.f32 0.0, %v2449
    %v2451 = vpop.f32.mrb[0].mxu0
    %v2452 = vpop.f32.mrb[0].mxu0
    %v2453 = vadd.f32 0.0, %v2452
    %v2454 = vpop.f32.mrb[0].mxu0
    %2455 = vmatprep.mubr.bf16.mxu0 0
    %2456 = vmatmul.mubr.bf16.gmra.mrb[0].mxu0 %v727
    %v2457 = vpop.f32.mrb[0].mxu0
    %v2458 = vadd.f32 0.0, %v2457
    %v2459 = vpop.f32.mrb[0].mxu0
    %v2460 = vpop.f32.mrb[0].mxu0
    %v2461 = vadd.f32 0.0, %v2460
    %v2462 = vpop.f32.mrb[0].mxu0
    %2463 = vmatprep.mubr.bf16.mxu0 0
    %2464 = vmatmul.mubr.bf16.gmra.mrb[0].mxu0 %v730
    %v2465 = vpop.f32.mrb[0].mxu0
    %v2466 = vadd.f32 0.0, %v2465
    %v2467 = vpop.f32.mrb[0].mxu0
    %v2468 = vpop.f32.mrb[0].mxu0
    %v2469 = vadd.f32 0.0, %v2468
    %v2470 = vpop.f32.mrb[0].mxu0
    %2471 = vmatprep.mubr.bf16.mxu0 0
    %2472 = vmatmul.mubr.bf16.gmra.mrb[0].mxu0 %v733
    %v2473 = vpop.f32.mrb[0].mxu0
    %v2474 = vadd.f32 0.0, %v2473
    %v2475 = vpop.f32.mrb[0].mxu0
    %v2476 = vpop.f32.mrb[0].mxu0
    %v2477 = vadd.f32 0.0, %v2476
    %v2478 = vpop.f32.mrb[0].mxu0
    %2479 = vmatprep.mubr.bf16.mxu0 0
    %2480 = vmatmul.mubr.bf16.gmra.mrb[0].mxu0 %v736
    %v2481 = vpop.f32.mrb[0].mxu0
    %v2482 = vadd.f32 0.0, %v2481
    %v2483 = vpop.f32.mrb[0].mxu0
    %v2484 = vpop.f32.mrb[0].mxu0
    %v2485 = vadd.f32 0.0, %v2484
    %v2486 = vpop.f32.mrb[0].mxu0
    %2487 = vmatprep.mubr.bf16.mxu0 0
    %2488 = vmatmul.mubr.bf16.gmra.mrb[0].mxu0 %v739
    %v2489 = vpop.f32.mrb[0].mxu0
    %v2490 = vadd.f32 0.0, %v2489
    %v2491 = vpop.f32.mrb[0].mxu0
    %v2492 = vpop.f32.mrb[0].mxu0
    %v2493 = vadd.f32 0.0, %v2492
    %v2494 = vpop.f32.mrb[0].mxu0
    %2495 = vmatprep.mubr.bf16.mxu0 0
    %2496 = vmatmul.mubr.bf16.gmra.mrb[0].mxu0 %v742
    %v2497 = vpop.f32.mrb[0].mxu0
    %v2498 = vadd.f32 0.0, %v2497
    %v2499 = vpop.f32.mrb[0].mxu0
    %v2500 = vpop.f32.mrb[0].mxu0
    %v2501 = vadd.f32 0.0, %v2500
    %v2502 = vpop.f32.mrb[0].mxu0
    %2503 = vmatprep.mubr.bf16.mxu0 0
    %2504 = vmatmul.mubr.bf16.gmra.mrb[0].mxu0 %v745
    %v2505 = vpop.f32.mrb[0].mxu0
    %v2506 = vadd.f32 0.0, %v2505
    %v2507 = vpop.f32.mrb[0].mxu0
    %v2508 = vpop.f32.mrb[0].mxu0
    %v2509 = vadd.f32 0.0, %v2508
    %v2510 = vpop.f32.mrb[0].mxu0
    %2511 = vmatprep.mubr.bf16.mxu0 0
    %2512 = vmatmul.mubr.bf16.gmra.mrb[0].mxu0 %v748
    %v2513 = vpop.f32.mrb[0].mxu0
    %v2514 = vadd.f32 0.0, %v2513
    %v2515 = vpop.f32.mrb[0].mxu0
    %v2516 = vpop.f32.mrb[0].mxu0
    %v2517 = vadd.f32 0.0, %v2516
    %v2518 = vpop.f32.mrb[0].mxu0
    %2519 = vmatprep.mubr.bf16.mxu0 0
    %2520 = vmatmul.mubr.bf16.gmra.mrb[0].mxu0 %v751
    %v2521 = vpop.f32.mrb[0].mxu0
    %v2522 = vadd.f32 0.0, %v2521
    %v2523 = vpop.f32.mrb[0].mxu0
    %v2524 = vpop.f32.mrb[0].mxu0
    %v2525 = vadd.f32 0.0, %v2524
    %v2526 = vpop.f32.mrb[0].mxu0
    %2527 = vmatprep.mubr.bf16.mxu0 0
    %2528 = vmatmul.mubr.bf16.gmra.mrb[0].mxu0 %v754
    %v2529 = vpop.f32.mrb[0].mxu0
    %v2530 = vadd.f32 0.0, %v2529
    %v2531 = vpop.f32.mrb[0].mxu0
    %v2532 = vpop.f32.mrb[0].mxu0
    %v2533 = vadd.f32 0.0, %v2532
    %v2534 = vpop.f32.mrb[0].mxu0
    %2535 = vmatprep.mubr.bf16.mxu0 0
    %2536 = vmatmul.mubr.bf16.gmra.mrb[0].mxu0 %v757
    %v2537 = vpop.f32.mrb[0].mxu0
    %v2538 = vadd.f32 0.0, %v2537
    %v2539 = vpop.f32.mrb[0].mxu0
    %v2540 = vpop.f32.mrb[0].mxu0
    %v2541 = vadd.f32 0.0, %v2540
    %v2542 = vpop.f32.mrb[0].mxu0
    %2543 = vmatprep.mubr.bf16.mxu0 0
    %2544 = vmatmul.mubr.bf16.gmra.mrb[0].mxu0 %v760
    %v2545 = vpop.f32.mrb[0].mxu0
    %v2546 = vadd.f32 0.0, %v2545
    %v2547 = vpop.f32.mrb[0].mxu0
    %v2548 = vpop.f32.mrb[0].mxu0
    %v2549 = vadd.f32 0.0, %v2548
    %v2550 = vpop.f32.mrb[0].mxu0
    %2551 = vmatprep.mubr.bf16.mxu0 0
    %2552 = vmatmul.mubr.bf16.gmra.mrb[0].mxu0 %v763
    %v2553 = vpop.f32.mrb[0].mxu0
    %v2554 = vadd.f32 0.0, %v2553
    %v2555 = vpop.f32.mrb[0].mxu0
    %v2556 = vpop.f32.mrb[0].mxu0
    %v2557 = vadd.f32 0.0, %v2556
    %v2558 = vpop.f32.mrb[0].mxu0
    %2559 = vmatprep.mubr.bf16.mxu0 0
    %2560 = vmatmul.mubr.bf16.gmra.mrb[0].mxu0 %v766
    %v2561 = vpop.f32.mrb[0].mxu0
    %v2562 = vadd.f32 0.0, %v2561
    %v2563 = vpop.f32.mrb[0].mxu0
    %v2564 = vpop.f32.mrb[0].mxu0
    %v2565 = vadd.f32 0.0, %v2564
    %v2566 = vpop.f32.mrb[0].mxu0
    %2567 = vmatprep.mubr.bf16.mxu0 0
    %2568 = vmatmul.mubr.bf16.gmra.mrb[0].mxu0 %v769
    %v2569 = vpop.f32.mrb[0].mxu0
    %v2570 = vadd.f32 0.0, %v2569
    %v2571 = vpop.f32.mrb[0].mxu0
    %v2572 = vpop.f32.mrb[0].mxu0
    %v2573 = vadd.f32 0.0, %v2572
    %v2574 = vpop.f32.mrb[0].mxu0
    %2575 = vmatprep.mubr.bf16.mxu0 0
    %2576 = vmatmul.mubr.bf16.gmra.mrb[0].mxu0 %v772
    %v2577 = vpop.f32.mrb[0].mxu0
    %v2578 = vadd.f32 0.0, %v2577
    %v2579 = vpop.f32.mrb[0].mxu0
    %v2580 = vpop.f32.mrb[0].mxu0
    %v2581 = vadd.f32 0.0, %v2580
    %v2582 = vpop.f32.mrb[0].mxu0
    %2583 = vmatprep.mubr.bf16.mxu0 0
    %2584 = vmatmul.mubr.bf16.gmra.mrb[0].mxu0 %v775
    %v2585 = vpop.f32.mrb[0].mxu0
    %v2586 = vadd.f32 0.0, %v2585
    %v2587 = vpop.f32.mrb[0].mxu0
    %v2588 = vpop.f32.mrb[0].mxu0
    %v2589 = vadd.f32 0.0, %v2588
    %v2590 = vpop.f32.mrb[0].mxu0
    %2591 = vmatprep.mubr.bf16.mxu0 0
    %2592 = vmatmul.mubr.bf16.gmra.mrb[0].mxu0 %v778
    %v2593 = vpop.f32.mrb[0].mxu0
    %v2594 = vadd.f32 0.0, %v2593
    %v2595 = vpop.f32.mrb[0].mxu0
    %v2596 = vpop.f32.mrb[0].mxu0
    %v2597 = vadd.f32 0.0, %v2596
    %v2598 = vpop.f32.mrb[0].mxu0
    %2599 = vmatprep.mubr.bf16.mxu0 0
    %2600 = vmatmul.mubr.bf16.gmra.mrb[0].mxu0 %v781
    %v2601 = vpop.f32.mrb[0].mxu0
    %v2602 = vadd.f32 0.0, %v2601
    %v2603 = vpop.f32.mrb[0].mxu0
    %v2604 = vpop.f32.mrb[0].mxu0
    %v2605 = vadd.f32 0.0, %v2604
    %v2606 = vpop.f32.mrb[0].mxu0
    %2607 = vmatprep.mubr.bf16.mxu0 0
    %2608 = vmatmul.mubr.bf16.gmra.mrb[0].mxu0 %v784
    %v2609 = vpop.f32.mrb[0].mxu0
    %v2610 = vadd.f32 0.0, %v2609
    %v2611 = vpop.f32.mrb[0].mxu0
    %v2612 = vpop.f32.mrb[0].mxu0
    %v2613 = vadd.f32 0.0, %v2612
    %v2614 = vpop.f32.mrb[0].mxu0
    %2615 = vmatprep.mubr.bf16.mxu0 0
    %2616 = vmatmul.mubr.bf16.gmra.mrb[0].mxu0 %v1058
    %v2617 = vpop.f32.mrb[0].mxu0
    %v2618 = vadd.f32 0.0, %v2617
    %v2619 = vpop.f32.mrb[0].mxu0
    %v2620 = vpop.f32.mrb[0].mxu0
    %v2621 = vadd.f32 0.0, %v2620
    %v2622 = vpop.f32.mrb[0].mxu0
    %2623 = vmatprep.mubr.bf16.mxu0 0
    %2624 = vmatmul.mubr.bf16.gmra.mrb[0].mxu0 %v1718
    %v2625 = vpop.f32.mrb[0].mxu0
    %v2626 = vadd.f32 0.0, %v2625
    %v2627 = vpop.f32.mrb[0].mxu0
    %v2628 = vpop.f32.mrb[0].mxu0
    %v2629 = vadd.f32 0.0, %v2628
    %v2630 = vpop.f32.mrb[0].mxu0
    %2631 = vmatprep.mubr.bf16.mxu0 0
    %2632 = vmatmul.mubr.bf16.gmra.mrb[0].mxu0 %v2378
    %v2633 = vpop.f32.mrb[0].mxu0
    %v2634 = vadd.f32 0.0, %v2633
    %v2635 = vpop.f32.mrb[0].mxu0
    %v2636 = vpop.f32.mrb[0].mxu0
    %v2637 = vadd.f32 0.0, %v2636
    %v2638 = vpop.f32.mrb[0].mxu0
    %2639 = vdwg.mxu0
    %v2640 = vadd.f32 %v2310, %v2418
    %v2641 = vadd.f32 %v2311, %v2421
    %v2642 = vadd.f32 %v2312, %v2426
    %v2643 = vadd.f32 %v2313, %v2429
    %v2644 = vadd.f32 %v2314, %v2434
    %v2645 = vadd.f32 %v2315, %v2437
    %v2646 = vadd.f32 %v2316, %v2442
    %v2647 = vadd.f32 %v2317, %v2445
    %v2648 = vadd.f32 %v2318, %v2450
    %v2649 = vadd.f32 %v2319, %v2453
    %v2650 = vadd.f32 %v2320, %v2458
    %v2651 = vadd.f32 %v2321, %v2461
    %v2652 = vadd.f32 %v2322, %v2466
    %v2653 = vadd.f32 %v2323, %v2469
    %v2654 = vadd.f32 %v2324, %v2474
    %v2655 = vadd.f32 %v2325, %v2477
    %v2656 = vadd.f32 %v2326, %v2482
    %v2657 = vadd.f32 %v2327, %v2485
    %v2658 = vadd.f32 %v2328, %v2490
    %v2659 = vadd.f32 %v2329, %v2493
    %v2660 = vadd.f32 %v2330, %v2498
    %v2661 = vadd.f32 %v2331, %v2501
    %v2662 = vadd.f32 %v2332, %v2506
    %v2663 = vadd.f32 %v2333, %v2509
    %v2664 = vadd.f32 %v2334, %v2514
    %v2665 = vadd.f32 %v2335, %v2517
    %v2666 = vadd.f32 %v2336, %v2522
    %v2667 = vadd.f32 %v2337, %v2525
    %v2668 = vadd.f32 %v2338, %v2530
    %v2669 = vadd.f32 %v2339, %v2533
    %v2670 = vadd.f32 %v2340, %v2538
    %v2671 = vadd.f32 %v2341, %v2541
    %v2672 = vadd.f32 %v2342, %v2546
    %v2673 = vadd.f32 %v2343, %v2549
    %v2674 = vadd.f32 %v2344, %v2554
    %v2675 = vadd.f32 %v2345, %v2557
    %v2676 = vadd.f32 %v2346, %v2562
    %v2677 = vadd.f32 %v2347, %v2565
    %v2678 = vadd.f32 %v2348, %v2570
    %v2679 = vadd.f32 %v2349, %v2573
    %v2680 = vadd.f32 %v2350, %v2578
    %v2681 = vadd.f32 %v2351, %v2581
    %v2682 = vadd.f32 %v2352, %v2586
    %v2683 = vadd.f32 %v2353, %v2589
    %v2684 = vadd.f32 %v2354, %v2594
    %v2685 = vadd.f32 %v2355, %v2597
    %v2686 = vadd.f32 %v2356, %v2602
    %v2687 = vadd.f32 %v2357, %v2605
    %v2688 = vadd.f32 %v2358, %v2610
    %v2689 = vadd.f32 %v2359, %v2613
    %v2690 = vadd.f32 %v2360, %v2618
    %v2691 = vadd.f32 %v2361, %v2621
    %v2692 = vadd.f32 %v2362, %v2626
    %v2693 = vadd.f32 %v2363, %v2629
    %v2694 = vadd.f32 %v2364, %v2634
    %v2695 = vadd.f32 %v2365, %v2637
    %s2696 = scalar_lea.vmem %s1, 56
    %v2697 = vld [vmem:[%s2696] sm:$0xf]
    %v2698 = vld [vmem:[%s2696 + $0x4] sm:$0x3]
    %v2700 = vunpack.c.l.b16 %v169
    %v2701 = vpack.c.b16 %v2700, %v2370
    %v2704 = vunpack.c.l.b16 %v2697
    %v2705 = vunpack.c.l.b16 %v2698
    %v2706 = vpack.c.b16 %v2705, %v2704
    %v2708 = vsel %vm321, %v2701, 0
    %v2711 = vsel %vm406, %v2706, 0
    %2713 = vmatprep.subr.bf16.mxu0 0
    %2714 = vmatpush1.bf16.msra.mxu0 %v2711
    %2715 = vmatprep.subr.bf16.mxu0 0
    %2716 = vmatpush1.bf16.msra.mxu0 0
    %2717 = vmatprep.subr.bf16.mxu0 0
    %2718 = vmatpush1.bf16.msra.mxu0 0
    %2719 = vmatprep.subr.bf16.mxu0 0
    %2720 = vmatpush1.bf16.msra.mxu0 0
    %2721 = vmatprep.subr.bf16.mxu0 0
    %2722 = vmatpush1.bf16.msra.mxu0 0
    %2723 = vmatprep.subr.bf16.mxu0 0
    %2724 = vmatpush1.bf16.msra.mxu0 0
    %2725 = vmatprep.subr.bf16.mxu0 0
    %2726 = vmatpush1.bf16.msra.mxu0 0
    %2727 = vmatprep.subr.bf16.mxu0 0
    %2728 = vmatpush1.bf16.msra.mxu0 0
    %2729 = vmatprep.subr.bf16.mxu0 0
    %2730 = vmatpush1.bf16.msra.mxu0 0
    %2731 = vmatprep.subr.bf16.mxu0 0
    %2732 = vmatpush1.bf16.msra.mxu0 0
    %2733 = vmatprep.subr.bf16.mxu0 0
    %2734 = vmatpush1.bf16.msra.mxu0 0
    %2735 = vmatprep.subr.bf16.mxu0 0
    %2736 = vmatpush1.bf16.msra.mxu0 0
    %2737 = vmatprep.subr.bf16.mxu0 0
    %2738 = vmatpush1.bf16.msra.mxu0 0
    %2739 = vmatprep.subr.bf16.mxu0 0
    %2740 = vmatpush1.bf16.msra.mxu0 0
    %2741 = vmatprep.subr.bf16.mxu0 0
    %2742 = vmatpush1.bf16.msra.mxu0 0
    %2743 = vmatprep.subr.bf16.mxu0 0
    %2744 = vmatpush1.bf16.msra.mxu0 0
    %2745 = vmatprep.mubr.bf16.mxu0 0
    %2746 = vmatmul.mubr.bf16.gmra.mrb[0].mxu0 %v332
    %v2747 = vpop.f32.mrb[0].mxu0
    %v2748 = vadd.f32 0.0, %v2747
    %v2749 = vpop.f32.mrb[0].mxu0
    %v2750 = vpop.f32.mrb[0].mxu0
    %v2751 = vadd.f32 0.0, %v2750
    %v2752 = vpop.f32.mrb[0].mxu0
    %2753 = vmatprep.mubr.bf16.mxu0 0
    %2754 = vmatmul.mubr.bf16.gmra.mrb[0].mxu0 %v335
    %v2755 = vpop.f32.mrb[0].mxu0
    %v2756 = vadd.f32 0.0, %v2755
    %v2757 = vpop.f32.mrb[0].mxu0
    %v2758 = vpop.f32.mrb[0].mxu0
    %v2759 = vadd.f32 0.0, %v2758
    %v2760 = vpop.f32.mrb[0].mxu0
    %2761 = vmatprep.mubr.bf16.mxu0 0
    %2762 = vmatmul.mubr.bf16.gmra.mrb[0].mxu0 %v338
    %v2763 = vpop.f32.mrb[0].mxu0
    %v2764 = vadd.f32 0.0, %v2763
    %v2765 = vpop.f32.mrb[0].mxu0
    %v2766 = vpop.f32.mrb[0].mxu0
    %v2767 = vadd.f32 0.0, %v2766
    %v2768 = vpop.f32.mrb[0].mxu0
    %2769 = vmatprep.mubr.bf16.mxu0 0
    %2770 = vmatmul.mubr.bf16.gmra.mrb[0].mxu0 %v341
    %v2771 = vpop.f32.mrb[0].mxu0
    %v2772 = vadd.f32 0.0, %v2771
    %v2773 = vpop.f32.mrb[0].mxu0
    %v2774 = vpop.f32.mrb[0].mxu0
    %v2775 = vadd.f32 0.0, %v2774
    %v2776 = vpop.f32.mrb[0].mxu0
    %2777 = vmatprep.mubr.bf16.mxu0 0
    %2778 = vmatmul.mubr.bf16.gmra.mrb[0].mxu0 %v344
    %v2779 = vpop.f32.mrb[0].mxu0
    %v2780 = vadd.f32 0.0, %v2779
    %v2781 = vpop.f32.mrb[0].mxu0
    %v2782 = vpop.f32.mrb[0].mxu0
    %v2783 = vadd.f32 0.0, %v2782
    %v2784 = vpop.f32.mrb[0].mxu0
    %2785 = vmatprep.mubr.bf16.mxu0 0
    %2786 = vmatmul.mubr.bf16.gmra.mrb[0].mxu0 %v347
    %v2787 = vpop.f32.mrb[0].mxu0
    %v2788 = vadd.f32 0.0, %v2787
    %v2789 = vpop.f32.mrb[0].mxu0
    %v2790 = vpop.f32.mrb[0].mxu0
    %v2791 = vadd.f32 0.0, %v2790
    %v2792 = vpop.f32.mrb[0].mxu0
    %2793 = vmatprep.mubr.bf16.mxu0 0
    %2794 = vmatmul.mubr.bf16.gmra.mrb[0].mxu0 %v350
    %v2795 = vpop.f32.mrb[0].mxu0
    %v2796 = vadd.f32 0.0, %v2795
    %v2797 = vpop.f32.mrb[0].mxu0
    %v2798 = vpop.f32.mrb[0].mxu0
    %v2799 = vadd.f32 0.0, %v2798
    %v2800 = vpop.f32.mrb[0].mxu0
    %2801 = vmatprep.mubr.bf16.mxu0 0
    %2802 = vmatmul.mubr.bf16.gmra.mrb[0].mxu0 %v353
    %v2803 = vpop.f32.mrb[0].mxu0
    %v2804 = vadd.f32 0.0, %v2803
    %v2805 = vpop.f32.mrb[0].mxu0
    %v2806 = vpop.f32.mrb[0].mxu0
    %v2807 = vadd.f32 0.0, %v2806
    %v2808 = vpop.f32.mrb[0].mxu0
    %2809 = vmatprep.mubr.bf16.mxu0 0
    %2810 = vmatmul.mubr.bf16.gmra.mrb[0].mxu0 %v356
    %v2811 = vpop.f32.mrb[0].mxu0
    %v2812 = vadd.f32 0.0, %v2811
    %v2813 = vpop.f32.mrb[0].mxu0
    %v2814 = vpop.f32.mrb[0].mxu0
    %v2815 = vadd.f32 0.0, %v2814
    %v2816 = vpop.f32.mrb[0].mxu0
    %2817 = vmatprep.mubr.bf16.mxu0 0
    %2818 = vmatmul.mubr.bf16.gmra.mrb[0].mxu0 %v359
    %v2819 = vpop.f32.mrb[0].mxu0
    %v2820 = vadd.f32 0.0, %v2819
    %v2821 = vpop.f32.mrb[0].mxu0
    %v2822 = vpop.f32.mrb[0].mxu0
    %v2823 = vadd.f32 0.0, %v2822
    %v2824 = vpop.f32.mrb[0].mxu0
    %2825 = vmatprep.mubr.bf16.mxu0 0
    %2826 = vmatmul.mubr.bf16.gmra.mrb[0].mxu0 %v362
    %v2827 = vpop.f32.mrb[0].mxu0
    %v2828 = vadd.f32 0.0, %v2827
    %v2829 = vpop.f32.mrb[0].mxu0
    %v2830 = vpop.f32.mrb[0].mxu0
    %v2831 = vadd.f32 0.0, %v2830
    %v2832 = vpop.f32.mrb[0].mxu0
    %2833 = vmatprep.mubr.bf16.mxu0 0
    %2834 = vmatmul.mubr.bf16.gmra.mrb[0].mxu0 %v365
    %v2835 = vpop.f32.mrb[0].mxu0
    %v2836 = vadd.f32 0.0, %v2835
    %v2837 = vpop.f32.mrb[0].mxu0
    %v2838 = vpop.f32.mrb[0].mxu0
    %v2839 = vadd.f32 0.0, %v2838
    %v2840 = vpop.f32.mrb[0].mxu0
    %2841 = vmatprep.mubr.bf16.mxu0 0
    %2842 = vmatmul.mubr.bf16.gmra.mrb[0].mxu0 %v368
    %v2843 = vpop.f32.mrb[0].mxu0
    %v2844 = vadd.f32 0.0, %v2843
    %v2845 = vpop.f32.mrb[0].mxu0
    %v2846 = vpop.f32.mrb[0].mxu0
    %v2847 = vadd.f32 0.0, %v2846
    %v2848 = vpop.f32.mrb[0].mxu0
    %2849 = vmatprep.mubr.bf16.mxu0 0
    %2850 = vmatmul.mubr.bf16.gmra.mrb[0].mxu0 %v371
    %v2851 = vpop.f32.mrb[0].mxu0
    %v2852 = vadd.f32 0.0, %v2851
    %v2853 = vpop.f32.mrb[0].mxu0
    %v2854 = vpop.f32.mrb[0].mxu0
    %v2855 = vadd.f32 0.0, %v2854
    %v2856 = vpop.f32.mrb[0].mxu0
    %2857 = vmatprep.mubr.bf16.mxu0 0
    %2858 = vmatmul.mubr.bf16.gmra.mrb[0].mxu0 %v374
    %v2859 = vpop.f32.mrb[0].mxu0
    %v2860 = vadd.f32 0.0, %v2859
    %v2861 = vpop.f32.mrb[0].mxu0
    %v2862 = vpop.f32.mrb[0].mxu0
    %v2863 = vadd.f32 0.0, %v2862
    %v2864 = vpop.f32.mrb[0].mxu0
    %2865 = vmatprep.mubr.bf16.mxu0 0
    %2866 = vmatmul.mubr.bf16.gmra.mrb[0].mxu0 %v377
    %v2867 = vpop.f32.mrb[0].mxu0
    %v2868 = vadd.f32 0.0, %v2867
    %v2869 = vpop.f32.mrb[0].mxu0
    %v2870 = vpop.f32.mrb[0].mxu0
    %v2871 = vadd.f32 0.0, %v2870
    %v2872 = vpop.f32.mrb[0].mxu0
    %2873 = vmatprep.mubr.bf16.mxu0 0
    %2874 = vmatmul.mubr.bf16.gmra.mrb[0].mxu0 %v380
    %v2875 = vpop.f32.mrb[0].mxu0
    %v2876 = vadd.f32 0.0, %v2875
    %v2877 = vpop.f32.mrb[0].mxu0
    %v2878 = vpop.f32.mrb[0].mxu0
    %v2879 = vadd.f32 0.0, %v2878
    %v2880 = vpop.f32.mrb[0].mxu0
    %2881 = vmatprep.mubr.bf16.mxu0 0
    %2882 = vmatmul.mubr.bf16.gmra.mrb[0].mxu0 %v383
    %v2883 = vpop.f32.mrb[0].mxu0
    %v2884 = vadd.f32 0.0, %v2883
    %v2885 = vpop.f32.mrb[0].mxu0
    %v2886 = vpop.f32.mrb[0].mxu0
    %v2887 = vadd.f32 0.0, %v2886
    %v2888 = vpop.f32.mrb[0].mxu0
    %2889 = vmatprep.mubr.bf16.mxu0 0
    %2890 = vmatmul.mubr.bf16.gmra.mrb[0].mxu0 %v386
    %v2891 = vpop.f32.mrb[0].mxu0
    %v2892 = vadd.f32 0.0, %v2891
    %v2893 = vpop.f32.mrb[0].mxu0
    %v2894 = vpop.f32.mrb[0].mxu0
    %v2895 = vadd.f32 0.0, %v2894
    %v2896 = vpop.f32.mrb[0].mxu0
    %2897 = vmatprep.mubr.bf16.mxu0 0
    %2898 = vmatmul.mubr.bf16.gmra.mrb[0].mxu0 %v389
    %v2899 = vpop.f32.mrb[0].mxu0
    %v2900 = vadd.f32 0.0, %v2899
    %v2901 = vpop.f32.mrb[0].mxu0
    %v2902 = vpop.f32.mrb[0].mxu0
    %v2903 = vadd.f32 0.0, %v2902
    %v2904 = vpop.f32.mrb[0].mxu0
    %2905 = vmatprep.mubr.bf16.mxu0 0
    %2906 = vmatmul.mubr.bf16.gmra.mrb[0].mxu0 %v392
    %v2907 = vpop.f32.mrb[0].mxu0
    %v2908 = vadd.f32 0.0, %v2907
    %v2909 = vpop.f32.mrb[0].mxu0
    %v2910 = vpop.f32.mrb[0].mxu0
    %v2911 = vadd.f32 0.0, %v2910
    %v2912 = vpop.f32.mrb[0].mxu0
    %2913 = vmatprep.mubr.bf16.mxu0 0
    %2914 = vmatmul.mubr.bf16.gmra.mrb[0].mxu0 %v395
    %v2915 = vpop.f32.mrb[0].mxu0
    %v2916 = vadd.f32 0.0, %v2915
    %v2917 = vpop.f32.mrb[0].mxu0
    %v2918 = vpop.f32.mrb[0].mxu0
    %v2919 = vadd.f32 0.0, %v2918
    %v2920 = vpop.f32.mrb[0].mxu0
    %2921 = vmatprep.mubr.bf16.mxu0 0
    %2922 = vmatmul.mubr.bf16.gmra.mrb[0].mxu0 %v398
    %v2923 = vpop.f32.mrb[0].mxu0
    %v2924 = vadd.f32 0.0, %v2923
    %v2925 = vpop.f32.mrb[0].mxu0
    %v2926 = vpop.f32.mrb[0].mxu0
    %v2927 = vadd.f32 0.0, %v2926
    %v2928 = vpop.f32.mrb[0].mxu0
    %2929 = vmatprep.mubr.bf16.mxu0 0
    %2930 = vmatmul.mubr.bf16.gmra.mrb[0].mxu0 %v401
    %v2931 = vpop.f32.mrb[0].mxu0
    %v2932 = vadd.f32 0.0, %v2931
    %v2933 = vpop.f32.mrb[0].mxu0
    %v2934 = vpop.f32.mrb[0].mxu0
    %v2935 = vadd.f32 0.0, %v2934
    %v2936 = vpop.f32.mrb[0].mxu0
    %2937 = vmatprep.mubr.bf16.mxu0 0
    %2938 = vmatmul.mubr.bf16.gmra.mrb[0].mxu0 %v404
    %v2939 = vpop.f32.mrb[0].mxu0
    %v2940 = vadd.f32 0.0, %v2939
    %v2941 = vpop.f32.mrb[0].mxu0
    %v2942 = vpop.f32.mrb[0].mxu0
    %v2943 = vadd.f32 0.0, %v2942
    %v2944 = vpop.f32.mrb[0].mxu0
    %2945 = vmatprep.mubr.bf16.mxu0 0
    %2946 = vmatmul.mubr.bf16.gmra.mrb[0].mxu0 %v1388
    %v2947 = vpop.f32.mrb[0].mxu0
    %v2948 = vadd.f32 0.0, %v2947
    %v2949 = vpop.f32.mrb[0].mxu0
    %v2950 = vpop.f32.mrb[0].mxu0
    %v2951 = vadd.f32 0.0, %v2950
    %v2952 = vpop.f32.mrb[0].mxu0
    %2953 = vmatprep.mubr.bf16.mxu0 0
    %2954 = vmatmul.mubr.bf16.gmra.mrb[0].mxu0 %v2048
    %v2955 = vpop.f32.mrb[0].mxu0
    %v2956 = vadd.f32 0.0, %v2955
    %v2957 = vpop.f32.mrb[0].mxu0
    %v2958 = vpop.f32.mrb[0].mxu0
    %v2959 = vadd.f32 0.0, %v2958
    %v2960 = vpop.f32.mrb[0].mxu0
    %2961 = vmatprep.mubr.bf16.mxu0 0
    %2962 = vmatmul.mubr.bf16.gmra.mrb[0].mxu0 %v2708
    %v2963 = vpop.f32.mrb[0].mxu0
    %v2964 = vadd.f32 0.0, %v2963
    %v2965 = vpop.f32.mrb[0].mxu0
    %v2966 = vpop.f32.mrb[0].mxu0
    %v2967 = vadd.f32 0.0, %v2966
    %v2968 = vpop.f32.mrb[0].mxu0
    %2969 = vdwg.mxu0
    %v2970 = vadd.f32 %v2640, %v2748
    %v2971 = vadd.f32 %v2641, %v2751
    %v2972 = vadd.f32 %v2642, %v2756
    %v2973 = vadd.f32 %v2643, %v2759
    %v2974 = vadd.f32 %v2644, %v2764
    %v2975 = vadd.f32 %v2645, %v2767
    %v2976 = vadd.f32 %v2646, %v2772
    %v2977 = vadd.f32 %v2647, %v2775
    %v2978 = vadd.f32 %v2648, %v2780
    %v2979 = vadd.f32 %v2649, %v2783
    %v2980 = vadd.f32 %v2650, %v2788
    %v2981 = vadd.f32 %v2651, %v2791
    %v2982 = vadd.f32 %v2652, %v2796
    %v2983 = vadd.f32 %v2653, %v2799
    %v2984 = vadd.f32 %v2654, %v2804
    %v2985 = vadd.f32 %v2655, %v2807
    %v2986 = vadd.f32 %v2656, %v2812
    %v2987 = vadd.f32 %v2657, %v2815
    %v2988 = vadd.f32 %v2658, %v2820
    %v2989 = vadd.f32 %v2659, %v2823
    %v2990 = vadd.f32 %v2660, %v2828
    %v2991 = vadd.f32 %v2661, %v2831
    %v2992 = vadd.f32 %v2662, %v2836
    %v2993 = vadd.f32 %v2663, %v2839
    %v2994 = vadd.f32 %v2664, %v2844
    %v2995 = vadd.f32 %v2665, %v2847
    %v2996 = vadd.f32 %v2666, %v2852
    %v2997 = vadd.f32 %v2667, %v2855
    %v2998 = vadd.f32 %v2668, %v2860
    %v2999 = vadd.f32 %v2669, %v2863
    %v3000 = vadd.f32 %v2670, %v2868
    %v3001 = vadd.f32 %v2671, %v2871
    %v3002 = vadd.f32 %v2672, %v2876
    %v3003 = vadd.f32 %v2673, %v2879
    %v3004 = vadd.f32 %v2674, %v2884
    %v3005 = vadd.f32 %v2675, %v2887
    %v3006 = vadd.f32 %v2676, %v2892
    %v3007 = vadd.f32 %v2677, %v2895
    %v3008 = vadd.f32 %v2678, %v2900
    %v3009 = vadd.f32 %v2679, %v2903
    %v3010 = vadd.f32 %v2680, %v2908
    %v3011 = vadd.f32 %v2681, %v2911
    %v3012 = vadd.f32 %v2682, %v2916
    %v3013 = vadd.f32 %v2683, %v2919
    %v3014 = vadd.f32 %v2684, %v2924
    %v3015 = vadd.f32 %v2685, %v2927
    %v3016 = vadd.f32 %v2686, %v2932
    %v3017 = vadd.f32 %v2687, %v2935
    %v3018 = vadd.f32 %v2688, %v2940
    %v3019 = vadd.f32 %v2689, %v2943
    %v3020 = vadd.f32 %v2690, %v2948
    %v3021 = vadd.f32 %v2691, %v2951
    %v3022 = vadd.f32 %v2692, %v2956
    %v3023 = vadd.f32 %v2693, %v2959
    %v3024 = vadd.f32 %v2694, %v2964
    %v3025 = vadd.f32 %v2695, %v2967
    %s3026 = scalar_lea.vmem %s1, 64
    %v3027 = vld [vmem:[%s3026] sm:$0xf]
    %v3028 = vld [vmem:[%s3026 + $0x4] sm:$0x3]
    %v3030 = vunpack.c.l.b16 %v170
    %v3031 = vpack.c.b16 %v3030, %v2700
    %v3034 = vunpack.c.l.b16 %v3027
    %v3035 = vunpack.c.l.b16 %v3028
    %v3036 = vpack.c.b16 %v3035, %v3034
    %v3038 = vsel %vm321, %v3031, 0
    %v3041 = vsel %vm406, %v3036, 0
    %3043 = vmatprep.subr.bf16.mxu0 0
    %3044 = vmatpush1.bf16.msra.mxu0 %v3041
    %3045 = vmatprep.subr.bf16.mxu0 0
    %3046 = vmatpush1.bf16.msra.mxu0 0
    %3047 = vmatprep.subr.bf16.mxu0 0
    %3048 = vmatpush1.bf16.msra.mxu0 0
    %3049 = vmatprep.subr.bf16.mxu0 0
    %3050 = vmatpush1.bf16.msra.mxu0 0
    %3051 = vmatprep.subr.bf16.mxu0 0
    %3052 = vmatpush1.bf16.msra.mxu0 0
    %3053 = vmatprep.subr.bf16.mxu0 0
    %3054 = vmatpush1.bf16.msra.mxu0 0
    %3055 = vmatprep.subr.bf16.mxu0 0
    %3056 = vmatpush1.bf16.msra.mxu0 0
    %3057 = vmatprep.subr.bf16.mxu0 0
    %3058 = vmatpush1.bf16.msra.mxu0 0
    %3059 = vmatprep.subr.bf16.mxu0 0
    %3060 = vmatpush1.bf16.msra.mxu0 0
    %3061 = vmatprep.subr.bf16.mxu0 0
    %3062 = vmatpush1.bf16.msra.mxu0 0
    %3063 = vmatprep.subr.bf16.mxu0 0
    %3064 = vmatpush1.bf16.msra.mxu0 0
    %3065 = vmatprep.subr.bf16.mxu0 0
    %3066 = vmatpush1.bf16.msra.mxu0 0
    %3067 = vmatprep.subr.bf16.mxu0 0
    %3068 = vmatpush1.bf16.msra.mxu0 0
    %3069 = vmatprep.subr.bf16.mxu0 0
    %3070 = vmatpush1.bf16.msra.mxu0 0
    %3071 = vmatprep.subr.bf16.mxu0 0
    %3072 = vmatpush1.bf16.msra.mxu0 0
    %3073 = vmatprep.subr.bf16.mxu0 0
    %3074 = vmatpush1.bf16.msra.mxu0 0
    %3075 = vmatprep.mubr.bf16.mxu0 0
    %3076 = vmatmul.mubr.bf16.gmra.mrb[0].mxu0 %v715
    %v3077 = vpop.f32.mrb[0].mxu0
    %v3078 = vadd.f32 0.0, %v3077
    %v3079 = vpop.f32.mrb[0].mxu0
    %v3080 = vpop.f32.mrb[0].mxu0
    %v3081 = vadd.f32 0.0, %v3080
    %v3082 = vpop.f32.mrb[0].mxu0
    %3083 = vmatprep.mubr.bf16.mxu0 0
    %3084 = vmatmul.mubr.bf16.gmra.mrb[0].mxu0 %v718
    %v3085 = vpop.f32.mrb[0].mxu0
    %v3086 = vadd.f32 0.0, %v3085
    %v3087 = vpop.f32.mrb[0].mxu0
    %v3088 = vpop.f32.mrb[0].mxu0
    %v3089 = vadd.f32 0.0, %v3088
    %v3090 = vpop.f32.mrb[0].mxu0
    %3091 = vmatprep.mubr.bf16.mxu0 0
    %3092 = vmatmul.mubr.bf16.gmra.mrb[0].mxu0 %v721
    %v3093 = vpop.f32.mrb[0].mxu0
    %v3094 = vadd.f32 0.0, %v3093
    %v3095 = vpop.f32.mrb[0].mxu0
    %v3096 = vpop.f32.mrb[0].mxu0
    %v3097 = vadd.f32 0.0, %v3096
    %v3098 = vpop.f32.mrb[0].mxu0
    %3099 = vmatprep.mubr.bf16.mxu0 0
    %3100 = vmatmul.mubr.bf16.gmra.mrb[0].mxu0 %v724
    %v3101 = vpop.f32.mrb[0].mxu0
    %v3102 = vadd.f32 0.0, %v3101
    %v3103 = vpop.f32.mrb[0].mxu0
    %v3104 = vpop.f32.mrb[0].mxu0
    %v3105 = vadd.f32 0.0, %v3104
    %v3106 = vpop.f32.mrb[0].mxu0
    %3107 = vmatprep.mubr.bf16.mxu0 0
    %3108 = vmatmul.mubr.bf16.gmra.mrb[0].mxu0 %v727
    %v3109 = vpop.f32.mrb[0].mxu0
    %v3110 = vadd.f32 0.0, %v3109
    %v3111 = vpop.f32.mrb[0].mxu0
    %v3112 = vpop.f32.mrb[0].mxu0
    %v3113 = vadd.f32 0.0, %v3112
    %v3114 = vpop.f32.mrb[0].mxu0
    %3115 = vmatprep.mubr.bf16.mxu0 0
    %3116 = vmatmul.mubr.bf16.gmra.mrb[0].mxu0 %v730
    %v3117 = vpop.f32.mrb[0].mxu0
    %v3118 = vadd.f32 0.0, %v3117
    %v3119 = vpop.f32.mrb[0].mxu0
    %v3120 = vpop.f32.mrb[0].mxu0
    %v3121 = vadd.f32 0.0, %v3120
    %v3122 = vpop.f32.mrb[0].mxu0
    %3123 = vmatprep.mubr.bf16.mxu0 0
    %3124 = vmatmul.mubr.bf16.gmra.mrb[0].mxu0 %v733
    %v3125 = vpop.f32.mrb[0].mxu0
    %v3126 = vadd.f32 0.0, %v3125
    %v3127 = vpop.f32.mrb[0].mxu0
    %v3128 = vpop.f32.mrb[0].mxu0
    %v3129 = vadd.f32 0.0, %v3128
    %v3130 = vpop.f32.mrb[0].mxu0
    %3131 = vmatprep.mubr.bf16.mxu0 0
    %3132 = vmatmul.mubr.bf16.gmra.mrb[0].mxu0 %v736
    %v3133 = vpop.f32.mrb[0].mxu0
    %v3134 = vadd.f32 0.0, %v3133
    %v3135 = vpop.f32.mrb[0].mxu0
    %v3136 = vpop.f32.mrb[0].mxu0
    %v3137 = vadd.f32 0.0, %v3136
    %v3138 = vpop.f32.mrb[0].mxu0
    %3139 = vmatprep.mubr.bf16.mxu0 0
    %3140 = vmatmul.mubr.bf16.gmra.mrb[0].mxu0 %v739
    %v3141 = vpop.f32.mrb[0].mxu0
    %v3142 = vadd.f32 0.0, %v3141
    %v3143 = vpop.f32.mrb[0].mxu0
    %v3144 = vpop.f32.mrb[0].mxu0
    %v3145 = vadd.f32 0.0, %v3144
    %v3146 = vpop.f32.mrb[0].mxu0
    %3147 = vmatprep.mubr.bf16.mxu0 0
    %3148 = vmatmul.mubr.bf16.gmra.mrb[0].mxu0 %v742
    %v3149 = vpop.f32.mrb[0].mxu0
    %v3150 = vadd.f32 0.0, %v3149
    %v3151 = vpop.f32.mrb[0].mxu0
    %v3152 = vpop.f32.mrb[0].mxu0
    %v3153 = vadd.f32 0.0, %v3152
    %v3154 = vpop.f32.mrb[0].mxu0
    %3155 = vmatprep.mubr.bf16.mxu0 0
    %3156 = vmatmul.mubr.bf16.gmra.mrb[0].mxu0 %v745
    %v3157 = vpop.f32.mrb[0].mxu0
    %v3158 = vadd.f32 0.0, %v3157
    %v3159 = vpop.f32.mrb[0].mxu0
    %v3160 = vpop.f32.mrb[0].mxu0
    %v3161 = vadd.f32 0.0, %v3160
    %v3162 = vpop.f32.mrb[0].mxu0
    %3163 = vmatprep.mubr.bf16.mxu0 0
    %3164 = vmatmul.mubr.bf16.gmra.mrb[0].mxu0 %v748
    %v3165 = vpop.f32.mrb[0].mxu0
    %v3166 = vadd.f32 0.0, %v3165
    %v3167 = vpop.f32.mrb[0].mxu0
    %v3168 = vpop.f32.mrb[0].mxu0
    %v3169 = vadd.f32 0.0, %v3168
    %v3170 = vpop.f32.mrb[0].mxu0
    %3171 = vmatprep.mubr.bf16.mxu0 0
    %3172 = vmatmul.mubr.bf16.gmra.mrb[0].mxu0 %v751
    %v3173 = vpop.f32.mrb[0].mxu0
    %v3174 = vadd.f32 0.0, %v3173
    %v3175 = vpop.f32.mrb[0].mxu0
    %v3176 = vpop.f32.mrb[0].mxu0
    %v3177 = vadd.f32 0.0, %v3176
    %v3178 = vpop.f32.mrb[0].mxu0
    %3179 = vmatprep.mubr.bf16.mxu0 0
    %3180 = vmatmul.mubr.bf16.gmra.mrb[0].mxu0 %v754
    %v3181 = vpop.f32.mrb[0].mxu0
    %v3182 = vadd.f32 0.0, %v3181
    %v3183 = vpop.f32.mrb[0].mxu0
    %v3184 = vpop.f32.mrb[0].mxu0
    %v3185 = vadd.f32 0.0, %v3184
    %v3186 = vpop.f32.mrb[0].mxu0
    %3187 = vmatprep.mubr.bf16.mxu0 0
    %3188 = vmatmul.mubr.bf16.gmra.mrb[0].mxu0 %v757
    %v3189 = vpop.f32.mrb[0].mxu0
    %v3190 = vadd.f32 0.0, %v3189
    %v3191 = vpop.f32.mrb[0].mxu0
    %v3192 = vpop.f32.mrb[0].mxu0
    %v3193 = vadd.f32 0.0, %v3192
    %v3194 = vpop.f32.mrb[0].mxu0
    %3195 = vmatprep.mubr.bf16.mxu0 0
    %3196 = vmatmul.mubr.bf16.gmra.mrb[0].mxu0 %v760
    %v3197 = vpop.f32.mrb[0].mxu0
    %v3198 = vadd.f32 0.0, %v3197
    %v3199 = vpop.f32.mrb[0].mxu0
    %v3200 = vpop.f32.mrb[0].mxu0
    %v3201 = vadd.f32 0.0, %v3200
    %v3202 = vpop.f32.mrb[0].mxu0
    %3203 = vmatprep.mubr.bf16.mxu0 0
    %3204 = vmatmul.mubr.bf16.gmra.mrb[0].mxu0 %v763
    %v3205 = vpop.f32.mrb[0].mxu0
    %v3206 = vadd.f32 0.0, %v3205
    %v3207 = vpop.f32.mrb[0].mxu0
    %v3208 = vpop.f32.mrb[0].mxu0
    %v3209 = vadd.f32 0.0, %v3208
    %v3210 = vpop.f32.mrb[0].mxu0
    %3211 = vmatprep.mubr.bf16.mxu0 0
    %3212 = vmatmul.mubr.bf16.gmra.mrb[0].mxu0 %v766
    %v3213 = vpop.f32.mrb[0].mxu0
    %v3214 = vadd.f32 0.0, %v3213
    %v3215 = vpop.f32.mrb[0].mxu0
    %v3216 = vpop.f32.mrb[0].mxu0
    %v3217 = vadd.f32 0.0, %v3216
    %v3218 = vpop.f32.mrb[0].mxu0
    %3219 = vmatprep.mubr.bf16.mxu0 0
    %3220 = vmatmul.mubr.bf16.gmra.mrb[0].mxu0 %v769
    %v3221 = vpop.f32.mrb[0].mxu0
    %v3222 = vadd.f32 0.0, %v3221
    %v3223 = vpop.f32.mrb[0].mxu0
    %v3224 = vpop.f32.mrb[0].mxu0
    %v3225 = vadd.f32 0.0, %v3224
    %v3226 = vpop.f32.mrb[0].mxu0
    %3227 = vmatprep.mubr.bf16.mxu0 0
    %3228 = vmatmul.mubr.bf16.gmra.mrb[0].mxu0 %v772
    %v3229 = vpop.f32.mrb[0].mxu0
    %v3230 = vadd.f32 0.0, %v3229
    %v3231 = vpop.f32.mrb[0].mxu0
    %v3232 = vpop.f32.mrb[0].mxu0
    %v3233 = vadd.f32 0.0, %v3232
    %v3234 = vpop.f32.mrb[0].mxu0
    %3235 = vmatprep.mubr.bf16.mxu0 0
    %3236 = vmatmul.mubr.bf16.gmra.mrb[0].mxu0 %v775
    %v3237 = vpop.f32.mrb[0].mxu0
    %v3238 = vadd.f32 0.0, %v3237
    %v3239 = vpop.f32.mrb[0].mxu0
    %v3240 = vpop.f32.mrb[0].mxu0
    %v3241 = vadd.f32 0.0, %v3240
    %v3242 = vpop.f32.mrb[0].mxu0
    %3243 = vmatprep.mubr.bf16.mxu0 0
    %3244 = vmatmul.mubr.bf16.gmra.mrb[0].mxu0 %v778
    %v3245 = vpop.f32.mrb[0].mxu0
    %v3246 = vadd.f32 0.0, %v3245
    %v3247 = vpop.f32.mrb[0].mxu0
    %v3248 = vpop.f32.mrb[0].mxu0
    %v3249 = vadd.f32 0.0, %v3248
    %v3250 = vpop.f32.mrb[0].mxu0
    %3251 = vmatprep.mubr.bf16.mxu0 0
    %3252 = vmatmul.mubr.bf16.gmra.mrb[0].mxu0 %v781
    %v3253 = vpop.f32.mrb[0].mxu0
    %v3254 = vadd.f32 0.0, %v3253
    %v3255 = vpop.f32.mrb[0].mxu0
    %v3256 = vpop.f32.mrb[0].mxu0
    %v3257 = vadd.f32 0.0, %v3256
    %v3258 = vpop.f32.mrb[0].mxu0
    %3259 = vmatprep.mubr.bf16.mxu0 0
    %3260 = vmatmul.mubr.bf16.gmra.mrb[0].mxu0 %v784
    %v3261 = vpop.f32.mrb[0].mxu0
    %v3262 = vadd.f32 0.0, %v3261
    %v3263 = vpop.f32.mrb[0].mxu0
    %v3264 = vpop.f32.mrb[0].mxu0
    %v3265 = vadd.f32 0.0, %v3264
    %v3266 = vpop.f32.mrb[0].mxu0
    %3267 = vmatprep.mubr.bf16.mxu0 0
    %3268 = vmatmul.mubr.bf16.gmra.mrb[0].mxu0 %v1058
    %v3269 = vpop.f32.mrb[0].mxu0
    %v3270 = vadd.f32 0.0, %v3269
    %v3271 = vpop.f32.mrb[0].mxu0
    %v3272 = vpop.f32.mrb[0].mxu0
    %v3273 = vadd.f32 0.0, %v3272
    %v3274 = vpop.f32.mrb[0].mxu0
    %3275 = vmatprep.mubr.bf16.mxu0 0
    %3276 = vmatmul.mubr.bf16.gmra.mrb[0].mxu0 %v1718
    %v3277 = vpop.f32.mrb[0].mxu0
    %v3278 = vadd.f32 0.0, %v3277
    %v3279 = vpop.f32.mrb[0].mxu0
    %v3280 = vpop.f32.mrb[0].mxu0
    %v3281 = vadd.f32 0.0, %v3280
    %v3282 = vpop.f32.mrb[0].mxu0
    %3283 = vmatprep.mubr.bf16.mxu0 0
    %3284 = vmatmul.mubr.bf16.gmra.mrb[0].mxu0 %v2378
    %v3285 = vpop.f32.mrb[0].mxu0
    %v3286 = vadd.f32 0.0, %v3285
    %v3287 = vpop.f32.mrb[0].mxu0
    %v3288 = vpop.f32.mrb[0].mxu0
    %v3289 = vadd.f32 0.0, %v3288
    %v3290 = vpop.f32.mrb[0].mxu0
    %3291 = vmatprep.mubr.bf16.mxu0 0
    %3292 = vmatmul.mubr.bf16.gmra.mrb[0].mxu0 %v3038
    %v3293 = vpop.f32.mrb[0].mxu0
    %v3294 = vadd.f32 0.0, %v3293
    %v3295 = vpop.f32.mrb[0].mxu0
    %v3296 = vpop.f32.mrb[0].mxu0
    %v3297 = vadd.f32 0.0, %v3296
    %v3298 = vpop.f32.mrb[0].mxu0
    %3299 = vdwg.mxu0
    %v3300 = vadd.f32 %v2970, %v3078
    %v3301 = vadd.f32 %v2971, %v3081
    %v3302 = vadd.f32 %v2972, %v3086
    %v3303 = vadd.f32 %v2973, %v3089
    %v3304 = vadd.f32 %v2974, %v3094
    %v3305 = vadd.f32 %v2975, %v3097
    %v3306 = vadd.f32 %v2976, %v3102
    %v3307 = vadd.f32 %v2977, %v3105
    %v3308 = vadd.f32 %v2978, %v3110
    %v3309 = vadd.f32 %v2979, %v3113
    %v3310 = vadd.f32 %v2980, %v3118
    %v3311 = vadd.f32 %v2981, %v3121
    %v3312 = vadd.f32 %v2982, %v3126
    %v3313 = vadd.f32 %v2983, %v3129
    %v3314 = vadd.f32 %v2984, %v3134
    %v3315 = vadd.f32 %v2985, %v3137
    %v3316 = vadd.f32 %v2986, %v3142
    %v3317 = vadd.f32 %v2987, %v3145
    %v3318 = vadd.f32 %v2988, %v3150
    %v3319 = vadd.f32 %v2989, %v3153
    %v3320 = vadd.f32 %v2990, %v3158
    %v3321 = vadd.f32 %v2991, %v3161
    %v3322 = vadd.f32 %v2992, %v3166
    %v3323 = vadd.f32 %v2993, %v3169
    %v3324 = vadd.f32 %v2994, %v3174
    %v3325 = vadd.f32 %v2995, %v3177
    %v3326 = vadd.f32 %v2996, %v3182
    %v3327 = vadd.f32 %v2997, %v3185
    %v3328 = vadd.f32 %v2998, %v3190
    %v3329 = vadd.f32 %v2999, %v3193
    %v3330 = vadd.f32 %v3000, %v3198
    %v3331 = vadd.f32 %v3001, %v3201
    %v3332 = vadd.f32 %v3002, %v3206
    %v3333 = vadd.f32 %v3003, %v3209
    %v3334 = vadd.f32 %v3004, %v3214
    %v3335 = vadd.f32 %v3005, %v3217
    %v3336 = vadd.f32 %v3006, %v3222
    %v3337 = vadd.f32 %v3007, %v3225
    %v3338 = vadd.f32 %v3008, %v3230
    %v3339 = vadd.f32 %v3009, %v3233
    %v3340 = vadd.f32 %v3010, %v3238
    %v3341 = vadd.f32 %v3011, %v3241
    %v3342 = vadd.f32 %v3012, %v3246
    %v3343 = vadd.f32 %v3013, %v3249
    %v3344 = vadd.f32 %v3014, %v3254
    %v3345 = vadd.f32 %v3015, %v3257
    %v3346 = vadd.f32 %v3016, %v3262
    %v3347 = vadd.f32 %v3017, %v3265
    %v3348 = vadd.f32 %v3018, %v3270
    %v3349 = vadd.f32 %v3019, %v3273
    %v3350 = vadd.f32 %v3020, %v3278
    %v3351 = vadd.f32 %v3021, %v3281
    %v3352 = vadd.f32 %v3022, %v3286
    %v3353 = vadd.f32 %v3023, %v3289
    %v3354 = vadd.f32 %v3024, %v3294
    %v3355 = vadd.f32 %v3025, %v3297
    %v3356 = vld [vmem:[%s2] sm:$0x1]
    %v3358 = vlaneseq
    %v3359 = vshrl.u32 %v3358, 7
    %v3360 = vsub.s32 0, %v3359
    %v3361 = vrot.slane %v3356, %v3360
    %v3363 = vadd.f32 %v3300, %v3361
    %v3364 = vadd.f32 %v3301, %v3361
    %v3365 = vadd.f32 %v3302, %v3361
    %v3366 = vadd.f32 %v3303, %v3361
    %v3367 = vadd.f32 %v3304, %v3361
    %v3368 = vadd.f32 %v3305, %v3361
    %v3369 = vadd.f32 %v3306, %v3361
    %v3370 = vadd.f32 %v3307, %v3361
    %v3371 = vadd.f32 %v3308, %v3361
    %v3372 = vadd.f32 %v3309, %v3361
    %v3373 = vadd.f32 %v3310, %v3361
    %v3374 = vadd.f32 %v3311, %v3361
    %v3375 = vadd.f32 %v3312, %v3361
    %v3376 = vadd.f32 %v3313, %v3361
    %v3377 = vadd.f32 %v3314, %v3361
    %v3378 = vadd.f32 %v3315, %v3361
    %v3379 = vadd.f32 %v3316, %v3361
    %v3380 = vadd.f32 %v3317, %v3361
    %v3381 = vadd.f32 %v3318, %v3361
    %v3382 = vadd.f32 %v3319, %v3361
    %v3383 = vadd.f32 %v3320, %v3361
    %v3384 = vadd.f32 %v3321, %v3361
    %v3385 = vadd.f32 %v3322, %v3361
    %v3386 = vadd.f32 %v3323, %v3361
    %v3387 = vadd.f32 %v3324, %v3361
    %v3388 = vadd.f32 %v3325, %v3361
    %v3389 = vadd.f32 %v3326, %v3361
    %v3390 = vadd.f32 %v3327, %v3361
    %v3391 = vadd.f32 %v3328, %v3361
    %v3392 = vadd.f32 %v3329, %v3361
    %v3393 = vadd.f32 %v3330, %v3361
    %v3394 = vadd.f32 %v3331, %v3361
    %v3395 = vadd.f32 %v3332, %v3361
    %v3396 = vadd.f32 %v3333, %v3361
    %v3397 = vadd.f32 %v3334, %v3361
    %v3398 = vadd.f32 %v3335, %v3361
    %v3399 = vadd.f32 %v3336, %v3361
    %v3400 = vadd.f32 %v3337, %v3361
    %v3401 = vadd.f32 %v3338, %v3361
    %v3402 = vadd.f32 %v3339, %v3361
    %v3403 = vadd.f32 %v3340, %v3361
    %v3404 = vadd.f32 %v3341, %v3361
    %v3405 = vadd.f32 %v3342, %v3361
    %v3406 = vadd.f32 %v3343, %v3361
    %v3407 = vadd.f32 %v3344, %v3361
    %v3408 = vadd.f32 %v3345, %v3361
    %v3409 = vadd.f32 %v3346, %v3361
    %v3410 = vadd.f32 %v3347, %v3361
    %v3411 = vadd.f32 %v3348, %v3361
    %v3412 = vadd.f32 %v3349, %v3361
    %v3413 = vadd.f32 %v3350, %v3361
    %v3414 = vadd.f32 %v3351, %v3361
    %v3415 = vadd.f32 %v3352, %v3361
    %v3416 = vadd.f32 %v3353, %v3361
    %v3417 = vadd.f32 %v3354, %v3361
    %v3418 = vadd.f32 %v3355, %v3361
    %vm3419 = vcmp.ge.f32.partialorder %v3363, 0.0
    %vm3420 = vcmp.ge.f32.partialorder %v3364, 0.0
    %vm3421 = vcmp.ge.f32.partialorder %v3365, 0.0
    %vm3422 = vcmp.ge.f32.partialorder %v3366, 0.0
    %vm3423 = vcmp.ge.f32.partialorder %v3367, 0.0
    %vm3424 = vcmp.ge.f32.partialorder %v3368, 0.0
    %vm3425 = vcmp.ge.f32.partialorder %v3369, 0.0
    %vm3426 = vcmp.ge.f32.partialorder %v3370, 0.0
    %vm3427 = vcmp.ge.f32.partialorder %v3371, 0.0
    %vm3428 = vcmp.ge.f32.partialorder %v3372, 0.0
    %vm3429 = vcmp.ge.f32.partialorder %v3373, 0.0
    %vm3430 = vcmp.ge.f32.partialorder %v3374, 0.0
    %vm3431 = vcmp.ge.f32.partialorder %v3375, 0.0
    %vm3432 = vcmp.ge.f32.partialorder %v3376, 0.0
    %vm3433 = vcmp.ge.f32.partialorder %v3377, 0.0
    %vm3434 = vcmp.ge.f32.partialorder %v3378, 0.0
    %vm3435 = vcmp.ge.f32.partialorder %v3379, 0.0
    %vm3436 = vcmp.ge.f32.partialorder %v3380, 0.0
    %vm3437 = vcmp.ge.f32.partialorder %v3381, 0.0
    %vm3438 = vcmp.ge.f32.partialorder %v3382, 0.0
    %vm3439 = vcmp.ge.f32.partialorder %v3383, 0.0
    %vm3440 = vcmp.ge.f32.partialorder %v3384, 0.0
    %vm3441 = vcmp.ge.f32.partialorder %v3385, 0.0
    %vm3442 = vcmp.ge.f32.partialorder %v3386, 0.0
    %vm3443 = vcmp.ge.f32.partialorder %v3387, 0.0
    %vm3444 = vcmp.ge.f32.partialorder %v3388, 0.0
    %vm3445 = vcmp.ge.f32.partialorder %v3389, 0.0
    %vm3446 = vcmp.ge.f32.partialorder %v3390, 0.0
    %vm3447 = vcmp.ge.f32.partialorder %v3391, 0.0
    %vm3448 = vcmp.ge.f32.partialorder %v3392, 0.0
    %vm3449 = vcmp.ge.f32.partialorder %v3393, 0.0
    %vm3450 = vcmp.ge.f32.partialorder %v3394, 0.0
    %vm3451 = vcmp.ge.f32.partialorder %v3395, 0.0
    %vm3452 = vcmp.ge.f32.partialorder %v3396, 0.0
    %vm3453 = vcmp.ge.f32.partialorder %v3397, 0.0
    %vm3454 = vcmp.ge.f32.partialorder %v3398, 0.0
    %vm3455 = vcmp.ge.f32.partialorder %v3399, 0.0
    %vm3456 = vcmp.ge.f32.partialorder %v3400, 0.0
    %vm3457 = vcmp.ge.f32.partialorder %v3401, 0.0
    %vm3458 = vcmp.ge.f32.partialorder %v3402, 0.0
    %vm3459 = vcmp.ge.f32.partialorder %v3403, 0.0
    %vm3460 = vcmp.ge.f32.partialorder %v3404, 0.0
    %vm3461 = vcmp.ge.f32.partialorder %v3405, 0.0
    %vm3462 = vcmp.ge.f32.partialorder %v3406, 0.0
    %vm3463 = vcmp.ge.f32.partialorder %v3407, 0.0
    %vm3464 = vcmp.ge.f32.partialorder %v3408, 0.0
    %vm3465 = vcmp.ge.f32.partialorder %v3409, 0.0
    %vm3466 = vcmp.ge.f32.partialorder %v3410, 0.0
    %vm3467 = vcmp.ge.f32.partialorder %v3411, 0.0
    %vm3468 = vcmp.ge.f32.partialorder %v3412, 0.0
    %vm3469 = vcmp.ge.f32.partialorder %v3413, 0.0
    %vm3470 = vcmp.ge.f32.partialorder %v3414, 0.0
    %vm3471 = vcmp.ge.f32.partialorder %v3415, 0.0
    %vm3472 = vcmp.ge.f32.partialorder %v3416, 0.0
    %vm3473 = vcmp.ge.f32.partialorder %v3417, 0.0
    %vm3474 = vcmp.ge.f32.partialorder %v3418, 0.0
    %v3475 = vmul.f32 %v3363, 0.01
    %v3476 = vmul.f32 %v3364, 0.01
    %v3477 = vmul.f32 %v3365, 0.01
    %v3478 = vmul.f32 %v3366, 0.01
    %v3479 = vmul.f32 %v3367, 0.01
    %v3480 = vmul.f32 %v3368, 0.01
    %v3481 = vmul.f32 %v3369, 0.01
    %v3482 = vmul.f32 %v3370, 0.01
    %v3483 = vmul.f32 %v3371, 0.01
    %v3484 = vmul.f32 %v3372, 0.01
    %v3485 = vmul.f32 %v3373, 0.01
    %v3486 = vmul.f32 %v3374, 0.01
    %v3487 = vmul.f32 %v3375, 0.01
    %v3488 = vmul.f32 %v3376, 0.01
    %v3489 = vmul.f32 %v3377, 0.01
    %v3490 = vmul.f32 %v3378, 0.01
    %v3491 = vmul.f32 %v3379, 0.01
    %v3492 = vmul.f32 %v3380, 0.01
    %v3493 = vmul.f32 %v3381, 0.01
    %v3494 = vmul.f32 %v3382, 0.01
    %v3495 = vmul.f32 %v3383, 0.01
    %v3496 = vmul.f32 %v3384, 0.01
    %v3497 = vmul.f32 %v3385, 0.01
    %v3498 = vmul.f32 %v3386, 0.01
    %v3499 = vmul.f32 %v3387, 0.01
    %v3500 = vmul.f32 %v3388, 0.01
    %v3501 = vmul.f32 %v3389, 0.01
    %v3502 = vmul.f32 %v3390, 0.01
    %v3503 = vmul.f32 %v3391, 0.01
    %v3504 = vmul.f32 %v3392, 0.01
    %v3505 = vmul.f32 %v3393, 0.01
    %v3506 = vmul.f32 %v3394, 0.01
    %v3507 = vmul.f32 %v3395, 0.01
    %v3508 = vmul.f32 %v3396, 0.01
    %v3509 = vmul.f32 %v3397, 0.01
    %v3510 = vmul.f32 %v3398, 0.01
    %v3511 = vmul.f32 %v3399, 0.01
    %v3512 = vmul.f32 %v3400, 0.01
    %v3513 = vmul.f32 %v3401, 0.01
    %v3514 = vmul.f32 %v3402, 0.01
    %v3515 = vmul.f32 %v3403, 0.01
    %v3516 = vmul.f32 %v3404, 0.01
    %v3517 = vmul.f32 %v3405, 0.01
    %v3518 = vmul.f32 %v3406, 0.01
    %v3519 = vmul.f32 %v3407, 0.01
    %v3520 = vmul.f32 %v3408, 0.01
    %v3521 = vmul.f32 %v3409, 0.01
    %v3522 = vmul.f32 %v3410, 0.01
    %v3523 = vmul.f32 %v3411, 0.01
    %v3524 = vmul.f32 %v3412, 0.01
    %v3525 = vmul.f32 %v3413, 0.01
    %v3526 = vmul.f32 %v3414, 0.01
    %v3527 = vmul.f32 %v3415, 0.01
    %v3528 = vmul.f32 %v3416, 0.01
    %v3529 = vmul.f32 %v3417, 0.01
    %v3530 = vmul.f32 %v3418, 0.01
    %v3531 = vsel %vm3419, %v3363, %v3475
    %v3532 = vsel %vm3420, %v3364, %v3476
    %v3533 = vsel %vm3421, %v3365, %v3477
    %v3534 = vsel %vm3422, %v3366, %v3478
    %v3535 = vsel %vm3423, %v3367, %v3479
    %v3536 = vsel %vm3424, %v3368, %v3480
    %v3537 = vsel %vm3425, %v3369, %v3481
    %v3538 = vsel %vm3426, %v3370, %v3482
    %v3539 = vsel %vm3427, %v3371, %v3483
    %v3540 = vsel %vm3428, %v3372, %v3484
    %v3541 = vsel %vm3429, %v3373, %v3485
    %v3542 = vsel %vm3430, %v3374, %v3486
    %v3543 = vsel %vm3431, %v3375, %v3487
    %v3544 = vsel %vm3432, %v3376, %v3488
    %v3545 = vsel %vm3433, %v3377, %v3489
    %v3546 = vsel %vm3434, %v3378, %v3490
    %v3547 = vsel %vm3435, %v3379, %v3491
    %v3548 = vsel %vm3436, %v3380, %v3492
    %v3549 = vsel %vm3437, %v3381, %v3493
    %v3550 = vsel %vm3438, %v3382, %v3494
    %v3551 = vsel %vm3439, %v3383, %v3495
    %v3552 = vsel %vm3440, %v3384, %v3496
    %v3553 = vsel %vm3441, %v3385, %v3497
    %v3554 = vsel %vm3442, %v3386, %v3498
    %v3555 = vsel %vm3443, %v3387, %v3499
    %v3556 = vsel %vm3444, %v3388, %v3500
    %v3557 = vsel %vm3445, %v3389, %v3501
    %v3558 = vsel %vm3446, %v3390, %v3502
    %v3559 = vsel %vm3447, %v3391, %v3503
    %v3560 = vsel %vm3448, %v3392, %v3504
    %v3561 = vsel %vm3449, %v3393, %v3505
    %v3562 = vsel %vm3450, %v3394, %v3506
    %v3563 = vsel %vm3451, %v3395, %v3507
    %v3564 = vsel %vm3452, %v3396, %v3508
    %v3565 = vsel %vm3453, %v3397, %v3509
    %v3566 = vsel %vm3454, %v3398, %v3510
    %v3567 = vsel %vm3455, %v3399, %v3511
    %v3568 = vsel %vm3456, %v3400, %v3512
    %v3569 = vsel %vm3457, %v3401, %v3513
    %v3570 = vsel %vm3458, %v3402, %v3514
    %v3571 = vsel %vm3459, %v3403, %v3515
    %v3572 = vsel %vm3460, %v3404, %v3516
    %v3573 = vsel %vm3461, %v3405, %v3517
    %v3574 = vsel %vm3462, %v3406, %v3518
    %v3575 = vsel %vm3463, %v3407, %v3519
    %v3576 = vsel %vm3464, %v3408, %v3520
    %v3577 = vsel %vm3465, %v3409, %v3521
    %v3578 = vsel %vm3466, %v3410, %v3522
    %v3579 = vsel %vm3467, %v3411, %v3523
    %v3580 = vsel %vm3468, %v3412, %v3524
    %v3581 = vsel %vm3469, %v3413, %v3525
    %v3582 = vsel %vm3470, %v3414, %v3526
    %v3583 = vsel %vm3471, %v3415, %v3527
    %v3584 = vsel %vm3472, %v3416, %v3528
    %v3585 = vsel %vm3473, %v3417, %v3529
    %v3586 = vsel %vm3474, %v3418, %v3530
    %v3587 = vmax.f32 %v3532, %v3533
    %v3588 = vmax.f32 %v3534, %v3535
    %v3589 = vmax.f32 %v3536, %v3537
    %v3590 = vmax.f32 %v3538, %v3539
    %v3591 = vmax.f32 %v3540, %v3541
    %v3592 = vmax.f32 %v3542, %v3543
    %v3593 = vmax.f32 %v3544, %v3545
    %v3594 = vmax.f32 %v3546, %v3547
    %v3595 = vmax.f32 %v3548, %v3549
    %v3596 = vmax.f32 %v3550, %v3551
    %v3597 = vmax.f32 %v3552, %v3553
    %v3598 = vmax.f32 %v3554, %v3555
    %v3599 = vmax.f32 %v3556, %v3557
    %v3600 = vmax.f32 %v3558, %v3559
    %v3601 = vmax.f32 %v3560, %v3561
    %v3602 = vmax.f32 %v3562, %v3563
    %v3603 = vmax.f32 %v3564, %v3565
    %v3604 = vmax.f32 %v3566, %v3567
    %v3605 = vmax.f32 %v3568, %v3569
    %v3606 = vmax.f32 %v3570, %v3571
    %v3607 = vmax.f32 %v3572, %v3573
    %v3608 = vmax.f32 %v3574, %v3575
    %v3609 = vmax.f32 %v3576, %v3577
    %v3610 = vmax.f32 %v3578, %v3579
    %v3611 = vmax.f32 %v3580, %v3581
    %v3612 = vmax.f32 %v3582, %v3583
    %v3613 = vmax.f32 %v3584, %v3585
    %v3614 = vpack.c.bf16 %v3531, %v3531
    %v3615 = vpack.c.bf16 %v3587, %v3587
    %v3616 = vpack.c.bf16 %v3588, %v3588
    %v3617 = vpack.c.bf16 %v3589, %v3589
    %v3618 = vpack.c.bf16 %v3590, %v3590
    %v3619 = vpack.c.bf16 %v3591, %v3591
    %v3620 = vpack.c.bf16 %v3592, %v3592
    %v3621 = vpack.c.bf16 %v3593, %v3593
    %v3622 = vpack.c.bf16 %v3594, %v3594
    %v3623 = vpack.c.bf16 %v3595, %v3595
    %v3624 = vpack.c.bf16 %v3596, %v3596
    %v3625 = vpack.c.bf16 %v3597, %v3597
    %v3626 = vpack.c.bf16 %v3598, %v3598
    %v3627 = vpack.c.bf16 %v3599, %v3599
    %v3628 = vpack.c.bf16 %v3600, %v3600
    %v3629 = vpack.c.bf16 %v3601, %v3601
    %v3630 = vpack.c.bf16 %v3602, %v3602
    %v3631 = vpack.c.bf16 %v3603, %v3603
    %v3632 = vpack.c.bf16 %v3604, %v3604
    %v3633 = vpack.c.bf16 %v3605, %v3605
    %v3634 = vpack.c.bf16 %v3606, %v3606
    %v3635 = vpack.c.bf16 %v3607, %v3607
    %v3636 = vpack.c.bf16 %v3608, %v3608
    %v3637 = vpack.c.bf16 %v3609, %v3609
    %v3638 = vpack.c.bf16 %v3610, %v3610
    %v3639 = vpack.c.bf16 %v3611, %v3611
    %v3640 = vpack.c.bf16 %v3612, %v3612
    %v3641 = vpack.c.bf16 %v3613, %v3613
    %v3642 = vpack.c.bf16 %v3586, %v3586
    %v3643 = vld [vmem:[%s3] sm:$0xf]
    %v3644 = vld [vmem:[%s3 + $0x4] sm:$0xf]
    %v3645 = vld [vmem:[%s3 + $0x8] sm:$0xf]
    %v3646 = vld [vmem:[%s3 + $0xc] sm:$0xf]
    %s3647 = scalar_lea.vmem %s3, 16
    %v3648 = vld [vmem:[%s3647] sm:$0xf]
    %v3649 = vld [vmem:[%s3647 + $0x4] sm:$0xf]
    %v3650 = vld [vmem:[%s3647 + $0x8] sm:$0xf]
    %v3651 = vld [vmem:[%s3647 + $0xc] sm:$0xf]
    %v3677 = vunpack.c.l.b16 %v3615
    %v3678 = vunpack.c.l.b16 %v3616
    %v3679 = vunpack.c.l.b16 %v3617
    %v3680 = vunpack.c.l.b16 %v3618
    %v3681 = vunpack.c.l.b16 %v3619
    %v3682 = vunpack.c.l.b16 %v3620
    %v3683 = vunpack.c.l.b16 %v3621
    %v3684 = vunpack.c.l.b16 %v3622
    %v3685 = vunpack.c.l.b16 %v3623
    %v3686 = vunpack.c.l.b16 %v3624
    %v3687 = vunpack.c.l.b16 %v3625
    %v3688 = vunpack.c.l.b16 %v3626
    %v3689 = vunpack.c.l.b16 %v3627
    %v3690 = vunpack.c.l.b16 %v3628
    %v3691 = vunpack.c.l.b16 %v3629
    %v3692 = vunpack.c.l.b16 %v3630
    %v3693 = vunpack.c.l.b16 %v3631
    %v3694 = vunpack.c.l.b16 %v3632
    %v3695 = vunpack.c.l.b16 %v3633
    %v3696 = vunpack.c.l.b16 %v3634
    %v3697 = vunpack.c.l.b16 %v3635
    %v3698 = vunpack.c.l.b16 %v3636
    %v3699 = vunpack.c.l.b16 %v3637
    %v3700 = vunpack.c.l.b16 %v3638
    %v3701 = vunpack.c.l.b16 %v3639
    %v3702 = vpack.c.b16 %v3678, %v3677
    %v3703 = vpack.c.b16 %v3680, %v3679
    %v3704 = vpack.c.b16 %v3682, %v3681
    %v3705 = vpack.c.b16 %v3684, %v3683
    %v3706 = vpack.c.b16 %v3686, %v3685
    %v3707 = vpack.c.b16 %v3688, %v3687
    %v3708 = vpack.c.b16 %v3690, %v3689
    %v3709 = vpack.c.b16 %v3692, %v3691
    %v3710 = vpack.c.b16 %v3694, %v3693
    %v3711 = vpack.c.b16 %v3696, %v3695
    %v3712 = vpack.c.b16 %v3698, %v3697
    %v3713 = vpack.c.b16 %v3700, %v3699
    %v3714 = vpack.c.b16 %v3701, %v3701
    %v3719 = vunpack.c.l.b16 %v3648
    %v3720 = vunpack.c.l.b16 %v3649
    %v3721 = vunpack.c.l.b16 %v3650
    %v3722 = vunpack.c.l.b16 %v3651
    %v3723 = vpack.c.b16 %v3720, %v3719
    %v3724 = vpack.c.b16 %v3722, %v3721
    %vm3727 = vcmask 261120
    %v3729 = vsel %vm3727, %v3702, 0
    %v3732 = vsel %vm3727, %v3703, 0
    %v3735 = vsel %vm3727, %v3704, 0
    %v3738 = vsel %vm3727, %v3705, 0
    %v3741 = vsel %vm3727, %v3706, 0
    %v3744 = vsel %vm3727, %v3707, 0
    %v3747 = vsel %vm3727, %v3708, 0
    %v3750 = vsel %vm3727, %v3709, 0
    %v3753 = vsel %vm3727, %v3710, 0
    %v3756 = vsel %vm3727, %v3711, 0
    %v3759 = vsel %vm3727, %v3712, 0
    %v3762 = vsel %vm3727, %v3713, 0
    %v3765 = vsel %vm3727, %v3714, 0
    %3767 = vmatprep.subr.bf16.mxu0 0
    %3768 = vmatpush1.bf16.msra.mxu0 %v3723
    %3769 = vmatprep.subr.bf16.mxu0 0
    %3770 = vmatpush1.bf16.msra.mxu0 %v3724
    %3771 = vmatprep.subr.bf16.mxu0 0
    %3772 = vmatpush1.bf16.msra.mxu0 0
    %3773 = vmatprep.subr.bf16.mxu0 0
    %3774 = vmatpush1.bf16.msra.mxu0 0
    %3775 = vmatprep.subr.bf16.mxu0 0
    %3776 = vmatpush1.bf16.msra.mxu0 0
    %3777 = vmatprep.subr.bf16.mxu0 0
    %3778 = vmatpush1.bf16.msra.mxu0 0
    %3779 = vmatprep.subr.bf16.mxu0 0
    %3780 = vmatpush1.bf16.msra.mxu0 0
    %3781 = vmatprep.subr.bf16.mxu0 0
    %3782 = vmatpush1.bf16.msra.mxu0 0
    %3783 = vmatprep.subr.bf16.mxu0 0
    %3784 = vmatpush1.bf16.msra.mxu0 0
    %3785 = vmatprep.subr.bf16.mxu0 0
    %3786 = vmatpush1.bf16.msra.mxu0 0
    %3787 = vmatprep.subr.bf16.mxu0 0
    %3788 = vmatpush1.bf16.msra.mxu0 0
    %3789 = vmatprep.subr.bf16.mxu0 0
    %3790 = vmatpush1.bf16.msra.mxu0 0
    %3791 = vmatprep.subr.bf16.mxu0 0
    %3792 = vmatpush1.bf16.msra.mxu0 0
    %3793 = vmatprep.subr.bf16.mxu0 0
    %3794 = vmatpush1.bf16.msra.mxu0 0
    %3795 = vmatprep.subr.bf16.mxu0 0
    %3796 = vmatpush1.bf16.msra.mxu0 0
    %3797 = vmatprep.subr.bf16.mxu0 0
    %3798 = vmatpush1.bf16.msra.mxu0 0
    %3799 = vmatprep.mubr.bf16.mxu0 0
    %3800 = vmatmul.mubr.bf16.gmra.mrb[0].mxu0 %v3729
    %v3801 = vpop.f32.mrb[0].mxu0
    %v3802 = vadd.f32 0.0, %v3801
    %v3803 = vpop.f32.mrb[0].mxu0
    %v3804 = vpop.f32.mrb[0].mxu0
    %v3805 = vadd.f32 0.0, %v3804
    %v3806 = vpop.f32.mrb[0].mxu0
    %3807 = vmatprep.mubr.bf16.mxu0 0
    %3808 = vmatmul.mubr.bf16.gmra.mrb[0].mxu0 %v3732
    %v3809 = vpop.f32.mrb[0].mxu0
    %v3810 = vadd.f32 0.0, %v3809
    %v3811 = vpop.f32.mrb[0].mxu0
    %v3812 = vpop.f32.mrb[0].mxu0
    %v3813 = vadd.f32 0.0, %v3812
    %v3814 = vpop.f32.mrb[0].mxu0
    %3815 = vmatprep.mubr.bf16.mxu0 0
    %3816 = vmatmul.mubr.bf16.gmra.mrb[0].mxu0 %v3735
    %v3817 = vpop.f32.mrb[0].mxu0
    %v3818 = vadd.f32 0.0, %v3817
    %v3819 = vpop.f32.mrb[0].mxu0
    %v3820 = vpop.f32.mrb[0].mxu0
    %v3821 = vadd.f32 0.0, %v3820
    %v3822 = vpop.f32.mrb[0].mxu0
    %3823 = vmatprep.mubr.bf16.mxu0 0
    %3824 = vmatmul.mubr.bf16.gmra.mrb[0].mxu0 %v3738
    %v3825 = vpop.f32.mrb[0].mxu0
    %v3826 = vadd.f32 0.0, %v3825
    %v3827 = vpop.f32.mrb[0].mxu0
    %v3828 = vpop.f32.mrb[0].mxu0
    %v3829 = vadd.f32 0.0, %v3828
    %v3830 = vpop.f32.mrb[0].mxu0
    %3831 = vmatprep.mubr.bf16.mxu0 0
    %3832 = vmatmul.mubr.bf16.gmra.mrb[0].mxu0 %v3741
    %v3833 = vpop.f32.mrb[0].mxu0
    %v3834 = vadd.f32 0.0, %v3833
    %v3835 = vpop.f32.mrb[0].mxu0
    %v3836 = vpop.f32.mrb[0].mxu0
    %v3837 = vadd.f32 0.0, %v3836
    %v3838 = vpop.f32.mrb[0].mxu0
    %3839 = vmatprep.mubr.bf16.mxu0 0
    %3840 = vmatmul.mubr.bf16.gmra.mrb[0].mxu0 %v3744
    %v3841 = vpop.f32.mrb[0].mxu0
    %v3842 = vadd.f32 0.0, %v3841
    %v3843 = vpop.f32.mrb[0].mxu0
    %v3844 = vpop.f32.mrb[0].mxu0
    %v3845 = vadd.f32 0.0, %v3844
    %v3846 = vpop.f32.mrb[0].mxu0
    %3847 = vmatprep.mubr.bf16.mxu0 0
    %3848 = vmatmul.mubr.bf16.gmra.mrb[0].mxu0 %v3747
    %v3849 = vpop.f32.mrb[0].mxu0
    %v3850 = vadd.f32 0.0, %v3849
    %v3851 = vpop.f32.mrb[0].mxu0
    %v3852 = vpop.f32.mrb[0].mxu0
    %v3853 = vadd.f32 0.0, %v3852
    %v3854 = vpop.f32.mrb[0].mxu0
    %3855 = vmatprep.mubr.bf16.mxu0 0
    %3856 = vmatmul.mubr.bf16.gmra.mrb[0].mxu0 %v3750
    %v3857 = vpop.f32.mrb[0].mxu0
    %v3858 = vadd.f32 0.0, %v3857
    %v3859 = vpop.f32.mrb[0].mxu0
    %v3860 = vpop.f32.mrb[0].mxu0
    %v3861 = vadd.f32 0.0, %v3860
    %v3862 = vpop.f32.mrb[0].mxu0
    %3863 = vmatprep.mubr.bf16.mxu0 0
    %3864 = vmatmul.mubr.bf16.gmra.mrb[0].mxu0 %v3753
    %v3865 = vpop.f32.mrb[0].mxu0
    %v3866 = vadd.f32 0.0, %v3865
    %v3867 = vpop.f32.mrb[0].mxu0
    %v3868 = vpop.f32.mrb[0].mxu0
    %v3869 = vadd.f32 0.0, %v3868
    %v3870 = vpop.f32.mrb[0].mxu0
    %3871 = vmatprep.mubr.bf16.mxu0 0
    %3872 = vmatmul.mubr.bf16.gmra.mrb[0].mxu0 %v3756
    %v3873 = vpop.f32.mrb[0].mxu0
    %v3874 = vadd.f32 0.0, %v3873
    %v3875 = vpop.f32.mrb[0].mxu0
    %v3876 = vpop.f32.mrb[0].mxu0
    %v3877 = vadd.f32 0.0, %v3876
    %v3878 = vpop.f32.mrb[0].mxu0
    %3879 = vmatprep.mubr.bf16.mxu0 0
    %3880 = vmatmul.mubr.bf16.gmra.mrb[0].mxu0 %v3759
    %v3881 = vpop.f32.mrb[0].mxu0
    %v3882 = vadd.f32 0.0, %v3881
    %v3883 = vpop.f32.mrb[0].mxu0
    %v3884 = vpop.f32.mrb[0].mxu0
    %v3885 = vadd.f32 0.0, %v3884
    %v3886 = vpop.f32.mrb[0].mxu0
    %3887 = vmatprep.mubr.bf16.mxu0 0
    %3888 = vmatmul.mubr.bf16.gmra.mrb[0].mxu0 %v3762
    %v3889 = vpop.f32.mrb[0].mxu0
    %v3890 = vadd.f32 0.0, %v3889
    %v3891 = vpop.f32.mrb[0].mxu0
    %v3892 = vpop.f32.mrb[0].mxu0
    %v3893 = vadd.f32 0.0, %v3892
    %v3894 = vpop.f32.mrb[0].mxu0
    %3895 = vmatprep.mubr.bf16.mxu0 0
    %3896 = vmatmul.mubr.bf16.gmra.mrb[0].mxu0 %v3765
    %v3897 = vpop.f32.mrb[0].mxu0
    %v3898 = vadd.f32 0.0, %v3897
    %v3899 = vpop.f32.mrb[0].mxu0
    %v3900 = vpop.f32.mrb[0].mxu0
    %v3901 = vpop.f32.mrb[0].mxu0
    %3902 = vdwg.mxu0
    %v3904 = vunpack.c.l.b16 %v3614
    %v3905 = vpack.c.b16 %v3677, %v3904
    %v3906 = vpack.c.b16 %v3679, %v3678
    %v3907 = vpack.c.b16 %v3681, %v3680
    %v3908 = vpack.c.b16 %v3683, %v3682
    %v3909 = vpack.c.b16 %v3685, %v3684
    %v3910 = vpack.c.b16 %v3687, %v3686
    %v3911 = vpack.c.b16 %v3689, %v3688
    %v3912 = vpack.c.b16 %v3691, %v3690
    %v3913 = vpack.c.b16 %v3693, %v3692
    %v3914 = vpack.c.b16 %v3695, %v3694
    %v3915 = vpack.c.b16 %v3697, %v3696
    %v3916 = vpack.c.b16 %v3699, %v3698
    %v3917 = vpack.c.b16 %v3700, %v3700
    %v3922 = vunpack.c.l.b16 %v3643
    %v3923 = vunpack.c.l.b16 %v3644
    %v3924 = vunpack.c.l.b16 %v3645
    %v3925 = vunpack.c.l.b16 %v3646
    %v3926 = vpack.c.b16 %v3923, %v3922
    %v3927 = vpack.c.b16 %v3925, %v3924
    %v3931 = vsel %vm3727, %v3905, 0
    %v3934 = vsel %vm3727, %v3906, 0
    %v3937 = vsel %vm3727, %v3907, 0
    %v3940 = vsel %vm3727, %v3908, 0
    %v3943 = vsel %vm3727, %v3909, 0
    %v3946 = vsel %vm3727, %v3910, 0
    %v3949 = vsel %vm3727, %v3911, 0
    %v3952 = vsel %vm3727, %v3912, 0
    %v3955 = vsel %vm3727, %v3913, 0
    %v3958 = vsel %vm3727, %v3914, 0
    %v3961 = vsel %vm3727, %v3915, 0
    %v3964 = vsel %vm3727, %v3916, 0
    %v3967 = vsel %vm3727, %v3917, 0
    %3969 = vmatprep.subr.bf16.mxu0 0
    %3970 = vmatpush1.bf16.msra.mxu0 %v3926
    %3971 = vmatprep.subr.bf16.mxu0 0
    %3972 = vmatpush1.bf16.msra.mxu0 %v3927
    %3973 = vmatprep.subr.bf16.mxu0 0
    %3974 = vmatpush1.bf16.msra.mxu0 0
    %3975 = vmatprep.subr.bf16.mxu0 0
    %3976 = vmatpush1.bf16.msra.mxu0 0
    %3977 = vmatprep.subr.bf16.mxu0 0
    %3978 = vmatpush1.bf16.msra.mxu0 0
    %3979 = vmatprep.subr.bf16.mxu0 0
    %3980 = vmatpush1.bf16.msra.mxu0 0
    %3981 = vmatprep.subr.bf16.mxu0 0
    %3982 = vmatpush1.bf16.msra.mxu0 0
    %3983 = vmatprep.subr.bf16.mxu0 0
    %3984 = vmatpush1.bf16.msra.mxu0 0
    %3985 = vmatprep.subr.bf16.mxu0 0
    %3986 = vmatpush1.bf16.msra.mxu0 0
    %3987 = vmatprep.subr.bf16.mxu0 0
    %3988 = vmatpush1.bf16.msra.mxu0 0
    %3989 = vmatprep.subr.bf16.mxu0 0
    %3990 = vmatpush1.bf16.msra.mxu0 0
    %3991 = vmatprep.subr.bf16.mxu0 0
    %3992 = vmatpush1.bf16.msra.mxu0 0
    %3993 = vmatprep.subr.bf16.mxu0 0
    %3994 = vmatpush1.bf16.msra.mxu0 0
    %3995 = vmatprep.subr.bf16.mxu0 0
    %3996 = vmatpush1.bf16.msra.mxu0 0
    %3997 = vmatprep.subr.bf16.mxu0 0
    %3998 = vmatpush1.bf16.msra.mxu0 0
    %3999 = vmatprep.subr.bf16.mxu0 0
    %4000 = vmatpush1.bf16.msra.mxu0 0
    %4001 = vmatprep.mubr.bf16.mxu0 0
    %4002 = vmatmul.mubr.bf16.gmra.mrb[0].mxu0 %v3931
    %v4003 = vpop.f32.mrb[0].mxu0
    %v4004 = vadd.f32 %v3802, %v4003
    %v4005 = vpop.f32.mrb[0].mxu0
    %v4006 = vpop.f32.mrb[0].mxu0
    %v4007 = vadd.f32 %v3805, %v4006
    %v4008 = vpop.f32.mrb[0].mxu0
    %4009 = vmatprep.mubr.bf16.mxu0 0
    %4010 = vmatmul.mubr.bf16.gmra.mrb[0].mxu0 %v3934
    %v4011 = vpop.f32.mrb[0].mxu0
    %v4012 = vadd.f32 %v3810, %v4011
    %v4013 = vpop.f32.mrb[0].mxu0
    %v4014 = vpop.f32.mrb[0].mxu0
    %v4015 = vadd.f32 %v3813, %v4014
    %v4016 = vpop.f32.mrb[0].mxu0
    %4017 = vmatprep.mubr.bf16.mxu0 0
    %4018 = vmatmul.mubr.bf16.gmra.mrb[0].mxu0 %v3937
    %v4019 = vpop.f32.mrb[0].mxu0
    %v4020 = vadd.f32 %v3818, %v4019
    %v4021 = vpop.f32.mrb[0].mxu0
    %v4022 = vpop.f32.mrb[0].mxu0
    %v4023 = vadd.f32 %v3821, %v4022
    %v4024 = vpop.f32.mrb[0].mxu0
    %4025 = vmatprep.mubr.bf16.mxu0 0
    %4026 = vmatmul.mubr.bf16.gmra.mrb[0].mxu0 %v3940
    %v4027 = vpop.f32.mrb[0].mxu0
    %v4028 = vadd.f32 %v3826, %v4027
    %v4029 = vpop.f32.mrb[0].mxu0
    %v4030 = vpop.f32.mrb[0].mxu0
    %v4031 = vadd.f32 %v3829, %v4030
    %v4032 = vpop.f32.mrb[0].mxu0
    %4033 = vmatprep.mubr.bf16.mxu0 0
    %4034 = vmatmul.mubr.bf16.gmra.mrb[0].mxu0 %v3943
    %v4035 = vpop.f32.mrb[0].mxu0
    %v4036 = vadd.f32 %v3834, %v4035
    %v4037 = vpop.f32.mrb[0].mxu0
    %v4038 = vpop.f32.mrb[0].mxu0
    %v4039 = vadd.f32 %v3837, %v4038
    %v4040 = vpop.f32.mrb[0].mxu0
    %4041 = vmatprep.mubr.bf16.mxu0 0
    %4042 = vmatmul.mubr.bf16.gmra.mrb[0].mxu0 %v3946
    %v4043 = vpop.f32.mrb[0].mxu0
    %v4044 = vadd.f32 %v3842, %v4043
    %v4045 = vpop.f32.mrb[0].mxu0
    %v4046 = vpop.f32.mrb[0].mxu0
    %v4047 = vadd.f32 %v3845, %v4046
    %v4048 = vpop.f32.mrb[0].mxu0
    %4049 = vmatprep.mubr.bf16.mxu0 0
    %4050 = vmatmul.mubr.bf16.gmra.mrb[0].mxu0 %v3949
    %v4051 = vpop.f32.mrb[0].mxu0
    %v4052 = vadd.f32 %v3850, %v4051
    %v4053 = vpop.f32.mrb[0].mxu0
    %v4054 = vpop.f32.mrb[0].mxu0
    %v4055 = vadd.f32 %v3853, %v4054
    %v4056 = vpop.f32.mrb[0].mxu0
    %4057 = vmatprep.mubr.bf16.mxu0 0
    %4058 = vmatmul.mubr.bf16.gmra.mrb[0].mxu0 %v3952
    %v4059 = vpop.f32.mrb[0].mxu0
    %v4060 = vadd.f32 %v3858, %v4059
    %v4061 = vpop.f32.mrb[0].mxu0
    %v4062 = vpop.f32.mrb[0].mxu0
    %v4063 = vadd.f32 %v3861, %v4062
    %v4064 = vpop.f32.mrb[0].mxu0
    %4065 = vmatprep.mubr.bf16.mxu0 0
    %4066 = vmatmul.mubr.bf16.gmra.mrb[0].mxu0 %v3955
    %v4067 = vpop.f32.mrb[0].mxu0
    %v4068 = vadd.f32 %v3866, %v4067
    %v4069 = vpop.f32.mrb[0].mxu0
    %v4070 = vpop.f32.mrb[0].mxu0
    %v4071 = vadd.f32 %v3869, %v4070
    %v4072 = vpop.f32.mrb[0].mxu0
    %4073 = vmatprep.mubr.bf16.mxu0 0
    %4074 = vmatmul.mubr.bf16.gmra.mrb[0].mxu0 %v3958
    %v4075 = vpop.f32.mrb[0].mxu0
    %v4076 = vadd.f32 %v3874, %v4075
    %v4077 = vpop.f32.mrb[0].mxu0
    %v4078 = vpop.f32.mrb[0].mxu0
    %v4079 = vadd.f32 %v3877, %v4078
    %v4080 = vpop.f32.mrb[0].mxu0
    %4081 = vmatprep.mubr.bf16.mxu0 0
    %4082 = vmatmul.mubr.bf16.gmra.mrb[0].mxu0 %v3961
    %v4083 = vpop.f32.mrb[0].mxu0
    %v4084 = vadd.f32 %v3882, %v4083
    %v4085 = vpop.f32.mrb[0].mxu0
    %v4086 = vpop.f32.mrb[0].mxu0
    %v4087 = vadd.f32 %v3885, %v4086
    %v4088 = vpop.f32.mrb[0].mxu0
    %4089 = vmatprep.mubr.bf16.mxu0 0
    %4090 = vmatmul.mubr.bf16.gmra.mrb[0].mxu0 %v3964
    %v4091 = vpop.f32.mrb[0].mxu0
    %v4092 = vadd.f32 %v3890, %v4091
    %v4093 = vpop.f32.mrb[0].mxu0
    %v4094 = vpop.f32.mrb[0].mxu0
    %v4095 = vadd.f32 %v3893, %v4094
    %v4096 = vpop.f32.mrb[0].mxu0
    %4097 = vmatprep.mubr.bf16.mxu0 0
    %4098 = vmatmul.mubr.bf16.gmra.mrb[0].mxu0 %v3967
    %v4099 = vpop.f32.mrb[0].mxu0
    %v4100 = vadd.f32 %v3898, %v4099
    %v4101 = vpop.f32.mrb[0].mxu0
    %v4102 = vpop.f32.mrb[0].mxu0
    %v4103 = vpop.f32.mrb[0].mxu0
    %4104 = vdwg.mxu0
    %s4105 = scalar_lea.vmem %s3, 32
    %v4106 = vld [vmem:[%s4105] sm:$0xf]
    %v4107 = vld [vmem:[%s4105 + $0x4] sm:$0xf]
    %v4108 = vld [vmem:[%s4105 + $0x8] sm:$0xf]
    %v4109 = vld [vmem:[%s4105 + $0xc] sm:$0xf]
    %v4111 = vunpack.c.l.b16 %v3640
    %v4112 = vpack.c.b16 %v3701, %v3700
    %v4113 = vpack.c.b16 %v4111, %v4111
    %v4118 = vunpack.c.l.b16 %v4106
    %v4119 = vunpack.c.l.b16 %v4107
    %v4120 = vunpack.c.l.b16 %v4108
    %v4121 = vunpack.c.l.b16 %v4109
    %v4122 = vpack.c.b16 %v4119, %v4118
    %v4123 = vpack.c.b16 %v4121, %v4120
    %v4127 = vsel %vm3727, %v4112, 0
    %v4130 = vsel %vm3727, %v4113, 0
    %4132 = vmatprep.subr.bf16.mxu0 0
    %4133 = vmatpush1.bf16.msra.mxu0 %v4122
    %4134 = vmatprep.subr.bf16.mxu0 0
    %4135 = vmatpush1.bf16.msra.mxu0 %v4123
    %4136 = vmatprep.subr.bf16.mxu0 0
    %4137 = vmatpush1.bf16.msra.mxu0 0
    %4138 = vmatprep.subr.bf16.mxu0 0
    %4139 = vmatpush1.bf16.msra.mxu0 0
    %4140 = vmatprep.subr.bf16.mxu0 0
    %4141 = vmatpush1.bf16.msra.mxu0 0
    %4142 = vmatprep.subr.bf16.mxu0 0
    %4143 = vmatpush1.bf16.msra.mxu0 0
    %4144 = vmatprep.subr.bf16.mxu0 0
    %4145 = vmatpush1.bf16.msra.mxu0 0
    %4146 = vmatprep.subr.bf16.mxu0 0
    %4147 = vmatpush1.bf16.msra.mxu0 0
    %4148 = vmatprep.subr.bf16.mxu0 0
    %4149 = vmatpush1.bf16.msra.mxu0 0
    %4150 = vmatprep.subr.bf16.mxu0 0
    %4151 = vmatpush1.bf16.msra.mxu0 0
    %4152 = vmatprep.subr.bf16.mxu0 0
    %4153 = vmatpush1.bf16.msra.mxu0 0
    %4154 = vmatprep.subr.bf16.mxu0 0
    %4155 = vmatpush1.bf16.msra.mxu0 0
    %4156 = vmatprep.subr.bf16.mxu0 0
    %4157 = vmatpush1.bf16.msra.mxu0 0
    %4158 = vmatprep.subr.bf16.mxu0 0
    %4159 = vmatpush1.bf16.msra.mxu0 0
    %4160 = vmatprep.subr.bf16.mxu0 0
    %4161 = vmatpush1.bf16.msra.mxu0 0
    %4162 = vmatprep.subr.bf16.mxu0 0
    %4163 = vmatpush1.bf16.msra.mxu0 0
    %4164 = vmatprep.mubr.bf16.mxu0 0
    %4165 = vmatmul.mubr.bf16.gmra.mrb[0].mxu0 %v3934
    %v4166 = vpop.f32.mrb[0].mxu0
    %v4167 = vadd.f32 0.0, %v4166
    %v4168 = vpop.f32.mrb[0].mxu0
    %v4169 = vpop.f32.mrb[0].mxu0
    %v4170 = vadd.f32 0.0, %v4169
    %v4171 = vpop.f32.mrb[0].mxu0
    %4172 = vmatprep.mubr.bf16.mxu0 0
    %4173 = vmatmul.mubr.bf16.gmra.mrb[0].mxu0 %v3937
    %v4174 = vpop.f32.mrb[0].mxu0
    %v4175 = vadd.f32 0.0, %v4174
    %v4176 = vpop.f32.mrb[0].mxu0
    %v4177 = vpop.f32.mrb[0].mxu0
    %v4178 = vadd.f32 0.0, %v4177
    %v4179 = vpop.f32.mrb[0].mxu0
    %4180 = vmatprep.mubr.bf16.mxu0 0
    %4181 = vmatmul.mubr.bf16.gmra.mrb[0].mxu0 %v3940
    %v4182 = vpop.f32.mrb[0].mxu0
    %v4183 = vadd.f32 0.0, %v4182
    %v4184 = vpop.f32.mrb[0].mxu0
    %v4185 = vpop.f32.mrb[0].mxu0
    %v4186 = vadd.f32 0.0, %v4185
    %v4187 = vpop.f32.mrb[0].mxu0
    %4188 = vmatprep.mubr.bf16.mxu0 0
    %4189 = vmatmul.mubr.bf16.gmra.mrb[0].mxu0 %v3943
    %v4190 = vpop.f32.mrb[0].mxu0
    %v4191 = vadd.f32 0.0, %v4190
    %v4192 = vpop.f32.mrb[0].mxu0
    %v4193 = vpop.f32.mrb[0].mxu0
    %v4194 = vadd.f32 0.0, %v4193
    %v4195 = vpop.f32.mrb[0].mxu0
    %4196 = vmatprep.mubr.bf16.mxu0 0
    %4197 = vmatmul.mubr.bf16.gmra.mrb[0].mxu0 %v3946
    %v4198 = vpop.f32.mrb[0].mxu0
    %v4199 = vadd.f32 0.0, %v4198
    %v4200 = vpop.f32.mrb[0].mxu0
    %v4201 = vpop.f32.mrb[0].mxu0
    %v4202 = vadd.f32 0.0, %v4201
    %v4203 = vpop.f32.mrb[0].mxu0
    %4204 = vmatprep.mubr.bf16.mxu0 0
    %4205 = vmatmul.mubr.bf16.gmra.mrb[0].mxu0 %v3949
    %v4206 = vpop.f32.mrb[0].mxu0
    %v4207 = vadd.f32 0.0, %v4206
    %v4208 = vpop.f32.mrb[0].mxu0
    %v4209 = vpop.f32.mrb[0].mxu0
    %v4210 = vadd.f32 0.0, %v4209
    %v4211 = vpop.f32.mrb[0].mxu0
    %4212 = vmatprep.mubr.bf16.mxu0 0
    %4213 = vmatmul.mubr.bf16.gmra.mrb[0].mxu0 %v3952
    %v4214 = vpop.f32.mrb[0].mxu0
    %v4215 = vadd.f32 0.0, %v4214
    %v4216 = vpop.f32.mrb[0].mxu0
    %v4217 = vpop.f32.mrb[0].mxu0
    %v4218 = vadd.f32 0.0, %v4217
    %v4219 = vpop.f32.mrb[0].mxu0
    %4220 = vmatprep.mubr.bf16.mxu0 0
    %4221 = vmatmul.mubr.bf16.gmra.mrb[0].mxu0 %v3955
    %v4222 = vpop.f32.mrb[0].mxu0
    %v4223 = vadd.f32 0.0, %v4222
    %v4224 = vpop.f32.mrb[0].mxu0
    %v4225 = vpop.f32.mrb[0].mxu0
    %v4226 = vadd.f32 0.0, %v4225
    %v4227 = vpop.f32.mrb[0].mxu0
    %4228 = vmatprep.mubr.bf16.mxu0 0
    %4229 = vmatmul.mubr.bf16.gmra.mrb[0].mxu0 %v3958
    %v4230 = vpop.f32.mrb[0].mxu0
    %v4231 = vadd.f32 0.0, %v4230
    %v4232 = vpop.f32.mrb[0].mxu0
    %v4233 = vpop.f32.mrb[0].mxu0
    %v4234 = vadd.f32 0.0, %v4233
    %v4235 = vpop.f32.mrb[0].mxu0
    %4236 = vmatprep.mubr.bf16.mxu0 0
    %4237 = vmatmul.mubr.bf16.gmra.mrb[0].mxu0 %v3961
    %v4238 = vpop.f32.mrb[0].mxu0
    %v4239 = vadd.f32 0.0, %v4238
    %v4240 = vpop.f32.mrb[0].mxu0
    %v4241 = vpop.f32.mrb[0].mxu0
    %v4242 = vadd.f32 0.0, %v4241
    %v4243 = vpop.f32.mrb[0].mxu0
    %4244 = vmatprep.mubr.bf16.mxu0 0
    %4245 = vmatmul.mubr.bf16.gmra.mrb[0].mxu0 %v3964
    %v4246 = vpop.f32.mrb[0].mxu0
    %v4247 = vadd.f32 0.0, %v4246
    %v4248 = vpop.f32.mrb[0].mxu0
    %v4249 = vpop.f32.mrb[0].mxu0
    %v4250 = vadd.f32 0.0, %v4249
    %v4251 = vpop.f32.mrb[0].mxu0
    %4252 = vmatprep.mubr.bf16.mxu0 0
    %4253 = vmatmul.mubr.bf16.gmra.mrb[0].mxu0 %v4127
    %v4254 = vpop.f32.mrb[0].mxu0
    %v4255 = vadd.f32 0.0, %v4254
    %v4256 = vpop.f32.mrb[0].mxu0
    %v4257 = vpop.f32.mrb[0].mxu0
    %v4258 = vadd.f32 0.0, %v4257
    %v4259 = vpop.f32.mrb[0].mxu0
    %4260 = vmatprep.mubr.bf16.mxu0 0
    %4261 = vmatmul.mubr.bf16.gmra.mrb[0].mxu0 %v4130
    %v4262 = vpop.f32.mrb[0].mxu0
    %v4263 = vadd.f32 0.0, %v4262
    %v4264 = vpop.f32.mrb[0].mxu0
    %v4265 = vpop.f32.mrb[0].mxu0
    %v4266 = vpop.f32.mrb[0].mxu0
    %4267 = vdwg.mxu0
    %v4268 = vadd.f32 %v4004, %v4167
    %v4269 = vadd.f32 %v4007, %v4170
    %v4270 = vadd.f32 %v4012, %v4175
    %v4271 = vadd.f32 %v4015, %v4178
    %v4272 = vadd.f32 %v4020, %v4183
    %v4273 = vadd.f32 %v4023, %v4186
    %v4274 = vadd.f32 %v4028, %v4191
    %v4275 = vadd.f32 %v4031, %v4194
    %v4276 = vadd.f32 %v4036, %v4199
    %v4277 = vadd.f32 %v4039, %v4202
    %v4278 = vadd.f32 %v4044, %v4207
    %v4279 = vadd.f32 %v4047, %v4210
    %v4280 = vadd.f32 %v4052, %v4215
    %v4281 = vadd.f32 %v4055, %v4218
    %v4282 = vadd.f32 %v4060, %v4223
    %v4283 = vadd.f32 %v4063, %v4226
    %v4284 = vadd.f32 %v4068, %v4231
    %v4285 = vadd.f32 %v4071, %v4234
    %v4286 = vadd.f32 %v4076, %v4239
    %v4287 = vadd.f32 %v4079, %v4242
    %v4288 = vadd.f32 %v4084, %v4247
    %v4289 = vadd.f32 %v4087, %v4250
    %v4290 = vadd.f32 %v4092, %v4255
    %v4291 = vadd.f32 %v4095, %v4258
    %v4292 = vadd.f32 %v4100, %v4263
    %s4293 = scalar_lea.vmem %s3, 48
    %v4294 = vld [vmem:[%s4293] sm:$0xf]
    %v4295 = vld [vmem:[%s4293 + $0x4] sm:$0xf]
    %v4296 = vld [vmem:[%s4293 + $0x8] sm:$0xf]
    %v4297 = vld [vmem:[%s4293 + $0xc] sm:$0xf]
    %v4299 = vunpack.c.l.b16 %v3641
    %v4300 = vpack.c.b16 %v4111, %v3701
    %v4301 = vpack.c.b16 %v4299, %v4299
    %v4306 = vunpack.c.l.b16 %v4294
    %v4307 = vunpack.c.l.b16 %v4295
    %v4308 = vunpack.c.l.b16 %v4296
    %v4309 = vunpack.c.l.b16 %v4297
    %v4310 = vpack.c.b16 %v4307, %v4306
    %v4311 = vpack.c.b16 %v4309, %v4308
    %v4315 = vsel %vm3727, %v4300, 0
    %v4318 = vsel %vm3727, %v4301, 0
    %4320 = vmatprep.subr.bf16.mxu0 0
    %4321 = vmatpush1.bf16.msra.mxu0 %v4310
    %4322 = vmatprep.subr.bf16.mxu0 0
    %4323 = vmatpush1.bf16.msra.mxu0 %v4311
    %4324 = vmatprep.subr.bf16.mxu0 0
    %4325 = vmatpush1.bf16.msra.mxu0 0
    %4326 = vmatprep.subr.bf16.mxu0 0
    %4327 = vmatpush1.bf16.msra.mxu0 0
    %4328 = vmatprep.subr.bf16.mxu0 0
    %4329 = vmatpush1.bf16.msra.mxu0 0
    %4330 = vmatprep.subr.bf16.mxu0 0
    %4331 = vmatpush1.bf16.msra.mxu0 0
    %4332 = vmatprep.subr.bf16.mxu0 0
    %4333 = vmatpush1.bf16.msra.mxu0 0
    %4334 = vmatprep.subr.bf16.mxu0 0
    %4335 = vmatpush1.bf16.msra.mxu0 0
    %4336 = vmatprep.subr.bf16.mxu0 0
    %4337 = vmatpush1.bf16.msra.mxu0 0
    %4338 = vmatprep.subr.bf16.mxu0 0
    %4339 = vmatpush1.bf16.msra.mxu0 0
    %4340 = vmatprep.subr.bf16.mxu0 0
    %4341 = vmatpush1.bf16.msra.mxu0 0
    %4342 = vmatprep.subr.bf16.mxu0 0
    %4343 = vmatpush1.bf16.msra.mxu0 0
    %4344 = vmatprep.subr.bf16.mxu0 0
    %4345 = vmatpush1.bf16.msra.mxu0 0
    %4346 = vmatprep.subr.bf16.mxu0 0
    %4347 = vmatpush1.bf16.msra.mxu0 0
    %4348 = vmatprep.subr.bf16.mxu0 0
    %4349 = vmatpush1.bf16.msra.mxu0 0
    %4350 = vmatprep.subr.bf16.mxu0 0
    %4351 = vmatpush1.bf16.msra.mxu0 0
    %4352 = vmatprep.mubr.bf16.mxu0 0
    %4353 = vmatmul.mubr.bf16.gmra.mrb[0].mxu0 %v3732
    %v4354 = vpop.f32.mrb[0].mxu0
    %v4355 = vadd.f32 0.0, %v4354
    %v4356 = vpop.f32.mrb[0].mxu0
    %v4357 = vpop.f32.mrb[0].mxu0
    %v4358 = vadd.f32 0.0, %v4357
    %v4359 = vpop.f32.mrb[0].mxu0
    %4360 = vmatprep.mubr.bf16.mxu0 0
    %4361 = vmatmul.mubr.bf16.gmra.mrb[0].mxu0 %v3735
    %v4362 = vpop.f32.mrb[0].mxu0
    %v4363 = vadd.f32 0.0, %v4362
    %v4364 = vpop.f32.mrb[0].mxu0
    %v4365 = vpop.f32.mrb[0].mxu0
    %v4366 = vadd.f32 0.0, %v4365
    %v4367 = vpop.f32.mrb[0].mxu0
    %4368 = vmatprep.mubr.bf16.mxu0 0
    %4369 = vmatmul.mubr.bf16.gmra.mrb[0].mxu0 %v3738
    %v4370 = vpop.f32.mrb[0].mxu0
    %v4371 = vadd.f32 0.0, %v4370
    %v4372 = vpop.f32.mrb[0].mxu0
    %v4373 = vpop.f32.mrb[0].mxu0
    %v4374 = vadd.f32 0.0, %v4373
    %v4375 = vpop.f32.mrb[0].mxu0
    %4376 = vmatprep.mubr.bf16.mxu0 0
    %4377 = vmatmul.mubr.bf16.gmra.mrb[0].mxu0 %v3741
    %v4378 = vpop.f32.mrb[0].mxu0
    %v4379 = vadd.f32 0.0, %v4378
    %v4380 = vpop.f32.mrb[0].mxu0
    %v4381 = vpop.f32.mrb[0].mxu0
    %v4382 = vadd.f32 0.0, %v4381
    %v4383 = vpop.f32.mrb[0].mxu0
    %4384 = vmatprep.mubr.bf16.mxu0 0
    %4385 = vmatmul.mubr.bf16.gmra.mrb[0].mxu0 %v3744
    %v4386 = vpop.f32.mrb[0].mxu0
    %v4387 = vadd.f32 0.0, %v4386
    %v4388 = vpop.f32.mrb[0].mxu0
    %v4389 = vpop.f32.mrb[0].mxu0
    %v4390 = vadd.f32 0.0, %v4389
    %v4391 = vpop.f32.mrb[0].mxu0
    %4392 = vmatprep.mubr.bf16.mxu0 0
    %4393 = vmatmul.mubr.bf16.gmra.mrb[0].mxu0 %v3747
    %v4394 = vpop.f32.mrb[0].mxu0
    %v4395 = vadd.f32 0.0, %v4394
    %v4396 = vpop.f32.mrb[0].mxu0
    %v4397 = vpop.f32.mrb[0].mxu0
    %v4398 = vadd.f32 0.0, %v4397
    %v4399 = vpop.f32.mrb[0].mxu0
    %4400 = vmatprep.mubr.bf16.mxu0 0
    %4401 = vmatmul.mubr.bf16.gmra.mrb[0].mxu0 %v3750
    %v4402 = vpop.f32.mrb[0].mxu0
    %v4403 = vadd.f32 0.0, %v4402
    %v4404 = vpop.f32.mrb[0].mxu0
    %v4405 = vpop.f32.mrb[0].mxu0
    %v4406 = vadd.f32 0.0, %v4405
    %v4407 = vpop.f32.mrb[0].mxu0
    %4408 = vmatprep.mubr.bf16.mxu0 0
    %4409 = vmatmul.mubr.bf16.gmra.mrb[0].mxu0 %v3753
    %v4410 = vpop.f32.mrb[0].mxu0
    %v4411 = vadd.f32 0.0, %v4410
    %v4412 = vpop.f32.mrb[0].mxu0
    %v4413 = vpop.f32.mrb[0].mxu0
    %v4414 = vadd.f32 0.0, %v4413
    %v4415 = vpop.f32.mrb[0].mxu0
    %4416 = vmatprep.mubr.bf16.mxu0 0
    %4417 = vmatmul.mubr.bf16.gmra.mrb[0].mxu0 %v3756
    %v4418 = vpop.f32.mrb[0].mxu0
    %v4419 = vadd.f32 0.0, %v4418
    %v4420 = vpop.f32.mrb[0].mxu0
    %v4421 = vpop.f32.mrb[0].mxu0
    %v4422 = vadd.f32 0.0, %v4421
    %v4423 = vpop.f32.mrb[0].mxu0
    %4424 = vmatprep.mubr.bf16.mxu0 0
    %4425 = vmatmul.mubr.bf16.gmra.mrb[0].mxu0 %v3759
    %v4426 = vpop.f32.mrb[0].mxu0
    %v4427 = vadd.f32 0.0, %v4426
    %v4428 = vpop.f32.mrb[0].mxu0
    %v4429 = vpop.f32.mrb[0].mxu0
    %v4430 = vadd.f32 0.0, %v4429
    %v4431 = vpop.f32.mrb[0].mxu0
    %4432 = vmatprep.mubr.bf16.mxu0 0
    %4433 = vmatmul.mubr.bf16.gmra.mrb[0].mxu0 %v3762
    %v4434 = vpop.f32.mrb[0].mxu0
    %v4435 = vadd.f32 0.0, %v4434
    %v4436 = vpop.f32.mrb[0].mxu0
    %v4437 = vpop.f32.mrb[0].mxu0
    %v4438 = vadd.f32 0.0, %v4437
    %v4439 = vpop.f32.mrb[0].mxu0
    %4440 = vmatprep.mubr.bf16.mxu0 0
    %4441 = vmatmul.mubr.bf16.gmra.mrb[0].mxu0 %v4315
    %v4442 = vpop.f32.mrb[0].mxu0
    %v4443 = vadd.f32 0.0, %v4442
    %v4444 = vpop.f32.mrb[0].mxu0
    %v4445 = vpop.f32.mrb[0].mxu0
    %v4446 = vadd.f32 0.0, %v4445
    %v4447 = vpop.f32.mrb[0].mxu0
    %4448 = vmatprep.mubr.bf16.mxu0 0
    %4449 = vmatmul.mubr.bf16.gmra.mrb[0].mxu0 %v4318
    %v4450 = vpop.f32.mrb[0].mxu0
    %v4451 = vadd.f32 0.0, %v4450
    %v4452 = vpop.f32.mrb[0].mxu0
    %v4453 = vpop.f32.mrb[0].mxu0
    %v4454 = vpop.f32.mrb[0].mxu0
    %4455 = vdwg.mxu0
    %v4456 = vadd.f32 %v4268, %v4355
    %v4457 = vadd.f32 %v4269, %v4358
    %v4458 = vadd.f32 %v4270, %v4363
    %v4459 = vadd.f32 %v4271, %v4366
    %v4460 = vadd.f32 %v4272, %v4371
    %v4461 = vadd.f32 %v4273, %v4374
    %v4462 = vadd.f32 %v4274, %v4379
    %v4463 = vadd.f32 %v4275, %v4382
    %v4464 = vadd.f32 %v4276, %v4387
    %v4465 = vadd.f32 %v4277, %v4390
    %v4466 = vadd.f32 %v4278, %v4395
    %v4467 = vadd.f32 %v4279, %v4398
    %v4468 = vadd.f32 %v4280, %v4403
    %v4469 = vadd.f32 %v4281, %v4406
    %v4470 = vadd.f32 %v4282, %v4411
    %v4471 = vadd.f32 %v4283, %v4414
    %v4472 = vadd.f32 %v4284, %v4419
    %v4473 = vadd.f32 %v4285, %v4422
    %v4474 = vadd.f32 %v4286, %v4427
    %v4475 = vadd.f32 %v4287, %v4430
    %v4476 = vadd.f32 %v4288, %v4435
    %v4477 = vadd.f32 %v4289, %v4438
    %v4478 = vadd.f32 %v4290, %v4443
    %v4479 = vadd.f32 %v4291, %v4446
    %v4480 = vadd.f32 %v4292, %v4451
    %s4481 = scalar_lea.vmem %s3, 64
    %v4482 = vld [vmem:[%s4481] sm:$0xf]
    %v4483 = vld [vmem:[%s4481 + $0x4] sm:$0xf]
    %v4484 = vld [vmem:[%s4481 + $0x8] sm:$0xf]
    %v4485 = vld [vmem:[%s4481 + $0xc] sm:$0xf]
    %v4487 = vunpack.c.l.b16 %v3642
    %v4488 = vpack.c.b16 %v4299, %v4111
    %v4489 = vpack.c.b16 %v4487, %v4487
    %v4494 = vunpack.c.l.b16 %v4482
    %v4495 = vunpack.c.l.b16 %v4483
    %v4496 = vunpack.c.l.b16 %v4484
    %v4497 = vunpack.c.l.b16 %v4485
    %v4498 = vpack.c.b16 %v4495, %v4494
    %v4499 = vpack.c.b16 %v4497, %v4496
    %v4503 = vsel %vm3727, %v4488, 0
    %v4506 = vsel %vm3727, %v4489, 0
    %4508 = vmatprep.subr.bf16.mxu0 0
    %4509 = vmatpush1.bf16.msra.mxu0 %v4498
    %4510 = vmatprep.subr.bf16.mxu0 0
    %4511 = vmatpush1.bf16.msra.mxu0 %v4499
    %4512 = vmatprep.subr.bf16.mxu0 0
    %4513 = vmatpush1.bf16.msra.mxu0 0
    %4514 = vmatprep.subr.bf16.mxu0 0
    %4515 = vmatpush1.bf16.msra.mxu0 0
    %4516 = vmatprep.subr.bf16.mxu0 0
    %4517 = vmatpush1.bf16.msra.mxu0 0
    %4518 = vmatprep.subr.bf16.mxu0 0
    %4519 = vmatpush1.bf16.msra.mxu0 0
    %4520 = vmatprep.subr.bf16.mxu0 0
    %4521 = vmatpush1.bf16.msra.mxu0 0
    %4522 = vmatprep.subr.bf16.mxu0 0
    %4523 = vmatpush1.bf16.msra.mxu0 0
    %4524 = vmatprep.subr.bf16.mxu0 0
    %4525 = vmatpush1.bf16.msra.mxu0 0
    %4526 = vmatprep.subr.bf16.mxu0 0
    %4527 = vmatpush1.bf16.msra.mxu0 0
    %4528 = vmatprep.subr.bf16.mxu0 0
    %4529 = vmatpush1.bf16.msra.mxu0 0
    %4530 = vmatprep.subr.bf16.mxu0 0
    %4531 = vmatpush1.bf16.msra.mxu0 0
    %4532 = vmatprep.subr.bf16.mxu0 0
    %4533 = vmatpush1.bf16.msra.mxu0 0
    %4534 = vmatprep.subr.bf16.mxu0 0
    %4535 = vmatpush1.bf16.msra.mxu0 0
    %4536 = vmatprep.subr.bf16.mxu0 0
    %4537 = vmatpush1.bf16.msra.mxu0 0
    %4538 = vmatprep.subr.bf16.mxu0 0
    %4539 = vmatpush1.bf16.msra.mxu0 0
    %4540 = vmatprep.mubr.bf16.mxu0 0
    %4541 = vmatmul.mubr.bf16.gmra.mrb[0].mxu0 %v3937
    %v4542 = vpop.f32.mrb[0].mxu0
    %v4543 = vadd.f32 0.0, %v4542
    %v4544 = vpop.f32.mrb[0].mxu0
    %v4545 = vpop.f32.mrb[0].mxu0
    %v4546 = vadd.f32 0.0, %v4545
    %v4547 = vpop.f32.mrb[0].mxu0
    %4548 = vmatprep.mubr.bf16.mxu0 0
    %4549 = vmatmul.mubr.bf16.gmra.mrb[0].mxu0 %v3940
    %v4550 = vpop.f32.mrb[0].mxu0
    %v4551 = vadd.f32 0.0, %v4550
    %v4552 = vpop.f32.mrb[0].mxu0
    %v4553 = vpop.f32.mrb[0].mxu0
    %v4554 = vadd.f32 0.0, %v4553
    %v4555 = vpop.f32.mrb[0].mxu0
    %4556 = vmatprep.mubr.bf16.mxu0 0
    %4557 = vmatmul.mubr.bf16.gmra.mrb[0].mxu0 %v3943
    %v4558 = vpop.f32.mrb[0].mxu0
    %v4559 = vadd.f32 0.0, %v4558
    %v4560 = vpop.f32.mrb[0].mxu0
    %v4561 = vpop.f32.mrb[0].mxu0
    %v4562 = vadd.f32 0.0, %v4561
    %v4563 = vpop.f32.mrb[0].mxu0
    %4564 = vmatprep.mubr.bf16.mxu0 0
    %4565 = vmatmul.mubr.bf16.gmra.mrb[0].mxu0 %v3946
    %v4566 = vpop.f32.mrb[0].mxu0
    %v4567 = vadd.f32 0.0, %v4566
    %v4568 = vpop.f32.mrb[0].mxu0
    %v4569 = vpop.f32.mrb[0].mxu0
    %v4570 = vadd.f32 0.0, %v4569
    %v4571 = vpop.f32.mrb[0].mxu0
    %4572 = vmatprep.mubr.bf16.mxu0 0
    %4573 = vmatmul.mubr.bf16.gmra.mrb[0].mxu0 %v3949
    %v4574 = vpop.f32.mrb[0].mxu0
    %v4575 = vadd.f32 0.0, %v4574
    %v4576 = vpop.f32.mrb[0].mxu0
    %v4577 = vpop.f32.mrb[0].mxu0
    %v4578 = vadd.f32 0.0, %v4577
    %v4579 = vpop.f32.mrb[0].mxu0
    %4580 = vmatprep.mubr.bf16.mxu0 0
    %4581 = vmatmul.mubr.bf16.gmra.mrb[0].mxu0 %v3952
    %v4582 = vpop.f32.mrb[0].mxu0
    %v4583 = vadd.f32 0.0, %v4582
    %v4584 = vpop.f32.mrb[0].mxu0
    %v4585 = vpop.f32.mrb[0].mxu0
    %v4586 = vadd.f32 0.0, %v4585
    %v4587 = vpop.f32.mrb[0].mxu0
    %4588 = vmatprep.mubr.bf16.mxu0 0
    %4589 = vmatmul.mubr.bf16.gmra.mrb[0].mxu0 %v3955
    %v4590 = vpop.f32.mrb[0].mxu0
    %v4591 = vadd.f32 0.0, %v4590
    %v4592 = vpop.f32.mrb[0].mxu0
    %v4593 = vpop.f32.mrb[0].mxu0
    %v4594 = vadd.f32 0.0, %v4593
    %v4595 = vpop.f32.mrb[0].mxu0
    %4596 = vmatprep.mubr.bf16.mxu0 0
    %4597 = vmatmul.mubr.bf16.gmra.mrb[0].mxu0 %v3958
    %v4598 = vpop.f32.mrb[0].mxu0
    %v4599 = vadd.f32 0.0, %v4598
    %v4600 = vpop.f32.mrb[0].mxu0
    %v4601 = vpop.f32.mrb[0].mxu0
    %v4602 = vadd.f32 0.0, %v4601
    %v4603 = vpop.f32.mrb[0].mxu0
    %4604 = vmatprep.mubr.bf16.mxu0 0
    %4605 = vmatmul.mubr.bf16.gmra.mrb[0].mxu0 %v3961
    %v4606 = vpop.f32.mrb[0].mxu0
    %v4607 = vadd.f32 0.0, %v4606
    %v4608 = vpop.f32.mrb[0].mxu0
    %v4609 = vpop.f32.mrb[0].mxu0
    %v4610 = vadd.f32 0.0, %v4609
    %v4611 = vpop.f32.mrb[0].mxu0
    %4612 = vmatprep.mubr.bf16.mxu0 0
    %4613 = vmatmul.mubr.bf16.gmra.mrb[0].mxu0 %v3964
    %v4614 = vpop.f32.mrb[0].mxu0
    %v4615 = vadd.f32 0.0, %v4614
    %v4616 = vpop.f32.mrb[0].mxu0
    %v4617 = vpop.f32.mrb[0].mxu0
    %v4618 = vadd.f32 0.0, %v4617
    %v4619 = vpop.f32.mrb[0].mxu0
    %4620 = vmatprep.mubr.bf16.mxu0 0
    %4621 = vmatmul.mubr.bf16.gmra.mrb[0].mxu0 %v4127
    %v4622 = vpop.f32.mrb[0].mxu0
    %v4623 = vadd.f32 0.0, %v4622
    %v4624 = vpop.f32.mrb[0].mxu0
    %v4625 = vpop.f32.mrb[0].mxu0
    %v4626 = vadd.f32 0.0, %v4625
    %v4627 = vpop.f32.mrb[0].mxu0
    %4628 = vmatprep.mubr.bf16.mxu0 0
    %4629 = vmatmul.mubr.bf16.gmra.mrb[0].mxu0 %v4503
    %v4630 = vpop.f32.mrb[0].mxu0
    %v4631 = vadd.f32 0.0, %v4630
    %v4632 = vpop.f32.mrb[0].mxu0
    %v4633 = vpop.f32.mrb[0].mxu0
    %v4634 = vadd.f32 0.0, %v4633
    %v4635 = vpop.f32.mrb[0].mxu0
    %4636 = vmatprep.mubr.bf16.mxu0 0
    %4637 = vmatmul.mubr.bf16.gmra.mrb[0].mxu0 %v4506
    %v4638 = vpop.f32.mrb[0].mxu0
    %v4639 = vadd.f32 0.0, %v4638
    %v4640 = vpop.f32.mrb[0].mxu0
    %v4641 = vpop.f32.mrb[0].mxu0
    %v4642 = vpop.f32.mrb[0].mxu0
    %4643 = vdwg.mxu0
    %v4644 = vadd.f32 %v4456, %v4543
    %v4645 = vadd.f32 %v4457, %v4546
    %v4646 = vadd.f32 %v4458, %v4551
    %v4647 = vadd.f32 %v4459, %v4554
    %v4648 = vadd.f32 %v4460, %v4559
    %v4649 = vadd.f32 %v4461, %v4562
    %v4650 = vadd.f32 %v4462, %v4567
    %v4651 = vadd.f32 %v4463, %v4570
    %v4652 = vadd.f32 %v4464, %v4575
    %v4653 = vadd.f32 %v4465, %v4578
    %v4654 = vadd.f32 %v4466, %v4583
    %v4655 = vadd.f32 %v4467, %v4586
    %v4656 = vadd.f32 %v4468, %v4591
    %v4657 = vadd.f32 %v4469, %v4594
    %v4658 = vadd.f32 %v4470, %v4599
    %v4659 = vadd.f32 %v4471, %v4602
    %v4660 = vadd.f32 %v4472, %v4607
    %v4661 = vadd.f32 %v4473, %v4610
    %v4662 = vadd.f32 %v4474, %v4615
    %v4663 = vadd.f32 %v4475, %v4618
    %v4664 = vadd.f32 %v4476, %v4623
    %v4665 = vadd.f32 %v4477, %v4626
    %v4666 = vadd.f32 %v4478, %v4631
    %v4667 = vadd.f32 %v4479, %v4634
    %v4668 = vadd.f32 %v4480, %v4639
    %v4669 = vld [vmem:[%s4] sm:$0x1]
    %v4671 = vlaneseq
    %v4672 = vshrl.u32 %v4671, 7
    %v4673 = vsub.s32 0, %v4672
    %v4674 = vrot.slane %v4669, %v4673
    %v4676 = vadd.f32 %v4644, %v4674
    %v4677 = vadd.f32 %v4645, %v4674
    %v4678 = vadd.f32 %v4646, %v4674
    %v4679 = vadd.f32 %v4647, %v4674
    %v4680 = vadd.f32 %v4648, %v4674
    %v4681 = vadd.f32 %v4649, %v4674
    %v4682 = vadd.f32 %v4650, %v4674
    %v4683 = vadd.f32 %v4651, %v4674
    %v4684 = vadd.f32 %v4652, %v4674
    %v4685 = vadd.f32 %v4653, %v4674
    %v4686 = vadd.f32 %v4654, %v4674
    %v4687 = vadd.f32 %v4655, %v4674
    %v4688 = vadd.f32 %v4656, %v4674
    %v4689 = vadd.f32 %v4657, %v4674
    %v4690 = vadd.f32 %v4658, %v4674
    %v4691 = vadd.f32 %v4659, %v4674
    %v4692 = vadd.f32 %v4660, %v4674
    %v4693 = vadd.f32 %v4661, %v4674
    %v4694 = vadd.f32 %v4662, %v4674
    %v4695 = vadd.f32 %v4663, %v4674
    %v4696 = vadd.f32 %v4664, %v4674
    %v4697 = vadd.f32 %v4665, %v4674
    %v4698 = vadd.f32 %v4666, %v4674
    %v4699 = vadd.f32 %v4667, %v4674
    %v4700 = vadd.f32 %v4668, %v4674
    %vm4701 = vcmp.ge.f32.partialorder %v4676, 0.0
    %vm4702 = vcmp.ge.f32.partialorder %v4677, 0.0
    %vm4703 = vcmp.ge.f32.partialorder %v4678, 0.0
    %vm4704 = vcmp.ge.f32.partialorder %v4679, 0.0
    %vm4705 = vcmp.ge.f32.partialorder %v4680, 0.0
    %vm4706 = vcmp.ge.f32.partialorder %v4681, 0.0
    %vm4707 = vcmp.ge.f32.partialorder %v4682, 0.0
    %vm4708 = vcmp.ge.f32.partialorder %v4683, 0.0
    %vm4709 = vcmp.ge.f32.partialorder %v4684, 0.0
    %vm4710 = vcmp.ge.f32.partialorder %v4685, 0.0
    %vm4711 = vcmp.ge.f32.partialorder %v4686, 0.0
    %vm4712 = vcmp.ge.f32.partialorder %v4687, 0.0
    %vm4713 = vcmp.ge.f32.partialorder %v4688, 0.0
    %vm4714 = vcmp.ge.f32.partialorder %v4689, 0.0
    %vm4715 = vcmp.ge.f32.partialorder %v4690, 0.0
    %vm4716 = vcmp.ge.f32.partialorder %v4691, 0.0
    %vm4717 = vcmp.ge.f32.partialorder %v4692, 0.0
    %vm4718 = vcmp.ge.f32.partialorder %v4693, 0.0
    %vm4719 = vcmp.ge.f32.partialorder %v4694, 0.0
    %vm4720 = vcmp.ge.f32.partialorder %v4695, 0.0
    %vm4721 = vcmp.ge.f32.partialorder %v4696, 0.0
    %vm4722 = vcmp.ge.f32.partialorder %v4697, 0.0
    %vm4723 = vcmp.ge.f32.partialorder %v4698, 0.0
    %vm4724 = vcmp.ge.f32.partialorder %v4699, 0.0
    %vm4725 = vcmp.ge.f32.partialorder %v4700, 0.0
    %v4726 = vmul.f32 %v4676, 0.01
    %v4727 = vmul.f32 %v4677, 0.01
    %v4728 = vmul.f32 %v4678, 0.01
    %v4729 = vmul.f32 %v4679, 0.01
    %v4730 = vmul.f32 %v4680, 0.01
    %v4731 = vmul.f32 %v4681, 0.01
    %v4732 = vmul.f32 %v4682, 0.01
    %v4733 = vmul.f32 %v4683, 0.01
    %v4734 = vmul.f32 %v4684, 0.01
    %v4735 = vmul.f32 %v4685, 0.01
    %v4736 = vmul.f32 %v4686, 0.01
    %v4737 = vmul.f32 %v4687, 0.01
    %v4738 = vmul.f32 %v4688, 0.01
    %v4739 = vmul.f32 %v4689, 0.01
    %v4740 = vmul.f32 %v4690, 0.01
    %v4741 = vmul.f32 %v4691, 0.01
    %v4742 = vmul.f32 %v4692, 0.01
    %v4743 = vmul.f32 %v4693, 0.01
    %v4744 = vmul.f32 %v4694, 0.01
    %v4745 = vmul.f32 %v4695, 0.01
    %v4746 = vmul.f32 %v4696, 0.01
    %v4747 = vmul.f32 %v4697, 0.01
    %v4748 = vmul.f32 %v4698, 0.01
    %v4749 = vmul.f32 %v4699, 0.01
    %v4750 = vmul.f32 %v4700, 0.01
    %v4751 = vsel %vm4701, %v4676, %v4726
    %v4752 = vsel %vm4702, %v4677, %v4727
    %v4753 = vsel %vm4703, %v4678, %v4728
    %v4754 = vsel %vm4704, %v4679, %v4729
    %v4755 = vsel %vm4705, %v4680, %v4730
    %v4756 = vsel %vm4706, %v4681, %v4731
    %v4757 = vsel %vm4707, %v4682, %v4732
    %v4758 = vsel %vm4708, %v4683, %v4733
    %v4759 = vsel %vm4709, %v4684, %v4734
    %v4760 = vsel %vm4710, %v4685, %v4735
    %v4761 = vsel %vm4711, %v4686, %v4736
    %v4762 = vsel %vm4712, %v4687, %v4737
    %v4763 = vsel %vm4713, %v4688, %v4738
    %v4764 = vsel %vm4714, %v4689, %v4739
    %v4765 = vsel %vm4715, %v4690, %v4740
    %v4766 = vsel %vm4716, %v4691, %v4741
    %v4767 = vsel %vm4717, %v4692, %v4742
    %v4768 = vsel %vm4718, %v4693, %v4743
    %v4769 = vsel %vm4719, %v4694, %v4744
    %v4770 = vsel %vm4720, %v4695, %v4745
    %v4771 = vsel %vm4721, %v4696, %v4746
    %v4772 = vsel %vm4722, %v4697, %v4747
    %v4773 = vsel %vm4723, %v4698, %v4748
    %v4774 = vsel %vm4724, %v4699, %v4749
    %v4775 = vsel %vm4725, %v4700, %v4750
    %v4776 = vmax.f32 %v4752, %v4753
    %v4777 = vmax.f32 %v4754, %v4755
    %v4778 = vmax.f32 %v4756, %v4757
    %v4779 = vmax.f32 %v4758, %v4759
    %v4780 = vmax.f32 %v4760, %v4761
    %v4781 = vmax.f32 %v4762, %v4763
    %v4782 = vmax.f32 %v4764, %v4765
    %v4783 = vmax.f32 %v4766, %v4767
    %v4784 = vmax.f32 %v4768, %v4769
    %v4785 = vmax.f32 %v4770, %v4771
    %v4786 = vmax.f32 %v4772, %v4773
    %v4787 = vmax.f32 %v4774, %v4775
    %v4788 = vpack.c.bf16 %v4751, %v4751
    %v4789 = vpack.c.bf16 %v4776, %v4776
    %v4790 = vpack.c.bf16 %v4777, %v4777
    %v4791 = vpack.c.bf16 %v4778, %v4778
    %v4792 = vpack.c.bf16 %v4779, %v4779
    %v4793 = vpack.c.bf16 %v4780, %v4780
    %v4794 = vpack.c.bf16 %v4781, %v4781
    %v4795 = vpack.c.bf16 %v4782, %v4782
    %v4796 = vpack.c.bf16 %v4783, %v4783
    %v4797 = vpack.c.bf16 %v4784, %v4784
    %v4798 = vpack.c.bf16 %v4785, %v4785
    %v4799 = vpack.c.bf16 %v4786, %v4786
    %v4800 = vpack.c.bf16 %v4787, %v4787
    %v4801 = vld [vmem:[%s5] sm:$0xf]
    %v4802 = vld [vmem:[%s5 + $0x4] sm:$0xf]
    %v4803 = vld [vmem:[%s5 + $0x8] sm:$0xf]
    %v4804 = vld [vmem:[%s5 + $0xc] sm:$0xf]
    %v4805 = vld [vmem:[%s5 + $0x10] sm:$0xf]
    %v4806 = vld [vmem:[%s5 + $0x14] sm:$0xf]
    %v4807 = vld [vmem:[%s5 + $0x18] sm:$0xf]
    %v4808 = vld [vmem:[%s5 + $0x1c] sm:$0xf]
    %s4809 = scalar_lea.vmem %s5, 32
    %v4810 = vld [vmem:[%s4809] sm:$0xf]
    %v4811 = vld [vmem:[%s4809 + $0x4] sm:$0xf]
    %v4812 = vld [vmem:[%s4809 + $0x8] sm:$0xf]
    %v4813 = vld [vmem:[%s4809 + $0xc] sm:$0xf]
    %v4814 = vld [vmem:[%s4809 + $0x10] sm:$0xf]
    %v4815 = vld [vmem:[%s4809 + $0x14] sm:$0xf]
    %v4816 = vld [vmem:[%s4809 + $0x18] sm:$0xf]
    %v4817 = vld [vmem:[%s4809 + $0x1c] sm:$0xf]
    %v4827 = vunpack.c.l.b16 %v4789
    %v4828 = vunpack.c.l.b16 %v4790
    %v4829 = vunpack.c.l.b16 %v4791
    %v4830 = vunpack.c.l.b16 %v4792
    %v4831 = vunpack.c.l.b16 %v4793
    %v4832 = vunpack.c.l.b16 %v4794
    %v4833 = vunpack.c.l.b16 %v4795
    %v4834 = vunpack.c.l.b16 %v4796
    %v4835 = vunpack.c.l.b16 %v4797
    %v4836 = vpack.c.b16 %v4828, %v4827
    %v4837 = vpack.c.b16 %v4830, %v4829
    %v4838 = vpack.c.b16 %v4832, %v4831
    %v4839 = vpack.c.b16 %v4834, %v4833
    %v4840 = vpack.c.b16 %v4835, %v4835
    %v4849 = vunpack.c.l.b16 %v4810
    %v4850 = vunpack.c.l.b16 %v4811
    %v4851 = vunpack.c.l.b16 %v4812
    %v4852 = vunpack.c.l.b16 %v4813
    %v4853 = vunpack.c.l.b16 %v4814
    %v4854 = vunpack.c.l.b16 %v4815
    %v4855 = vunpack.c.l.b16 %v4816
    %v4856 = vunpack.c.l.b16 %v4817
    %v4857 = vpack.c.b16 %v4850, %v4849
    %v4858 = vpack.c.b16 %v4852, %v4851
    %v4859 = vpack.c.b16 %v4854, %v4853
    %v4860 = vpack.c.b16 %v4856, %v4855
    %vm4865 = vcmask 523264
    %v4867 = vsel %vm4865, %v4836, 0
    %v4870 = vsel %vm4865, %v4837, 0
    %v4873 = vsel %vm4865, %v4838, 0
    %v4876 = vsel %vm4865, %v4839, 0
    %v4879 = vsel %vm4865, %v4840, 0
    %4881 = vmatprep.subr.bf16.mxu0 0
    %4882 = vmatpush1.bf16.msra.mxu0 %v4857
    %4883 = vmatprep.subr.bf16.mxu0 0
    %4884 = vmatpush1.bf16.msra.mxu0 %v4858
    %4885 = vmatprep.subr.bf16.mxu0 0
    %4886 = vmatpush1.bf16.msra.mxu0 %v4859
    %4887 = vmatprep.subr.bf16.mxu0 0
    %4888 = vmatpush1.bf16.msra.mxu0 %v4860
    %4889 = vmatprep.subr.bf16.mxu0 0
    %4890 = vmatpush1.bf16.msra.mxu0 0
    %4891 = vmatprep.subr.bf16.mxu0 0
    %4892 = vmatpush1.bf16.msra.mxu0 0
    %4893 = vmatprep.subr.bf16.mxu0 0
    %4894 = vmatpush1.bf16.msra.mxu0 0
    %4895 = vmatprep.subr.bf16.mxu0 0
    %4896 = vmatpush1.bf16.msra.mxu0 0
    %4897 = vmatprep.subr.bf16.mxu0 0
    %4898 = vmatpush1.bf16.msra.mxu0 0
    %4899 = vmatprep.subr.bf16.mxu0 0
    %4900 = vmatpush1.bf16.msra.mxu0 0
    %4901 = vmatprep.subr.bf16.mxu0 0
    %4902 = vmatpush1.bf16.msra.mxu0 0
    %4903 = vmatprep.subr.bf16.mxu0 0
    %4904 = vmatpush1.bf16.msra.mxu0 0
    %4905 = vmatprep.subr.bf16.mxu0 0
    %4906 = vmatpush1.bf16.msra.mxu0 0
    %4907 = vmatprep.subr.bf16.mxu0 0
    %4908 = vmatpush1.bf16.msra.mxu0 0
    %4909 = vmatprep.subr.bf16.mxu0 0
    %4910 = vmatpush1.bf16.msra.mxu0 0
    %4911 = vmatprep.subr.bf16.mxu0 0
    %4912 = vmatpush1.bf16.msra.mxu0 0
    %4913 = vmatprep.mubr.bf16.mxu0 0
    %4914 = vmatmul.mubr.bf16.gmra.mrb[0].mxu0 %v4867
    %v4915 = vpop.f32.mrb[0].mxu0
    %v4916 = vadd.f32 0.0, %v4915
    %v4917 = vpop.f32.mrb[0].mxu0
    %v4918 = vpop.f32.mrb[0].mxu0
    %v4919 = vadd.f32 0.0, %v4918
    %v4920 = vpop.f32.mrb[0].mxu0
    %4921 = vmatprep.mubr.bf16.mxu0 0
    %4922 = vmatmul.mubr.bf16.gmra.mrb[0].mxu0 %v4870
    %v4923 = vpop.f32.mrb[0].mxu0
    %v4924 = vadd.f32 0.0, %v4923
    %v4925 = vpop.f32.mrb[0].mxu0
    %v4926 = vpop.f32.mrb[0].mxu0
    %v4927 = vadd.f32 0.0, %v4926
    %v4928 = vpop.f32.mrb[0].mxu0
    %4929 = vmatprep.mubr.bf16.mxu0 0
    %4930 = vmatmul.mubr.bf16.gmra.mrb[0].mxu0 %v4873
    %v4931 = vpop.f32.mrb[0].mxu0
    %v4932 = vadd.f32 0.0, %v4931
    %v4933 = vpop.f32.mrb[0].mxu0
    %v4934 = vpop.f32.mrb[0].mxu0
    %v4935 = vadd.f32 0.0, %v4934
    %v4936 = vpop.f32.mrb[0].mxu0
    %4937 = vmatprep.mubr.bf16.mxu0 0
    %4938 = vmatmul.mubr.bf16.gmra.mrb[0].mxu0 %v4876
    %v4939 = vpop.f32.mrb[0].mxu0
    %v4940 = vadd.f32 0.0, %v4939
    %v4941 = vpop.f32.mrb[0].mxu0
    %v4942 = vpop.f32.mrb[0].mxu0
    %v4943 = vadd.f32 0.0, %v4942
    %v4944 = vpop.f32.mrb[0].mxu0
    %4945 = vmatprep.mubr.bf16.mxu0 0
    %4946 = vmatmul.mubr.bf16.gmra.mrb[0].mxu0 %v4879
    %v4947 = vpop.f32.mrb[0].mxu0
    %v4948 = vadd.f32 0.0, %v4947
    %v4949 = vpop.f32.mrb[0].mxu0
    %v4950 = vpop.f32.mrb[0].mxu0
    %v4951 = vpop.f32.mrb[0].mxu0
    %4952 = vdwg.mxu0
    %v4954 = vunpack.c.l.b16 %v4788
    %v4955 = vpack.c.b16 %v4827, %v4954
    %v4956 = vpack.c.b16 %v4829, %v4828
    %v4957 = vpack.c.b16 %v4831, %v4830
    %v4958 = vpack.c.b16 %v4833, %v4832
    %v4959 = vpack.c.b16 %v4834, %v4834
    %v4968 = vunpack.c.l.b16 %v4801
    %v4969 = vunpack.c.l.b16 %v4802
    %v4970 = vunpack.c.l.b16 %v4803
    %v4971 = vunpack.c.l.b16 %v4804
    %v4972 = vunpack.c.l.b16 %v4805
    %v4973 = vunpack.c.l.b16 %v4806
    %v4974 = vunpack.c.l.b16 %v4807
    %v4975 = vunpack.c.l.b16 %v4808
    %v4976 = vpack.c.b16 %v4969, %v4968
    %v4977 = vpack.c.b16 %v4971, %v4970
    %v4978 = vpack.c.b16 %v4973, %v4972
    %v4979 = vpack.c.b16 %v4975, %v4974
    %v4985 = vsel %vm4865, %v4955, 0
    %v4988 = vsel %vm4865, %v4956, 0
    %v4991 = vsel %vm4865, %v4957, 0
    %v4994 = vsel %vm4865, %v4958, 0
    %v4997 = vsel %vm4865, %v4959, 0
    %4999 = vmatprep.subr.bf16.mxu0 0
    %5000 = vmatpush1.bf16.msra.mxu0 %v4976
    %5001 = vmatprep.subr.bf16.mxu0 0
    %5002 = vmatpush1.bf16.msra.mxu0 %v4977
    %5003 = vmatprep.subr.bf16.mxu0 0
    %5004 = vmatpush1.bf16.msra.mxu0 %v4978
    %5005 = vmatprep.subr.bf16.mxu0 0
    %5006 = vmatpush1.bf16.msra.mxu0 %v4979
    %5007 = vmatprep.subr.bf16.mxu0 0
    %5008 = vmatpush1.bf16.msra.mxu0 0
    %5009 = vmatprep.subr.bf16.mxu0 0
    %5010 = vmatpush1.bf16.msra.mxu0 0
    %5011 = vmatprep.subr.bf16.mxu0 0
    %5012 = vmatpush1.bf16.msra.mxu0 0
    %5013 = vmatprep.subr.bf16.mxu0 0
    %5014 = vmatpush1.bf16.msra.mxu0 0
    %5015 = vmatprep.subr.bf16.mxu0 0
    %5016 = vmatpush1.bf16.msra.mxu0 0
    %5017 = vmatprep.subr.bf16.mxu0 0
    %5018 = vmatpush1.bf16.msra.mxu0 0
    %5019 = vmatprep.subr.bf16.mxu0 0
    %5020 = vmatpush1.bf16.msra.mxu0 0
    %5021 = vmatprep.subr.bf16.mxu0 0
    %5022 = vmatpush1.bf16.msra.mxu0 0
    %5023 = vmatprep.subr.bf16.mxu0 0
    %5024 = vmatpush1.bf16.msra.mxu0 0
    %5025 = vmatprep.subr.bf16.mxu0 0
    %5026 = vmatpush1.bf16.msra.mxu0 0
    %5027 = vmatprep.subr.bf16.mxu0 0
    %5028 = vmatpush1.bf16.msra.mxu0 0
    %5029 = vmatprep.subr.bf16.mxu0 0
    %5030 = vmatpush1.bf16.msra.mxu0 0
    %5031 = vmatprep.mubr.bf16.mxu0 0
    %5032 = vmatmul.mubr.bf16.gmra.mrb[0].mxu0 %v4985
    %v5033 = vpop.f32.mrb[0].mxu0
    %v5034 = vadd.f32 %v4916, %v5033
    %v5035 = vpop.f32.mrb[0].mxu0
    %v5036 = vpop.f32.mrb[0].mxu0
    %v5037 = vadd.f32 %v4919, %v5036
    %v5038 = vpop.f32.mrb[0].mxu0
    %5039 = vmatprep.mubr.bf16.mxu0 0
    %5040 = vmatmul.mubr.bf16.gmra.mrb[0].mxu0 %v4988
    %v5041 = vpop.f32.mrb[0].mxu0
    %v5042 = vadd.f32 %v4924, %v5041
    %v5043 = vpop.f32.mrb[0].mxu0
    %v5044 = vpop.f32.mrb[0].mxu0
    %v5045 = vadd.f32 %v4927, %v5044
    %v5046 = vpop.f32.mrb[0].mxu0
    %5047 = vmatprep.mubr.bf16.mxu0 0
    %5048 = vmatmul.mubr.bf16.gmra.mrb[0].mxu0 %v4991
    %v5049 = vpop.f32.mrb[0].mxu0
    %v5050 = vadd.f32 %v4932, %v5049
    %v5051 = vpop.f32.mrb[0].mxu0
    %v5052 = vpop.f32.mrb[0].mxu0
    %v5053 = vadd.f32 %v4935, %v5052
    %v5054 = vpop.f32.mrb[0].mxu0
    %5055 = vmatprep.mubr.bf16.mxu0 0
    %5056 = vmatmul.mubr.bf16.gmra.mrb[0].mxu0 %v4994
    %v5057 = vpop.f32.mrb[0].mxu0
    %v5058 = vadd.f32 %v4940, %v5057
    %v5059 = vpop.f32.mrb[0].mxu0
    %v5060 = vpop.f32.mrb[0].mxu0
    %v5061 = vadd.f32 %v4943, %v5060
    %v5062 = vpop.f32.mrb[0].mxu0
    %5063 = vmatprep.mubr.bf16.mxu0 0
    %5064 = vmatmul.mubr.bf16.gmra.mrb[0].mxu0 %v4997
    %v5065 = vpop.f32.mrb[0].mxu0
    %v5066 = vadd.f32 %v4948, %v5065
    %v5067 = vpop.f32.mrb[0].mxu0
    %v5068 = vpop.f32.mrb[0].mxu0
    %v5069 = vpop.f32.mrb[0].mxu0
    %5070 = vdwg.mxu0
    %s5071 = scalar_lea.vmem %s5, 64
    %v5072 = vld [vmem:[%s5071] sm:$0xf]
    %v5073 = vld [vmem:[%s5071 + $0x4] sm:$0xf]
    %v5074 = vld [vmem:[%s5071 + $0x8] sm:$0xf]
    %v5075 = vld [vmem:[%s5071 + $0xc] sm:$0xf]
    %v5076 = vld [vmem:[%s5071 + $0x10] sm:$0xf]
    %v5077 = vld [vmem:[%s5071 + $0x14] sm:$0xf]
    %v5078 = vld [vmem:[%s5071 + $0x18] sm:$0xf]
    %v5079 = vld [vmem:[%s5071 + $0x1c] sm:$0xf]
    %v5081 = vunpack.c.l.b16 %v4798
    %v5082 = vpack.c.b16 %v4835, %v4834
    %v5083 = vpack.c.b16 %v5081, %v5081
    %v5092 = vunpack.c.l.b16 %v5072
    %v5093 = vunpack.c.l.b16 %v5073
    %v5094 = vunpack.c.l.b16 %v5074
    %v5095 = vunpack.c.l.b16 %v5075
    %v5096 = vunpack.c.l.b16 %v5076
    %v5097 = vunpack.c.l.b16 %v5077
    %v5098 = vunpack.c.l.b16 %v5078
    %v5099 = vunpack.c.l.b16 %v5079
    %v5100 = vpack.c.b16 %v5093, %v5092
    %v5101 = vpack.c.b16 %v5095, %v5094
    %v5102 = vpack.c.b16 %v5097, %v5096
    %v5103 = vpack.c.b16 %v5099, %v5098
    %v5109 = vsel %vm4865, %v5082, 0
    %v5112 = vsel %vm4865, %v5083, 0
    %5114 = vmatprep.subr.bf16.mxu0 0
    %5115 = vmatpush1.bf16.msra.mxu0 %v5100
    %5116 = vmatprep.subr.bf16.mxu0 0
    %5117 = vmatpush1.bf16.msra.mxu0 %v5101
    %5118 = vmatprep.subr.bf16.mxu0 0
    %5119 = vmatpush1.bf16.msra.mxu0 %v5102
    %5120 = vmatprep.subr.bf16.mxu0 0
    %5121 = vmatpush1.bf16.msra.mxu0 %v5103
    %5122 = vmatprep.subr.bf16.mxu0 0
    %5123 = vmatpush1.bf16.msra.mxu0 0
    %5124 = vmatprep.subr.bf16.mxu0 0
    %5125 = vmatpush1.bf16.msra.mxu0 0
    %5126 = vmatprep.subr.bf16.mxu0 0
    %5127 = vmatpush1.bf16.msra.mxu0 0
    %5128 = vmatprep.subr.bf16.mxu0 0
    %5129 = vmatpush1.bf16.msra.mxu0 0
    %5130 = vmatprep.subr.bf16.mxu0 0
    %5131 = vmatpush1.bf16.msra.mxu0 0
    %5132 = vmatprep.subr.bf16.mxu0 0
    %5133 = vmatpush1.bf16.msra.mxu0 0
    %5134 = vmatprep.subr.bf16.mxu0 0
    %5135 = vmatpush1.bf16.msra.mxu0 0
    %5136 = vmatprep.subr.bf16.mxu0 0
    %5137 = vmatpush1.bf16.msra.mxu0 0
    %5138 = vmatprep.subr.bf16.mxu0 0
    %5139 = vmatpush1.bf16.msra.mxu0 0
    %5140 = vmatprep.subr.bf16.mxu0 0
    %5141 = vmatpush1.bf16.msra.mxu0 0
    %5142 = vmatprep.subr.bf16.mxu0 0
    %5143 = vmatpush1.bf16.msra.mxu0 0
    %5144 = vmatprep.subr.bf16.mxu0 0
    %5145 = vmatpush1.bf16.msra.mxu0 0
    %5146 = vmatprep.mubr.bf16.mxu0 0
    %5147 = vmatmul.mubr.bf16.gmra.mrb[0].mxu0 %v4988
    %v5148 = vpop.f32.mrb[0].mxu0
    %v5149 = vadd.f32 0.0, %v5148
    %v5150 = vpop.f32.mrb[0].mxu0
    %v5151 = vpop.f32.mrb[0].mxu0
    %v5152 = vadd.f32 0.0, %v5151
    %v5153 = vpop.f32.mrb[0].mxu0
    %5154 = vmatprep.mubr.bf16.mxu0 0
    %5155 = vmatmul.mubr.bf16.gmra.mrb[0].mxu0 %v4991
    %v5156 = vpop.f32.mrb[0].mxu0
    %v5157 = vadd.f32 0.0, %v5156
    %v5158 = vpop.f32.mrb[0].mxu0
    %v5159 = vpop.f32.mrb[0].mxu0
    %v5160 = vadd.f32 0.0, %v5159
    %v5161 = vpop.f32.mrb[0].mxu0
    %5162 = vmatprep.mubr.bf16.mxu0 0
    %5163 = vmatmul.mubr.bf16.gmra.mrb[0].mxu0 %v4994
    %v5164 = vpop.f32.mrb[0].mxu0
    %v5165 = vadd.f32 0.0, %v5164
    %v5166 = vpop.f32.mrb[0].mxu0
    %v5167 = vpop.f32.mrb[0].mxu0
    %v5168 = vadd.f32 0.0, %v5167
    %v5169 = vpop.f32.mrb[0].mxu0
    %5170 = vmatprep.mubr.bf16.mxu0 0
    %5171 = vmatmul.mubr.bf16.gmra.mrb[0].mxu0 %v5109
    %v5172 = vpop.f32.mrb[0].mxu0
    %v5173 = vadd.f32 0.0, %v5172
    %v5174 = vpop.f32.mrb[0].mxu0
    %v5175 = vpop.f32.mrb[0].mxu0
    %v5176 = vadd.f32 0.0, %v5175
    %v5177 = vpop.f32.mrb[0].mxu0
    %5178 = vmatprep.mubr.bf16.mxu0 0
    %5179 = vmatmul.mubr.bf16.gmra.mrb[0].mxu0 %v5112
    %v5180 = vpop.f32.mrb[0].mxu0
    %v5181 = vadd.f32 0.0, %v5180
    %v5182 = vpop.f32.mrb[0].mxu0
    %v5183 = vpop.f32.mrb[0].mxu0
    %v5184 = vpop.f32.mrb[0].mxu0
    %5185 = vdwg.mxu0
    %v5186 = vadd.f32 %v5034, %v5149
    %v5187 = vadd.f32 %v5037, %v5152
    %v5188 = vadd.f32 %v5042, %v5157
    %v5189 = vadd.f32 %v5045, %v5160
    %v5190 = vadd.f32 %v5050, %v5165
    %v5191 = vadd.f32 %v5053, %v5168
    %v5192 = vadd.f32 %v5058, %v5173
    %v5193 = vadd.f32 %v5061, %v5176
    %v5194 = vadd.f32 %v5066, %v5181
    %s5195 = scalar_lea.vmem %s5, 96
    %v5196 = vld [vmem:[%s5195] sm:$0xf]
    %v5197 = vld [vmem:[%s5195 + $0x4] sm:$0xf]
    %v5198 = vld [vmem:[%s5195 + $0x8] sm:$0xf]
    %v5199 = vld [vmem:[%s5195 + $0xc] sm:$0xf]
    %v5200 = vld [vmem:[%s5195 + $0x10] sm:$0xf]
    %v5201 = vld [vmem:[%s5195 + $0x14] sm:$0xf]
    %v5202 = vld [vmem:[%s5195 + $0x18] sm:$0xf]
    %v5203 = vld [vmem:[%s5195 + $0x1c] sm:$0xf]
    %v5205 = vunpack.c.l.b16 %v4799
    %v5206 = vpack.c.b16 %v5081, %v4835
    %v5207 = vpack.c.b16 %v5205, %v5205
    %v5216 = vunpack.c.l.b16 %v5196
    %v5217 = vunpack.c.l.b16 %v5197
    %v5218 = vunpack.c.l.b16 %v5198
    %v5219 = vunpack.c.l.b16 %v5199
    %v5220 = vunpack.c.l.b16 %v5200
    %v5221 = vunpack.c.l.b16 %v5201
    %v5222 = vunpack.c.l.b16 %v5202
    %v5223 = vunpack.c.l.b16 %v5203
    %v5224 = vpack.c.b16 %v5217, %v5216
    %v5225 = vpack.c.b16 %v5219, %v5218
    %v5226 = vpack.c.b16 %v5221, %v5220
    %v5227 = vpack.c.b16 %v5223, %v5222
    %v5233 = vsel %vm4865, %v5206, 0
    %v5236 = vsel %vm4865, %v5207, 0
    %5238 = vmatprep.subr.bf16.mxu0 0
    %5239 = vmatpush1.bf16.msra.mxu0 %v5224
    %5240 = vmatprep.subr.bf16.mxu0 0
    %5241 = vmatpush1.bf16.msra.mxu0 %v5225
    %5242 = vmatprep.subr.bf16.mxu0 0
    %5243 = vmatpush1.bf16.msra.mxu0 %v5226
    %5244 = vmatprep.subr.bf16.mxu0 0
    %5245 = vmatpush1.bf16.msra.mxu0 %v5227
    %5246 = vmatprep.subr.bf16.mxu0 0
    %5247 = vmatpush1.bf16.msra.mxu0 0
    %5248 = vmatprep.subr.bf16.mxu0 0
    %5249 = vmatpush1.bf16.msra.mxu0 0
    %5250 = vmatprep.subr.bf16.mxu0 0
    %5251 = vmatpush1.bf16.msra.mxu0 0
    %5252 = vmatprep.subr.bf16.mxu0 0
    %5253 = vmatpush1.bf16.msra.mxu0 0
    %5254 = vmatprep.subr.bf16.mxu0 0
    %5255 = vmatpush1.bf16.msra.mxu0 0
    %5256 = vmatprep.subr.bf16.mxu0 0
    %5257 = vmatpush1.bf16.msra.mxu0 0
    %5258 = vmatprep.subr.bf16.mxu0 0
    %5259 = vmatpush1.bf16.msra.mxu0 0
    %5260 = vmatprep.subr.bf16.mxu0 0
    %5261 = vmatpush1.bf16.msra.mxu0 0
    %5262 = vmatprep.subr.bf16.mxu0 0
    %5263 = vmatpush1.bf16.msra.mxu0 0
    %5264 = vmatprep.subr.bf16.mxu0 0
    %5265 = vmatpush1.bf16.msra.mxu0 0
    %5266 = vmatprep.subr.bf16.mxu0 0
    %5267 = vmatpush1.bf16.msra.mxu0 0
    %5268 = vmatprep.subr.bf16.mxu0 0
    %5269 = vmatpush1.bf16.msra.mxu0 0
    %5270 = vmatprep.mubr.bf16.mxu0 0
    %5271 = vmatmul.mubr.bf16.gmra.mrb[0].mxu0 %v4870
    %v5272 = vpop.f32.mrb[0].mxu0
    %v5273 = vadd.f32 0.0, %v5272
    %v5274 = vpop.f32.mrb[0].mxu0
    %v5275 = vpop.f32.mrb[0].mxu0
    %v5276 = vadd.f32 0.0, %v5275
    %v5277 = vpop.f32.mrb[0].mxu0
    %5278 = vmatprep.mubr.bf16.mxu0 0
    %5279 = vmatmul.mubr.bf16.gmra.mrb[0].mxu0 %v4873
    %v5280 = vpop.f32.mrb[0].mxu0
    %v5281 = vadd.f32 0.0, %v5280
    %v5282 = vpop.f32.mrb[0].mxu0
    %v5283 = vpop.f32.mrb[0].mxu0
    %v5284 = vadd.f32 0.0, %v5283
    %v5285 = vpop.f32.mrb[0].mxu0
    %5286 = vmatprep.mubr.bf16.mxu0 0
    %5287 = vmatmul.mubr.bf16.gmra.mrb[0].mxu0 %v4876
    %v5288 = vpop.f32.mrb[0].mxu0
    %v5289 = vadd.f32 0.0, %v5288
    %v5290 = vpop.f32.mrb[0].mxu0
    %v5291 = vpop.f32.mrb[0].mxu0
    %v5292 = vadd.f32 0.0, %v5291
    %v5293 = vpop.f32.mrb[0].mxu0
    %5294 = vmatprep.mubr.bf16.mxu0 0
    %5295 = vmatmul.mubr.bf16.gmra.mrb[0].mxu0 %v5233
    %v5296 = vpop.f32.mrb[0].mxu0
    %v5297 = vadd.f32 0.0, %v5296
    %v5298 = vpop.f32.mrb[0].mxu0
    %v5299 = vpop.f32.mrb[0].mxu0
    %v5300 = vadd.f32 0.0, %v5299
    %v5301 = vpop.f32.mrb[0].mxu0
    %5302 = vmatprep.mubr.bf16.mxu0 0
    %5303 = vmatmul.mubr.bf16.gmra.mrb[0].mxu0 %v5236
    %v5304 = vpop.f32.mrb[0].mxu0
    %v5305 = vadd.f32 0.0, %v5304
    %v5306 = vpop.f32.mrb[0].mxu0
    %v5307 = vpop.f32.mrb[0].mxu0
    %v5308 = vpop.f32.mrb[0].mxu0
    %5309 = vdwg.mxu0
    %v5310 = vadd.f32 %v5186, %v5273
    %v5311 = vadd.f32 %v5187, %v5276
    %v5312 = vadd.f32 %v5188, %v5281
    %v5313 = vadd.f32 %v5189, %v5284
    %v5314 = vadd.f32 %v5190, %v5289
    %v5315 = vadd.f32 %v5191, %v5292
    %v5316 = vadd.f32 %v5192, %v5297
    %v5317 = vadd.f32 %v5193, %v5300
    %v5318 = vadd.f32 %v5194, %v5305
    %s5319 = scalar_lea.vmem %s5, 128
    %v5320 = vld [vmem:[%s5319] sm:$0xf]
    %v5321 = vld [vmem:[%s5319 + $0x4] sm:$0xf]
    %v5322 = vld [vmem:[%s5319 + $0x8] sm:$0xf]
    %v5323 = vld [vmem:[%s5319 + $0xc] sm:$0xf]
    %v5324 = vld [vmem:[%s5319 + $0x10] sm:$0xf]
    %v5325 = vld [vmem:[%s5319 + $0x14] sm:$0xf]
    %v5326 = vld [vmem:[%s5319 + $0x18] sm:$0xf]
    %v5327 = vld [vmem:[%s5319 + $0x1c] sm:$0xf]
    %v5329 = vunpack.c.l.b16 %v4800
    %v5330 = vpack.c.b16 %v5205, %v5081
    %v5331 = vpack.c.b16 %v5329, %v5329
    %v5340 = vunpack.c.l.b16 %v5320
    %v5341 = vunpack.c.l.b16 %v5321
    %v5342 = vunpack.c.l.b16 %v5322
    %v5343 = vunpack.c.l.b16 %v5323
    %v5344 = vunpack.c.l.b16 %v5324
    %v5345 = vunpack.c.l.b16 %v5325
    %v5346 = vunpack.c.l.b16 %v5326
    %v5347 = vunpack.c.l.b16 %v5327
    %v5348 = vpack.c.b16 %v5341, %v5340
    %v5349 = vpack.c.b16 %v5343, %v5342
    %v5350 = vpack.c.b16 %v5345, %v5344
    %v5351 = vpack.c.b16 %v5347, %v5346
    %v5357 = vsel %vm4865, %v5330, 0
    %v5360 = vsel %vm4865, %v5331, 0
    %5362 = vmatprep.subr.bf16.mxu0 0
    %5363 = vmatpush1.bf16.msra.mxu0 %v5348
    %5364 = vmatprep.subr.bf16.mxu0 0
    %5365 = vmatpush1.bf16.msra.mxu0 %v5349
    %5366 = vmatprep.subr.bf16.mxu0 0
    %5367 = vmatpush1.bf16.msra.mxu0 %v5350
    %5368 = vmatprep.subr.bf16.mxu0 0
    %5369 = vmatpush1.bf16.msra.mxu0 %v5351
    %5370 = vmatprep.subr.bf16.mxu0 0
    %5371 = vmatpush1.bf16.msra.mxu0 0
    %5372 = vmatprep.subr.bf16.mxu0 0
    %5373 = vmatpush1.bf16.msra.mxu0 0
    %5374 = vmatprep.subr.bf16.mxu0 0
    %5375 = vmatpush1.bf16.msra.mxu0 0
    %5376 = vmatprep.subr.bf16.mxu0 0
    %5377 = vmatpush1.bf16.msra.mxu0 0
    %5378 = vmatprep.subr.bf16.mxu0 0
    %5379 = vmatpush1.bf16.msra.mxu0 0
    %5380 = vmatprep.subr.bf16.mxu0 0
    %5381 = vmatpush1.bf16.msra.mxu0 0
    %5382 = vmatprep.subr.bf16.mxu0 0
    %5383 = vmatpush1.bf16.msra.mxu0 0
    %5384 = vmatprep.subr.bf16.mxu0 0
    %5385 = vmatpush1.bf16.msra.mxu0 0
    %5386 = vmatprep.subr.bf16.mxu0 0
    %5387 = vmatpush1.bf16.msra.mxu0 0
    %5388 = vmatprep.subr.bf16.mxu0 0
    %5389 = vmatpush1.bf16.msra.mxu0 0
    %5390 = vmatprep.subr.bf16.mxu0 0
    %5391 = vmatpush1.bf16.msra.mxu0 0
    %5392 = vmatprep.subr.bf16.mxu0 0
    %5393 = vmatpush1.bf16.msra.mxu0 0
    %5394 = vmatprep.mubr.bf16.mxu0 0
    %5395 = vmatmul.mubr.bf16.gmra.mrb[0].mxu0 %v4991
    %v5396 = vpop.f32.mrb[0].mxu0
    %v5397 = vadd.f32 0.0, %v5396
    %v5398 = vpop.f32.mrb[0].mxu0
    %v5399 = vpop.f32.mrb[0].mxu0
    %v5400 = vadd.f32 0.0, %v5399
    %v5401 = vpop.f32.mrb[0].mxu0
    %5402 = vmatprep.mubr.bf16.mxu0 0
    %5403 = vmatmul.mubr.bf16.gmra.mrb[0].mxu0 %v4994
    %v5404 = vpop.f32.mrb[0].mxu0
    %v5405 = vadd.f32 0.0, %v5404
    %v5406 = vpop.f32.mrb[0].mxu0
    %v5407 = vpop.f32.mrb[0].mxu0
    %v5408 = vadd.f32 0.0, %v5407
    %v5409 = vpop.f32.mrb[0].mxu0
    %5410 = vmatprep.mubr.bf16.mxu0 0
    %5411 = vmatmul.mubr.bf16.gmra.mrb[0].mxu0 %v5109
    %v5412 = vpop.f32.mrb[0].mxu0
    %v5413 = vadd.f32 0.0, %v5412
    %v5414 = vpop.f32.mrb[0].mxu0
    %v5415 = vpop.f32.mrb[0].mxu0
    %v5416 = vadd.f32 0.0, %v5415
    %v5417 = vpop.f32.mrb[0].mxu0
    %5418 = vmatprep.mubr.bf16.mxu0 0
    %5419 = vmatmul.mubr.bf16.gmra.mrb[0].mxu0 %v5357
    %v5420 = vpop.f32.mrb[0].mxu0
    %v5421 = vadd.f32 0.0, %v5420
    %v5422 = vpop.f32.mrb[0].mxu0
    %v5423 = vpop.f32.mrb[0].mxu0
    %v5424 = vadd.f32 0.0, %v5423
    %v5425 = vpop.f32.mrb[0].mxu0
    %5426 = vmatprep.mubr.bf16.mxu0 0
    %5427 = vmatmul.mubr.bf16.gmra.mrb[0].mxu0 %v5360
    %v5428 = vpop.f32.mrb[0].mxu0
    %v5429 = vadd.f32 0.0, %v5428
    %v5430 = vpop.f32.mrb[0].mxu0
    %v5431 = vpop.f32.mrb[0].mxu0
    %v5432 = vpop.f32.mrb[0].mxu0
    %5433 = vdwg.mxu0
    %v5434 = vadd.f32 %v5310, %v5397
    %v5435 = vadd.f32 %v5311, %v5400
    %v5436 = vadd.f32 %v5312, %v5405
    %v5437 = vadd.f32 %v5313, %v5408
    %v5438 = vadd.f32 %v5314, %v5413
    %v5439 = vadd.f32 %v5315, %v5416
    %v5440 = vadd.f32 %v5316, %v5421
    %v5441 = vadd.f32 %v5317, %v5424
    %v5442 = vadd.f32 %v5318, %v5429
    %v5443 = vld [vmem:[%s6] sm:$0x1]
    %v5445 = vlaneseq
    %v5446 = vshrl.u32 %v5445, 7
    %v5447 = vsub.s32 0, %v5446
    %v5448 = vrot.slane %v5443, %v5447
    %v5450 = vadd.f32 %v5434, %v5448
    %v5451 = vadd.f32 %v5435, %v5448
    %v5452 = vadd.f32 %v5436, %v5448
    %v5453 = vadd.f32 %v5437, %v5448
    %v5454 = vadd.f32 %v5438, %v5448
    %v5455 = vadd.f32 %v5439, %v5448
    %v5456 = vadd.f32 %v5440, %v5448
    %v5457 = vadd.f32 %v5441, %v5448
    %v5458 = vadd.f32 %v5442, %v5448
    %vm5459 = vcmp.ge.f32.partialorder %v5450, 0.0
    %vm5460 = vcmp.ge.f32.partialorder %v5451, 0.0
    %vm5461 = vcmp.ge.f32.partialorder %v5452, 0.0
    %vm5462 = vcmp.ge.f32.partialorder %v5453, 0.0
    %vm5463 = vcmp.ge.f32.partialorder %v5454, 0.0
    %vm5464 = vcmp.ge.f32.partialorder %v5455, 0.0
    %vm5465 = vcmp.ge.f32.partialorder %v5456, 0.0
    %vm5466 = vcmp.ge.f32.partialorder %v5457, 0.0
    %vm5467 = vcmp.ge.f32.partialorder %v5458, 0.0
    %v5468 = vmul.f32 %v5450, 0.01
    %v5469 = vmul.f32 %v5451, 0.01
    %v5470 = vmul.f32 %v5452, 0.01
    %v5471 = vmul.f32 %v5453, 0.01
    %v5472 = vmul.f32 %v5454, 0.01
    %v5473 = vmul.f32 %v5455, 0.01
    %v5474 = vmul.f32 %v5456, 0.01
    %v5475 = vmul.f32 %v5457, 0.01
    %v5476 = vmul.f32 %v5458, 0.01
    %v5477 = vsel %vm5459, %v5450, %v5468
    %v5478 = vsel %vm5460, %v5451, %v5469
    %v5479 = vsel %vm5461, %v5452, %v5470
    %v5480 = vsel %vm5462, %v5453, %v5471
    %v5481 = vsel %vm5463, %v5454, %v5472
    %v5482 = vsel %vm5464, %v5455, %v5473
    %v5483 = vsel %vm5465, %v5456, %v5474
    %v5484 = vsel %vm5466, %v5457, %v5475
    %v5485 = vsel %vm5467, %v5458, %v5476
    %v5486 = vmax.f32 %v5478, %v5479
    %v5487 = vmax.f32 %v5480, %v5481
    %v5488 = vmax.f32 %v5482, %v5483
    %v5489 = vmax.f32 %v5484, %v5485
    %v5490 = vpack.c.bf16 %v5477, %v5477
    %v5491 = vpack.c.bf16 %v5486, %v5486
    %v5492 = vpack.c.bf16 %v5487, %v5487
    %v5493 = vpack.c.bf16 %v5488, %v5488
    %v5494 = vpack.c.bf16 %v5489, %v5489
    %v5495 = vld [vmem:[%s7] sm:$0xf]
    %v5496 = vld [vmem:[%s7 + $0x4] sm:$0xf]
    %v5497 = vld [vmem:[%s7 + $0x8] sm:$0xf]
    %v5498 = vld [vmem:[%s7 + $0xc] sm:$0xf]
    %v5499 = vld [vmem:[%s9] sm:$0x1]
    %v5501 = vlaneseq
    %v5502 = vshrl.u32 %v5501, 7
    %v5503 = vsub.s32 0, %v5502
    %v5504 = vrot.slane %v5499, %v5503
    %v5511 = vunpack.c.l.b16 %v5490
    %v5512 = vunpack.c.l.b16 %v5491
    %v5513 = vunpack.c.l.b16 %v5492
    %v5514 = vunpack.c.l.b16 %v5493
    %v5515 = vunpack.c.l.b16 %v5494
    %v5516 = vpack.c.b16 %v5512, %v5511
    %v5517 = vpack.c.b16 %v5514, %v5513
    %v5518 = vpack.c.b16 %v5515, %v5515
    %v5523 = vunpack.c.l.b16 %v5495
    %v5524 = vunpack.c.l.b16 %v5496
    %v5525 = vunpack.c.l.b16 %v5497
    %v5526 = vunpack.c.l.b16 %v5498
    %v5527 = vpack.c.b16 %v5524, %v5523
    %v5528 = vpack.c.b16 %v5526, %v5525
    %v5532 = vsel %vm3727, %v5516, 0
    %v5535 = vsel %vm3727, %v5517, 0
    %v5538 = vsel %vm3727, %v5518, 0
    %5540 = vmatprep.subr.bf16.mxu0 0
    %5541 = vmatpush1.bf16.msra.mxu0 %v5527
    %5542 = vmatprep.subr.bf16.mxu0 0
    %5543 = vmatpush1.bf16.msra.mxu0 %v5528
    %5544 = vmatprep.subr.bf16.mxu0 0
    %5545 = vmatpush1.bf16.msra.mxu0 0
    %5546 = vmatprep.subr.bf16.mxu0 0
    %5547 = vmatpush1.bf16.msra.mxu0 0
    %5548 = vmatprep.subr.bf16.mxu0 0
    %5549 = vmatpush1.bf16.msra.mxu0 0
    %5550 = vmatprep.subr.bf16.mxu0 0
    %5551 = vmatpush1.bf16.msra.mxu0 0
    %5552 = vmatprep.subr.bf16.mxu0 0
    %5553 = vmatpush1.bf16.msra.mxu0 0
    %5554 = vmatprep.subr.bf16.mxu0 0
    %5555 = vmatpush1.bf16.msra.mxu0 0
    %5556 = vmatprep.subr.bf16.mxu0 0
    %5557 = vmatpush1.bf16.msra.mxu0 0
    %5558 = vmatprep.subr.bf16.mxu0 0
    %5559 = vmatpush1.bf16.msra.mxu0 0
    %5560 = vmatprep.subr.bf16.mxu0 0
    %5561 = vmatpush1.bf16.msra.mxu0 0
    %5562 = vmatprep.subr.bf16.mxu0 0
    %5563 = vmatpush1.bf16.msra.mxu0 0
    %5564 = vmatprep.subr.bf16.mxu0 0
    %5565 = vmatpush1.bf16.msra.mxu0 0
    %5566 = vmatprep.subr.bf16.mxu0 0
    %5567 = vmatpush1.bf16.msra.mxu0 0
    %5568 = vmatprep.subr.bf16.mxu0 0
    %5569 = vmatpush1.bf16.msra.mxu0 0
    %5570 = vmatprep.subr.bf16.mxu0 0
    %5571 = vmatpush1.bf16.msra.mxu0 0
    %5572 = vmatprep.mubr.bf16.mxu0 0
    %5573 = vmatmul.mubr.bf16.gmra.mrb[0].mxu0 %v5532
    %v5574 = vpop.f32.mrb[0].mxu0
    %v5575 = vadd.f32 %v5504, %v5574
    %v5576 = vpop.f32.mrb[0].mxu0
    %v5577 = vpop.f32.mrb[0].mxu0
    %v5578 = vadd.f32 %v5504, %v5577
    %v5579 = vpop.f32.mrb[0].mxu0
    %5580 = vmatprep.mubr.bf16.mxu0 0
    %5581 = vmatmul.mubr.bf16.gmra.mrb[0].mxu0 %v5535
    %v5582 = vpop.f32.mrb[0].mxu0
    %v5583 = vadd.f32 %v5504, %v5582
    %v5584 = vpop.f32.mrb[0].mxu0
    %v5585 = vpop.f32.mrb[0].mxu0
    %v5586 = vadd.f32 %v5504, %v5585
    %v5587 = vpop.f32.mrb[0].mxu0
    %5588 = vmatprep.mubr.bf16.mxu0 0
    %5589 = vmatmul.mubr.bf16.gmra.mrb[0].mxu0 %v5538
    %v5590 = vpop.f32.mrb[0].mxu0
    %v5591 = vadd.f32 %v5504, %v5590
    %v5592 = vpop.f32.mrb[0].mxu0
    %v5593 = vpop.f32.mrb[0].mxu0
    %v5594 = vpop.f32.mrb[0].mxu0
    %5595 = vdwg.mxu0
    %v5596 = vld [vmem:[%s8] sm:$0xf]
    %v5597 = vld [vmem:[%s8 + $0x4] sm:$0xf]
    %v5598 = vld [vmem:[%s8 + $0x8] sm:$0xf]
    %v5599 = vld [vmem:[%s8 + $0xc] sm:$0xf]
    %v5604 = vunpack.c.l.b16 %v5596
    %v5605 = vunpack.c.l.b16 %v5597
    %v5606 = vunpack.c.l.b16 %v5598
    %v5607 = vunpack.c.l.b16 %v5599
    %v5608 = vpack.c.b16 %v5605, %v5604
    %v5609 = vpack.c.b16 %v5607, %v5606
    %v5613 = vsel %vm3727, 0, 0
    %5615 = vmatprep.subr.bf16.mxu0 0
    %5616 = vmatpush1.bf16.msra.mxu0 %v5608
    %5617 = vmatprep.subr.bf16.mxu0 0
    %5618 = vmatpush1.bf16.msra.mxu0 %v5609
    %5619 = vmatprep.subr.bf16.mxu0 0
    %5620 = vmatpush1.bf16.msra.mxu0 0
    %5621 = vmatprep.subr.bf16.mxu0 0
    %5622 = vmatpush1.bf16.msra.mxu0 0
    %5623 = vmatprep.subr.bf16.mxu0 0
    %5624 = vmatpush1.bf16.msra.mxu0 0
    %5625 = vmatprep.subr.bf16.mxu0 0
    %5626 = vmatpush1.bf16.msra.mxu0 0
    %5627 = vmatprep.subr.bf16.mxu0 0
    %5628 = vmatpush1.bf16.msra.mxu0 0
    %5629 = vmatprep.subr.bf16.mxu0 0
    %5630 = vmatpush1.bf16.msra.mxu0 0
    %5631 = vmatprep.subr.bf16.mxu0 0
    %5632 = vmatpush1.bf16.msra.mxu0 0
    %5633 = vmatprep.subr.bf16.mxu0 0
    %5634 = vmatpush1.bf16.msra.mxu0 0
    %5635 = vmatprep.subr.bf16.mxu0 0
    %5636 = vmatpush1.bf16.msra.mxu0 0
    %5637 = vmatprep.subr.bf16.mxu0 0
    %5638 = vmatpush1.bf16.msra.mxu0 0
    %5639 = vmatprep.subr.bf16.mxu0 0
    %5640 = vmatpush1.bf16.msra.mxu0 0
    %5641 = vmatprep.subr.bf16.mxu0 0
    %5642 = vmatpush1.bf16.msra.mxu0 0
    %5643 = vmatprep.subr.bf16.mxu0 0
    %5644 = vmatpush1.bf16.msra.mxu0 0
    %5645 = vmatprep.subr.bf16.mxu0 0
    %5646 = vmatpush1.bf16.msra.mxu0 0
    %5647 = vmatprep.mubr.bf16.mxu0 0
    %5648 = vmatmul.mubr.bf16.gmra.mrb[0].mxu0 %v5613
    %v5649 = vpop.f32.mrb[0].mxu0
    %v5650 = vadd.f32 0.0, %v5649
    %v5651 = vpop.f32.mrb[0].mxu0
    %v5652 = vpop.f32.mrb[0].mxu0
    %v5653 = vpop.f32.mrb[0].mxu0
    %5654 = vdwg.mxu0
    %v5655 = vadd.f32 %v5575, %v5650
    %v5656 = vxor.u32 %v5655, 2147483648
    %v5657 = vmul.f32 %v5656, 1.442695
    %v5658 = vpow.pop %v5657
    %v5659 = vadd.f32 %v5658, 1.0
    %v5660 = vrcp.pop %v5659
    %v5661 = vmul.f32 1.0, %v5660
    %v5662 = vtanh.pop %v5655
    %v5663 = vmul.f32 %v5661, 0.0
    %5665 = vrot.lane.b32.xlu0 %v5662, 32
    %v5666 = vpop.permute.xlu0 %5665
    %v5668 = vmul.f32 %v5661, %v5666
    %5670 = vrot.lane.b32.xlu0 %v5668, 32
    %v5671 = vpop.permute.xlu0 %5670
    %v5673 = vadd.f32 %v5663, %v5671
    %v5674 = vtanh.pop %v5673
    %5676 = vrot.lane.b32.xlu0 %v5674, 32
    %v5677 = vpop.permute.xlu0 %5676
    %v5679 = vmul.f32 %v5661, %v5677
    %5681 = vrot.lane.b32.xlu0 %v5679, 64
    %v5682 = vpop.permute.xlu0 %5681
    %5684 = vst.msk [vmem:[#allocation2] sm:$0xff] %vm3727, %v5682
    %v5685 = vpack.c.bf16 %v5679, %v5679
    %5687 = vrot.lane.b32.xlu0 %v5685, 64
    %v5688 = vpop.permute.xlu0 %5687
    %v5690 = vsel %vm3727, %v5688, 0
    %5692 = vmatprep.subr.bf16.mxu0 0
    %5693 = vmatpush1.bf16.msra.mxu0 %v5608
    %5694 = vmatprep.subr.bf16.mxu0 0
    %5695 = vmatpush1.bf16.msra.mxu0 %v5609
    %5696 = vmatprep.subr.bf16.mxu0 0
    %5697 = vmatpush1.bf16.msra.mxu0 0
    %5698 = vmatprep.subr.bf16.mxu0 0
    %5699 = vmatpush1.bf16.msra.mxu0 0
    %5700 = vmatprep.subr.bf16.mxu0 0
    %5701 = vmatpush1.bf16.msra.mxu0 0
    %5702 = vmatprep.subr.bf16.mxu0 0
    %5703 = vmatpush1.bf16.msra.mxu0 0
    %5704 = vmatprep.subr.bf16.mxu0 0
    %5705 = vmatpush1.bf16.msra.mxu0 0
    %5706 = vmatprep.subr.bf16.mxu0 0
    %5707 = vmatpush1.bf16.msra.mxu0 0
    %5708 = vmatprep.subr.bf16.mxu0 0
    %5709 = vmatpush1.bf16.msra.mxu0 0
    %5710 = vmatprep.subr.bf16.mxu0 0
    %5711 = vmatpush1.bf16.msra.mxu0 0
    %5712 = vmatprep.subr.bf16.mxu0 0
    %5713 = vmatpush1.bf16.msra.mxu0 0
    %5714 = vmatprep.subr.bf16.mxu0 0
    %5715 = vmatpush1.bf16.msra.mxu0 0
    %5716 = vmatprep.subr.bf16.mxu0 0
    %5717 = vmatpush1.bf16.msra.mxu0 0
    %5718 = vmatprep.subr.bf16.mxu0 0
    %5719 = vmatpush1.bf16.msra.mxu0 0
    %5720 = vmatprep.subr.bf16.mxu0 0
    %5721 = vmatpush1.bf16.msra.mxu0 0
    %5722 = vmatprep.subr.bf16.mxu0 0
    %5723 = vmatpush1.bf16.msra.mxu0 0
    %5724 = vmatprep.mubr.bf16.mxu0 0
    %5725 = vmatmul.mubr.bf16.gmra.mrb[0].mxu0 %v5690
    %v5726 = vpop.f32.mrb[0].mxu0
    %v5727 = vadd.f32 0.0, %v5726
    %v5728 = vpop.f32.mrb[0].mxu0
    %v5729 = vpop.f32.mrb[0].mxu0
    %v5730 = vpop.f32.mrb[0].mxu0
    %5731 = vdwg.mxu0
    %v5732 = vadd.f32 %v5578, %v5727
    %v5733 = vxor.u32 %v5732, 2147483648
    %v5734 = vmul.f32 %v5733, 1.442695
    %v5735 = vpow.pop %v5734
    %v5736 = vadd.f32 %v5735, 1.0
    %v5737 = vrcp.pop %v5736
    %v5738 = vmul.f32 1.0, %v5737
    %v5739 = vtanh.pop %v5732
    %v5740 = vmul.f32 %v5738, %v5673
    %5742 = vrot.lane.b32.xlu0 %v5739, 32
    %v5743 = vpop.permute.xlu0 %5742
    %v5745 = vmul.f32 %v5738, %v5743
    %5747 = vrot.lane.b32.xlu0 %v5745, 32
    %v5748 = vpop.permute.xlu0 %5747
    %v5750 = vadd.f32 %v5740, %v5748
    %v5751 = vtanh.pop %v5750
    %5753 = vrot.lane.b32.xlu0 %v5751, 32
    %v5754 = vpop.permute.xlu0 %5753
    %v5756 = vmul.f32 %v5738, %v5754
    %5758 = vrot.lane.b32.xlu0 %v5756, 64
    %v5759 = vpop.permute.xlu0 %5758
    %s5761 = scalar_lea.vmem [#allocation2], 8
    %5762 = vst.msk [vmem:[%s5761] sm:$0xff] %vm3727, %v5759
    %v5763 = vpack.c.bf16 %v5756, %v5756
    %5765 = vrot.lane.b32.xlu0 %v5763, 64
    %v5766 = vpop.permute.xlu0 %5765
    %v5768 = vsel %vm3727, %v5766, 0
    %5770 = vmatprep.subr.bf16.mxu0 0
    %5771 = vmatpush1.bf16.msra.mxu0 %v5608
    %5772 = vmatprep.subr.bf16.mxu0 0
    %5773 = vmatpush1.bf16.msra.mxu0 %v5609
    %5774 = vmatprep.subr.bf16.mxu0 0
    %5775 = vmatpush1.bf16.msra.mxu0 0
    %5776 = vmatprep.subr.bf16.mxu0 0
    %5777 = vmatpush1.bf16.msra.mxu0 0
    %5778 = vmatprep.subr.bf16.mxu0 0
    %5779 = vmatpush1.bf16.msra.mxu0 0
    %5780 = vmatprep.subr.bf16.mxu0 0
    %5781 = vmatpush1.bf16.msra.mxu0 0
    %5782 = vmatprep.subr.bf16.mxu0 0
    %5783 = vmatpush1.bf16.msra.mxu0 0
    %5784 = vmatprep.subr.bf16.mxu0 0
    %5785 = vmatpush1.bf16.msra.mxu0 0
    %5786 = vmatprep.subr.bf16.mxu0 0
    %5787 = vmatpush1.bf16.msra.mxu0 0
    %5788 = vmatprep.subr.bf16.mxu0 0
    %5789 = vmatpush1.bf16.msra.mxu0 0
    %5790 = vmatprep.subr.bf16.mxu0 0
    %5791 = vmatpush1.bf16.msra.mxu0 0
    %5792 = vmatprep.subr.bf16.mxu0 0
    %5793 = vmatpush1.bf16.msra.mxu0 0
    %5794 = vmatprep.subr.bf16.mxu0 0
    %5795 = vmatpush1.bf16.msra.mxu0 0
    %5796 = vmatprep.subr.bf16.mxu0 0
    %5797 = vmatpush1.bf16.msra.mxu0 0
    %5798 = vmatprep.subr.bf16.mxu0 0
    %5799 = vmatpush1.bf16.msra.mxu0 0
    %5800 = vmatprep.subr.bf16.mxu0 0
    %5801 = vmatpush1.bf16.msra.mxu0 0
    %5802 = vmatprep.mubr.bf16.mxu0 0
    %5803 = vmatmul.mubr.bf16.gmra.mrb[0].mxu0 %v5768
    %v5804 = vpop.f32.mrb[0].mxu0
    %v5805 = vadd.f32 0.0, %v5804
    %v5806 = vpop.f32.mrb[0].mxu0
    %v5807 = vpop.f32.mrb[0].mxu0
    %v5808 = vpop.f32.mrb[0].mxu0
    %5809 = vdwg.mxu0
    %v5810 = vadd.f32 %v5583, %v5805
    %v5811 = vxor.u32 %v5810, 2147483648
    %v5812 = vmul.f32 %v5811, 1.442695
    %v5813 = vpow.pop %v5812
    %v5814 = vadd.f32 %v5813, 1.0
    %v5815 = vrcp.pop %v5814
    %v5816 = vmul.f32 1.0, %v5815
    %v5817 = vtanh.pop %v5810
    %v5818 = vmul.f32 %v5816, %v5750
    %5820 = vrot.lane.b32.xlu0 %v5817, 32
    %v5821 = vpop.permute.xlu0 %5820
    %v5823 = vmul.f32 %v5816, %v5821
    %5825 = vrot.lane.b32.xlu0 %v5823, 32
    %v5826 = vpop.permute.xlu0 %5825
    %v5828 = vadd.f32 %v5818, %v5826
    %v5829 = vtanh.pop %v5828
    %5831 = vrot.lane.b32.xlu0 %v5829, 32
    %v5832 = vpop.permute.xlu0 %5831
    %v5834 = vmul.f32 %v5816, %v5832
    %5836 = vrot.lane.b32.xlu0 %v5834, 64
    %v5837 = vpop.permute.xlu0 %5836
    %s5839 = scalar_lea.vmem [#allocation2], 16
    %5840 = vst.msk [vmem:[%s5839] sm:$0xff] %vm3727, %v5837
    %v5841 = vpack.c.bf16 %v5834, %v5834
    %5843 = vrot.lane.b32.xlu0 %v5841, 64
    %v5844 = vpop.permute.xlu0 %5843
    %v5846 = vsel %vm3727, %v5844, 0
    %5848 = vmatprep.subr.bf16.mxu0 0
    %5849 = vmatpush1.bf16.msra.mxu0 %v5608
    %5850 = vmatprep.subr.bf16.mxu0 0
    %5851 = vmatpush1.bf16.msra.mxu0 %v5609
    %5852 = vmatprep.subr.bf16.mxu0 0
    %5853 = vmatpush1.bf16.msra.mxu0 0
    %5854 = vmatprep.subr.bf16.mxu0 0
    %5855 = vmatpush1.bf16.msra.mxu0 0
    %5856 = vmatprep.subr.bf16.mxu0 0
    %5857 = vmatpush1.bf16.msra.mxu0 0
    %5858 = vmatprep.subr.bf16.mxu0 0
    %5859 = vmatpush1.bf16.msra.mxu0 0
    %5860 = vmatprep.subr.bf16.mxu0 0
    %5861 = vmatpush1.bf16.msra.mxu0 0
    %5862 = vmatprep.subr.bf16.mxu0 0
    %5863 = vmatpush1.bf16.msra.mxu0 0
    %5864 = vmatprep.subr.bf16.mxu0 0
    %5865 = vmatpush1.bf16.msra.mxu0 0
    %5866 = vmatprep.subr.bf16.mxu0 0
    %5867 = vmatpush1.bf16.msra.mxu0 0
    %5868 = vmatprep.subr.bf16.mxu0 0
    %5869 = vmatpush1.bf16.msra.mxu0 0
    %5870 = vmatprep.subr.bf16.mxu0 0
    %5871 = vmatpush1.bf16.msra.mxu0 0
    %5872 = vmatprep.subr.bf16.mxu0 0
    %5873 = vmatpush1.bf16.msra.mxu0 0
    %5874 = vmatprep.subr.bf16.mxu0 0
    %5875 = vmatpush1.bf16.msra.mxu0 0
    %5876 = vmatprep.subr.bf16.mxu0 0
    %5877 = vmatpush1.bf16.msra.mxu0 0
    %5878 = vmatprep.subr.bf16.mxu0 0
    %5879 = vmatpush1.bf16.msra.mxu0 0
    %5880 = vmatprep.mubr.bf16.mxu0 0
    %5881 = vmatmul.mubr.bf16.gmra.mrb[0].mxu0 %v5846
    %v5882 = vpop.f32.mrb[0].mxu0
    %v5883 = vadd.f32 0.0, %v5882
    %v5884 = vpop.f32.mrb[0].mxu0
    %v5885 = vpop.f32.mrb[0].mxu0
    %v5886 = vpop.f32.mrb[0].mxu0
    %5887 = vdwg.mxu0
    %v5888 = vadd.f32 %v5586, %v5883
    %v5889 = vxor.u32 %v5888, 2147483648
    %v5890 = vmul.f32 %v5889, 1.442695
    %v5891 = vpow.pop %v5890
    %v5892 = vadd.f32 %v5891, 1.0
    %v5893 = vrcp.pop %v5892
    %v5894 = vmul.f32 1.0, %v5893
    %v5895 = vtanh.pop %v5888
    %v5896 = vmul.f32 %v5894, %v5828
    %5898 = vrot.lane.b32.xlu0 %v5895, 32
    %v5899 = vpop.permute.xlu0 %5898
    %v5901 = vmul.f32 %v5894, %v5899
    %5903 = vrot.lane.b32.xlu0 %v5901, 32
    %v5904 = vpop.permute.xlu0 %5903
    %v5906 = vadd.f32 %v5896, %v5904
    %v5907 = vtanh.pop %v5906
    %5909 = vrot.lane.b32.xlu0 %v5907, 32
    %v5910 = vpop.permute.xlu0 %5909
    %v5912 = vmul.f32 %v5894, %v5910
    %5914 = vrot.lane.b32.xlu0 %v5912, 64
    %v5915 = vpop.permute.xlu0 %5914
    %s5917 = scalar_lea.vmem [#allocation2], 24
    %5918 = vst.msk [vmem:[%s5917] sm:$0xff] %vm3727, %v5915
    %v5919 = vpack.c.bf16 %v5912, %v5912
    %5921 = vrot.lane.b32.xlu0 %v5919, 64
    %v5922 = vpop.permute.xlu0 %5921
    %v5924 = vsel %vm3727, %v5922, 0
    %5926 = vmatprep.subr.bf16.mxu0 0
    %5927 = vmatpush1.bf16.msra.mxu0 %v5608
    %5928 = vmatprep.subr.bf16.mxu0 0
    %5929 = vmatpush1.bf16.msra.mxu0 %v5609
    %5930 = vmatprep.subr.bf16.mxu0 0
    %5931 = vmatpush1.bf16.msra.mxu0 0
    %5932 = vmatprep.subr.bf16.mxu0 0
    %5933 = vmatpush1.bf16.msra.mxu0 0
    %5934 = vmatprep.subr.bf16.mxu0 0
    %5935 = vmatpush1.bf16.msra.mxu0 0
    %5936 = vmatprep.subr.bf16.mxu0 0
    %5937 = vmatpush1.bf16.msra.mxu0 0
    %5938 = vmatprep.subr.bf16.mxu0 0
    %5939 = vmatpush1.bf16.msra.mxu0 0
    %5940 = vmatprep.subr.bf16.mxu0 0
    %5941 = vmatpush1.bf16.msra.mxu0 0
    %5942 = vmatprep.subr.bf16.mxu0 0
    %5943 = vmatpush1.bf16.msra.mxu0 0
    %5944 = vmatprep.subr.bf16.mxu0 0
    %5945 = vmatpush1.bf16.msra.mxu0 0
    %5946 = vmatprep.subr.bf16.mxu0 0
    %5947 = vmatpush1.bf16.msra.mxu0 0
    %5948 = vmatprep.subr.bf16.mxu0 0
    %5949 = vmatpush1.bf16.msra.mxu0 0
    %5950 = vmatprep.subr.bf16.mxu0 0
    %5951 = vmatpush1.bf16.msra.mxu0 0
    %5952 = vmatprep.subr.bf16.mxu0 0
    %5953 = vmatpush1.bf16.msra.mxu0 0
    %5954 = vmatprep.subr.bf16.mxu0 0
    %5955 = vmatpush1.bf16.msra.mxu0 0
    %5956 = vmatprep.subr.bf16.mxu0 0
    %5957 = vmatpush1.bf16.msra.mxu0 0
    %5958 = vmatprep.mubr.bf16.mxu0 0
    %5959 = vmatmul.mubr.bf16.gmra.mrb[0].mxu0 %v5924
    %v5960 = vpop.f32.mrb[0].mxu0
    %v5961 = vadd.f32 0.0, %v5960
    %v5962 = vpop.f32.mrb[0].mxu0
    %v5963 = vpop.f32.mrb[0].mxu0
    %v5964 = vpop.f32.mrb[0].mxu0
    %5965 = vdwg.mxu0
    %v5966 = vadd.f32 %v5591, %v5961
    %v5967 = vxor.u32 %v5966, 2147483648
    %v5968 = vmul.f32 %v5967, 1.442695
    %v5969 = vpow.pop %v5968
    %v5970 = vadd.f32 %v5969, 1.0
    %v5971 = vrcp.pop %v5970
    %v5972 = vmul.f32 1.0, %v5971
    %v5973 = vtanh.pop %v5966
    %v5974 = vmul.f32 %v5972, %v5906
    %5976 = vrot.lane.b32.xlu0 %v5973, 32
    %v5977 = vpop.permute.xlu0 %5976
    %v5979 = vmul.f32 %v5972, %v5977
    %5981 = vrot.lane.b32.xlu0 %v5979, 32
    %v5982 = vpop.permute.xlu0 %5981
    %v5984 = vadd.f32 %v5974, %v5982
    %v5985 = vtanh.pop %v5984
    %5987 = vrot.lane.b32.xlu0 %v5985, 32
    %v5988 = vpop.permute.xlu0 %5987
    %v5990 = vmul.f32 %v5972, %v5988
    %5992 = vrot.lane.b32.xlu0 %v5990, 64
    %v5993 = vpop.permute.xlu0 %5992
    %s5995 = scalar_lea.vmem [#allocation2], 32
    %5996 = vst.msk [vmem:[%s5995] sm:$0xff] %vm3727, %v5993
    %v5997 = vld [vmem:[#allocation2] sm:$0xff]
    %v5998 = vld [vmem:[#allocation2 + $0x8] sm:$0xff]
    %v5999 = vld [vmem:[#allocation2 + $0x10] sm:$0xff]
    %v6000 = vld [vmem:[#allocation2 + $0x18] sm:$0xff]
    %v6001 = vld [vmem:[#allocation2 + $0x20] sm:$0xff]
    %v6002 = vpack.c.bf16 %v5997, %v5997
    %v6003 = vpack.c.bf16 %v5998, %v5998
    %v6004 = vpack.c.bf16 %v5999, %v5999
    %v6005 = vpack.c.bf16 %v6000, %v6000
    %v6006 = vpack.c.bf16 %v6001, %v6001
    %s6007 = scalar_lea.vmem %s7, 16
    %v6008 = vld [vmem:[%s6007] sm:$0xf]
    %v6009 = vld [vmem:[%s6007 + $0x4] sm:$0xf]
    %v6010 = vld [vmem:[%s6007 + $0x8] sm:$0xf]
    %v6011 = vld [vmem:[%s6007 + $0xc] sm:$0xf]
    %s6012 = scalar_lea.vmem %s9, 1
    %v6013 = vld [vmem:[%s6012] sm:$0x1]
    %v6015 = vlaneseq
    %v6016 = vshrl.u32 %v6015, 7
    %v6017 = vsub.s32 0, %v6016
    %v6018 = vrot.slane %v6013, %v6017
    %v6025 = vunpack.c.l.b16 %v6002
    %v6026 = vunpack.c.l.b16 %v6003
    %v6027 = vunpack.c.l.b16 %v6004
    %v6028 = vunpack.c.l.b16 %v6005
    %v6029 = vunpack.c.l.b16 %v6006
    %v6030 = vpack.c.b16 %v6026, %v6025
    %v6031 = vpack.c.b16 %v6028, %v6027
    %v6032 = vpack.c.b16 %v6029, %v6029
    %v6037 = vunpack.c.l.b16 %v6008
    %v6038 = vunpack.c.l.b16 %v6009
    %v6039 = vunpack.c.l.b16 %v6010
    %v6040 = vunpack.c.l.b16 %v6011
    %v6041 = vpack.c.b16 %v6038, %v6037
    %v6042 = vpack.c.b16 %v6040, %v6039
    %v6046 = vsel %vm3727, %v6030, 0
    %v6049 = vsel %vm3727, %v6031, 0
    %v6052 = vsel %vm3727, %v6032, 0
    %6054 = vmatprep.subr.bf16.mxu0 0
    %6055 = vmatpush1.bf16.msra.mxu0 %v6041
    %6056 = vmatprep.subr.bf16.mxu0 0
    %6057 = vmatpush1.bf16.msra.mxu0 %v6042
    %6058 = vmatprep.subr.bf16.mxu0 0
    %6059 = vmatpush1.bf16.msra.mxu0 0
    %6060 = vmatprep.subr.bf16.mxu0 0
    %6061 = vmatpush1.bf16.msra.mxu0 0
    %6062 = vmatprep.subr.bf16.mxu0 0
    %6063 = vmatpush1.bf16.msra.mxu0 0
    %6064 = vmatprep.subr.bf16.mxu0 0
    %6065 = vmatpush1.bf16.msra.mxu0 0
    %6066 = vmatprep.subr.bf16.mxu0 0
    %6067 = vmatpush1.bf16.msra.mxu0 0
    %6068 = vmatprep.subr.bf16.mxu0 0
    %6069 = vmatpush1.bf16.msra.mxu0 0
    %6070 = vmatprep.subr.bf16.mxu0 0
    %6071 = vmatpush1.bf16.msra.mxu0 0
    %6072 = vmatprep.subr.bf16.mxu0 0
    %6073 = vmatpush1.bf16.msra.mxu0 0
    %6074 = vmatprep.subr.bf16.mxu0 0
    %6075 = vmatpush1.bf16.msra.mxu0 0
    %6076 = vmatprep.subr.bf16.mxu0 0
    %6077 = vmatpush1.bf16.msra.mxu0 0
    %6078 = vmatprep.subr.bf16.mxu0 0
    %6079 = vmatpush1.bf16.msra.mxu0 0
    %6080 = vmatprep.subr.bf16.mxu0 0
    %6081 = vmatpush1.bf16.msra.mxu0 0
    %6082 = vmatprep.subr.bf16.mxu0 0
    %6083 = vmatpush1.bf16.msra.mxu0 0
    %6084 = vmatprep.subr.bf16.mxu0 0
    %6085 = vmatpush1.bf16.msra.mxu0 0
    %6086 = vmatprep.mubr.bf16.mxu0 0
    %6087 = vmatmul.mubr.bf16.gmra.mrb[0].mxu0 %v6046
    %v6088 = vpop.f32.mrb[0].mxu0
    %v6089 = vadd.f32 %v6018, %v6088
    %v6090 = vpop.f32.mrb[0].mxu0
    %v6091 = vpop.f32.mrb[0].mxu0
    %v6092 = vadd.f32 %v6018, %v6091
    %v6093 = vpop.f32.mrb[0].mxu0
    %6094 = vmatprep.mubr.bf16.mxu0 0
    %6095 = vmatmul.mubr.bf16.gmra.mrb[0].mxu0 %v6049
    %v6096 = vpop.f32.mrb[0].mxu0
    %v6097 = vadd.f32 %v6018, %v6096
    %v6098 = vpop.f32.mrb[0].mxu0
    %v6099 = vpop.f32.mrb[0].mxu0
    %v6100 = vadd.f32 %v6018, %v6099
    %v6101 = vpop.f32.mrb[0].mxu0
    %6102 = vmatprep.mubr.bf16.mxu0 0
    %6103 = vmatmul.mubr.bf16.gmra.mrb[0].mxu0 %v6052
    %v6104 = vpop.f32.mrb[0].mxu0
    %v6105 = vadd.f32 %v6018, %v6104
    %v6106 = vpop.f32.mrb[0].mxu0
    %v6107 = vpop.f32.mrb[0].mxu0
    %v6108 = vpop.f32.mrb[0].mxu0
    %6109 = vdwg.mxu0
    %s6110 = scalar_lea.vmem %s8, 16
    %v6111 = vld [vmem:[%s6110] sm:$0xf]
    %v6112 = vld [vmem:[%s6110 + $0x4] sm:$0xf]
    %v6113 = vld [vmem:[%s6110 + $0x8] sm:$0xf]
    %v6114 = vld [vmem:[%s6110 + $0xc] sm:$0xf]
    %v6119 = vunpack.c.l.b16 %v6111
    %v6120 = vunpack.c.l.b16 %v6112
    %v6121 = vunpack.c.l.b16 %v6113
    %v6122 = vunpack.c.l.b16 %v6114
    %v6123 = vpack.c.b16 %v6120, %v6119
    %v6124 = vpack.c.b16 %v6122, %v6121
    %6127 = vmatprep.subr.bf16.mxu0 0
    %6128 = vmatpush1.bf16.msra.mxu0 %v6123
    %6129 = vmatprep.subr.bf16.mxu0 0
    %6130 = vmatpush1.bf16.msra.mxu0 %v6124
    %6131 = vmatprep.subr.bf16.mxu0 0
    %6132 = vmatpush1.bf16.msra.mxu0 0
    %6133 = vmatprep.subr.bf16.mxu0 0
    %6134 = vmatpush1.bf16.msra.mxu0 0
    %6135 = vmatprep.subr.bf16.mxu0 0
    %6136 = vmatpush1.bf16.msra.mxu0 0
    %6137 = vmatprep.subr.bf16.mxu0 0
    %6138 = vmatpush1.bf16.msra.mxu0 0
    %6139 = vmatprep.subr.bf16.mxu0 0
    %6140 = vmatpush1.bf16.msra.mxu0 0
    %6141 = vmatprep.subr.bf16.mxu0 0
    %6142 = vmatpush1.bf16.msra.mxu0 0
    %6143 = vmatprep.subr.bf16.mxu0 0
    %6144 = vmatpush1.bf16.msra.mxu0 0
    %6145 = vmatprep.subr.bf16.mxu0 0
    %6146 = vmatpush1.bf16.msra.mxu0 0
    %6147 = vmatprep.subr.bf16.mxu0 0
    %6148 = vmatpush1.bf16.msra.mxu0 0
    %6149 = vmatprep.subr.bf16.mxu0 0
    %6150 = vmatpush1.bf16.msra.mxu0 0
    %6151 = vmatprep.subr.bf16.mxu0 0
    %6152 = vmatpush1.bf16.msra.mxu0 0
    %6153 = vmatprep.subr.bf16.mxu0 0
    %6154 = vmatpush1.bf16.msra.mxu0 0
    %6155 = vmatprep.subr.bf16.mxu0 0
    %6156 = vmatpush1.bf16.msra.mxu0 0
    %6157 = vmatprep.subr.bf16.mxu0 0
    %6158 = vmatpush1.bf16.msra.mxu0 0
    %6159 = vmatprep.mubr.bf16.mxu0 0
    %6160 = vmatmul.mubr.bf16.gmra.mrb[0].mxu0 %v5613
    %v6161 = vpop.f32.mrb[0].mxu0
    %v6162 = vadd.f32 0.0, %v6161
    %v6163 = vpop.f32.mrb[0].mxu0
    %v6164 = vpop.f32.mrb[0].mxu0
    %v6165 = vpop.f32.mrb[0].mxu0
    %6166 = vdwg.mxu0
    %v6167 = vadd.f32 %v6089, %v6162
    %v6168 = vxor.u32 %v6167, 2147483648
    %v6169 = vmul.f32 %v6168, 1.442695
    %v6170 = vpow.pop %v6169
    %v6171 = vadd.f32 %v6170, 1.0
    %v6172 = vrcp.pop %v6171
    %v6173 = vmul.f32 1.0, %v6172
    %v6174 = vtanh.pop %v6167
    %v6175 = vmul.f32 %v6173, 0.0
    %6177 = vrot.lane.b32.xlu0 %v6174, 32
    %v6178 = vpop.permute.xlu0 %6177
    %v6180 = vmul.f32 %v6173, %v6178
    %6182 = vrot.lane.b32.xlu0 %v6180, 32
    %v6183 = vpop.permute.xlu0 %6182
    %v6185 = vadd.f32 %v6175, %v6183
    %v6186 = vtanh.pop %v6185
    %6188 = vrot.lane.b32.xlu0 %v6186, 32
    %v6189 = vpop.permute.xlu0 %6188
    %v6191 = vmul.f32 %v6173, %v6189
    %v6192 = vpack.c.bf16 %v6191, %v6191
    %6194 = vrot.lane.b32.xlu0 %v6192, 64
    %v6195 = vpop.permute.xlu0 %6194
    %v6197 = vsel %vm3727, %v6195, 0
    %6199 = vmatprep.subr.bf16.mxu0 0
    %6200 = vmatpush1.bf16.msra.mxu0 %v6123
    %6201 = vmatprep.subr.bf16.mxu0 0
    %6202 = vmatpush1.bf16.msra.mxu0 %v6124
    %6203 = vmatprep.subr.bf16.mxu0 0
    %6204 = vmatpush1.bf16.msra.mxu0 0
    %6205 = vmatprep.subr.bf16.mxu0 0
    %6206 = vmatpush1.bf16.msra.mxu0 0
    %6207 = vmatprep.subr.bf16.mxu0 0
    %6208 = vmatpush1.bf16.msra.mxu0 0
    %6209 = vmatprep.subr.bf16.mxu0 0
    %6210 = vmatpush1.bf16.msra.mxu0 0
    %6211 = vmatprep.subr.bf16.mxu0 0
    %6212 = vmatpush1.bf16.msra.mxu0 0
    %6213 = vmatprep.subr.bf16.mxu0 0
    %6214 = vmatpush1.bf16.msra.mxu0 0
    %6215 = vmatprep.subr.bf16.mxu0 0
    %6216 = vmatpush1.bf16.msra.mxu0 0
    %6217 = vmatprep.subr.bf16.mxu0 0
    %6218 = vmatpush1.bf16.msra.mxu0 0
    %6219 = vmatprep.subr.bf16.mxu0 0
    %6220 = vmatpush1.bf16.msra.mxu0 0
    %6221 = vmatprep.subr.bf16.mxu0 0
    %6222 = vmatpush1.bf16.msra.mxu0 0
    %6223 = vmatprep.subr.bf16.mxu0 0
    %6224 = vmatpush1.bf16.msra.mxu0 0
    %6225 = vmatprep.subr.bf16.mxu0 0
    %6226 = vmatpush1.bf16.msra.mxu0 0
    %6227 = vmatprep.subr.bf16.mxu0 0
    %6228 = vmatpush1.bf16.msra.mxu0 0
    %6229 = vmatprep.subr.bf16.mxu0 0
    %6230 = vmatpush1.bf16.msra.mxu0 0
    %6231 = vmatprep.mubr.bf16.mxu0 0
    %6232 = vmatmul.mubr.bf16.gmra.mrb[0].mxu0 %v6197
    %v6233 = vpop.f32.mrb[0].mxu0
    %v6234 = vadd.f32 0.0, %v6233
    %v6235 = vpop.f32.mrb[0].mxu0
    %v6236 = vpop.f32.mrb[0].mxu0
    %v6237 = vpop.f32.mrb[0].mxu0
    %6238 = vdwg.mxu0
    %v6239 = vadd.f32 %v6092, %v6234
    %v6240 = vxor.u32 %v6239, 2147483648
    %v6241 = vmul.f32 %v6240, 1.442695
    %v6242 = vpow.pop %v6241
    %v6243 = vadd.f32 %v6242, 1.0
    %v6244 = vrcp.pop %v6243
    %v6245 = vmul.f32 1.0, %v6244
    %v6246 = vtanh.pop %v6239
    %v6247 = vmul.f32 %v6245, %v6185
    %6249 = vrot.lane.b32.xlu0 %v6246, 32
    %v6250 = vpop.permute.xlu0 %6249
    %v6252 = vmul.f32 %v6245, %v6250
    %6254 = vrot.lane.b32.xlu0 %v6252, 32
    %v6255 = vpop.permute.xlu0 %6254
    %v6257 = vadd.f32 %v6247, %v6255
    %v6258 = vtanh.pop %v6257
    %6260 = vrot.lane.b32.xlu0 %v6258, 32
    %v6261 = vpop.permute.xlu0 %6260
    %v6263 = vmul.f32 %v6245, %v6261
    %v6264 = vpack.c.bf16 %v6263, %v6263
    %6266 = vrot.lane.b32.xlu0 %v6264, 64
    %v6267 = vpop.permute.xlu0 %6266
    %v6269 = vsel %vm3727, %v6267, 0
    %6271 = vmatprep.subr.bf16.mxu0 0
    %6272 = vmatpush1.bf16.msra.mxu0 %v6123
    %6273 = vmatprep.subr.bf16.mxu0 0
    %6274 = vmatpush1.bf16.msra.mxu0 %v6124
    %6275 = vmatprep.subr.bf16.mxu0 0
    %6276 = vmatpush1.bf16.msra.mxu0 0
    %6277 = vmatprep.subr.bf16.mxu0 0
    %6278 = vmatpush1.bf16.msra.mxu0 0
    %6279 = vmatprep.subr.bf16.mxu0 0
    %6280 = vmatpush1.bf16.msra.mxu0 0
    %6281 = vmatprep.subr.bf16.mxu0 0
    %6282 = vmatpush1.bf16.msra.mxu0 0
    %6283 = vmatprep.subr.bf16.mxu0 0
    %6284 = vmatpush1.bf16.msra.mxu0 0
    %6285 = vmatprep.subr.bf16.mxu0 0
    %6286 = vmatpush1.bf16.msra.mxu0 0
    %6287 = vmatprep.subr.bf16.mxu0 0
    %6288 = vmatpush1.bf16.msra.mxu0 0
    %6289 = vmatprep.subr.bf16.mxu0 0
    %6290 = vmatpush1.bf16.msra.mxu0 0
    %6291 = vmatprep.subr.bf16.mxu0 0
    %6292 = vmatpush1.bf16.msra.mxu0 0
    %6293 = vmatprep.subr.bf16.mxu0 0
    %6294 = vmatpush1.bf16.msra.mxu0 0
    %6295 = vmatprep.subr.bf16.mxu0 0
    %6296 = vmatpush1.bf16.msra.mxu0 0
    %6297 = vmatprep.subr.bf16.mxu0 0
    %6298 = vmatpush1.bf16.msra.mxu0 0
    %6299 = vmatprep.subr.bf16.mxu0 0
    %6300 = vmatpush1.bf16.msra.mxu0 0
    %6301 = vmatprep.subr.bf16.mxu0 0
    %6302 = vmatpush1.bf16.msra.mxu0 0
    %6303 = vmatprep.mubr.bf16.mxu0 0
    %6304 = vmatmul.mubr.bf16.gmra.mrb[0].mxu0 %v6269
    %v6305 = vpop.f32.mrb[0].mxu0
    %v6306 = vadd.f32 0.0, %v6305
    %v6307 = vpop.f32.mrb[0].mxu0
    %v6308 = vpop.f32.mrb[0].mxu0
    %v6309 = vpop.f32.mrb[0].mxu0
    %6310 = vdwg.mxu0
    %v6311 = vadd.f32 %v6097, %v6306
    %v6312 = vxor.u32 %v6311, 2147483648
    %v6313 = vmul.f32 %v6312, 1.442695
    %v6314 = vpow.pop %v6313
    %v6315 = vadd.f32 %v6314, 1.0
    %v6316 = vrcp.pop %v6315
    %v6317 = vmul.f32 1.0, %v6316
    %v6318 = vtanh.pop %v6311
    %v6319 = vmul.f32 %v6317, %v6257
    %6321 = vrot.lane.b32.xlu0 %v6318, 32
    %v6322 = vpop.permute.xlu0 %6321
    %v6324 = vmul.f32 %v6317, %v6322
    %6326 = vrot.lane.b32.xlu0 %v6324, 32
    %v6327 = vpop.permute.xlu0 %6326
    %v6329 = vadd.f32 %v6319, %v6327
    %v6330 = vtanh.pop %v6329
    %6332 = vrot.lane.b32.xlu0 %v6330, 32
    %v6333 = vpop.permute.xlu0 %6332
    %v6335 = vmul.f32 %v6317, %v6333
    %v6336 = vpack.c.bf16 %v6335, %v6335
    %6338 = vrot.lane.b32.xlu0 %v6336, 64
    %v6339 = vpop.permute.xlu0 %6338
    %v6341 = vsel %vm3727, %v6339, 0
    %6343 = vmatprep.subr.bf16.mxu0 0
    %6344 = vmatpush1.bf16.msra.mxu0 %v6123
    %6345 = vmatprep.subr.bf16.mxu0 0
    %6346 = vmatpush1.bf16.msra.mxu0 %v6124
    %6347 = vmatprep.subr.bf16.mxu0 0
    %6348 = vmatpush1.bf16.msra.mxu0 0
    %6349 = vmatprep.subr.bf16.mxu0 0
    %6350 = vmatpush1.bf16.msra.mxu0 0
    %6351 = vmatprep.subr.bf16.mxu0 0
    %6352 = vmatpush1.bf16.msra.mxu0 0
    %6353 = vmatprep.subr.bf16.mxu0 0
    %6354 = vmatpush1.bf16.msra.mxu0 0
    %6355 = vmatprep.subr.bf16.mxu0 0
    %6356 = vmatpush1.bf16.msra.mxu0 0
    %6357 = vmatprep.subr.bf16.mxu0 0
    %6358 = vmatpush1.bf16.msra.mxu0 0
    %6359 = vmatprep.subr.bf16.mxu0 0
    %6360 = vmatpush1.bf16.msra.mxu0 0
    %6361 = vmatprep.subr.bf16.mxu0 0
    %6362 = vmatpush1.bf16.msra.mxu0 0
    %6363 = vmatprep.subr.bf16.mxu0 0
    %6364 = vmatpush1.bf16.msra.mxu0 0
    %6365 = vmatprep.subr.bf16.mxu0 0
    %6366 = vmatpush1.bf16.msra.mxu0 0
    %6367 = vmatprep.subr.bf16.mxu0 0
    %6368 = vmatpush1.bf16.msra.mxu0 0
    %6369 = vmatprep.subr.bf16.mxu0 0
    %6370 = vmatpush1.bf16.msra.mxu0 0
    %6371 = vmatprep.subr.bf16.mxu0 0
    %6372 = vmatpush1.bf16.msra.mxu0 0
    %6373 = vmatprep.subr.bf16.mxu0 0
    %6374 = vmatpush1.bf16.msra.mxu0 0
    %6375 = vmatprep.mubr.bf16.mxu0 0
    %6376 = vmatmul.mubr.bf16.gmra.mrb[0].mxu0 %v6341
    %v6377 = vpop.f32.mrb[0].mxu0
    %v6378 = vadd.f32 0.0, %v6377
    %v6379 = vpop.f32.mrb[0].mxu0
    %v6380 = vpop.f32.mrb[0].mxu0
    %v6381 = vpop.f32.mrb[0].mxu0
    %6382 = vdwg.mxu0
    %v6383 = vadd.f32 %v6100, %v6378
    %v6384 = vxor.u32 %v6383, 2147483648
    %v6385 = vmul.f32 %v6384, 1.442695
    %v6386 = vpow.pop %v6385
    %v6387 = vadd.f32 %v6386, 1.0
    %v6388 = vrcp.pop %v6387
    %v6389 = vmul.f32 1.0, %v6388
    %v6390 = vtanh.pop %v6383
    %v6391 = vmul.f32 %v6389, %v6329
    %6393 = vrot.lane.b32.xlu0 %v6390, 32
    %v6394 = vpop.permute.xlu0 %6393
    %v6396 = vmul.f32 %v6389, %v6394
    %6398 = vrot.lane.b32.xlu0 %v6396, 32
    %v6399 = vpop.permute.xlu0 %6398
    %v6401 = vadd.f32 %v6391, %v6399
    %v6402 = vtanh.pop %v6401
    %6404 = vrot.lane.b32.xlu0 %v6402, 32
    %v6405 = vpop.permute.xlu0 %6404
    %v6407 = vmul.f32 %v6389, %v6405
    %v6408 = vpack.c.bf16 %v6407, %v6407
    %6410 = vrot.lane.b32.xlu0 %v6408, 64
    %v6411 = vpop.permute.xlu0 %6410
    %v6413 = vsel %vm3727, %v6411, 0
    %6415 = vmatprep.subr.bf16.mxu0 0
    %6416 = vmatpush1.bf16.msra.mxu0 %v6123
    %6417 = vmatprep.subr.bf16.mxu0 0
    %6418 = vmatpush1.bf16.msra.mxu0 %v6124
    %6419 = vmatprep.subr.bf16.mxu0 0
    %6420 = vmatpush1.bf16.msra.mxu0 0
    %6421 = vmatprep.subr.bf16.mxu0 0
    %6422 = vmatpush1.bf16.msra.mxu0 0
    %6423 = vmatprep.subr.bf16.mxu0 0
    %6424 = vmatpush1.bf16.msra.mxu0 0
    %6425 = vmatprep.subr.bf16.mxu0 0
    %6426 = vmatpush1.bf16.msra.mxu0 0
    %6427 = vmatprep.subr.bf16.mxu0 0
    %6428 = vmatpush1.bf16.msra.mxu0 0
    %6429 = vmatprep.subr.bf16.mxu0 0
    %6430 = vmatpush1.bf16.msra.mxu0 0
    %6431 = vmatprep.subr.bf16.mxu0 0
    %6432 = vmatpush1.bf16.msra.mxu0 0
    %6433 = vmatprep.subr.bf16.mxu0 0
    %6434 = vmatpush1.bf16.msra.mxu0 0
    %6435 = vmatprep.subr.bf16.mxu0 0
    %6436 = vmatpush1.bf16.msra.mxu0 0
    %6437 = vmatprep.subr.bf16.mxu0 0
    %6438 = vmatpush1.bf16.msra.mxu0 0
    %6439 = vmatprep.subr.bf16.mxu0 0
    %6440 = vmatpush1.bf16.msra.mxu0 0
    %6441 = vmatprep.subr.bf16.mxu0 0
    %6442 = vmatpush1.bf16.msra.mxu0 0
    %6443 = vmatprep.subr.bf16.mxu0 0
    %6444 = vmatpush1.bf16.msra.mxu0 0
    %6445 = vmatprep.subr.bf16.mxu0 0
    %6446 = vmatpush1.bf16.msra.mxu0 0
    %6447 = vmatprep.mubr.bf16.mxu0 0
    %6448 = vmatmul.mubr.bf16.gmra.mrb[0].mxu0 %v6413
    %v6449 = vpop.f32.mrb[0].mxu0
    %v6450 = vadd.f32 0.0, %v6449
    %v6451 = vpop.f32.mrb[0].mxu0
    %v6452 = vpop.f32.mrb[0].mxu0
    %v6453 = vpop.f32.mrb[0].mxu0
    %6454 = vdwg.mxu0
    %v6455 = vadd.f32 %v6105, %v6450
    %v6456 = vxor.u32 %v6455, 2147483648
    %v6457 = vmul.f32 %v6456, 1.442695
    %v6458 = vpow.pop %v6457
    %v6459 = vadd.f32 %v6458, 1.0
    %v6460 = vrcp.pop %v6459
    %v6461 = vmul.f32 1.0, %v6460
    %v6462 = vtanh.pop %v6455
    %v6463 = vmul.f32 %v6461, %v6401
    %6465 = vrot.lane.b32.xlu0 %v6462, 32
    %v6466 = vpop.permute.xlu0 %6465
    %v6468 = vmul.f32 %v6461, %v6466
    %6470 = vrot.lane.b32.xlu0 %v6468, 32
    %v6471 = vpop.permute.xlu0 %6470
    %v6473 = vadd.f32 %v6463, %v6471
    %v6474 = vtanh.pop %v6473
    %6476 = vrot.lane.b32.xlu0 %v6474, 32
    %v6477 = vpop.permute.xlu0 %6476
    %v6479 = vmul.f32 %v6461, %v6477
    %v6480 = vld [vmem:[%s10] sm:$0xff]
    %v6481 = vld [vmem:[%s10 + $0x8] sm:$0xff]
    %v6482 = vld [vmem:[%s10 + $0x10] sm:$0xff]
    %v6483 = vld [vmem:[%s10 + $0x18] sm:$0xff]
    %v6484 = vld [vmem:[%s10 + $0x20] sm:$0xff]
    %v6485 = vld [vmem:[%s10 + $0x28] sm:$0xff]
    %v6486 = vld [vmem:[%s10 + $0x30] sm:$0xff]
    %v6487 = vld [vmem:[%s10 + $0x38] sm:$0xff]
    %6489 = vrot.lane.b32.xlu0 %v6473, 96
    %v6490 = vpop.permute.xlu0 %6489
    %v6491 = vsel %vm3727, %v6490, 0
    %6493 = vmatprep.subr.mxu0 0.0
    %6494 = vmatpush1.msra.mxu0 %v6484
    %6495 = vmatprep.subr.mxu0 0.0
    %6496 = vmatpush1.msra.mxu0 %v6485
    %6497 = vmatprep.subr.mxu0 0.0
    %6498 = vmatpush1.msra.mxu0 %v6486
    %6499 = vmatprep.subr.mxu0 0.0
    %6500 = vmatpush1.msra.mxu0 %v6487
    %6501 = vmatprep.subr.mxu0 0.0
    %6502 = vmatpush1.msra.mxu0 0.0
    %6503 = vmatprep.subr.mxu0 0.0
    %6504 = vmatpush1.msra.mxu0 0.0
    %6505 = vmatprep.subr.mxu0 0.0
    %6506 = vmatpush1.msra.mxu0 0.0
    %6507 = vmatprep.subr.mxu0 0.0
    %6508 = vmatpush1.msra.mxu0 0.0
    %6509 = vmatprep.subr.mxu0 0.0
    %6510 = vmatpush1.msra.mxu0 0.0
    %6511 = vmatprep.subr.mxu0 0.0
    %6512 = vmatpush1.msra.mxu0 0.0
    %6513 = vmatprep.subr.mxu0 0.0
    %6514 = vmatpush1.msra.mxu0 0.0
    %6515 = vmatprep.subr.mxu0 0.0
    %6516 = vmatpush1.msra.mxu0 0.0
    %6517 = vmatprep.subr.mxu0 0.0
    %6518 = vmatpush1.msra.mxu0 0.0
    %6519 = vmatprep.subr.mxu0 0.0
    %6520 = vmatpush1.msra.mxu0 0.0
    %6521 = vmatprep.subr.mxu0 0.0
    %6522 = vmatpush1.msra.mxu0 0.0
    %6523 = vmatprep.subr.mxu0 0.0
    %6524 = vmatpush1.msra.mxu0 0.0
    %6525 = vmatprep.subr.mxu0 0.0
    %6526 = vmatpush1.msra.mxu0 0.0
    %6527 = vmatprep.subr.mxu0 0.0
    %6528 = vmatpush1.msra.mxu0 0.0
    %6529 = vmatprep.subr.mxu0 0.0
    %6530 = vmatpush1.msra.mxu0 0.0
    %6531 = vmatprep.subr.mxu0 0.0
    %6532 = vmatpush1.msra.mxu0 0.0
    %6533 = vmatprep.subr.mxu0 0.0
    %6534 = vmatpush1.msra.mxu0 0.0
    %6535 = vmatprep.subr.mxu0 0.0
    %6536 = vmatpush1.msra.mxu0 0.0
    %6537 = vmatprep.subr.mxu0 0.0
    %6538 = vmatpush1.msra.mxu0 0.0
    %6539 = vmatprep.subr.mxu0 0.0
    %6540 = vmatpush1.msra.mxu0 0.0
    %6541 = vmatprep.subr.mxu0 0.0
    %6542 = vmatpush1.msra.mxu0 0.0
    %6543 = vmatprep.subr.mxu0 0.0
    %6544 = vmatpush1.msra.mxu0 0.0
    %6545 = vmatprep.subr.mxu0 0.0
    %6546 = vmatpush1.msra.mxu0 0.0
    %6547 = vmatprep.subr.mxu0 0.0
    %6548 = vmatpush1.msra.mxu0 0.0
    %6549 = vmatprep.subr.mxu0 0.0
    %6550 = vmatpush1.msra.mxu0 0.0
    %6551 = vmatprep.subr.mxu0 0.0
    %6552 = vmatpush1.msra.mxu0 0.0
    %6553 = vmatprep.subr.mxu0 0.0
    %6554 = vmatpush1.msra.mxu0 0.0
    %6555 = vmatprep.subr.mxu0 0.0
    %6556 = vmatpush1.msra.mxu0 0.0
    %6557 = vmatprep.mubr.f32.mxu0 0.0
    %6558 = vmatmul.mubr.f32.gmra.mrb[0].mxu0 %v6491
    %v6559 = vpop.f32.mrb[0].mxu0
    %v6560 = vadd.f32 0.0, %v6559
    %v6561 = vpop.f32.mrb[0].mxu0
    %6562 = vdwg.mxu0
    %6564 = vrot.lane.b32.xlu0 %v6479, 64
    %v6565 = vpop.permute.xlu0 %6564
    %v6566 = vsel %vm3727, %v6565, 0
    %6568 = vmatprep.subr.mxu0 0.0
    %6569 = vmatpush1.msra.mxu0 %v6480
    %6570 = vmatprep.subr.mxu0 0.0
    %6571 = vmatpush1.msra.mxu0 %v6481
    %6572 = vmatprep.subr.mxu0 0.0
    %6573 = vmatpush1.msra.mxu0 %v6482
    %6574 = vmatprep.subr.mxu0 0.0
    %6575 = vmatpush1.msra.mxu0 %v6483
    %6576 = vmatprep.subr.mxu0 0.0
    %6577 = vmatpush1.msra.mxu0 0.0
    %6578 = vmatprep.subr.mxu0 0.0
    %6579 = vmatpush1.msra.mxu0 0.0
    %6580 = vmatprep.subr.mxu0 0.0
    %6581 = vmatpush1.msra.mxu0 0.0
    %6582 = vmatprep.subr.mxu0 0.0
    %6583 = vmatpush1.msra.mxu0 0.0
    %6584 = vmatprep.subr.mxu0 0.0
    %6585 = vmatpush1.msra.mxu0 0.0
    %6586 = vmatprep.subr.mxu0 0.0
    %6587 = vmatpush1.msra.mxu0 0.0
    %6588 = vmatprep.subr.mxu0 0.0
    %6589 = vmatpush1.msra.mxu0 0.0
    %6590 = vmatprep.subr.mxu0 0.0
    %6591 = vmatpush1.msra.mxu0 0.0
    %6592 = vmatprep.subr.mxu0 0.0
    %6593 = vmatpush1.msra.mxu0 0.0
    %6594 = vmatprep.subr.mxu0 0.0
    %6595 = vmatpush1.msra.mxu0 0.0
    %6596 = vmatprep.subr.mxu0 0.0
    %6597 = vmatpush1.msra.mxu0 0.0
    %6598 = vmatprep.subr.mxu0 0.0
    %6599 = vmatpush1.msra.mxu0 0.0
    %6600 = vmatprep.subr.mxu0 0.0
    %6601 = vmatpush1.msra.mxu0 0.0
    %6602 = vmatprep.subr.mxu0 0.0
    %6603 = vmatpush1.msra.mxu0 0.0
    %6604 = vmatprep.subr.mxu0 0.0
    %6605 = vmatpush1.msra.mxu0 0.0
    %6606 = vmatprep.subr.mxu0 0.0
    %6607 = vmatpush1.msra.mxu0 0.0
    %6608 = vmatprep.subr.mxu0 0.0
    %6609 = vmatpush1.msra.mxu0 0.0
    %6610 = vmatprep.subr.mxu0 0.0
    %6611 = vmatpush1.msra.mxu0 0.0
    %6612 = vmatprep.subr.mxu0 0.0
    %6613 = vmatpush1.msra.mxu0 0.0
    %6614 = vmatprep.subr.mxu0 0.0
    %6615 = vmatpush1.msra.mxu0 0.0
    %6616 = vmatprep.subr.mxu0 0.0
    %6617 = vmatpush1.msra.mxu0 0.0
    %6618 = vmatprep.subr.mxu0 0.0
    %6619 = vmatpush1.msra.mxu0 0.0
    %6620 = vmatprep.subr.mxu0 0.0
    %6621 = vmatpush1.msra.mxu0 0.0
    %6622 = vmatprep.subr.mxu0 0.0
    %6623 = vmatpush1.msra.mxu0 0.0
    %6624 = vmatprep.subr.mxu0 0.0
    %6625 = vmatpush1.msra.mxu0 0.0
    %6626 = vmatprep.subr.mxu0 0.0
    %6627 = vmatpush1.msra.mxu0 0.0
    %6628 = vmatprep.subr.mxu0 0.0
    %6629 = vmatpush1.msra.mxu0 0.0
    %6630 = vmatprep.subr.mxu0 0.0
    %6631 = vmatpush1.msra.mxu0 0.0
    %6632 = vmatprep.mubr.f32.mxu0 0.0
    %6633 = vmatmul.mubr.f32.gmra.mrb[0].mxu0 %v6566
    %v6634 = vpop.f32.mrb[0].mxu0
    %v6635 = vadd.f32 %v6560, %v6634
    %v6636 = vpop.f32.mrb[0].mxu0
    %6637 = vdwg.mxu0
    %v6638 = vld [vmem:[%s11] sm:$0x1]
    %v6640 = vlaneseq
    %v6641 = vshrl.u32 %v6640, 7
    %v6642 = vsub.s32 0, %v6641
    %v6643 = vrot.slane %v6638, %v6642
    %v6645 = vadd.f32 %v6635, %v6643
    %6646 = vst [vmem:[#allocation3] sm:$0xff] %v6645
    // Predicated region
    $region50: #{tpu_custom_call.1} parent=1 // pred_check
      _
    $region51: #{tpu_custom_call.1} parent=1 // pred_check_branch
      %6648 = sbr.rel (0) target = $region53
    $region52: #{tpu_custom_call.1} parent=1 // pred_region
      %s6650 = ssub.s32 128, 128
      %6651 = vsyncadd [#allocation4], %s6650
      %s6653 = sshll.u32 [#allocation3], 4
      %s6654 = int_to_ptr.vmem [resolvable:$true] %s6653
      %6656 = dma.vmem_to_hbm [thread:$0]  %s6654, 128, %s12, [#allocation4]
    $region53: #{tpu_custom_call.1} parent=1 // pred_fallthru
      _
    // Predicated region
    $region54: #{tpu_custom_call.1} parent=1 // pred_check
      _
    $region55: #{tpu_custom_call.1} parent=1 // pred_check_branch
      %6658 = sbr.rel (0) target = $region57
    $region56: #{tpu_custom_call.1} parent=1 // pred_region
      %6659 = dma.done [#allocation4], 128
    $region57: #{tpu_custom_call.1} parent=1 // pred_fallthru
      _
    %6660 = vsyncpa [#allocation4], 1

</llo_original>
